<compile_context>
chip_gen: v7x
topology: tpu7x:2x2x1
jax: 0.10.0
libtpu: 0.0.40
codegen_flags: <defaults>
</compile_context>

<pallas_src>
import functools

import jax
import jax.numpy as jnp
from jax.experimental import pallas as pl
from jax.experimental.pallas import tpu as pltpu


_NEG_INF = -1000000000.0  # matches scores.masked_fill_(attn_mask, -1e9)


def _attn_kernel(q_ref, k_ref, v_ref, mask_ref, ctx_ref, prob_ref, *, scale):
    # Block shapes: q (G, TQ, D), k/v (G, Sk, D), mask (G, TQ, Sk) bool.
    q = q_ref[...]
    k = k_ref[...]
    v = v_ref[...]
    m = mask_ref[...]                     # True / nonzero == masked out
    if m.dtype != jnp.bool_:
        m = m != 0

    # Fold the softmax scale into Q (f32 math, then back to the MXU dtype):
    # a multiply over TQ*D elements instead of TQ*Sk score elements.
    qs = (q.astype(jnp.float32) * scale).astype(q.dtype)

    # scores = (Q*scale) @ K^T; contraction over D with K kept in its native
    # (Sk, D) layout (no XLU transpose), f32 accumulation on the MXU.
    scores = jnp.einsum("gqd,gkd->gqk", qs, k,
                        preferred_element_type=jnp.float32)
    scores = jnp.where(m, jnp.float32(_NEG_INF), scores)

    # Numerically stable softmax over the key axis (f32 math).
    mx = jnp.max(scores, axis=-1, keepdims=True)
    e = jnp.exp(scores - mx)
    denom = jnp.sum(e, axis=-1, keepdims=True)
    p = e * pl.reciprocal(denom, approx=False)   # exact: keeps 1e-5 tolerance

    # context = P @ V, with P cast to V's dtype for the MXU.
    ctx = jnp.einsum("gqk,gkd->gqd", p.astype(v.dtype), v,
                     preferred_element_type=jnp.float32)

    prob_ref[...] = p.astype(prob_ref.dtype)
    ctx_ref[...] = ctx.astype(ctx_ref.dtype)


def _tpu_tile_params():
    """Generation-aware (query-tile target, block budget, vmem limit ceiling)."""
    kind = ""
    try:
        dev = jax.devices()[0]
        if dev.platform == "tpu":
            kind = dev.device_kind.lower()
    except Exception:
        pass
    if "v7" in kind:
        # 64 MiB physical VMEM (32 MiB scoped default), 256-wide MXU.
        return 256, 24 << 20, 48 << 20
    if "v6" in kind:
        # 128 MiB physical VMEM, 256-wide MXU: go wide.
        return 256, 20 << 20, 96 << 20
    if "v5" in kind and ("lite" in kind or "v5e" in kind):
        # v5e: 128 MiB physical but 16 MiB scoped default, 128-wide MXU.
        return 128, 14 << 20, 64 << 20
    # Unknown / older generations: conservative.
    return 128, 12 << 20, 48 << 20


def _choose_q_tile(sq, target):
    """Returns (TQ, padded Sq).  Never falls back to an unbounded full-Sq tile."""
    if sq <= target:
        return sq, sq
    for cand in (512, 384, 256, 128, 64, 32, 16, 8):
        if cand <= target and sq % cand == 0:
            return cand, sq
    tq = min(target, 128)
    return tq, ((sq + tq - 1) // tq) * tq


def _block_footprint(g, tq, sk, d, in_isz, prob_isz):
    """Per-grid-step VMEM bytes: 2x-buffered IO blocks + f32 intermediates."""
    io = 2 * (g * tq * d * in_isz          # Q block
              + 2 * g * sk * d * in_isz    # K + V blocks
              + g * tq * sk * 1            # bool mask block
              + g * tq * d * in_isz        # ctx output block
              + g * tq * sk * prob_isz)    # prob output block
    tmp = 3 * g * tq * sk * 4              # f32 scores / exp / prob temporaries
    return io + tmp


def _pick_head_group(bh, tq, sk, d, in_isz, prob_isz, budget_bytes):
    """Largest divisor of BH whose per-step footprint fits the budget."""
    g = 1
    for cand in range(1, bh + 1):
        if bh % cand == 0 and _block_footprint(
                cand, tq, sk, d, in_isz, prob_isz) <= budget_bytes:
            g = cand
    return g


def scaled_attention(Q, K, V, attn_mask, *, d_head, prob_dtype=None):
    """Pallas implementation of ScaledAttentionLayer.forward (eval mode).

    Q: (B, H, Sq, D), K/V: (B, H, Sk, D), attn_mask: bool (B, H, Sq, Sk),
    True == masked out.  Returns (context (B, H, Sq, D), attn_prob (B, H, Sq, Sk)).
    prob_dtype: optionally store attn_prob in a narrower dtype (e.g. bf16) to
    halve the dominant HBM writeback stream; default matches Q.dtype.
    """
    B, H, Sq, D = Q.shape
    Sk = K.shape[2]
    BH = B * H
    scale = 1.0 / (d_head ** 0.5)
    in_dt = Q.dtype
    prob_dt = in_dt if prob_dtype is None else jnp.dtype(prob_dtype)

    block_q, budget_bytes, vmem_ceiling = _tpu_tile_params()

    TQ, Sq_pad = _choose_q_tile(Sq, block_q)
    Sk_pad = ((Sk + 127) // 128) * 128      # lane-dense prob stores

    q = Q.reshape(BH, Sq, D)
    k = K.reshape(BH, Sk, D)
    v = V.reshape(BH, Sk, D)
    m = attn_mask.reshape(BH, Sq, Sk)       # bool (1 B/elem), no dtype cast

    if Sq_pad != Sq:
        q = jnp.pad(q, ((0, 0), (0, Sq_pad - Sq), (0, 0)))
        m = jnp.pad(m, ((0, 0), (0, Sq_pad - Sq), (0, 0)),
                    constant_values=False)
    if Sk_pad != Sk:
        k = jnp.pad(k, ((0, 0), (0, Sk_pad - Sk), (0, 0)))
        v = jnp.pad(v, ((0, 0), (0, Sk_pad - Sk), (0, 0)))
        # Padded keys are masked out -> ~0 probability.
        m = jnp.pad(m, ((0, 0), (0, 0), (0, Sk_pad - Sk)),
                    constant_values=True)

    in_isz = jnp.dtype(in_dt).itemsize
    prob_isz = jnp.dtype(prob_dt).itemsize
    G = _pick_head_group(BH, TQ, Sk_pad, D, in_isz, prob_isz, budget_bytes)
    footprint = _block_footprint(G, TQ, Sk_pad, D, in_isz, prob_isz)
    vmem_limit = int(min(vmem_ceiling,
                         max(32 << 20, footprint * 3 // 2 + (2 << 20))))

    kernel = functools.partial(_attn_kernel, scale=scale)

    ctx, prob = pl.pallas_call(
        kernel,
        out_shape=(
            jax.ShapeDtypeStruct((BH, Sq_pad, D), in_dt),
            jax.ShapeDtypeStruct((BH, Sq_pad, Sk_pad), prob_dt),
        ),
        grid_spec=pltpu.PrefetchScalarGridSpec(
            num_scalar_prefetch=0,
            # q-tile axis innermost -> K/V block index constant across it,
            # so their DMAs are not re-issued per query tile.
            grid=(BH // G, Sq_pad // TQ),
            in_specs=[
                pl.BlockSpec((G, TQ, D), lambda g, t: (g, t, 0)),
                pl.BlockSpec((G, Sk_pad, D), lambda g, t: (g, 0, 0)),
                pl.BlockSpec((G, Sk_pad, D), lambda g, t: (g, 0, 0)),
                pl.BlockSpec((G, TQ, Sk_pad), lambda g, t: (g, t, 0)),
            ],
            out_specs=[
                pl.BlockSpec((G, TQ, D), lambda g, t: (g, t, 0)),
                pl.BlockSpec((G, TQ, Sk_pad), lambda g, t: (g, t, 0)),
            ],
        ),
        compiler_params=pltpu.CompilerParams(
            # Megacore (v7x) shards only the head-group axis; splitting the
            # inner query-tile axis would duplicate K/V DMAs on both cores.
            dimension_semantics=("parallel", "arbitrary"),
            vmem_limit_bytes=vmem_limit,
        ),
    )(q, k, v, m)

    if Sq_pad != Sq or Sk_pad != Sk:
        ctx = ctx[:, :Sq, :]
        prob = prob[:, :Sq, :Sk]
    return ctx.reshape(B, H, Sq, D), prob.reshape(B, H, Sq, Sk)


def _reference(Q, K, V, attn_mask, d_head):
    scale = 1.0 / (d_head ** 0.5)
    # Scale folded into Q -- mathematically identical to matmul(Q, K^T)*scale
    # and keeps the MXU operand-rounding path identical to the kernel's, so
    # the 1e-5 comparison is meaningful on all generations.
    scores = jnp.einsum("bhqd,bhkd->bhqk", Q * scale, K)
    scores = jnp.where(attn_mask, _NEG_INF, scores)
    prob = jax.nn.softmax(scores, axis=-1)
    ctx = jnp.einsum("bhqk,bhkd->bhqd", prob, V)
    return ctx, prob


if __name__ == "__main__":
    # Small but tiling-exercising shapes: Sq=Sk=256 (lane-dense prob blocks),
    # D=64, 8 (batch*head) attention maps grouped per grid step.
    B, H, Sq, Sk, D = 2, 4, 256, 256, 64
    config = {"dropout": 0.0, "d_head": D}

    key = jax.random.PRNGKey(0)
    kq, kk, kv, km = jax.random.split(key, 4)
    Q = jax.random.normal(kq, (B, H, Sq, D), dtype=jnp.float32)
    K = jax.random.normal(kk, (B, H, Sk, D), dtype=jnp.float32)
    V = jax.random.normal(kv, (B, H, Sk, D), dtype=jnp.float32)
    # boolean mask, True => masked out (same convention as masked_fill_)
    attn_mask = jax.random.bernoulli(km, p=0.25, shape=(B, H, Sq, Sk))
    # make sure no row is fully masked (avoids degenerate softmax comparisons)
    attn_mask = attn_mask.at[..., 0].set(False)

    ctx, prob = scaled_attention(Q, K, V, attn_mask, d_head=config["d_head"])
    jax.block_until_ready((ctx, prob))

    ref_ctx, ref_prob = _reference(Q, K, V, attn_mask, config["d_head"])
    assert jnp.allclose(ctx, ref_ctx, atol=1e-5, rtol=1e-5)
    assert jnp.allclose(prob, ref_prob, atol=1e-5, rtol=1e-5)

    print("KERNEL_OK")
</pallas_src>

<mosaic_0001>
module attributes {stable_mosaic.version = 11 : i64} {
  func.func @_attn_kernel(%arg0: i32, %arg1: i32, %arg2: memref<8x128x64xf32, #tpu.memory_space<vmem>>, %arg3: memref<8x256x64xf32, #tpu.memory_space<vmem>>, %arg4: memref<8x256x64xf32, #tpu.memory_space<vmem>>, %arg5: memref<8x128x256xi32, #tpu.memory_space<vmem>>, %arg6: memref<8x128x64xf32, #tpu.memory_space<vmem>>, %arg7: memref<8x128x256xf32, #tpu.memory_space<vmem>>) attributes {dimension_semantics = [#tpu.dimension_semantics<parallel>, #tpu.dimension_semantics<arbitrary>], iteration_bounds = array<i64: 1, 2>, scalar_prefetch = 0 : i64, scratch_operands = 0 : i64, tpu.core_type = #tpu.core_type<tc>, window_params = [{transform_indices = @transform_0, window_bounds = array<i64: 8, 128, 64>}, {transform_indices = @transform_1, window_bounds = array<i64: 8, 256, 64>}, {transform_indices = @transform_2, window_bounds = array<i64: 8, 256, 64>}, {transform_indices = @transform_3, window_bounds = array<i64: 8, 128, 256>}, {transform_indices = @transform_4, window_bounds = array<i64: 8, 128, 64>}, {transform_indices = @transform_5, window_bounds = array<i64: 8, 128, 256>}]} {
    %c0 = arith.constant 0 : index
    %c0_0 = arith.constant 0 : index
    %c0_1 = arith.constant 0 : index
    %0 = vector.load %arg2[%c0, %c0_0, %c0_1] : memref<8x128x64xf32, #tpu.memory_space<vmem>>, vector<8x128x64xf32>
    %c0_2 = arith.constant 0 : index
    %c0_3 = arith.constant 0 : index
    %c0_4 = arith.constant 0 : index
    %1 = vector.load %arg3[%c0_2, %c0_3, %c0_4] : memref<8x256x64xf32, #tpu.memory_space<vmem>>, vector<8x256x64xf32>
    %c0_5 = arith.constant 0 : index
    %c0_6 = arith.constant 0 : index
    %c0_7 = arith.constant 0 : index
    %2 = vector.load %arg4[%c0_5, %c0_6, %c0_7] : memref<8x256x64xf32, #tpu.memory_space<vmem>>, vector<8x256x64xf32>
    %c0_8 = arith.constant 0 : index
    %c0_9 = arith.constant 0 : index
    %c0_10 = arith.constant 0 : index
    %3 = vector.load %arg5[%c0_8, %c0_9, %c0_10] : memref<8x128x256xi32, #tpu.memory_space<vmem>>, vector<8x128x256xi32>
    %cst = arith.constant dense<0> : vector<8x128x256xi32>
    %4 = arith.cmpi ne, %3, %cst : vector<8x128x256xi32>
    %cst_11 = arith.constant 1.250000e-01 : f32
    %5 = vector.broadcast %cst_11 : f32 to vector<8x128x64xf32>
    %6 = arith.mulf %0, %5 : vector<8x128x64xf32>
    "tpu.trace_start"() <{level = 10 : i32, message = "gqd,gkd->gqk"}> : () -> ()
    %cst_12 = arith.constant dense<0.000000e+00> : vector<8x128x256xf32>
    %7 = tpu.matmul %6, %1, %cst_12 {dimension_numbers = #tpu.dot_dimension_numbers<[2], [2], [1], [1], [0, 0, 0, 1, 1, 1], [0], [0]>} : vector<8x128x64xf32>, vector<8x256x64xf32>, vector<8x128x256xf32> -> vector<8x128x256xf32>
    %cst_13 = arith.constant -1.000000e+09 : f32
    "tpu.trace_stop"() : () -> ()
    %8 = vector.broadcast %cst_13 : f32 to vector<8x128x256xf32>
    %9 = arith.select %4, %8, %7 : vector<8x128x256xi1>, vector<8x128x256xf32>
    %cst_14 = arith.constant dense<0xFF800000> : vector<8x128xf32>
    %10 = vector.multi_reduction <maximumf>, %9, %cst_14 [2] : vector<8x128x256xf32> to vector<8x128xf32>
    %11 = vector.shape_cast %10 : vector<8x128xf32> to vector<8x128x1xf32>
    %12 = vector.broadcast %11 : vector<8x128x1xf32> to vector<8x128x256xf32>
    %13 = arith.subf %9, %12 : vector<8x128x256xf32>
    %14 = math.exp %13 : vector<8x128x256xf32>
    %cst_15 = arith.constant dense<0.000000e+00> : vector<8x128xf32>
    %15 = vector.multi_reduction <add>, %14, %cst_15 [2] : vector<8x128x256xf32> to vector<8x128xf32>
    %16 = vector.shape_cast %15 : vector<8x128xf32> to vector<8x128x1xf32>
    %17 = tpu.reciprocal %16 : vector<8x128x1xf32> -> vector<8x128x1xf32>
    %18 = vector.broadcast %17 : vector<8x128x1xf32> to vector<8x128x256xf32>
    %19 = arith.mulf %14, %18 : vector<8x128x256xf32>
    "tpu.trace_start"() <{level = 10 : i32, message = "gqk,gkd->gqd"}> : () -> ()
    %cst_16 = arith.constant dense<0.000000e+00> : vector<8x128x64xf32>
    %20 = tpu.matmul %19, %2, %cst_16 {dimension_numbers = #tpu.dot_dimension_numbers<[2], [1], [1], [2], [0, 0, 0, 1, 1, 2], [0], [0]>} : vector<8x128x256xf32>, vector<8x256x64xf32>, vector<8x128x64xf32> -> vector<8x128x64xf32>
    "tpu.trace_stop"() : () -> ()
    %c0_17 = arith.constant 0 : index
    %c0_18 = arith.constant 0 : index
    %c0_19 = arith.constant 0 : index
    %21 = vector.load %arg7[%c0_17, %c0_18, %c0_19] : memref<8x128x256xf32, #tpu.memory_space<vmem>>, vector<8x128x256xf32>
    tpu.vector_store %arg7[%c0_17, %c0_18, %c0_19], %19 {strides = array<i32>} : memref<8x128x256xf32, #tpu.memory_space<vmem>>, vector<8x128x256xf32>,
    %c0_20 = arith.constant 0 : index
    %c0_21 = arith.constant 0 : index
    %c0_22 = arith.constant 0 : index
    %22 = vector.load %arg6[%c0_20, %c0_21, %c0_22] : memref<8x128x64xf32, #tpu.memory_space<vmem>>, vector<8x128x64xf32>
    tpu.vector_store %arg6[%c0_20, %c0_21, %c0_22], %20 {strides = array<i32>} : memref<8x128x64xf32, #tpu.memory_space<vmem>>, vector<8x128x64xf32>,
    return
  }
  func.func @transform_0(%arg0: i32, %arg1: i32) -> (i32, i32, i32) {
    %c0_i32 = arith.constant 0 : i32
    %c0_i32_0 = arith.constant 0 : i32
    return %arg0, %arg1, %c0_i32 : i32, i32, i32
  }
  func.func @transform_1(%arg0: i32, %arg1: i32) -> (i32, i32, i32) {
    %c0_i32 = arith.constant 0 : i32
    %c0_i32_0 = arith.constant 0 : i32
    %c0_i32_1 = arith.constant 0 : i32
    return %arg0, %c0_i32, %c0_i32_0 : i32, i32, i32
  }
  func.func @transform_2(%arg0: i32, %arg1: i32) -> (i32, i32, i32) {
    %c0_i32 = arith.constant 0 : i32
    %c0_i32_0 = arith.constant 0 : i32
    %c0_i32_1 = arith.constant 0 : i32
    return %arg0, %c0_i32, %c0_i32_0 : i32, i32, i32
  }
  func.func @transform_3(%arg0: i32, %arg1: i32) -> (i32, i32, i32) {
    %c0_i32 = arith.constant 0 : i32
    %c0_i32_0 = arith.constant 0 : i32
    return %arg0, %arg1, %c0_i32 : i32, i32, i32
  }
  func.func @transform_4(%arg0: i32, %arg1: i32) -> (i32, i32, i32) {
    %c0_i32 = arith.constant 0 : i32
    %c0_i32_0 = arith.constant 0 : i32
    return %arg0, %arg1, %c0_i32 : i32, i32, i32
  }
  func.func @transform_5(%arg0: i32, %arg1: i32) -> (i32, i32, i32) {
    %c0_i32 = arith.constant 0 : i32
    %c0_i32_0 = arith.constant 0 : i32
    return %arg0, %arg1, %c0_i32 : i32, i32, i32
  }
}

</mosaic_0001>

<llo_original>
// kernel: tpu_custom_call.1
$region0: #{tpu_custom_call.1}
  #allocation0 [shape = 'u32[]', space=smem, size = 0x4, offset = 0x4, fixed_abs, tag = 'smem constant byte address 0x4 - core index']
  #allocation1 [shape = 'u32[144,128]{1,0:T(1,128)}', space=vmem, size = 0x12000, scoped, tag = 'internal scratch']
  #allocation7 [shape = 's32[]', space=sflag, size = 0x4, offset = 0, fixed_abs, tag = 'sflag constant byte address 0x0 - dummy sync flag']
  %s0 = inlined_call_operand.vmem [shape: f32[8,256,64], index: 0, kind: input, shape index: {}]
  %s1 = inlined_call_operand.vmem [shape: f32[8,256,64], index: 1, kind: input, shape index: {}]
  %s2 = inlined_call_operand.vmem [shape: f32[8,256,64], index: 2, kind: input, shape index: {}]
  %s3 = inlined_call_operand.vmem [shape: s32[8,256,256], index: 3, kind: input, shape index: {}]
  %s4 = inlined_call_operand.vmem [shape: f32[8,256,64], index: 4, kind: output, shape index: {0}]
  %s5 = inlined_call_operand.hbm [shape: f32[8,256,256], index: 5, kind: output, shape index: {1}]
  %6 = xla_tuple %s4, %s5
  %s7 = sld [smem:[#allocation0]]
  $region152: #{tpu_custom_call.1} parent=0
    _
  %s9 = ssub.s32 1, %s7
  %s10 = scalar_select 0, %s9, %s7
  $region1: #{tpu_custom_call.1} parent=0
    #allocation2 [shape = 'u8[1048576]{0}', space=vmem, size = 0x100000, scoped, tag = 'input window, operand 0']
    #allocation3 [shape = 'u8[2097152]{0}', space=vmem, size = 0x200000, scoped, tag = 'input window, operand 3']
    #allocation4 [shape = 'u8[1048576]{0}', space=vmem, size = 0x100000, scoped, tag = 'output window, operand 0']
    #allocation5 [shape = 'u8[2097152]{0}', space=vmem, size = 0x200000, scoped, tag = 'output window, operand 1']
    #allocation6 [shape = 's32[2]{0}', space=sflag, size = 0x8, scoped, tag = 'scoped memory for tpu_custom_call.1']
    %11 = vsyncpa [#allocation6], 0
    %s12 = scalar_lea.sflag [#allocation6], 1
    %13 = vsyncpa %s12, 0
    loop: start=0, step=1, limit=4
    $region2: #{tpu_custom_call.1} parent=1 // loop_pre_header
      _
    $region3: #{tpu_custom_call.1} parent=1 // loop_header
      %s15 = sphi 0, %s19
      %p16 = scmp.ge.s32.totalorder %s15, 4
      %s22 = sphi 0, %s34
      %s23 = sphi 0, %s30
      %s24 = sphi 0, %s22
      %s25 = sphi 0, %s23
      %s26 = sphi 0, %s24
      %s27 = sphi 0, %s25
      %s39 = sphi 0, %s41
      %s42 = sphi 0, %s39
      %s43 = sphi 0, %s42
      %s59 = sphi 0, %s43
      %s65 = sphi 0, %s67
      %s68 = sphi 0, %s65
      %s69 = sphi 0, %s68
      %s85 = sphi 0, %s69
      %s91 = sphi 0, %s93
      %s94 = sphi 0, %s91
      %s95 = sphi 0, %s94
      %s111 = sphi 0, %s95
      %s119 = sphi 0, %s121
      %s122 = sphi 0, %s119
      %s123 = sphi 0, %s122
      %s139 = sphi 0, %s123
      %s147 = sphi 0, %s149
      %s150 = sphi 0, %s147
      %s151 = sphi 0, %s150
      %s167 = sphi 0, %s151
      %s175 = sphi 0, %s177
      %s178 = sphi 0, %s175
      %s179 = sphi 0, %s178
      %s195 = sphi 0, %s179
    $region4: #{tpu_custom_call.1} parent=1 // loop_header_branch
      %18 = sbr.rel (%p16) target = $region8
    $region5: #{tpu_custom_call.1} parent=1 // loop_body
      %s20 = ssub.s32 %s15, 1
      %s21 = ssub.s32 %s15, 2
      %s28 = sadd.s32 1, %s23
      %p29 = scmp.ge.s32.totalorder %s28, 2
      %s30 = scalar_select %p29, 0, %s28
      %s31 = sadd.s32 1, %s22
      %s32 = scalar_select %p29, %s31, %s22
      %p33 = scmp.ge.s32.totalorder %s32, 1
      %s34 = scalar_select %p33, 0, %s32
      %s35 = ssub.s32 %s22, %s34
      %s36 = ssub.s32 %s23, %s30
      %s37 = sor.u32 %s35, %s36
      %p38 = scmp.eq.s32.totalorder %s37, 0
      %s40 = sadd.s32 %s39, 1
      %s41 = scalar_select %p38, %s39, %s40
      %p44 = pneg %p38
      %p45 = scmp.eq.s32.totalorder %s15, 1
      %p46 = por %p44, %p45
      %p47 = scmp.ne.s32.totalorder %s39, %s42
      %p48 = scmp.eq.s32.totalorder %s15, 0
      %p49 = por %p47, %p48
      %p50 = scmp.ne.s32.totalorder %s39, %s42
      %p51 = scmp.eq.s32.totalorder %s20, 1
      %p52 = por %p50, %p51
      %p53 = scmp.ne.s32.totalorder %s42, %s43
      %p54 = scmp.eq.s32.totalorder %s20, 0
      %p55 = por %p53, %p54
      %p56 = scmp.ne.s32.totalorder %s42, %s43
      %p57 = scmp.eq.s32.totalorder %s21, 1
      %p58 = por %p56, %p57
      %p60 = scmp.ne.s32.totalorder %s43, %s59
      %p61 = scmp.eq.s32.totalorder %s21, 0
      %p62 = por %p60, %p61
      %s63 = ssub.s32 %s22, %s34
      %p64 = scmp.eq.s32.totalorder %s63, 0
      %s66 = sadd.s32 %s65, 1
      %s67 = scalar_select %p64, %s65, %s66
      %p70 = pneg %p64
      %p71 = scmp.eq.s32.totalorder %s15, 1
      %p72 = por %p70, %p71
      %p73 = scmp.ne.s32.totalorder %s65, %s68
      %p74 = scmp.eq.s32.totalorder %s15, 0
      %p75 = por %p73, %p74
      %p76 = scmp.ne.s32.totalorder %s65, %s68
      %p77 = scmp.eq.s32.totalorder %s20, 1
      %p78 = por %p76, %p77
      %p79 = scmp.ne.s32.totalorder %s68, %s69
      %p80 = scmp.eq.s32.totalorder %s20, 0
      %p81 = por %p79, %p80
      %p82 = scmp.ne.s32.totalorder %s68, %s69
      %p83 = scmp.eq.s32.totalorder %s21, 1
      %p84 = por %p82, %p83
      %p86 = scmp.ne.s32.totalorder %s69, %s85
      %p87 = scmp.eq.s32.totalorder %s21, 0
      %p88 = por %p86, %p87
      %s89 = ssub.s32 %s22, %s34
      %p90 = scmp.eq.s32.totalorder %s89, 0
      %s92 = sadd.s32 %s91, 1
      %s93 = scalar_select %p90, %s91, %s92
      %p96 = pneg %p90
      %p97 = scmp.eq.s32.totalorder %s15, 1
      %p98 = por %p96, %p97
      %p99 = scmp.ne.s32.totalorder %s91, %s94
      %p100 = scmp.eq.s32.totalorder %s15, 0
      %p101 = por %p99, %p100
      %p102 = scmp.ne.s32.totalorder %s91, %s94
      %p103 = scmp.eq.s32.totalorder %s20, 1
      %p104 = por %p102, %p103
      %p105 = scmp.ne.s32.totalorder %s94, %s95
      %p106 = scmp.eq.s32.totalorder %s20, 0
      %p107 = por %p105, %p106
      %p108 = scmp.ne.s32.totalorder %s94, %s95
      %p109 = scmp.eq.s32.totalorder %s21, 1
      %p110 = por %p108, %p109
      %p112 = scmp.ne.s32.totalorder %s95, %s111
      %p113 = scmp.eq.s32.totalorder %s21, 0
      %p114 = por %p112, %p113
      %s115 = ssub.s32 %s22, %s34
      %s116 = ssub.s32 %s23, %s30
      %s117 = sor.u32 %s115, %s116
      %p118 = scmp.eq.s32.totalorder %s117, 0
      %s120 = sadd.s32 %s119, 1
      %s121 = scalar_select %p118, %s119, %s120
      %p124 = pneg %p118
      %p125 = scmp.eq.s32.totalorder %s15, 1
      %p126 = por %p124, %p125
      %p127 = scmp.ne.s32.totalorder %s119, %s122
      %p128 = scmp.eq.s32.totalorder %s15, 0
      %p129 = por %p127, %p128
      %p130 = scmp.ne.s32.totalorder %s119, %s122
      %p131 = scmp.eq.s32.totalorder %s20, 1
      %p132 = por %p130, %p131
      %p133 = scmp.ne.s32.totalorder %s122, %s123
      %p134 = scmp.eq.s32.totalorder %s20, 0
      %p135 = por %p133, %p134
      %p136 = scmp.ne.s32.totalorder %s122, %s123
      %p137 = scmp.eq.s32.totalorder %s21, 1
      %p138 = por %p136, %p137
      %p140 = scmp.ne.s32.totalorder %s123, %s139
      %p141 = scmp.eq.s32.totalorder %s21, 0
      %p142 = por %p140, %p141
      %s143 = ssub.s32 %s22, %s34
      %s144 = ssub.s32 %s23, %s30
      %s145 = sor.u32 %s143, %s144
      %p146 = scmp.eq.s32.totalorder %s145, 0
      %s148 = sadd.s32 %s147, 1
      %s149 = scalar_select %p146, %s147, %s148
      %p152 = pneg %p146
      %p153 = scmp.eq.s32.totalorder %s15, 1
      %p154 = por %p152, %p153
      %p155 = scmp.ne.s32.totalorder %s147, %s150
      %p156 = scmp.eq.s32.totalorder %s15, 0
      %p157 = por %p155, %p156
      %p158 = scmp.ne.s32.totalorder %s147, %s150
      %p159 = scmp.eq.s32.totalorder %s20, 1
      %p160 = por %p158, %p159
      %p161 = scmp.ne.s32.totalorder %s150, %s151
      %p162 = scmp.eq.s32.totalorder %s20, 0
      %p163 = por %p161, %p162
      %p164 = scmp.ne.s32.totalorder %s150, %s151
      %p165 = scmp.eq.s32.totalorder %s21, 1
      %p166 = por %p164, %p165
      %p168 = scmp.ne.s32.totalorder %s151, %s167
      %p169 = scmp.eq.s32.totalorder %s21, 0
      %p170 = por %p168, %p169
      %s171 = ssub.s32 %s22, %s34
      %s172 = ssub.s32 %s23, %s30
      %s173 = sor.u32 %s171, %s172
      %p174 = scmp.eq.s32.totalorder %s173, 0
      %s176 = sadd.s32 %s175, 1
      %s177 = scalar_select %p174, %s175, %s176
      %p180 = pneg %p174
      %p181 = scmp.eq.s32.totalorder %s15, 1
      %p182 = por %p180, %p181
      %p183 = scmp.ne.s32.totalorder %s175, %s178
      %p184 = scmp.eq.s32.totalorder %s15, 0
      %p185 = por %p183, %p184
      %p186 = scmp.ne.s32.totalorder %s175, %s178
      %p187 = scmp.eq.s32.totalorder %s20, 1
      %p188 = por %p186, %p187
      %p189 = scmp.ne.s32.totalorder %s178, %s179
      %p190 = scmp.eq.s32.totalorder %s20, 0
      %p191 = por %p189, %p190
      %p192 = scmp.ne.s32.totalorder %s178, %s179
      %p193 = scmp.eq.s32.totalorder %s21, 1
      %p194 = por %p192, %p193
      %p196 = scmp.ne.s32.totalorder %s179, %s195
      %p197 = scmp.eq.s32.totalorder %s21, 0
      %p198 = por %p196, %p197
      %p199 = scmp.le.s32.totalorder 1, %s15
      %p200 = scmp.lt.s32.totalorder %s15, 3
      %p201 = pnand %p199, %p200
      %p202 = pneg %p201
      // Predicated region
      $region9: #{tpu_custom_call.1} parent=5 // pred_check
        _
      $region10: #{tpu_custom_call.1} parent=5 // pred_check_branch
        %204 = sbr.rel (%p201) target = $region12
      $region11: #{tpu_custom_call.1} parent=5 // pred_region
        %s205 = ssub.s32 %s15, 1
        // Predicated region
        $region13: #{tpu_custom_call.1} parent=11 // pred_check
          %p206 = pneg %p81
        $region14: #{tpu_custom_call.1} parent=11 // pred_check_branch
          %208 = sbr.rel (%p206) target = $region16
        $region15: #{tpu_custom_call.1} parent=11 // pred_region
          %s209 = smul.u32 8, %s24
          %p210 = scmp.lt.s32.totalorder %s209, 7
          %s211 = scalar_select %p210, %s209, 7
          %s212 = smul.addr %s211, 32
          %s213 = smul.addr %s212, 8
          %s214 = scalar_lea.vmem %s1, %s213
          %s215 = smul.u32 8, %s24
        $region16: #{tpu_custom_call.1} parent=11 // pred_fallthru
          _
        // Predicated region
        $region17: #{tpu_custom_call.1} parent=11 // pred_check
          %p216 = pneg %p107
        $region18: #{tpu_custom_call.1} parent=11 // pred_check_branch
          %218 = sbr.rel (%p216) target = $region20
        $region19: #{tpu_custom_call.1} parent=11 // pred_region
          %s219 = smul.u32 8, %s24
          %p220 = scmp.lt.s32.totalorder %s219, 7
          %s221 = scalar_select %p220, %s219, 7
          %s222 = smul.addr %s221, 32
          %s223 = smul.addr %s222, 8
          %s224 = scalar_lea.vmem %s2, %s223
          %s225 = smul.u32 8, %s24
        $region20: #{tpu_custom_call.1} parent=11 // pred_fallthru
          _
      $region12: #{tpu_custom_call.1} parent=5 // pred_fallthru
        _
      %p226 = scmp.lt.s32.totalorder %s15, 2
      // Predicated region
      $region21: #{tpu_custom_call.1} parent=5 // pred_check
        %p227 = pneg %p226
      $region22: #{tpu_custom_call.1} parent=5 // pred_check_branch
        %229 = sbr.rel (%p227) target = $region24
      $region23: #{tpu_custom_call.1} parent=5 // pred_region
        // Predicated region
        $region25: #{tpu_custom_call.1} parent=23 // pred_check
          %p230 = pneg %p49
        $region26: #{tpu_custom_call.1} parent=23 // pred_check_branch
          %232 = sbr.rel (%p230) target = $region28
        $region27: #{tpu_custom_call.1} parent=23 // pred_region
          %s233 = sand.u32 %s39, 1
          %s234 = sand.u32 %s39, 1
          %s235 = smul.addr %s234, 1024
          %s236 = scalar_lea.vmem [#allocation2], %s235
          %s237 = smul.u32 8, %s22
          %s238 = smul.u32 16, %s23
          %s239 = smul.addr %s237, 32
          %s240 = sadd.s32 %s238, %s239
          %s241 = smul.addr %s240, 8
          %s242 = scalar_lea.vmem %s0, %s241
          // Predicated region
          $region29: #{tpu_custom_call.1} parent=27 // pred_check
            _
          $region30: #{tpu_custom_call.1} parent=27 // pred_check_branch
            %244 = sbr.rel (0) target = $region32
          $region31: #{tpu_custom_call.1} parent=27 // pred_region
            // Predicated region
            $region33: #{tpu_custom_call.1} parent=31 // pred_check
              _
            $region34: #{tpu_custom_call.1} parent=31 // pred_check_branch
              %246 = sbr.rel (0) target = $region36
            $region35: #{tpu_custom_call.1} parent=31 // pred_region
              // Predicated region
              $region48: #{tpu_custom_call.1} parent=35 // pred_check
                _
              $region49: #{tpu_custom_call.1} parent=35 // pred_check_branch
                %515 = sbr.rel (0) target = $region51
              $region50: #{tpu_custom_call.1} parent=35 // pred_region
                loop: start=0, step=1, limit=1
                $region52: #{tpu_custom_call.1} parent=50 // loop_pre_header
                  _
                $region53: #{tpu_custom_call.1} parent=50 // loop_header
                  %s517 = sphi 0, %s521
                  %p518 = scmp.ge.s32.totalorder %s517, 1
                  %s522 = sphi %s242, %s242
                  %s523 = sphi %s236, %s236
                $region54: #{tpu_custom_call.1} parent=50 // loop_header_branch
                  %520 = sbr.rel (%p518) target = $region58
                $region55: #{tpu_custom_call.1} parent=50 // loop_body
                  %v524 = vld [vmem:[%s522] sm:$0xff]
                  %525 = vst [vmem:[%s523] sm:$0xff] %v524
                  %v526 = vld [vmem:[%s522 + $0x8] sm:$0xff]
                  %527 = vst [vmem:[%s523 + $0x8] sm:$0xff] %v526
                  %v528 = vld [vmem:[%s522 + $0x10] sm:$0xff]
                  %529 = vst [vmem:[%s523 + $0x10] sm:$0xff] %v528
                  %v530 = vld [vmem:[%s522 + $0x18] sm:$0xff]
                  %531 = vst [vmem:[%s523 + $0x18] sm:$0xff] %v530
                  %v532 = vld [vmem:[%s522 + $0x20] sm:$0xff]
                  %533 = vst [vmem:[%s523 + $0x20] sm:$0xff] %v532
                  %v534 = vld [vmem:[%s522 + $0x28] sm:$0xff]
                  %535 = vst [vmem:[%s523 + $0x28] sm:$0xff] %v534
                  %v536 = vld [vmem:[%s522 + $0x30] sm:$0xff]
                  %537 = vst [vmem:[%s523 + $0x30] sm:$0xff] %v536
                  %v538 = vld [vmem:[%s522 + $0x38] sm:$0xff]
                  %539 = vst [vmem:[%s523 + $0x38] sm:$0xff] %v538
                  %v540 = vld [vmem:[%s522 + $0x40] sm:$0xff]
                  %541 = vst [vmem:[%s523 + $0x40] sm:$0xff] %v540
                  %v542 = vld [vmem:[%s522 + $0x48] sm:$0xff]
                  %543 = vst [vmem:[%s523 + $0x48] sm:$0xff] %v542
                  %v544 = vld [vmem:[%s522 + $0x50] sm:$0xff]
                  %545 = vst [vmem:[%s523 + $0x50] sm:$0xff] %v544
                  %v546 = vld [vmem:[%s522 + $0x58] sm:$0xff]
                  %547 = vst [vmem:[%s523 + $0x58] sm:$0xff] %v546
                  %v548 = vld [vmem:[%s522 + $0x60] sm:$0xff]
                  %549 = vst [vmem:[%s523 + $0x60] sm:$0xff] %v548
                  %v550 = vld [vmem:[%s522 + $0x68] sm:$0xff]
                  %551 = vst [vmem:[%s523 + $0x68] sm:$0xff] %v550
                  %v552 = vld [vmem:[%s522 + $0x70] sm:$0xff]
                  %553 = vst [vmem:[%s523 + $0x70] sm:$0xff] %v552
                  %v554 = vld [vmem:[%s522 + $0x78] sm:$0xff]
                  %555 = vst [vmem:[%s523 + $0x78] sm:$0xff] %v554
                  %v556 = vld [vmem:[%s522 + $0x100] sm:$0xff]
                  %557 = vst [vmem:[%s523 + $0x80] sm:$0xff] %v556
                  %v558 = vld [vmem:[%s522 + $0x108] sm:$0xff]
                  %559 = vst [vmem:[%s523 + $0x88] sm:$0xff] %v558
                  %v560 = vld [vmem:[%s522 + $0x110] sm:$0xff]
                  %561 = vst [vmem:[%s523 + $0x90] sm:$0xff] %v560
                  %v562 = vld [vmem:[%s522 + $0x118] sm:$0xff]
                  %563 = vst [vmem:[%s523 + $0x98] sm:$0xff] %v562
                  %v564 = vld [vmem:[%s522 + $0x120] sm:$0xff]
                  %565 = vst [vmem:[%s523 + $0xa0] sm:$0xff] %v564
                  %v566 = vld [vmem:[%s522 + $0x128] sm:$0xff]
                  %567 = vst [vmem:[%s523 + $0xa8] sm:$0xff] %v566
                  %v568 = vld [vmem:[%s522 + $0x130] sm:$0xff]
                  %569 = vst [vmem:[%s523 + $0xb0] sm:$0xff] %v568
                  %v570 = vld [vmem:[%s522 + $0x138] sm:$0xff]
                  %571 = vst [vmem:[%s523 + $0xb8] sm:$0xff] %v570
                  %v572 = vld [vmem:[%s522 + $0x140] sm:$0xff]
                  %573 = vst [vmem:[%s523 + $0xc0] sm:$0xff] %v572
                  %v574 = vld [vmem:[%s522 + $0x148] sm:$0xff]
                  %575 = vst [vmem:[%s523 + $0xc8] sm:$0xff] %v574
                  %v576 = vld [vmem:[%s522 + $0x150] sm:$0xff]
                  %577 = vst [vmem:[%s523 + $0xd0] sm:$0xff] %v576
                  %v578 = vld [vmem:[%s522 + $0x158] sm:$0xff]
                  %579 = vst [vmem:[%s523 + $0xd8] sm:$0xff] %v578
                  %v580 = vld [vmem:[%s522 + $0x160] sm:$0xff]
                  %581 = vst [vmem:[%s523 + $0xe0] sm:$0xff] %v580
                  %v582 = vld [vmem:[%s522 + $0x168] sm:$0xff]
                  %583 = vst [vmem:[%s523 + $0xe8] sm:$0xff] %v582
                  %v584 = vld [vmem:[%s522 + $0x170] sm:$0xff]
                  %585 = vst [vmem:[%s523 + $0xf0] sm:$0xff] %v584
                  %v586 = vld [vmem:[%s522 + $0x178] sm:$0xff]
                  %587 = vst [vmem:[%s523 + $0xf8] sm:$0xff] %v586
                  %v588 = vld [vmem:[%s522 + $0x200] sm:$0xff]
                  %589 = vst [vmem:[%s523 + $0x100] sm:$0xff] %v588
                  %v590 = vld [vmem:[%s522 + $0x208] sm:$0xff]
                  %591 = vst [vmem:[%s523 + $0x108] sm:$0xff] %v590
                  %v592 = vld [vmem:[%s522 + $0x210] sm:$0xff]
                  %593 = vst [vmem:[%s523 + $0x110] sm:$0xff] %v592
                  %v594 = vld [vmem:[%s522 + $0x218] sm:$0xff]
                  %595 = vst [vmem:[%s523 + $0x118] sm:$0xff] %v594
                  %v596 = vld [vmem:[%s522 + $0x220] sm:$0xff]
                  %597 = vst [vmem:[%s523 + $0x120] sm:$0xff] %v596
                  %v598 = vld [vmem:[%s522 + $0x228] sm:$0xff]
                  %599 = vst [vmem:[%s523 + $0x128] sm:$0xff] %v598
                  %v600 = vld [vmem:[%s522 + $0x230] sm:$0xff]
                  %601 = vst [vmem:[%s523 + $0x130] sm:$0xff] %v600
                  %v602 = vld [vmem:[%s522 + $0x238] sm:$0xff]
                  %603 = vst [vmem:[%s523 + $0x138] sm:$0xff] %v602
                  %v604 = vld [vmem:[%s522 + $0x240] sm:$0xff]
                  %605 = vst [vmem:[%s523 + $0x140] sm:$0xff] %v604
                  %v606 = vld [vmem:[%s522 + $0x248] sm:$0xff]
                  %607 = vst [vmem:[%s523 + $0x148] sm:$0xff] %v606
                  %v608 = vld [vmem:[%s522 + $0x250] sm:$0xff]
                  %609 = vst [vmem:[%s523 + $0x150] sm:$0xff] %v608
                  %v610 = vld [vmem:[%s522 + $0x258] sm:$0xff]
                  %611 = vst [vmem:[%s523 + $0x158] sm:$0xff] %v610
                  %v612 = vld [vmem:[%s522 + $0x260] sm:$0xff]
                  %613 = vst [vmem:[%s523 + $0x160] sm:$0xff] %v612
                  %v614 = vld [vmem:[%s522 + $0x268] sm:$0xff]
                  %615 = vst [vmem:[%s523 + $0x168] sm:$0xff] %v614
                  %v616 = vld [vmem:[%s522 + $0x270] sm:$0xff]
                  %617 = vst [vmem:[%s523 + $0x170] sm:$0xff] %v616
                  %v618 = vld [vmem:[%s522 + $0x278] sm:$0xff]
                  %619 = vst [vmem:[%s523 + $0x178] sm:$0xff] %v618
                  %v620 = vld [vmem:[%s522 + $0x300] sm:$0xff]
                  %621 = vst [vmem:[%s523 + $0x180] sm:$0xff] %v620
                  %v622 = vld [vmem:[%s522 + $0x308] sm:$0xff]
                  %623 = vst [vmem:[%s523 + $0x188] sm:$0xff] %v622
                  %v624 = vld [vmem:[%s522 + $0x310] sm:$0xff]
                  %625 = vst [vmem:[%s523 + $0x190] sm:$0xff] %v624
                  %v626 = vld [vmem:[%s522 + $0x318] sm:$0xff]
                  %627 = vst [vmem:[%s523 + $0x198] sm:$0xff] %v626
                  %v628 = vld [vmem:[%s522 + $0x320] sm:$0xff]
                  %629 = vst [vmem:[%s523 + $0x1a0] sm:$0xff] %v628
                  %v630 = vld [vmem:[%s522 + $0x328] sm:$0xff]
                  %631 = vst [vmem:[%s523 + $0x1a8] sm:$0xff] %v630
                  %v632 = vld [vmem:[%s522 + $0x330] sm:$0xff]
                  %633 = vst [vmem:[%s523 + $0x1b0] sm:$0xff] %v632
                  %v634 = vld [vmem:[%s522 + $0x338] sm:$0xff]
                  %635 = vst [vmem:[%s523 + $0x1b8] sm:$0xff] %v634
                  %v636 = vld [vmem:[%s522 + $0x340] sm:$0xff]
                  %637 = vst [vmem:[%s523 + $0x1c0] sm:$0xff] %v636
                  %v638 = vld [vmem:[%s522 + $0x348] sm:$0xff]
                  %639 = vst [vmem:[%s523 + $0x1c8] sm:$0xff] %v638
                  %v640 = vld [vmem:[%s522 + $0x350] sm:$0xff]
                  %641 = vst [vmem:[%s523 + $0x1d0] sm:$0xff] %v640
                  %v642 = vld [vmem:[%s522 + $0x358] sm:$0xff]
                  %643 = vst [vmem:[%s523 + $0x1d8] sm:$0xff] %v642
                  %v644 = vld [vmem:[%s522 + $0x360] sm:$0xff]
                  %645 = vst [vmem:[%s523 + $0x1e0] sm:$0xff] %v644
                  %v646 = vld [vmem:[%s522 + $0x368] sm:$0xff]
                  %647 = vst [vmem:[%s523 + $0x1e8] sm:$0xff] %v646
                  %v648 = vld [vmem:[%s522 + $0x370] sm:$0xff]
                  %649 = vst [vmem:[%s523 + $0x1f0] sm:$0xff] %v648
                  %v650 = vld [vmem:[%s522 + $0x378] sm:$0xff]
                  %651 = vst [vmem:[%s523 + $0x1f8] sm:$0xff] %v650
                  %v652 = vld [vmem:[%s522 + $0x400] sm:$0xff]
                  %653 = vst [vmem:[%s523 + $0x200] sm:$0xff] %v652
                  %v654 = vld [vmem:[%s522 + $0x408] sm:$0xff]
                  %655 = vst [vmem:[%s523 + $0x208] sm:$0xff] %v654
                  %v656 = vld [vmem:[%s522 + $0x410] sm:$0xff]
                  %657 = vst [vmem:[%s523 + $0x210] sm:$0xff] %v656
                  %v658 = vld [vmem:[%s522 + $0x418] sm:$0xff]
                  %659 = vst [vmem:[%s523 + $0x218] sm:$0xff] %v658
                  %v660 = vld [vmem:[%s522 + $0x420] sm:$0xff]
                  %661 = vst [vmem:[%s523 + $0x220] sm:$0xff] %v660
                  %v662 = vld [vmem:[%s522 + $0x428] sm:$0xff]
                  %663 = vst [vmem:[%s523 + $0x228] sm:$0xff] %v662
                  %v664 = vld [vmem:[%s522 + $0x430] sm:$0xff]
                  %665 = vst [vmem:[%s523 + $0x230] sm:$0xff] %v664
                  %v666 = vld [vmem:[%s522 + $0x438] sm:$0xff]
                  %667 = vst [vmem:[%s523 + $0x238] sm:$0xff] %v666
                  %v668 = vld [vmem:[%s522 + $0x440] sm:$0xff]
                  %669 = vst [vmem:[%s523 + $0x240] sm:$0xff] %v668
                  %v670 = vld [vmem:[%s522 + $0x448] sm:$0xff]
                  %671 = vst [vmem:[%s523 + $0x248] sm:$0xff] %v670
                  %v672 = vld [vmem:[%s522 + $0x450] sm:$0xff]
                  %673 = vst [vmem:[%s523 + $0x250] sm:$0xff] %v672
                  %v674 = vld [vmem:[%s522 + $0x458] sm:$0xff]
                  %675 = vst [vmem:[%s523 + $0x258] sm:$0xff] %v674
                  %v676 = vld [vmem:[%s522 + $0x460] sm:$0xff]
                  %677 = vst [vmem:[%s523 + $0x260] sm:$0xff] %v676
                  %v678 = vld [vmem:[%s522 + $0x468] sm:$0xff]
                  %679 = vst [vmem:[%s523 + $0x268] sm:$0xff] %v678
                  %v680 = vld [vmem:[%s522 + $0x470] sm:$0xff]
                  %681 = vst [vmem:[%s523 + $0x270] sm:$0xff] %v680
                  %v682 = vld [vmem:[%s522 + $0x478] sm:$0xff]
                  %683 = vst [vmem:[%s523 + $0x278] sm:$0xff] %v682
                  %v684 = vld [vmem:[%s522 + $0x500] sm:$0xff]
                  %685 = vst [vmem:[%s523 + $0x280] sm:$0xff] %v684
                  %v686 = vld [vmem:[%s522 + $0x508] sm:$0xff]
                  %687 = vst [vmem:[%s523 + $0x288] sm:$0xff] %v686
                  %v688 = vld [vmem:[%s522 + $0x510] sm:$0xff]
                  %689 = vst [vmem:[%s523 + $0x290] sm:$0xff] %v688
                  %v690 = vld [vmem:[%s522 + $0x518] sm:$0xff]
                  %691 = vst [vmem:[%s523 + $0x298] sm:$0xff] %v690
                  %v692 = vld [vmem:[%s522 + $0x520] sm:$0xff]
                  %693 = vst [vmem:[%s523 + $0x2a0] sm:$0xff] %v692
                  %v694 = vld [vmem:[%s522 + $0x528] sm:$0xff]
                  %695 = vst [vmem:[%s523 + $0x2a8] sm:$0xff] %v694
                  %v696 = vld [vmem:[%s522 + $0x530] sm:$0xff]
                  %697 = vst [vmem:[%s523 + $0x2b0] sm:$0xff] %v696
                  %v698 = vld [vmem:[%s522 + $0x538] sm:$0xff]
                  %699 = vst [vmem:[%s523 + $0x2b8] sm:$0xff] %v698
                  %v700 = vld [vmem:[%s522 + $0x540] sm:$0xff]
                  %701 = vst [vmem:[%s523 + $0x2c0] sm:$0xff] %v700
                  %v702 = vld [vmem:[%s522 + $0x548] sm:$0xff]
                  %703 = vst [vmem:[%s523 + $0x2c8] sm:$0xff] %v702
                  %v704 = vld [vmem:[%s522 + $0x550] sm:$0xff]
                  %705 = vst [vmem:[%s523 + $0x2d0] sm:$0xff] %v704
                  %v706 = vld [vmem:[%s522 + $0x558] sm:$0xff]
                  %707 = vst [vmem:[%s523 + $0x2d8] sm:$0xff] %v706
                  %v708 = vld [vmem:[%s522 + $0x560] sm:$0xff]
                  %709 = vst [vmem:[%s523 + $0x2e0] sm:$0xff] %v708
                  %v710 = vld [vmem:[%s522 + $0x568] sm:$0xff]
                  %711 = vst [vmem:[%s523 + $0x2e8] sm:$0xff] %v710
                  %v712 = vld [vmem:[%s522 + $0x570] sm:$0xff]
                  %713 = vst [vmem:[%s523 + $0x2f0] sm:$0xff] %v712
                  %v714 = vld [vmem:[%s522 + $0x578] sm:$0xff]
                  %715 = vst [vmem:[%s523 + $0x2f8] sm:$0xff] %v714
                  %v716 = vld [vmem:[%s522 + $0x600] sm:$0xff]
                  %717 = vst [vmem:[%s523 + $0x300] sm:$0xff] %v716
                  %v718 = vld [vmem:[%s522 + $0x608] sm:$0xff]
                  %719 = vst [vmem:[%s523 + $0x308] sm:$0xff] %v718
                  %v720 = vld [vmem:[%s522 + $0x610] sm:$0xff]
                  %721 = vst [vmem:[%s523 + $0x310] sm:$0xff] %v720
                  %v722 = vld [vmem:[%s522 + $0x618] sm:$0xff]
                  %723 = vst [vmem:[%s523 + $0x318] sm:$0xff] %v722
                  %v724 = vld [vmem:[%s522 + $0x620] sm:$0xff]
                  %725 = vst [vmem:[%s523 + $0x320] sm:$0xff] %v724
                  %v726 = vld [vmem:[%s522 + $0x628] sm:$0xff]
                  %727 = vst [vmem:[%s523 + $0x328] sm:$0xff] %v726
                  %v728 = vld [vmem:[%s522 + $0x630] sm:$0xff]
                  %729 = vst [vmem:[%s523 + $0x330] sm:$0xff] %v728
                  %v730 = vld [vmem:[%s522 + $0x638] sm:$0xff]
                  %731 = vst [vmem:[%s523 + $0x338] sm:$0xff] %v730
                  %v732 = vld [vmem:[%s522 + $0x640] sm:$0xff]
                  %733 = vst [vmem:[%s523 + $0x340] sm:$0xff] %v732
                  %v734 = vld [vmem:[%s522 + $0x648] sm:$0xff]
                  %735 = vst [vmem:[%s523 + $0x348] sm:$0xff] %v734
                  %v736 = vld [vmem:[%s522 + $0x650] sm:$0xff]
                  %737 = vst [vmem:[%s523 + $0x350] sm:$0xff] %v736
                  %v738 = vld [vmem:[%s522 + $0x658] sm:$0xff]
                  %739 = vst [vmem:[%s523 + $0x358] sm:$0xff] %v738
                  %v740 = vld [vmem:[%s522 + $0x660] sm:$0xff]
                  %741 = vst [vmem:[%s523 + $0x360] sm:$0xff] %v740
                  %v742 = vld [vmem:[%s522 + $0x668] sm:$0xff]
                  %743 = vst [vmem:[%s523 + $0x368] sm:$0xff] %v742
                  %v744 = vld [vmem:[%s522 + $0x670] sm:$0xff]
                  %745 = vst [vmem:[%s523 + $0x370] sm:$0xff] %v744
                  %v746 = vld [vmem:[%s522 + $0x678] sm:$0xff]
                  %747 = vst [vmem:[%s523 + $0x378] sm:$0xff] %v746
                  %v748 = vld [vmem:[%s522 + $0x700] sm:$0xff]
                  %749 = vst [vmem:[%s523 + $0x380] sm:$0xff] %v748
                  %v750 = vld [vmem:[%s522 + $0x708] sm:$0xff]
                  %751 = vst [vmem:[%s523 + $0x388] sm:$0xff] %v750
                  %v752 = vld [vmem:[%s522 + $0x710] sm:$0xff]
                  %753 = vst [vmem:[%s523 + $0x390] sm:$0xff] %v752
                  %v754 = vld [vmem:[%s522 + $0x718] sm:$0xff]
                  %755 = vst [vmem:[%s523 + $0x398] sm:$0xff] %v754
                  %v756 = vld [vmem:[%s522 + $0x720] sm:$0xff]
                  %757 = vst [vmem:[%s523 + $0x3a0] sm:$0xff] %v756
                  %v758 = vld [vmem:[%s522 + $0x728] sm:$0xff]
                  %759 = vst [vmem:[%s523 + $0x3a8] sm:$0xff] %v758
                  %v760 = vld [vmem:[%s522 + $0x730] sm:$0xff]
                  %761 = vst [vmem:[%s523 + $0x3b0] sm:$0xff] %v760
                  %v762 = vld [vmem:[%s522 + $0x738] sm:$0xff]
                  %763 = vst [vmem:[%s523 + $0x3b8] sm:$0xff] %v762
                  %v764 = vld [vmem:[%s522 + $0x740] sm:$0xff]
                  %765 = vst [vmem:[%s523 + $0x3c0] sm:$0xff] %v764
                  %v766 = vld [vmem:[%s522 + $0x748] sm:$0xff]
                  %767 = vst [vmem:[%s523 + $0x3c8] sm:$0xff] %v766
                  %v768 = vld [vmem:[%s522 + $0x750] sm:$0xff]
                  %769 = vst [vmem:[%s523 + $0x3d0] sm:$0xff] %v768
                  %v770 = vld [vmem:[%s522 + $0x758] sm:$0xff]
                  %771 = vst [vmem:[%s523 + $0x3d8] sm:$0xff] %v770
                  %v772 = vld [vmem:[%s522 + $0x760] sm:$0xff]
                  %773 = vst [vmem:[%s523 + $0x3e0] sm:$0xff] %v772
                  %v774 = vld [vmem:[%s522 + $0x768] sm:$0xff]
                  %775 = vst [vmem:[%s523 + $0x3e8] sm:$0xff] %v774
                  %v776 = vld [vmem:[%s522 + $0x770] sm:$0xff]
                  %777 = vst [vmem:[%s523 + $0x3f0] sm:$0xff] %v776
                  %v778 = vld [vmem:[%s522 + $0x778] sm:$0xff]
                  %779 = vst [vmem:[%s523 + $0x3f8] sm:$0xff] %v778
                $region56: #{tpu_custom_call.1} parent=50 // loop_footer
                  %s521 = sadd.s32 1, %s517
                $region57: #{tpu_custom_call.1} parent=50 // loop_footer_branch
                  %516 = sbr.rel target = $region53
                $region58: #{tpu_custom_call.1} parent=50 // loop_exit
                  _
              $region51: #{tpu_custom_call.1} parent=35 // pred_fallthru
                _
              // Predicated region
              $region59: #{tpu_custom_call.1} parent=35 // pred_check
                _
              $region60: #{tpu_custom_call.1} parent=35 // pred_check_branch
                %781 = sbr.rel target = $region62
              $region61: #{tpu_custom_call.1} parent=35 // pred_region
                _
              $region62: #{tpu_custom_call.1} parent=35 // pred_fallthru
                _
            $region36: #{tpu_custom_call.1} parent=31 // pred_fallthru
              _
            // Predicated region
            $region37: #{tpu_custom_call.1} parent=31 // pred_check
              _
            $region38: #{tpu_custom_call.1} parent=31 // pred_check_branch
              %248 = sbr.rel target = $region40
            $region39: #{tpu_custom_call.1} parent=31 // pred_region
              loop: start=0, step=1, limit=1
              $region41: #{tpu_custom_call.1} parent=39 // loop_pre_header
                _
              $region42: #{tpu_custom_call.1} parent=39 // loop_header
                %s251 = sphi 0, %s255
                %p252 = scmp.ge.s32.totalorder %s251, 1
                %s256 = sphi %s242, %s242
                %s257 = sphi %s236, %s236
              $region43: #{tpu_custom_call.1} parent=39 // loop_header_branch
                %254 = sbr.rel (%p252) target = $region47
              $region44: #{tpu_custom_call.1} parent=39 // loop_body
                %v258 = vld [vmem:[%s256] sm:$0xff]
                %259 = vst [vmem:[%s257] sm:$0xff] %v258
                %v260 = vld [vmem:[%s256 + $0x8] sm:$0xff]
                %261 = vst [vmem:[%s257 + $0x8] sm:$0xff] %v260
                %v262 = vld [vmem:[%s256 + $0x10] sm:$0xff]
                %263 = vst [vmem:[%s257 + $0x10] sm:$0xff] %v262
                %v264 = vld [vmem:[%s256 + $0x18] sm:$0xff]
                %265 = vst [vmem:[%s257 + $0x18] sm:$0xff] %v264
                %v266 = vld [vmem:[%s256 + $0x20] sm:$0xff]
                %267 = vst [vmem:[%s257 + $0x20] sm:$0xff] %v266
                %v268 = vld [vmem:[%s256 + $0x28] sm:$0xff]
                %269 = vst [vmem:[%s257 + $0x28] sm:$0xff] %v268
                %v270 = vld [vmem:[%s256 + $0x30] sm:$0xff]
                %271 = vst [vmem:[%s257 + $0x30] sm:$0xff] %v270
                %v272 = vld [vmem:[%s256 + $0x38] sm:$0xff]
                %273 = vst [vmem:[%s257 + $0x38] sm:$0xff] %v272
                %v274 = vld [vmem:[%s256 + $0x40] sm:$0xff]
                %275 = vst [vmem:[%s257 + $0x40] sm:$0xff] %v274
                %v276 = vld [vmem:[%s256 + $0x48] sm:$0xff]
                %277 = vst [vmem:[%s257 + $0x48] sm:$0xff] %v276
                %v278 = vld [vmem:[%s256 + $0x50] sm:$0xff]
                %279 = vst [vmem:[%s257 + $0x50] sm:$0xff] %v278
                %v280 = vld [vmem:[%s256 + $0x58] sm:$0xff]
                %281 = vst [vmem:[%s257 + $0x58] sm:$0xff] %v280
                %v282 = vld [vmem:[%s256 + $0x60] sm:$0xff]
                %283 = vst [vmem:[%s257 + $0x60] sm:$0xff] %v282
                %v284 = vld [vmem:[%s256 + $0x68] sm:$0xff]
                %285 = vst [vmem:[%s257 + $0x68] sm:$0xff] %v284
                %v286 = vld [vmem:[%s256 + $0x70] sm:$0xff]
                %287 = vst [vmem:[%s257 + $0x70] sm:$0xff] %v286
                %v288 = vld [vmem:[%s256 + $0x78] sm:$0xff]
                %289 = vst [vmem:[%s257 + $0x78] sm:$0xff] %v288
                %v290 = vld [vmem:[%s256 + $0x100] sm:$0xff]
                %291 = vst [vmem:[%s257 + $0x80] sm:$0xff] %v290
                %v292 = vld [vmem:[%s256 + $0x108] sm:$0xff]
                %293 = vst [vmem:[%s257 + $0x88] sm:$0xff] %v292
                %v294 = vld [vmem:[%s256 + $0x110] sm:$0xff]
                %295 = vst [vmem:[%s257 + $0x90] sm:$0xff] %v294
                %v296 = vld [vmem:[%s256 + $0x118] sm:$0xff]
                %297 = vst [vmem:[%s257 + $0x98] sm:$0xff] %v296
                %v298 = vld [vmem:[%s256 + $0x120] sm:$0xff]
                %299 = vst [vmem:[%s257 + $0xa0] sm:$0xff] %v298
                %v300 = vld [vmem:[%s256 + $0x128] sm:$0xff]
                %301 = vst [vmem:[%s257 + $0xa8] sm:$0xff] %v300
                %v302 = vld [vmem:[%s256 + $0x130] sm:$0xff]
                %303 = vst [vmem:[%s257 + $0xb0] sm:$0xff] %v302
                %v304 = vld [vmem:[%s256 + $0x138] sm:$0xff]
                %305 = vst [vmem:[%s257 + $0xb8] sm:$0xff] %v304
                %v306 = vld [vmem:[%s256 + $0x140] sm:$0xff]
                %307 = vst [vmem:[%s257 + $0xc0] sm:$0xff] %v306
                %v308 = vld [vmem:[%s256 + $0x148] sm:$0xff]
                %309 = vst [vmem:[%s257 + $0xc8] sm:$0xff] %v308
                %v310 = vld [vmem:[%s256 + $0x150] sm:$0xff]
                %311 = vst [vmem:[%s257 + $0xd0] sm:$0xff] %v310
                %v312 = vld [vmem:[%s256 + $0x158] sm:$0xff]
                %313 = vst [vmem:[%s257 + $0xd8] sm:$0xff] %v312
                %v314 = vld [vmem:[%s256 + $0x160] sm:$0xff]
                %315 = vst [vmem:[%s257 + $0xe0] sm:$0xff] %v314
                %v316 = vld [vmem:[%s256 + $0x168] sm:$0xff]
                %317 = vst [vmem:[%s257 + $0xe8] sm:$0xff] %v316
                %v318 = vld [vmem:[%s256 + $0x170] sm:$0xff]
                %319 = vst [vmem:[%s257 + $0xf0] sm:$0xff] %v318
                %v320 = vld [vmem:[%s256 + $0x178] sm:$0xff]
                %321 = vst [vmem:[%s257 + $0xf8] sm:$0xff] %v320
                %v322 = vld [vmem:[%s256 + $0x200] sm:$0xff]
                %323 = vst [vmem:[%s257 + $0x100] sm:$0xff] %v322
                %v324 = vld [vmem:[%s256 + $0x208] sm:$0xff]
                %325 = vst [vmem:[%s257 + $0x108] sm:$0xff] %v324
                %v326 = vld [vmem:[%s256 + $0x210] sm:$0xff]
                %327 = vst [vmem:[%s257 + $0x110] sm:$0xff] %v326
                %v328 = vld [vmem:[%s256 + $0x218] sm:$0xff]
                %329 = vst [vmem:[%s257 + $0x118] sm:$0xff] %v328
                %v330 = vld [vmem:[%s256 + $0x220] sm:$0xff]
                %331 = vst [vmem:[%s257 + $0x120] sm:$0xff] %v330
                %v332 = vld [vmem:[%s256 + $0x228] sm:$0xff]
                %333 = vst [vmem:[%s257 + $0x128] sm:$0xff] %v332
                %v334 = vld [vmem:[%s256 + $0x230] sm:$0xff]
                %335 = vst [vmem:[%s257 + $0x130] sm:$0xff] %v334
                %v336 = vld [vmem:[%s256 + $0x238] sm:$0xff]
                %337 = vst [vmem:[%s257 + $0x138] sm:$0xff] %v336
                %v338 = vld [vmem:[%s256 + $0x240] sm:$0xff]
                %339 = vst [vmem:[%s257 + $0x140] sm:$0xff] %v338
                %v340 = vld [vmem:[%s256 + $0x248] sm:$0xff]
                %341 = vst [vmem:[%s257 + $0x148] sm:$0xff] %v340
                %v342 = vld [vmem:[%s256 + $0x250] sm:$0xff]
                %343 = vst [vmem:[%s257 + $0x150] sm:$0xff] %v342
                %v344 = vld [vmem:[%s256 + $0x258] sm:$0xff]
                %345 = vst [vmem:[%s257 + $0x158] sm:$0xff] %v344
                %v346 = vld [vmem:[%s256 + $0x260] sm:$0xff]
                %347 = vst [vmem:[%s257 + $0x160] sm:$0xff] %v346
                %v348 = vld [vmem:[%s256 + $0x268] sm:$0xff]
                %349 = vst [vmem:[%s257 + $0x168] sm:$0xff] %v348
                %v350 = vld [vmem:[%s256 + $0x270] sm:$0xff]
                %351 = vst [vmem:[%s257 + $0x170] sm:$0xff] %v350
                %v352 = vld [vmem:[%s256 + $0x278] sm:$0xff]
                %353 = vst [vmem:[%s257 + $0x178] sm:$0xff] %v352
                %v354 = vld [vmem:[%s256 + $0x300] sm:$0xff]
                %355 = vst [vmem:[%s257 + $0x180] sm:$0xff] %v354
                %v356 = vld [vmem:[%s256 + $0x308] sm:$0xff]
                %357 = vst [vmem:[%s257 + $0x188] sm:$0xff] %v356
                %v358 = vld [vmem:[%s256 + $0x310] sm:$0xff]
                %359 = vst [vmem:[%s257 + $0x190] sm:$0xff] %v358
                %v360 = vld [vmem:[%s256 + $0x318] sm:$0xff]
                %361 = vst [vmem:[%s257 + $0x198] sm:$0xff] %v360
                %v362 = vld [vmem:[%s256 + $0x320] sm:$0xff]
                %363 = vst [vmem:[%s257 + $0x1a0] sm:$0xff] %v362
                %v364 = vld [vmem:[%s256 + $0x328] sm:$0xff]
                %365 = vst [vmem:[%s257 + $0x1a8] sm:$0xff] %v364
                %v366 = vld [vmem:[%s256 + $0x330] sm:$0xff]
                %367 = vst [vmem:[%s257 + $0x1b0] sm:$0xff] %v366
                %v368 = vld [vmem:[%s256 + $0x338] sm:$0xff]
                %369 = vst [vmem:[%s257 + $0x1b8] sm:$0xff] %v368
                %v370 = vld [vmem:[%s256 + $0x340] sm:$0xff]
                %371 = vst [vmem:[%s257 + $0x1c0] sm:$0xff] %v370
                %v372 = vld [vmem:[%s256 + $0x348] sm:$0xff]
                %373 = vst [vmem:[%s257 + $0x1c8] sm:$0xff] %v372
                %v374 = vld [vmem:[%s256 + $0x350] sm:$0xff]
                %375 = vst [vmem:[%s257 + $0x1d0] sm:$0xff] %v374
                %v376 = vld [vmem:[%s256 + $0x358] sm:$0xff]
                %377 = vst [vmem:[%s257 + $0x1d8] sm:$0xff] %v376
                %v378 = vld [vmem:[%s256 + $0x360] sm:$0xff]
                %379 = vst [vmem:[%s257 + $0x1e0] sm:$0xff] %v378
                %v380 = vld [vmem:[%s256 + $0x368] sm:$0xff]
                %381 = vst [vmem:[%s257 + $0x1e8] sm:$0xff] %v380
                %v382 = vld [vmem:[%s256 + $0x370] sm:$0xff]
                %383 = vst [vmem:[%s257 + $0x1f0] sm:$0xff] %v382
                %v384 = vld [vmem:[%s256 + $0x378] sm:$0xff]
                %385 = vst [vmem:[%s257 + $0x1f8] sm:$0xff] %v384
                %v386 = vld [vmem:[%s256 + $0x400] sm:$0xff]
                %387 = vst [vmem:[%s257 + $0x200] sm:$0xff] %v386
                %v388 = vld [vmem:[%s256 + $0x408] sm:$0xff]
                %389 = vst [vmem:[%s257 + $0x208] sm:$0xff] %v388
                %v390 = vld [vmem:[%s256 + $0x410] sm:$0xff]
                %391 = vst [vmem:[%s257 + $0x210] sm:$0xff] %v390
                %v392 = vld [vmem:[%s256 + $0x418] sm:$0xff]
                %393 = vst [vmem:[%s257 + $0x218] sm:$0xff] %v392
                %v394 = vld [vmem:[%s256 + $0x420] sm:$0xff]
                %395 = vst [vmem:[%s257 + $0x220] sm:$0xff] %v394
                %v396 = vld [vmem:[%s256 + $0x428] sm:$0xff]
                %397 = vst [vmem:[%s257 + $0x228] sm:$0xff] %v396
                %v398 = vld [vmem:[%s256 + $0x430] sm:$0xff]
                %399 = vst [vmem:[%s257 + $0x230] sm:$0xff] %v398
                %v400 = vld [vmem:[%s256 + $0x438] sm:$0xff]
                %401 = vst [vmem:[%s257 + $0x238] sm:$0xff] %v400
                %v402 = vld [vmem:[%s256 + $0x440] sm:$0xff]
                %403 = vst [vmem:[%s257 + $0x240] sm:$0xff] %v402
                %v404 = vld [vmem:[%s256 + $0x448] sm:$0xff]
                %405 = vst [vmem:[%s257 + $0x248] sm:$0xff] %v404
                %v406 = vld [vmem:[%s256 + $0x450] sm:$0xff]
                %407 = vst [vmem:[%s257 + $0x250] sm:$0xff] %v406
                %v408 = vld [vmem:[%s256 + $0x458] sm:$0xff]
                %409 = vst [vmem:[%s257 + $0x258] sm:$0xff] %v408
                %v410 = vld [vmem:[%s256 + $0x460] sm:$0xff]
                %411 = vst [vmem:[%s257 + $0x260] sm:$0xff] %v410
                %v412 = vld [vmem:[%s256 + $0x468] sm:$0xff]
                %413 = vst [vmem:[%s257 + $0x268] sm:$0xff] %v412
                %v414 = vld [vmem:[%s256 + $0x470] sm:$0xff]
                %415 = vst [vmem:[%s257 + $0x270] sm:$0xff] %v414
                %v416 = vld [vmem:[%s256 + $0x478] sm:$0xff]
                %417 = vst [vmem:[%s257 + $0x278] sm:$0xff] %v416
                %v418 = vld [vmem:[%s256 + $0x500] sm:$0xff]
                %419 = vst [vmem:[%s257 + $0x280] sm:$0xff] %v418
                %v420 = vld [vmem:[%s256 + $0x508] sm:$0xff]
                %421 = vst [vmem:[%s257 + $0x288] sm:$0xff] %v420
                %v422 = vld [vmem:[%s256 + $0x510] sm:$0xff]
                %423 = vst [vmem:[%s257 + $0x290] sm:$0xff] %v422
                %v424 = vld [vmem:[%s256 + $0x518] sm:$0xff]
                %425 = vst [vmem:[%s257 + $0x298] sm:$0xff] %v424
                %v426 = vld [vmem:[%s256 + $0x520] sm:$0xff]
                %427 = vst [vmem:[%s257 + $0x2a0] sm:$0xff] %v426
                %v428 = vld [vmem:[%s256 + $0x528] sm:$0xff]
                %429 = vst [vmem:[%s257 + $0x2a8] sm:$0xff] %v428
                %v430 = vld [vmem:[%s256 + $0x530] sm:$0xff]
                %431 = vst [vmem:[%s257 + $0x2b0] sm:$0xff] %v430
                %v432 = vld [vmem:[%s256 + $0x538] sm:$0xff]
                %433 = vst [vmem:[%s257 + $0x2b8] sm:$0xff] %v432
                %v434 = vld [vmem:[%s256 + $0x540] sm:$0xff]
                %435 = vst [vmem:[%s257 + $0x2c0] sm:$0xff] %v434
                %v436 = vld [vmem:[%s256 + $0x548] sm:$0xff]
                %437 = vst [vmem:[%s257 + $0x2c8] sm:$0xff] %v436
                %v438 = vld [vmem:[%s256 + $0x550] sm:$0xff]
                %439 = vst [vmem:[%s257 + $0x2d0] sm:$0xff] %v438
                %v440 = vld [vmem:[%s256 + $0x558] sm:$0xff]
                %441 = vst [vmem:[%s257 + $0x2d8] sm:$0xff] %v440
                %v442 = vld [vmem:[%s256 + $0x560] sm:$0xff]
                %443 = vst [vmem:[%s257 + $0x2e0] sm:$0xff] %v442
                %v444 = vld [vmem:[%s256 + $0x568] sm:$0xff]
                %445 = vst [vmem:[%s257 + $0x2e8] sm:$0xff] %v444
                %v446 = vld [vmem:[%s256 + $0x570] sm:$0xff]
                %447 = vst [vmem:[%s257 + $0x2f0] sm:$0xff] %v446
                %v448 = vld [vmem:[%s256 + $0x578] sm:$0xff]
                %449 = vst [vmem:[%s257 + $0x2f8] sm:$0xff] %v448
                %v450 = vld [vmem:[%s256 + $0x600] sm:$0xff]
                %451 = vst [vmem:[%s257 + $0x300] sm:$0xff] %v450
                %v452 = vld [vmem:[%s256 + $0x608] sm:$0xff]
                %453 = vst [vmem:[%s257 + $0x308] sm:$0xff] %v452
                %v454 = vld [vmem:[%s256 + $0x610] sm:$0xff]
                %455 = vst [vmem:[%s257 + $0x310] sm:$0xff] %v454
                %v456 = vld [vmem:[%s256 + $0x618] sm:$0xff]
                %457 = vst [vmem:[%s257 + $0x318] sm:$0xff] %v456
                %v458 = vld [vmem:[%s256 + $0x620] sm:$0xff]
                %459 = vst [vmem:[%s257 + $0x320] sm:$0xff] %v458
                %v460 = vld [vmem:[%s256 + $0x628] sm:$0xff]
                %461 = vst [vmem:[%s257 + $0x328] sm:$0xff] %v460
                %v462 = vld [vmem:[%s256 + $0x630] sm:$0xff]
                %463 = vst [vmem:[%s257 + $0x330] sm:$0xff] %v462
                %v464 = vld [vmem:[%s256 + $0x638] sm:$0xff]
                %465 = vst [vmem:[%s257 + $0x338] sm:$0xff] %v464
                %v466 = vld [vmem:[%s256 + $0x640] sm:$0xff]
                %467 = vst [vmem:[%s257 + $0x340] sm:$0xff] %v466
                %v468 = vld [vmem:[%s256 + $0x648] sm:$0xff]
                %469 = vst [vmem:[%s257 + $0x348] sm:$0xff] %v468
                %v470 = vld [vmem:[%s256 + $0x650] sm:$0xff]
                %471 = vst [vmem:[%s257 + $0x350] sm:$0xff] %v470
                %v472 = vld [vmem:[%s256 + $0x658] sm:$0xff]
                %473 = vst [vmem:[%s257 + $0x358] sm:$0xff] %v472
                %v474 = vld [vmem:[%s256 + $0x660] sm:$0xff]
                %475 = vst [vmem:[%s257 + $0x360] sm:$0xff] %v474
                %v476 = vld [vmem:[%s256 + $0x668] sm:$0xff]
                %477 = vst [vmem:[%s257 + $0x368] sm:$0xff] %v476
                %v478 = vld [vmem:[%s256 + $0x670] sm:$0xff]
                %479 = vst [vmem:[%s257 + $0x370] sm:$0xff] %v478
                %v480 = vld [vmem:[%s256 + $0x678] sm:$0xff]
                %481 = vst [vmem:[%s257 + $0x378] sm:$0xff] %v480
                %v482 = vld [vmem:[%s256 + $0x700] sm:$0xff]
                %483 = vst [vmem:[%s257 + $0x380] sm:$0xff] %v482
                %v484 = vld [vmem:[%s256 + $0x708] sm:$0xff]
                %485 = vst [vmem:[%s257 + $0x388] sm:$0xff] %v484
                %v486 = vld [vmem:[%s256 + $0x710] sm:$0xff]
                %487 = vst [vmem:[%s257 + $0x390] sm:$0xff] %v486
                %v488 = vld [vmem:[%s256 + $0x718] sm:$0xff]
                %489 = vst [vmem:[%s257 + $0x398] sm:$0xff] %v488
                %v490 = vld [vmem:[%s256 + $0x720] sm:$0xff]
                %491 = vst [vmem:[%s257 + $0x3a0] sm:$0xff] %v490
                %v492 = vld [vmem:[%s256 + $0x728] sm:$0xff]
                %493 = vst [vmem:[%s257 + $0x3a8] sm:$0xff] %v492
                %v494 = vld [vmem:[%s256 + $0x730] sm:$0xff]
                %495 = vst [vmem:[%s257 + $0x3b0] sm:$0xff] %v494
                %v496 = vld [vmem:[%s256 + $0x738] sm:$0xff]
                %497 = vst [vmem:[%s257 + $0x3b8] sm:$0xff] %v496
                %v498 = vld [vmem:[%s256 + $0x740] sm:$0xff]
                %499 = vst [vmem:[%s257 + $0x3c0] sm:$0xff] %v498
                %v500 = vld [vmem:[%s256 + $0x748] sm:$0xff]
                %501 = vst [vmem:[%s257 + $0x3c8] sm:$0xff] %v500
                %v502 = vld [vmem:[%s256 + $0x750] sm:$0xff]
                %503 = vst [vmem:[%s257 + $0x3d0] sm:$0xff] %v502
                %v504 = vld [vmem:[%s256 + $0x758] sm:$0xff]
                %505 = vst [vmem:[%s257 + $0x3d8] sm:$0xff] %v504
                %v506 = vld [vmem:[%s256 + $0x760] sm:$0xff]
                %507 = vst [vmem:[%s257 + $0x3e0] sm:$0xff] %v506
                %v508 = vld [vmem:[%s256 + $0x768] sm:$0xff]
                %509 = vst [vmem:[%s257 + $0x3e8] sm:$0xff] %v508
                %v510 = vld [vmem:[%s256 + $0x770] sm:$0xff]
                %511 = vst [vmem:[%s257 + $0x3f0] sm:$0xff] %v510
                %v512 = vld [vmem:[%s256 + $0x778] sm:$0xff]
                %513 = vst [vmem:[%s257 + $0x3f8] sm:$0xff] %v512
              $region45: #{tpu_custom_call.1} parent=39 // loop_footer
                %s255 = sadd.s32 1, %s251
              $region46: #{tpu_custom_call.1} parent=39 // loop_footer_branch
                %250 = sbr.rel target = $region42
              $region47: #{tpu_custom_call.1} parent=39 // loop_exit
                _
            $region40: #{tpu_custom_call.1} parent=31 // pred_fallthru
              _
          $region32: #{tpu_custom_call.1} parent=27 // pred_fallthru
            _
          %782 = vnop
        $region28: #{tpu_custom_call.1} parent=23 // pred_fallthru
          _
        // Predicated region
        $region63: #{tpu_custom_call.1} parent=23 // pred_check
          %p783 = pneg %p129
        $region64: #{tpu_custom_call.1} parent=23 // pred_check_branch
          %785 = sbr.rel (%p783) target = $region66
        $region65: #{tpu_custom_call.1} parent=23 // pred_region
          %s786 = sand.u32 %s119, 1
          %s787 = sand.u32 %s119, 1
          %s788 = smul.addr %s787, 2048
          %s789 = scalar_lea.vmem [#allocation3], %s788
          %s790 = smul.u32 8, %s22
          %s791 = smul.u32 16, %s23
          %s792 = smul.addr %s791, 2
          %s793 = smul.addr %s790, 64
          %s794 = sadd.s32 %s792, %s793
          %s795 = smul.addr %s794, 8
          %s796 = scalar_lea.vmem %s3, %s795
          // Predicated region
          $region67: #{tpu_custom_call.1} parent=65 // pred_check
            _
          $region68: #{tpu_custom_call.1} parent=65 // pred_check_branch
            %798 = sbr.rel (0) target = $region70
          $region69: #{tpu_custom_call.1} parent=65 // pred_region
            // Predicated region
            $region71: #{tpu_custom_call.1} parent=69 // pred_check
              _
            $region72: #{tpu_custom_call.1} parent=69 // pred_check_branch
              %800 = sbr.rel (0) target = $region74
            $region73: #{tpu_custom_call.1} parent=69 // pred_region
              loop: start=0, step=1, limit=1
              $region75: #{tpu_custom_call.1} parent=73 // loop_pre_header
                _
              $region76: #{tpu_custom_call.1} parent=73 // loop_header
                %s802 = sphi 0, %s806
                %p803 = scmp.ge.s32.totalorder %s802, 1
                %s807 = sphi %s796, %s796
                %s808 = sphi %s789, %s789
              $region77: #{tpu_custom_call.1} parent=73 // loop_header_branch
                %805 = sbr.rel (%p803) target = $region81
              $region78: #{tpu_custom_call.1} parent=73 // loop_body
                %v809 = vld [vmem:[%s807] sm:$0xff]
                %810 = vst [vmem:[%s808] sm:$0xff] %v809
                %v811 = vld [vmem:[%s807 + $0x8] sm:$0xff]
                %812 = vst [vmem:[%s808 + $0x8] sm:$0xff] %v811
                %v813 = vld [vmem:[%s807 + $0x10] sm:$0xff]
                %814 = vst [vmem:[%s808 + $0x10] sm:$0xff] %v813
                %v815 = vld [vmem:[%s807 + $0x18] sm:$0xff]
                %816 = vst [vmem:[%s808 + $0x18] sm:$0xff] %v815
                %v817 = vld [vmem:[%s807 + $0x20] sm:$0xff]
                %818 = vst [vmem:[%s808 + $0x20] sm:$0xff] %v817
                %v819 = vld [vmem:[%s807 + $0x28] sm:$0xff]
                %820 = vst [vmem:[%s808 + $0x28] sm:$0xff] %v819
                %v821 = vld [vmem:[%s807 + $0x30] sm:$0xff]
                %822 = vst [vmem:[%s808 + $0x30] sm:$0xff] %v821
                %v823 = vld [vmem:[%s807 + $0x38] sm:$0xff]
                %824 = vst [vmem:[%s808 + $0x38] sm:$0xff] %v823
                %v825 = vld [vmem:[%s807 + $0x40] sm:$0xff]
                %826 = vst [vmem:[%s808 + $0x40] sm:$0xff] %v825
                %v827 = vld [vmem:[%s807 + $0x48] sm:$0xff]
                %828 = vst [vmem:[%s808 + $0x48] sm:$0xff] %v827
                %v829 = vld [vmem:[%s807 + $0x50] sm:$0xff]
                %830 = vst [vmem:[%s808 + $0x50] sm:$0xff] %v829
                %v831 = vld [vmem:[%s807 + $0x58] sm:$0xff]
                %832 = vst [vmem:[%s808 + $0x58] sm:$0xff] %v831
                %v833 = vld [vmem:[%s807 + $0x60] sm:$0xff]
                %834 = vst [vmem:[%s808 + $0x60] sm:$0xff] %v833
                %v835 = vld [vmem:[%s807 + $0x68] sm:$0xff]
                %836 = vst [vmem:[%s808 + $0x68] sm:$0xff] %v835
                %v837 = vld [vmem:[%s807 + $0x70] sm:$0xff]
                %838 = vst [vmem:[%s808 + $0x70] sm:$0xff] %v837
                %v839 = vld [vmem:[%s807 + $0x78] sm:$0xff]
                %840 = vst [vmem:[%s808 + $0x78] sm:$0xff] %v839
                %v841 = vld [vmem:[%s807 + $0x80] sm:$0xff]
                %842 = vst [vmem:[%s808 + $0x80] sm:$0xff] %v841
                %v843 = vld [vmem:[%s807 + $0x88] sm:$0xff]
                %844 = vst [vmem:[%s808 + $0x88] sm:$0xff] %v843
                %v845 = vld [vmem:[%s807 + $0x90] sm:$0xff]
                %846 = vst [vmem:[%s808 + $0x90] sm:$0xff] %v845
                %v847 = vld [vmem:[%s807 + $0x98] sm:$0xff]
                %848 = vst [vmem:[%s808 + $0x98] sm:$0xff] %v847
                %v849 = vld [vmem:[%s807 + $0xa0] sm:$0xff]
                %850 = vst [vmem:[%s808 + $0xa0] sm:$0xff] %v849
                %v851 = vld [vmem:[%s807 + $0xa8] sm:$0xff]
                %852 = vst [vmem:[%s808 + $0xa8] sm:$0xff] %v851
                %v853 = vld [vmem:[%s807 + $0xb0] sm:$0xff]
                %854 = vst [vmem:[%s808 + $0xb0] sm:$0xff] %v853
                %v855 = vld [vmem:[%s807 + $0xb8] sm:$0xff]
                %856 = vst [vmem:[%s808 + $0xb8] sm:$0xff] %v855
                %v857 = vld [vmem:[%s807 + $0xc0] sm:$0xff]
                %858 = vst [vmem:[%s808 + $0xc0] sm:$0xff] %v857
                %v859 = vld [vmem:[%s807 + $0xc8] sm:$0xff]
                %860 = vst [vmem:[%s808 + $0xc8] sm:$0xff] %v859
                %v861 = vld [vmem:[%s807 + $0xd0] sm:$0xff]
                %862 = vst [vmem:[%s808 + $0xd0] sm:$0xff] %v861
                %v863 = vld [vmem:[%s807 + $0xd8] sm:$0xff]
                %864 = vst [vmem:[%s808 + $0xd8] sm:$0xff] %v863
                %v865 = vld [vmem:[%s807 + $0xe0] sm:$0xff]
                %866 = vst [vmem:[%s808 + $0xe0] sm:$0xff] %v865
                %v867 = vld [vmem:[%s807 + $0xe8] sm:$0xff]
                %868 = vst [vmem:[%s808 + $0xe8] sm:$0xff] %v867
                %v869 = vld [vmem:[%s807 + $0xf0] sm:$0xff]
                %870 = vst [vmem:[%s808 + $0xf0] sm:$0xff] %v869
                %v871 = vld [vmem:[%s807 + $0xf8] sm:$0xff]
                %872 = vst [vmem:[%s808 + $0xf8] sm:$0xff] %v871
                %v873 = vld [vmem:[%s807 + $0x200] sm:$0xff]
                %874 = vst [vmem:[%s808 + $0x100] sm:$0xff] %v873
                %v875 = vld [vmem:[%s807 + $0x208] sm:$0xff]
                %876 = vst [vmem:[%s808 + $0x108] sm:$0xff] %v875
                %v877 = vld [vmem:[%s807 + $0x210] sm:$0xff]
                %878 = vst [vmem:[%s808 + $0x110] sm:$0xff] %v877
                %v879 = vld [vmem:[%s807 + $0x218] sm:$0xff]
                %880 = vst [vmem:[%s808 + $0x118] sm:$0xff] %v879
                %v881 = vld [vmem:[%s807 + $0x220] sm:$0xff]
                %882 = vst [vmem:[%s808 + $0x120] sm:$0xff] %v881
                %v883 = vld [vmem:[%s807 + $0x228] sm:$0xff]
                %884 = vst [vmem:[%s808 + $0x128] sm:$0xff] %v883
                %v885 = vld [vmem:[%s807 + $0x230] sm:$0xff]
                %886 = vst [vmem:[%s808 + $0x130] sm:$0xff] %v885
                %v887 = vld [vmem:[%s807 + $0x238] sm:$0xff]
                %888 = vst [vmem:[%s808 + $0x138] sm:$0xff] %v887
                %v889 = vld [vmem:[%s807 + $0x240] sm:$0xff]
                %890 = vst [vmem:[%s808 + $0x140] sm:$0xff] %v889
                %v891 = vld [vmem:[%s807 + $0x248] sm:$0xff]
                %892 = vst [vmem:[%s808 + $0x148] sm:$0xff] %v891
                %v893 = vld [vmem:[%s807 + $0x250] sm:$0xff]
                %894 = vst [vmem:[%s808 + $0x150] sm:$0xff] %v893
                %v895 = vld [vmem:[%s807 + $0x258] sm:$0xff]
                %896 = vst [vmem:[%s808 + $0x158] sm:$0xff] %v895
                %v897 = vld [vmem:[%s807 + $0x260] sm:$0xff]
                %898 = vst [vmem:[%s808 + $0x160] sm:$0xff] %v897
                %v899 = vld [vmem:[%s807 + $0x268] sm:$0xff]
                %900 = vst [vmem:[%s808 + $0x168] sm:$0xff] %v899
                %v901 = vld [vmem:[%s807 + $0x270] sm:$0xff]
                %902 = vst [vmem:[%s808 + $0x170] sm:$0xff] %v901
                %v903 = vld [vmem:[%s807 + $0x278] sm:$0xff]
                %904 = vst [vmem:[%s808 + $0x178] sm:$0xff] %v903
                %v905 = vld [vmem:[%s807 + $0x280] sm:$0xff]
                %906 = vst [vmem:[%s808 + $0x180] sm:$0xff] %v905
                %v907 = vld [vmem:[%s807 + $0x288] sm:$0xff]
                %908 = vst [vmem:[%s808 + $0x188] sm:$0xff] %v907
                %v909 = vld [vmem:[%s807 + $0x290] sm:$0xff]
                %910 = vst [vmem:[%s808 + $0x190] sm:$0xff] %v909
                %v911 = vld [vmem:[%s807 + $0x298] sm:$0xff]
                %912 = vst [vmem:[%s808 + $0x198] sm:$0xff] %v911
                %v913 = vld [vmem:[%s807 + $0x2a0] sm:$0xff]
                %914 = vst [vmem:[%s808 + $0x1a0] sm:$0xff] %v913
                %v915 = vld [vmem:[%s807 + $0x2a8] sm:$0xff]
                %916 = vst [vmem:[%s808 + $0x1a8] sm:$0xff] %v915
                %v917 = vld [vmem:[%s807 + $0x2b0] sm:$0xff]
                %918 = vst [vmem:[%s808 + $0x1b0] sm:$0xff] %v917
                %v919 = vld [vmem:[%s807 + $0x2b8] sm:$0xff]
                %920 = vst [vmem:[%s808 + $0x1b8] sm:$0xff] %v919
                %v921 = vld [vmem:[%s807 + $0x2c0] sm:$0xff]
                %922 = vst [vmem:[%s808 + $0x1c0] sm:$0xff] %v921
                %v923 = vld [vmem:[%s807 + $0x2c8] sm:$0xff]
                %924 = vst [vmem:[%s808 + $0x1c8] sm:$0xff] %v923
                %v925 = vld [vmem:[%s807 + $0x2d0] sm:$0xff]
                %926 = vst [vmem:[%s808 + $0x1d0] sm:$0xff] %v925
                %v927 = vld [vmem:[%s807 + $0x2d8] sm:$0xff]
                %928 = vst [vmem:[%s808 + $0x1d8] sm:$0xff] %v927
                %v929 = vld [vmem:[%s807 + $0x2e0] sm:$0xff]
                %930 = vst [vmem:[%s808 + $0x1e0] sm:$0xff] %v929
                %v931 = vld [vmem:[%s807 + $0x2e8] sm:$0xff]
                %932 = vst [vmem:[%s808 + $0x1e8] sm:$0xff] %v931
                %v933 = vld [vmem:[%s807 + $0x2f0] sm:$0xff]
                %934 = vst [vmem:[%s808 + $0x1f0] sm:$0xff] %v933
                %v935 = vld [vmem:[%s807 + $0x2f8] sm:$0xff]
                %936 = vst [vmem:[%s808 + $0x1f8] sm:$0xff] %v935
                %v937 = vld [vmem:[%s807 + $0x400] sm:$0xff]
                %938 = vst [vmem:[%s808 + $0x200] sm:$0xff] %v937
                %v939 = vld [vmem:[%s807 + $0x408] sm:$0xff]
                %940 = vst [vmem:[%s808 + $0x208] sm:$0xff] %v939
                %v941 = vld [vmem:[%s807 + $0x410] sm:$0xff]
                %942 = vst [vmem:[%s808 + $0x210] sm:$0xff] %v941
                %v943 = vld [vmem:[%s807 + $0x418] sm:$0xff]
                %944 = vst [vmem:[%s808 + $0x218] sm:$0xff] %v943
                %v945 = vld [vmem:[%s807 + $0x420] sm:$0xff]
                %946 = vst [vmem:[%s808 + $0x220] sm:$0xff] %v945
                %v947 = vld [vmem:[%s807 + $0x428] sm:$0xff]
                %948 = vst [vmem:[%s808 + $0x228] sm:$0xff] %v947
                %v949 = vld [vmem:[%s807 + $0x430] sm:$0xff]
                %950 = vst [vmem:[%s808 + $0x230] sm:$0xff] %v949
                %v951 = vld [vmem:[%s807 + $0x438] sm:$0xff]
                %952 = vst [vmem:[%s808 + $0x238] sm:$0xff] %v951
                %v953 = vld [vmem:[%s807 + $0x440] sm:$0xff]
                %954 = vst [vmem:[%s808 + $0x240] sm:$0xff] %v953
                %v955 = vld [vmem:[%s807 + $0x448] sm:$0xff]
                %956 = vst [vmem:[%s808 + $0x248] sm:$0xff] %v955
                %v957 = vld [vmem:[%s807 + $0x450] sm:$0xff]
                %958 = vst [vmem:[%s808 + $0x250] sm:$0xff] %v957
                %v959 = vld [vmem:[%s807 + $0x458] sm:$0xff]
                %960 = vst [vmem:[%s808 + $0x258] sm:$0xff] %v959
                %v961 = vld [vmem:[%s807 + $0x460] sm:$0xff]
                %962 = vst [vmem:[%s808 + $0x260] sm:$0xff] %v961
                %v963 = vld [vmem:[%s807 + $0x468] sm:$0xff]
                %964 = vst [vmem:[%s808 + $0x268] sm:$0xff] %v963
                %v965 = vld [vmem:[%s807 + $0x470] sm:$0xff]
                %966 = vst [vmem:[%s808 + $0x270] sm:$0xff] %v965
                %v967 = vld [vmem:[%s807 + $0x478] sm:$0xff]
                %968 = vst [vmem:[%s808 + $0x278] sm:$0xff] %v967
                %v969 = vld [vmem:[%s807 + $0x480] sm:$0xff]
                %970 = vst [vmem:[%s808 + $0x280] sm:$0xff] %v969
                %v971 = vld [vmem:[%s807 + $0x488] sm:$0xff]
                %972 = vst [vmem:[%s808 + $0x288] sm:$0xff] %v971
                %v973 = vld [vmem:[%s807 + $0x490] sm:$0xff]
                %974 = vst [vmem:[%s808 + $0x290] sm:$0xff] %v973
                %v975 = vld [vmem:[%s807 + $0x498] sm:$0xff]
                %976 = vst [vmem:[%s808 + $0x298] sm:$0xff] %v975
                %v977 = vld [vmem:[%s807 + $0x4a0] sm:$0xff]
                %978 = vst [vmem:[%s808 + $0x2a0] sm:$0xff] %v977
                %v979 = vld [vmem:[%s807 + $0x4a8] sm:$0xff]
                %980 = vst [vmem:[%s808 + $0x2a8] sm:$0xff] %v979
                %v981 = vld [vmem:[%s807 + $0x4b0] sm:$0xff]
                %982 = vst [vmem:[%s808 + $0x2b0] sm:$0xff] %v981
                %v983 = vld [vmem:[%s807 + $0x4b8] sm:$0xff]
                %984 = vst [vmem:[%s808 + $0x2b8] sm:$0xff] %v983
                %v985 = vld [vmem:[%s807 + $0x4c0] sm:$0xff]
                %986 = vst [vmem:[%s808 + $0x2c0] sm:$0xff] %v985
                %v987 = vld [vmem:[%s807 + $0x4c8] sm:$0xff]
                %988 = vst [vmem:[%s808 + $0x2c8] sm:$0xff] %v987
                %v989 = vld [vmem:[%s807 + $0x4d0] sm:$0xff]
                %990 = vst [vmem:[%s808 + $0x2d0] sm:$0xff] %v989
                %v991 = vld [vmem:[%s807 + $0x4d8] sm:$0xff]
                %992 = vst [vmem:[%s808 + $0x2d8] sm:$0xff] %v991
                %v993 = vld [vmem:[%s807 + $0x4e0] sm:$0xff]
                %994 = vst [vmem:[%s808 + $0x2e0] sm:$0xff] %v993
                %v995 = vld [vmem:[%s807 + $0x4e8] sm:$0xff]
                %996 = vst [vmem:[%s808 + $0x2e8] sm:$0xff] %v995
                %v997 = vld [vmem:[%s807 + $0x4f0] sm:$0xff]
                %998 = vst [vmem:[%s808 + $0x2f0] sm:$0xff] %v997
                %v999 = vld [vmem:[%s807 + $0x4f8] sm:$0xff]
                %1000 = vst [vmem:[%s808 + $0x2f8] sm:$0xff] %v999
                %v1001 = vld [vmem:[%s807 + $0x600] sm:$0xff]
                %1002 = vst [vmem:[%s808 + $0x300] sm:$0xff] %v1001
                %v1003 = vld [vmem:[%s807 + $0x608] sm:$0xff]
                %1004 = vst [vmem:[%s808 + $0x308] sm:$0xff] %v1003
                %v1005 = vld [vmem:[%s807 + $0x610] sm:$0xff]
                %1006 = vst [vmem:[%s808 + $0x310] sm:$0xff] %v1005
                %v1007 = vld [vmem:[%s807 + $0x618] sm:$0xff]
                %1008 = vst [vmem:[%s808 + $0x318] sm:$0xff] %v1007
                %v1009 = vld [vmem:[%s807 + $0x620] sm:$0xff]
                %1010 = vst [vmem:[%s808 + $0x320] sm:$0xff] %v1009
                %v1011 = vld [vmem:[%s807 + $0x628] sm:$0xff]
                %1012 = vst [vmem:[%s808 + $0x328] sm:$0xff] %v1011
                %v1013 = vld [vmem:[%s807 + $0x630] sm:$0xff]
                %1014 = vst [vmem:[%s808 + $0x330] sm:$0xff] %v1013
                %v1015 = vld [vmem:[%s807 + $0x638] sm:$0xff]
                %1016 = vst [vmem:[%s808 + $0x338] sm:$0xff] %v1015
                %v1017 = vld [vmem:[%s807 + $0x640] sm:$0xff]
                %1018 = vst [vmem:[%s808 + $0x340] sm:$0xff] %v1017
                %v1019 = vld [vmem:[%s807 + $0x648] sm:$0xff]
                %1020 = vst [vmem:[%s808 + $0x348] sm:$0xff] %v1019
                %v1021 = vld [vmem:[%s807 + $0x650] sm:$0xff]
                %1022 = vst [vmem:[%s808 + $0x350] sm:$0xff] %v1021
                %v1023 = vld [vmem:[%s807 + $0x658] sm:$0xff]
                %1024 = vst [vmem:[%s808 + $0x358] sm:$0xff] %v1023
                %v1025 = vld [vmem:[%s807 + $0x660] sm:$0xff]
                %1026 = vst [vmem:[%s808 + $0x360] sm:$0xff] %v1025
                %v1027 = vld [vmem:[%s807 + $0x668] sm:$0xff]
                %1028 = vst [vmem:[%s808 + $0x368] sm:$0xff] %v1027
                %v1029 = vld [vmem:[%s807 + $0x670] sm:$0xff]
                %1030 = vst [vmem:[%s808 + $0x370] sm:$0xff] %v1029
                %v1031 = vld [vmem:[%s807 + $0x678] sm:$0xff]
                %1032 = vst [vmem:[%s808 + $0x378] sm:$0xff] %v1031
                %v1033 = vld [vmem:[%s807 + $0x680] sm:$0xff]
                %1034 = vst [vmem:[%s808 + $0x380] sm:$0xff] %v1033
                %v1035 = vld [vmem:[%s807 + $0x688] sm:$0xff]
                %1036 = vst [vmem:[%s808 + $0x388] sm:$0xff] %v1035
                %v1037 = vld [vmem:[%s807 + $0x690] sm:$0xff]
                %1038 = vst [vmem:[%s808 + $0x390] sm:$0xff] %v1037
                %v1039 = vld [vmem:[%s807 + $0x698] sm:$0xff]
                %1040 = vst [vmem:[%s808 + $0x398] sm:$0xff] %v1039
                %v1041 = vld [vmem:[%s807 + $0x6a0] sm:$0xff]
                %1042 = vst [vmem:[%s808 + $0x3a0] sm:$0xff] %v1041
                %v1043 = vld [vmem:[%s807 + $0x6a8] sm:$0xff]
                %1044 = vst [vmem:[%s808 + $0x3a8] sm:$0xff] %v1043
                %v1045 = vld [vmem:[%s807 + $0x6b0] sm:$0xff]
                %1046 = vst [vmem:[%s808 + $0x3b0] sm:$0xff] %v1045
                %v1047 = vld [vmem:[%s807 + $0x6b8] sm:$0xff]
                %1048 = vst [vmem:[%s808 + $0x3b8] sm:$0xff] %v1047
                %v1049 = vld [vmem:[%s807 + $0x6c0] sm:$0xff]
                %1050 = vst [vmem:[%s808 + $0x3c0] sm:$0xff] %v1049
                %v1051 = vld [vmem:[%s807 + $0x6c8] sm:$0xff]
                %1052 = vst [vmem:[%s808 + $0x3c8] sm:$0xff] %v1051
                %v1053 = vld [vmem:[%s807 + $0x6d0] sm:$0xff]
                %1054 = vst [vmem:[%s808 + $0x3d0] sm:$0xff] %v1053
                %v1055 = vld [vmem:[%s807 + $0x6d8] sm:$0xff]
                %1056 = vst [vmem:[%s808 + $0x3d8] sm:$0xff] %v1055
                %v1057 = vld [vmem:[%s807 + $0x6e0] sm:$0xff]
                %1058 = vst [vmem:[%s808 + $0x3e0] sm:$0xff] %v1057
                %v1059 = vld [vmem:[%s807 + $0x6e8] sm:$0xff]
                %1060 = vst [vmem:[%s808 + $0x3e8] sm:$0xff] %v1059
                %v1061 = vld [vmem:[%s807 + $0x6f0] sm:$0xff]
                %1062 = vst [vmem:[%s808 + $0x3f0] sm:$0xff] %v1061
                %v1063 = vld [vmem:[%s807 + $0x6f8] sm:$0xff]
                %1064 = vst [vmem:[%s808 + $0x3f8] sm:$0xff] %v1063
                %v1065 = vld [vmem:[%s807 + $0x800] sm:$0xff]
                %1066 = vst [vmem:[%s808 + $0x400] sm:$0xff] %v1065
                %v1067 = vld [vmem:[%s807 + $0x808] sm:$0xff]
                %1068 = vst [vmem:[%s808 + $0x408] sm:$0xff] %v1067
                %v1069 = vld [vmem:[%s807 + $0x810] sm:$0xff]
                %1070 = vst [vmem:[%s808 + $0x410] sm:$0xff] %v1069
                %v1071 = vld [vmem:[%s807 + $0x818] sm:$0xff]
                %1072 = vst [vmem:[%s808 + $0x418] sm:$0xff] %v1071
                %v1073 = vld [vmem:[%s807 + $0x820] sm:$0xff]
                %1074 = vst [vmem:[%s808 + $0x420] sm:$0xff] %v1073
                %v1075 = vld [vmem:[%s807 + $0x828] sm:$0xff]
                %1076 = vst [vmem:[%s808 + $0x428] sm:$0xff] %v1075
                %v1077 = vld [vmem:[%s807 + $0x830] sm:$0xff]
                %1078 = vst [vmem:[%s808 + $0x430] sm:$0xff] %v1077
                %v1079 = vld [vmem:[%s807 + $0x838] sm:$0xff]
                %1080 = vst [vmem:[%s808 + $0x438] sm:$0xff] %v1079
                %v1081 = vld [vmem:[%s807 + $0x840] sm:$0xff]
                %1082 = vst [vmem:[%s808 + $0x440] sm:$0xff] %v1081
                %v1083 = vld [vmem:[%s807 + $0x848] sm:$0xff]
                %1084 = vst [vmem:[%s808 + $0x448] sm:$0xff] %v1083
                %v1085 = vld [vmem:[%s807 + $0x850] sm:$0xff]
                %1086 = vst [vmem:[%s808 + $0x450] sm:$0xff] %v1085
                %v1087 = vld [vmem:[%s807 + $0x858] sm:$0xff]
                %1088 = vst [vmem:[%s808 + $0x458] sm:$0xff] %v1087
                %v1089 = vld [vmem:[%s807 + $0x860] sm:$0xff]
                %1090 = vst [vmem:[%s808 + $0x460] sm:$0xff] %v1089
                %v1091 = vld [vmem:[%s807 + $0x868] sm:$0xff]
                %1092 = vst [vmem:[%s808 + $0x468] sm:$0xff] %v1091
                %v1093 = vld [vmem:[%s807 + $0x870] sm:$0xff]
                %1094 = vst [vmem:[%s808 + $0x470] sm:$0xff] %v1093
                %v1095 = vld [vmem:[%s807 + $0x878] sm:$0xff]
                %1096 = vst [vmem:[%s808 + $0x478] sm:$0xff] %v1095
                %v1097 = vld [vmem:[%s807 + $0x880] sm:$0xff]
                %1098 = vst [vmem:[%s808 + $0x480] sm:$0xff] %v1097
                %v1099 = vld [vmem:[%s807 + $0x888] sm:$0xff]
                %1100 = vst [vmem:[%s808 + $0x488] sm:$0xff] %v1099
                %v1101 = vld [vmem:[%s807 + $0x890] sm:$0xff]
                %1102 = vst [vmem:[%s808 + $0x490] sm:$0xff] %v1101
                %v1103 = vld [vmem:[%s807 + $0x898] sm:$0xff]
                %1104 = vst [vmem:[%s808 + $0x498] sm:$0xff] %v1103
                %v1105 = vld [vmem:[%s807 + $0x8a0] sm:$0xff]
                %1106 = vst [vmem:[%s808 + $0x4a0] sm:$0xff] %v1105
                %v1107 = vld [vmem:[%s807 + $0x8a8] sm:$0xff]
                %1108 = vst [vmem:[%s808 + $0x4a8] sm:$0xff] %v1107
                %v1109 = vld [vmem:[%s807 + $0x8b0] sm:$0xff]
                %1110 = vst [vmem:[%s808 + $0x4b0] sm:$0xff] %v1109
                %v1111 = vld [vmem:[%s807 + $0x8b8] sm:$0xff]
                %1112 = vst [vmem:[%s808 + $0x4b8] sm:$0xff] %v1111
                %v1113 = vld [vmem:[%s807 + $0x8c0] sm:$0xff]
                %1114 = vst [vmem:[%s808 + $0x4c0] sm:$0xff] %v1113
                %v1115 = vld [vmem:[%s807 + $0x8c8] sm:$0xff]
                %1116 = vst [vmem:[%s808 + $0x4c8] sm:$0xff] %v1115
                %v1117 = vld [vmem:[%s807 + $0x8d0] sm:$0xff]
                %1118 = vst [vmem:[%s808 + $0x4d0] sm:$0xff] %v1117
                %v1119 = vld [vmem:[%s807 + $0x8d8] sm:$0xff]
                %1120 = vst [vmem:[%s808 + $0x4d8] sm:$0xff] %v1119
                %v1121 = vld [vmem:[%s807 + $0x8e0] sm:$0xff]
                %1122 = vst [vmem:[%s808 + $0x4e0] sm:$0xff] %v1121
                %v1123 = vld [vmem:[%s807 + $0x8e8] sm:$0xff]
                %1124 = vst [vmem:[%s808 + $0x4e8] sm:$0xff] %v1123
                %v1125 = vld [vmem:[%s807 + $0x8f0] sm:$0xff]
                %1126 = vst [vmem:[%s808 + $0x4f0] sm:$0xff] %v1125
                %v1127 = vld [vmem:[%s807 + $0x8f8] sm:$0xff]
                %1128 = vst [vmem:[%s808 + $0x4f8] sm:$0xff] %v1127
                %v1129 = vld [vmem:[%s807 + $0xa00] sm:$0xff]
                %1130 = vst [vmem:[%s808 + $0x500] sm:$0xff] %v1129
                %v1131 = vld [vmem:[%s807 + $0xa08] sm:$0xff]
                %1132 = vst [vmem:[%s808 + $0x508] sm:$0xff] %v1131
                %v1133 = vld [vmem:[%s807 + $0xa10] sm:$0xff]
                %1134 = vst [vmem:[%s808 + $0x510] sm:$0xff] %v1133
                %v1135 = vld [vmem:[%s807 + $0xa18] sm:$0xff]
                %1136 = vst [vmem:[%s808 + $0x518] sm:$0xff] %v1135
                %v1137 = vld [vmem:[%s807 + $0xa20] sm:$0xff]
                %1138 = vst [vmem:[%s808 + $0x520] sm:$0xff] %v1137
                %v1139 = vld [vmem:[%s807 + $0xa28] sm:$0xff]
                %1140 = vst [vmem:[%s808 + $0x528] sm:$0xff] %v1139
                %v1141 = vld [vmem:[%s807 + $0xa30] sm:$0xff]
                %1142 = vst [vmem:[%s808 + $0x530] sm:$0xff] %v1141
                %v1143 = vld [vmem:[%s807 + $0xa38] sm:$0xff]
                %1144 = vst [vmem:[%s808 + $0x538] sm:$0xff] %v1143
                %v1145 = vld [vmem:[%s807 + $0xa40] sm:$0xff]
                %1146 = vst [vmem:[%s808 + $0x540] sm:$0xff] %v1145
                %v1147 = vld [vmem:[%s807 + $0xa48] sm:$0xff]
                %1148 = vst [vmem:[%s808 + $0x548] sm:$0xff] %v1147
                %v1149 = vld [vmem:[%s807 + $0xa50] sm:$0xff]
                %1150 = vst [vmem:[%s808 + $0x550] sm:$0xff] %v1149
                %v1151 = vld [vmem:[%s807 + $0xa58] sm:$0xff]
                %1152 = vst [vmem:[%s808 + $0x558] sm:$0xff] %v1151
                %v1153 = vld [vmem:[%s807 + $0xa60] sm:$0xff]
                %1154 = vst [vmem:[%s808 + $0x560] sm:$0xff] %v1153
                %v1155 = vld [vmem:[%s807 + $0xa68] sm:$0xff]
                %1156 = vst [vmem:[%s808 + $0x568] sm:$0xff] %v1155
                %v1157 = vld [vmem:[%s807 + $0xa70] sm:$0xff]
                %1158 = vst [vmem:[%s808 + $0x570] sm:$0xff] %v1157
                %v1159 = vld [vmem:[%s807 + $0xa78] sm:$0xff]
                %1160 = vst [vmem:[%s808 + $0x578] sm:$0xff] %v1159
                %v1161 = vld [vmem:[%s807 + $0xa80] sm:$0xff]
                %1162 = vst [vmem:[%s808 + $0x580] sm:$0xff] %v1161
                %v1163 = vld [vmem:[%s807 + $0xa88] sm:$0xff]
                %1164 = vst [vmem:[%s808 + $0x588] sm:$0xff] %v1163
                %v1165 = vld [vmem:[%s807 + $0xa90] sm:$0xff]
                %1166 = vst [vmem:[%s808 + $0x590] sm:$0xff] %v1165
                %v1167 = vld [vmem:[%s807 + $0xa98] sm:$0xff]
                %1168 = vst [vmem:[%s808 + $0x598] sm:$0xff] %v1167
                %v1169 = vld [vmem:[%s807 + $0xaa0] sm:$0xff]
                %1170 = vst [vmem:[%s808 + $0x5a0] sm:$0xff] %v1169
                %v1171 = vld [vmem:[%s807 + $0xaa8] sm:$0xff]
                %1172 = vst [vmem:[%s808 + $0x5a8] sm:$0xff] %v1171
                %v1173 = vld [vmem:[%s807 + $0xab0] sm:$0xff]
                %1174 = vst [vmem:[%s808 + $0x5b0] sm:$0xff] %v1173
                %v1175 = vld [vmem:[%s807 + $0xab8] sm:$0xff]
                %1176 = vst [vmem:[%s808 + $0x5b8] sm:$0xff] %v1175
                %v1177 = vld [vmem:[%s807 + $0xac0] sm:$0xff]
                %1178 = vst [vmem:[%s808 + $0x5c0] sm:$0xff] %v1177
                %v1179 = vld [vmem:[%s807 + $0xac8] sm:$0xff]
                %1180 = vst [vmem:[%s808 + $0x5c8] sm:$0xff] %v1179
                %v1181 = vld [vmem:[%s807 + $0xad0] sm:$0xff]
                %1182 = vst [vmem:[%s808 + $0x5d0] sm:$0xff] %v1181
                %v1183 = vld [vmem:[%s807 + $0xad8] sm:$0xff]
                %1184 = vst [vmem:[%s808 + $0x5d8] sm:$0xff] %v1183
                %v1185 = vld [vmem:[%s807 + $0xae0] sm:$0xff]
                %1186 = vst [vmem:[%s808 + $0x5e0] sm:$0xff] %v1185
                %v1187 = vld [vmem:[%s807 + $0xae8] sm:$0xff]
                %1188 = vst [vmem:[%s808 + $0x5e8] sm:$0xff] %v1187
                %v1189 = vld [vmem:[%s807 + $0xaf0] sm:$0xff]
                %1190 = vst [vmem:[%s808 + $0x5f0] sm:$0xff] %v1189
                %v1191 = vld [vmem:[%s807 + $0xaf8] sm:$0xff]
                %1192 = vst [vmem:[%s808 + $0x5f8] sm:$0xff] %v1191
                %v1193 = vld [vmem:[%s807 + $0xc00] sm:$0xff]
                %1194 = vst [vmem:[%s808 + $0x600] sm:$0xff] %v1193
                %v1195 = vld [vmem:[%s807 + $0xc08] sm:$0xff]
                %1196 = vst [vmem:[%s808 + $0x608] sm:$0xff] %v1195
                %v1197 = vld [vmem:[%s807 + $0xc10] sm:$0xff]
                %1198 = vst [vmem:[%s808 + $0x610] sm:$0xff] %v1197
                %v1199 = vld [vmem:[%s807 + $0xc18] sm:$0xff]
                %1200 = vst [vmem:[%s808 + $0x618] sm:$0xff] %v1199
                %v1201 = vld [vmem:[%s807 + $0xc20] sm:$0xff]
                %1202 = vst [vmem:[%s808 + $0x620] sm:$0xff] %v1201
                %v1203 = vld [vmem:[%s807 + $0xc28] sm:$0xff]
                %1204 = vst [vmem:[%s808 + $0x628] sm:$0xff] %v1203
                %v1205 = vld [vmem:[%s807 + $0xc30] sm:$0xff]
                %1206 = vst [vmem:[%s808 + $0x630] sm:$0xff] %v1205
                %v1207 = vld [vmem:[%s807 + $0xc38] sm:$0xff]
                %1208 = vst [vmem:[%s808 + $0x638] sm:$0xff] %v1207
                %v1209 = vld [vmem:[%s807 + $0xc40] sm:$0xff]
                %1210 = vst [vmem:[%s808 + $0x640] sm:$0xff] %v1209
                %v1211 = vld [vmem:[%s807 + $0xc48] sm:$0xff]
                %1212 = vst [vmem:[%s808 + $0x648] sm:$0xff] %v1211
                %v1213 = vld [vmem:[%s807 + $0xc50] sm:$0xff]
                %1214 = vst [vmem:[%s808 + $0x650] sm:$0xff] %v1213
                %v1215 = vld [vmem:[%s807 + $0xc58] sm:$0xff]
                %1216 = vst [vmem:[%s808 + $0x658] sm:$0xff] %v1215
                %v1217 = vld [vmem:[%s807 + $0xc60] sm:$0xff]
                %1218 = vst [vmem:[%s808 + $0x660] sm:$0xff] %v1217
                %v1219 = vld [vmem:[%s807 + $0xc68] sm:$0xff]
                %1220 = vst [vmem:[%s808 + $0x668] sm:$0xff] %v1219
                %v1221 = vld [vmem:[%s807 + $0xc70] sm:$0xff]
                %1222 = vst [vmem:[%s808 + $0x670] sm:$0xff] %v1221
                %v1223 = vld [vmem:[%s807 + $0xc78] sm:$0xff]
                %1224 = vst [vmem:[%s808 + $0x678] sm:$0xff] %v1223
                %v1225 = vld [vmem:[%s807 + $0xc80] sm:$0xff]
                %1226 = vst [vmem:[%s808 + $0x680] sm:$0xff] %v1225
                %v1227 = vld [vmem:[%s807 + $0xc88] sm:$0xff]
                %1228 = vst [vmem:[%s808 + $0x688] sm:$0xff] %v1227
                %v1229 = vld [vmem:[%s807 + $0xc90] sm:$0xff]
                %1230 = vst [vmem:[%s808 + $0x690] sm:$0xff] %v1229
                %v1231 = vld [vmem:[%s807 + $0xc98] sm:$0xff]
                %1232 = vst [vmem:[%s808 + $0x698] sm:$0xff] %v1231
                %v1233 = vld [vmem:[%s807 + $0xca0] sm:$0xff]
                %1234 = vst [vmem:[%s808 + $0x6a0] sm:$0xff] %v1233
                %v1235 = vld [vmem:[%s807 + $0xca8] sm:$0xff]
                %1236 = vst [vmem:[%s808 + $0x6a8] sm:$0xff] %v1235
                %v1237 = vld [vmem:[%s807 + $0xcb0] sm:$0xff]
                %1238 = vst [vmem:[%s808 + $0x6b0] sm:$0xff] %v1237
                %v1239 = vld [vmem:[%s807 + $0xcb8] sm:$0xff]
                %1240 = vst [vmem:[%s808 + $0x6b8] sm:$0xff] %v1239
                %v1241 = vld [vmem:[%s807 + $0xcc0] sm:$0xff]
                %1242 = vst [vmem:[%s808 + $0x6c0] sm:$0xff] %v1241
                %v1243 = vld [vmem:[%s807 + $0xcc8] sm:$0xff]
                %1244 = vst [vmem:[%s808 + $0x6c8] sm:$0xff] %v1243
                %v1245 = vld [vmem:[%s807 + $0xcd0] sm:$0xff]
                %1246 = vst [vmem:[%s808 + $0x6d0] sm:$0xff] %v1245
                %v1247 = vld [vmem:[%s807 + $0xcd8] sm:$0xff]
                %1248 = vst [vmem:[%s808 + $0x6d8] sm:$0xff] %v1247
                %v1249 = vld [vmem:[%s807 + $0xce0] sm:$0xff]
                %1250 = vst [vmem:[%s808 + $0x6e0] sm:$0xff] %v1249
                %v1251 = vld [vmem:[%s807 + $0xce8] sm:$0xff]
                %1252 = vst [vmem:[%s808 + $0x6e8] sm:$0xff] %v1251
                %v1253 = vld [vmem:[%s807 + $0xcf0] sm:$0xff]
                %1254 = vst [vmem:[%s808 + $0x6f0] sm:$0xff] %v1253
                %v1255 = vld [vmem:[%s807 + $0xcf8] sm:$0xff]
                %1256 = vst [vmem:[%s808 + $0x6f8] sm:$0xff] %v1255
                %v1257 = vld [vmem:[%s807 + $0xe00] sm:$0xff]
                %1258 = vst [vmem:[%s808 + $0x700] sm:$0xff] %v1257
                %v1259 = vld [vmem:[%s807 + $0xe08] sm:$0xff]
                %1260 = vst [vmem:[%s808 + $0x708] sm:$0xff] %v1259
                %v1261 = vld [vmem:[%s807 + $0xe10] sm:$0xff]
                %1262 = vst [vmem:[%s808 + $0x710] sm:$0xff] %v1261
                %v1263 = vld [vmem:[%s807 + $0xe18] sm:$0xff]
                %1264 = vst [vmem:[%s808 + $0x718] sm:$0xff] %v1263
                %v1265 = vld [vmem:[%s807 + $0xe20] sm:$0xff]
                %1266 = vst [vmem:[%s808 + $0x720] sm:$0xff] %v1265
                %v1267 = vld [vmem:[%s807 + $0xe28] sm:$0xff]
                %1268 = vst [vmem:[%s808 + $0x728] sm:$0xff] %v1267
                %v1269 = vld [vmem:[%s807 + $0xe30] sm:$0xff]
                %1270 = vst [vmem:[%s808 + $0x730] sm:$0xff] %v1269
                %v1271 = vld [vmem:[%s807 + $0xe38] sm:$0xff]
                %1272 = vst [vmem:[%s808 + $0x738] sm:$0xff] %v1271
                %v1273 = vld [vmem:[%s807 + $0xe40] sm:$0xff]
                %1274 = vst [vmem:[%s808 + $0x740] sm:$0xff] %v1273
                %v1275 = vld [vmem:[%s807 + $0xe48] sm:$0xff]
                %1276 = vst [vmem:[%s808 + $0x748] sm:$0xff] %v1275
                %v1277 = vld [vmem:[%s807 + $0xe50] sm:$0xff]
                %1278 = vst [vmem:[%s808 + $0x750] sm:$0xff] %v1277
                %v1279 = vld [vmem:[%s807 + $0xe58] sm:$0xff]
                %1280 = vst [vmem:[%s808 + $0x758] sm:$0xff] %v1279
                %v1281 = vld [vmem:[%s807 + $0xe60] sm:$0xff]
                %1282 = vst [vmem:[%s808 + $0x760] sm:$0xff] %v1281
                %v1283 = vld [vmem:[%s807 + $0xe68] sm:$0xff]
                %1284 = vst [vmem:[%s808 + $0x768] sm:$0xff] %v1283
                %v1285 = vld [vmem:[%s807 + $0xe70] sm:$0xff]
                %1286 = vst [vmem:[%s808 + $0x770] sm:$0xff] %v1285
                %v1287 = vld [vmem:[%s807 + $0xe78] sm:$0xff]
                %1288 = vst [vmem:[%s808 + $0x778] sm:$0xff] %v1287
                %v1289 = vld [vmem:[%s807 + $0xe80] sm:$0xff]
                %1290 = vst [vmem:[%s808 + $0x780] sm:$0xff] %v1289
                %v1291 = vld [vmem:[%s807 + $0xe88] sm:$0xff]
                %1292 = vst [vmem:[%s808 + $0x788] sm:$0xff] %v1291
                %v1293 = vld [vmem:[%s807 + $0xe90] sm:$0xff]
                %1294 = vst [vmem:[%s808 + $0x790] sm:$0xff] %v1293
                %v1295 = vld [vmem:[%s807 + $0xe98] sm:$0xff]
                %1296 = vst [vmem:[%s808 + $0x798] sm:$0xff] %v1295
                %v1297 = vld [vmem:[%s807 + $0xea0] sm:$0xff]
                %1298 = vst [vmem:[%s808 + $0x7a0] sm:$0xff] %v1297
                %v1299 = vld [vmem:[%s807 + $0xea8] sm:$0xff]
                %1300 = vst [vmem:[%s808 + $0x7a8] sm:$0xff] %v1299
                %v1301 = vld [vmem:[%s807 + $0xeb0] sm:$0xff]
                %1302 = vst [vmem:[%s808 + $0x7b0] sm:$0xff] %v1301
                %v1303 = vld [vmem:[%s807 + $0xeb8] sm:$0xff]
                %1304 = vst [vmem:[%s808 + $0x7b8] sm:$0xff] %v1303
                %v1305 = vld [vmem:[%s807 + $0xec0] sm:$0xff]
                %1306 = vst [vmem:[%s808 + $0x7c0] sm:$0xff] %v1305
                %v1307 = vld [vmem:[%s807 + $0xec8] sm:$0xff]
                %1308 = vst [vmem:[%s808 + $0x7c8] sm:$0xff] %v1307
                %v1309 = vld [vmem:[%s807 + $0xed0] sm:$0xff]
                %1310 = vst [vmem:[%s808 + $0x7d0] sm:$0xff] %v1309
                %v1311 = vld [vmem:[%s807 + $0xed8] sm:$0xff]
                %1312 = vst [vmem:[%s808 + $0x7d8] sm:$0xff] %v1311
                %v1313 = vld [vmem:[%s807 + $0xee0] sm:$0xff]
                %1314 = vst [vmem:[%s808 + $0x7e0] sm:$0xff] %v1313
                %v1315 = vld [vmem:[%s807 + $0xee8] sm:$0xff]
                %1316 = vst [vmem:[%s808 + $0x7e8] sm:$0xff] %v1315
                %v1317 = vld [vmem:[%s807 + $0xef0] sm:$0xff]
                %1318 = vst [vmem:[%s808 + $0x7f0] sm:$0xff] %v1317
                %v1319 = vld [vmem:[%s807 + $0xef8] sm:$0xff]
                %1320 = vst [vmem:[%s808 + $0x7f8] sm:$0xff] %v1319
              $region79: #{tpu_custom_call.1} parent=73 // loop_footer
                %s806 = sadd.s32 1, %s802
              $region80: #{tpu_custom_call.1} parent=73 // loop_footer_branch
                %801 = sbr.rel target = $region76
              $region81: #{tpu_custom_call.1} parent=73 // loop_exit
                _
            $region74: #{tpu_custom_call.1} parent=69 // pred_fallthru
              _
            // Predicated region
            $region82: #{tpu_custom_call.1} parent=69 // pred_check
              _
            $region83: #{tpu_custom_call.1} parent=69 // pred_check_branch
              %1322 = sbr.rel target = $region85
            $region84: #{tpu_custom_call.1} parent=69 // pred_region
              _
            $region85: #{tpu_custom_call.1} parent=69 // pred_fallthru
              _
          $region70: #{tpu_custom_call.1} parent=65 // pred_fallthru
            _
          %1323 = vnop
        $region66: #{tpu_custom_call.1} parent=23 // pred_fallthru
          _
      $region24: #{tpu_custom_call.1} parent=5 // pred_fallthru
        _
      %p1324 = scmp.le.s32.totalorder 1, %s15
      %p1325 = scmp.lt.s32.totalorder %s15, 3
      %p1326 = pnand %p1324, %p1325
      %p1327 = pneg %p1326
      // Predicated region
      $region86: #{tpu_custom_call.1} parent=5 // pred_check
        _
      $region87: #{tpu_custom_call.1} parent=5 // pred_check_branch
        %1329 = sbr.rel (%p1326) target = $region89
      $region88: #{tpu_custom_call.1} parent=5 // pred_region
        %s1330 = ssub.s32 %s15, 1
        %s1331 = sand.u32 %s42, 1
        %s1332 = sand.u32 %s42, 1
        %s1333 = smul.addr %s1332, 1024
        %s1334 = scalar_lea.vmem [#allocation2], %s1333
        // Predicated region
        $region90: #{tpu_custom_call.1} parent=88 // pred_check
          %p1335 = pneg %p55
        $region91: #{tpu_custom_call.1} parent=88 // pred_check_branch
          %1337 = sbr.rel (%p1335) target = $region93
        $region92: #{tpu_custom_call.1} parent=88 // pred_region
          _
        $region93: #{tpu_custom_call.1} parent=88 // pred_fallthru
          _
        %s1338 = sand.u32 %s122, 1
        %s1339 = sand.u32 %s122, 1
        %s1340 = smul.addr %s1339, 2048
        %s1341 = scalar_lea.vmem [#allocation3], %s1340
        // Predicated region
        $region94: #{tpu_custom_call.1} parent=88 // pred_check
          %p1342 = pneg %p135
        $region95: #{tpu_custom_call.1} parent=88 // pred_check_branch
          %1344 = sbr.rel (%p1342) target = $region97
        $region96: #{tpu_custom_call.1} parent=88 // pred_region
          _
        $region97: #{tpu_custom_call.1} parent=88 // pred_fallthru
          _
        %s1345 = sand.u32 %s42, 1
        %s1346 = sand.u32 %s42, 1
        %s1347 = smul.addr %s1346, 1024
        %s1348 = scalar_lea.vmem [#allocation2], %s1347
        %p1349 = pneg %p55
        %p1350 = pneg %p52
        %s1351 = smul.u32 8, %s24
        %p1352 = scmp.lt.s32.totalorder %s1351, 7
        %s1353 = scalar_select %p1352, %s1351, 7
        %s1354 = smul.addr %s1353, 32
        %s1355 = smul.addr %s1354, 8
        %s1356 = scalar_lea.vmem %s1, %s1355
        %p1357 = pneg %p81
        %p1358 = pneg %p78
        %s1359 = smul.u32 8, %s24
        %p1360 = scmp.lt.s32.totalorder %s1359, 7
        %s1361 = scalar_select %p1360, %s1359, 7
        %s1362 = smul.addr %s1361, 32
        %s1363 = smul.addr %s1362, 8
        %s1364 = scalar_lea.vmem %s2, %s1363
        %p1365 = pneg %p107
        %p1366 = pneg %p104
        %s1367 = sand.u32 %s122, 1
        %s1368 = sand.u32 %s122, 1
        %s1369 = smul.addr %s1368, 2048
        %s1370 = scalar_lea.vmem [#allocation3], %s1369
        %p1371 = pneg %p135
        %p1372 = pneg %p132
        %p1373 = pneg %p163
        %p1374 = pneg %p160
        %s1375 = sand.u32 %s150, 1
        %s1376 = sand.u32 %s150, 1
        %s1377 = smul.addr %s1376, 1024
        %s1378 = scalar_lea.vmem [#allocation4], %s1377
        %p1379 = pneg %p191
        %p1380 = pneg %p188
        %s1381 = sand.u32 %s178, 1
        %s1382 = scalar_lea.sflag [#allocation6], %s1381
        %s1383 = sand.u32 %s178, 1
        %s1384 = smul.addr %s1383, 2048
        %s1385 = scalar_lea.vmem [#allocation5], %s1384
        %s1386 = smul.u32 8, %s24
        %s1387 = smul.u32 16, %s25
        %s1388 = smul.u32 8, %s24
        %p1389 = scmp.lt.s32.totalorder %s1388, 7
        %s1390 = scalar_select %p1389, %s1388, 7
        %s1391 = smul.addr %s1390, 32
        %s1392 = smul.addr %s1391, 8
        %s1393 = scalar_lea.vmem %s1, %s1392
        %s1394 = smul.u32 8, %s24
        %s1395 = smul.u32 8, %s24
        %p1396 = scmp.lt.s32.totalorder %s1395, 7
        %s1397 = scalar_select %p1396, %s1395, 7
        %s1398 = smul.addr %s1397, 32
        %s1399 = smul.addr %s1398, 8
        %s1400 = scalar_lea.vmem %s2, %s1399
        %s1401 = smul.u32 8, %s24
        %s1402 = smul.u32 8, %s24
        %s1403 = smul.u32 16, %s25
        %s1404 = smul.u32 8, %s24
        %s1405 = smul.u32 16, %s25
        %s1406 = smul.u32 8, %s24
        %s1407 = smul.u32 16, %s25
        %v1408 = vld [vmem:[%s1334] sm:$0xff]
        %v1409 = vld [vmem:[%s1334 + $0x8] sm:$0xff]
        %v1410 = vld [vmem:[%s1334 + $0x10] sm:$0xff]
        %v1411 = vld [vmem:[%s1334 + $0x18] sm:$0xff]
        %v1412 = vld [vmem:[%s1334 + $0x20] sm:$0xff]
        %v1413 = vld [vmem:[%s1334 + $0x28] sm:$0xff]
        %v1414 = vld [vmem:[%s1334 + $0x30] sm:$0xff]
        %v1415 = vld [vmem:[%s1334 + $0x38] sm:$0xff]
        %v1416 = vld [vmem:[%s1334 + $0x40] sm:$0xff]
        %v1417 = vld [vmem:[%s1334 + $0x48] sm:$0xff]
        %v1418 = vld [vmem:[%s1334 + $0x50] sm:$0xff]
        %v1419 = vld [vmem:[%s1334 + $0x58] sm:$0xff]
        %v1420 = vld [vmem:[%s1334 + $0x60] sm:$0xff]
        %v1421 = vld [vmem:[%s1334 + $0x68] sm:$0xff]
        %v1422 = vld [vmem:[%s1334 + $0x70] sm:$0xff]
        %v1423 = vld [vmem:[%s1334 + $0x78] sm:$0xff]
        %v1424 = vld [vmem:[%s1334 + $0x80] sm:$0xff]
        %v1425 = vld [vmem:[%s1334 + $0x88] sm:$0xff]
        %v1426 = vld [vmem:[%s1334 + $0x90] sm:$0xff]
        %v1427 = vld [vmem:[%s1334 + $0x98] sm:$0xff]
        %v1428 = vld [vmem:[%s1334 + $0xa0] sm:$0xff]
        %v1429 = vld [vmem:[%s1334 + $0xa8] sm:$0xff]
        %v1430 = vld [vmem:[%s1334 + $0xb0] sm:$0xff]
        %v1431 = vld [vmem:[%s1334 + $0xb8] sm:$0xff]
        %v1432 = vld [vmem:[%s1334 + $0xc0] sm:$0xff]
        %v1433 = vld [vmem:[%s1334 + $0xc8] sm:$0xff]
        %v1434 = vld [vmem:[%s1334 + $0xd0] sm:$0xff]
        %v1435 = vld [vmem:[%s1334 + $0xd8] sm:$0xff]
        %v1436 = vld [vmem:[%s1334 + $0xe0] sm:$0xff]
        %v1437 = vld [vmem:[%s1334 + $0xe8] sm:$0xff]
        %v1438 = vld [vmem:[%s1334 + $0xf0] sm:$0xff]
        %v1439 = vld [vmem:[%s1334 + $0xf8] sm:$0xff]
        %v1440 = vld [vmem:[%s1334 + $0x100] sm:$0xff]
        %v1441 = vld [vmem:[%s1334 + $0x108] sm:$0xff]
        %v1442 = vld [vmem:[%s1334 + $0x110] sm:$0xff]
        %v1443 = vld [vmem:[%s1334 + $0x118] sm:$0xff]
        %v1444 = vld [vmem:[%s1334 + $0x120] sm:$0xff]
        %v1445 = vld [vmem:[%s1334 + $0x128] sm:$0xff]
        %v1446 = vld [vmem:[%s1334 + $0x130] sm:$0xff]
        %v1447 = vld [vmem:[%s1334 + $0x138] sm:$0xff]
        %v1448 = vld [vmem:[%s1334 + $0x140] sm:$0xff]
        %v1449 = vld [vmem:[%s1334 + $0x148] sm:$0xff]
        %v1450 = vld [vmem:[%s1334 + $0x150] sm:$0xff]
        %v1451 = vld [vmem:[%s1334 + $0x158] sm:$0xff]
        %v1452 = vld [vmem:[%s1334 + $0x160] sm:$0xff]
        %v1453 = vld [vmem:[%s1334 + $0x168] sm:$0xff]
        %v1454 = vld [vmem:[%s1334 + $0x170] sm:$0xff]
        %v1455 = vld [vmem:[%s1334 + $0x178] sm:$0xff]
        %v1456 = vld [vmem:[%s1334 + $0x180] sm:$0xff]
        %v1457 = vld [vmem:[%s1334 + $0x188] sm:$0xff]
        %v1458 = vld [vmem:[%s1334 + $0x190] sm:$0xff]
        %v1459 = vld [vmem:[%s1334 + $0x198] sm:$0xff]
        %v1460 = vld [vmem:[%s1334 + $0x1a0] sm:$0xff]
        %v1461 = vld [vmem:[%s1334 + $0x1a8] sm:$0xff]
        %v1462 = vld [vmem:[%s1334 + $0x1b0] sm:$0xff]
        %v1463 = vld [vmem:[%s1334 + $0x1b8] sm:$0xff]
        %v1464 = vld [vmem:[%s1334 + $0x1c0] sm:$0xff]
        %v1465 = vld [vmem:[%s1334 + $0x1c8] sm:$0xff]
        %v1466 = vld [vmem:[%s1334 + $0x1d0] sm:$0xff]
        %v1467 = vld [vmem:[%s1334 + $0x1d8] sm:$0xff]
        %v1468 = vld [vmem:[%s1334 + $0x1e0] sm:$0xff]
        %v1469 = vld [vmem:[%s1334 + $0x1e8] sm:$0xff]
        %v1470 = vld [vmem:[%s1334 + $0x1f0] sm:$0xff]
        %v1471 = vld [vmem:[%s1334 + $0x1f8] sm:$0xff]
        %v1472 = vld [vmem:[%s1334 + $0x200] sm:$0xff]
        %v1473 = vld [vmem:[%s1334 + $0x208] sm:$0xff]
        %v1474 = vld [vmem:[%s1334 + $0x210] sm:$0xff]
        %v1475 = vld [vmem:[%s1334 + $0x218] sm:$0xff]
        %v1476 = vld [vmem:[%s1334 + $0x220] sm:$0xff]
        %v1477 = vld [vmem:[%s1334 + $0x228] sm:$0xff]
        %v1478 = vld [vmem:[%s1334 + $0x230] sm:$0xff]
        %v1479 = vld [vmem:[%s1334 + $0x238] sm:$0xff]
        %v1480 = vld [vmem:[%s1334 + $0x240] sm:$0xff]
        %v1481 = vld [vmem:[%s1334 + $0x248] sm:$0xff]
        %v1482 = vld [vmem:[%s1334 + $0x250] sm:$0xff]
        %v1483 = vld [vmem:[%s1334 + $0x258] sm:$0xff]
        %v1484 = vld [vmem:[%s1334 + $0x260] sm:$0xff]
        %v1485 = vld [vmem:[%s1334 + $0x268] sm:$0xff]
        %v1486 = vld [vmem:[%s1334 + $0x270] sm:$0xff]
        %v1487 = vld [vmem:[%s1334 + $0x278] sm:$0xff]
        %v1488 = vld [vmem:[%s1334 + $0x280] sm:$0xff]
        %v1489 = vld [vmem:[%s1334 + $0x288] sm:$0xff]
        %v1490 = vld [vmem:[%s1334 + $0x290] sm:$0xff]
        %v1491 = vld [vmem:[%s1334 + $0x298] sm:$0xff]
        %v1492 = vld [vmem:[%s1334 + $0x2a0] sm:$0xff]
        %v1493 = vld [vmem:[%s1334 + $0x2a8] sm:$0xff]
        %v1494 = vld [vmem:[%s1334 + $0x2b0] sm:$0xff]
        %v1495 = vld [vmem:[%s1334 + $0x2b8] sm:$0xff]
        %v1496 = vld [vmem:[%s1334 + $0x2c0] sm:$0xff]
        %v1497 = vld [vmem:[%s1334 + $0x2c8] sm:$0xff]
        %v1498 = vld [vmem:[%s1334 + $0x2d0] sm:$0xff]
        %v1499 = vld [vmem:[%s1334 + $0x2d8] sm:$0xff]
        %v1500 = vld [vmem:[%s1334 + $0x2e0] sm:$0xff]
        %v1501 = vld [vmem:[%s1334 + $0x2e8] sm:$0xff]
        %v1502 = vld [vmem:[%s1334 + $0x2f0] sm:$0xff]
        %v1503 = vld [vmem:[%s1334 + $0x2f8] sm:$0xff]
        %v1504 = vld [vmem:[%s1334 + $0x300] sm:$0xff]
        %v1505 = vld [vmem:[%s1334 + $0x308] sm:$0xff]
        %v1506 = vld [vmem:[%s1334 + $0x310] sm:$0xff]
        %v1507 = vld [vmem:[%s1334 + $0x318] sm:$0xff]
        %v1508 = vld [vmem:[%s1334 + $0x320] sm:$0xff]
        %v1509 = vld [vmem:[%s1334 + $0x328] sm:$0xff]
        %v1510 = vld [vmem:[%s1334 + $0x330] sm:$0xff]
        %v1511 = vld [vmem:[%s1334 + $0x338] sm:$0xff]
        %v1512 = vld [vmem:[%s1334 + $0x340] sm:$0xff]
        %v1513 = vld [vmem:[%s1334 + $0x348] sm:$0xff]
        %v1514 = vld [vmem:[%s1334 + $0x350] sm:$0xff]
        %v1515 = vld [vmem:[%s1334 + $0x358] sm:$0xff]
        %v1516 = vld [vmem:[%s1334 + $0x360] sm:$0xff]
        %v1517 = vld [vmem:[%s1334 + $0x368] sm:$0xff]
        %v1518 = vld [vmem:[%s1334 + $0x370] sm:$0xff]
        %v1519 = vld [vmem:[%s1334 + $0x378] sm:$0xff]
        %v1520 = vld [vmem:[%s1334 + $0x380] sm:$0xff]
        %v1521 = vld [vmem:[%s1334 + $0x388] sm:$0xff]
        %v1522 = vld [vmem:[%s1334 + $0x390] sm:$0xff]
        %v1523 = vld [vmem:[%s1334 + $0x398] sm:$0xff]
        %v1524 = vld [vmem:[%s1334 + $0x3a0] sm:$0xff]
        %v1525 = vld [vmem:[%s1334 + $0x3a8] sm:$0xff]
        %v1526 = vld [vmem:[%s1334 + $0x3b0] sm:$0xff]
        %v1527 = vld [vmem:[%s1334 + $0x3b8] sm:$0xff]
        %v1528 = vld [vmem:[%s1334 + $0x3c0] sm:$0xff]
        %v1529 = vld [vmem:[%s1334 + $0x3c8] sm:$0xff]
        %v1530 = vld [vmem:[%s1334 + $0x3d0] sm:$0xff]
        %v1531 = vld [vmem:[%s1334 + $0x3d8] sm:$0xff]
        %v1532 = vld [vmem:[%s1334 + $0x3e0] sm:$0xff]
        %v1533 = vld [vmem:[%s1334 + $0x3e8] sm:$0xff]
        %v1534 = vld [vmem:[%s1334 + $0x3f0] sm:$0xff]
        %v1535 = vld [vmem:[%s1334 + $0x3f8] sm:$0xff]
        %v1536 = vld [vmem:[%s1393] sm:$0xff]
        %v1537 = vld [vmem:[%s1393 + $0x8] sm:$0xff]
        %v1538 = vld [vmem:[%s1393 + $0x10] sm:$0xff]
        %v1539 = vld [vmem:[%s1393 + $0x18] sm:$0xff]
        %v1540 = vld [vmem:[%s1393 + $0x20] sm:$0xff]
        %v1541 = vld [vmem:[%s1393 + $0x28] sm:$0xff]
        %v1542 = vld [vmem:[%s1393 + $0x30] sm:$0xff]
        %v1543 = vld [vmem:[%s1393 + $0x38] sm:$0xff]
        %v1544 = vld [vmem:[%s1393 + $0x40] sm:$0xff]
        %v1545 = vld [vmem:[%s1393 + $0x48] sm:$0xff]
        %v1546 = vld [vmem:[%s1393 + $0x50] sm:$0xff]
        %v1547 = vld [vmem:[%s1393 + $0x58] sm:$0xff]
        %v1548 = vld [vmem:[%s1393 + $0x60] sm:$0xff]
        %v1549 = vld [vmem:[%s1393 + $0x68] sm:$0xff]
        %v1550 = vld [vmem:[%s1393 + $0x70] sm:$0xff]
        %v1551 = vld [vmem:[%s1393 + $0x78] sm:$0xff]
        %v1552 = vld [vmem:[%s1393 + $0x80] sm:$0xff]
        %v1553 = vld [vmem:[%s1393 + $0x88] sm:$0xff]
        %v1554 = vld [vmem:[%s1393 + $0x90] sm:$0xff]
        %v1555 = vld [vmem:[%s1393 + $0x98] sm:$0xff]
        %v1556 = vld [vmem:[%s1393 + $0xa0] sm:$0xff]
        %v1557 = vld [vmem:[%s1393 + $0xa8] sm:$0xff]
        %v1558 = vld [vmem:[%s1393 + $0xb0] sm:$0xff]
        %v1559 = vld [vmem:[%s1393 + $0xb8] sm:$0xff]
        %v1560 = vld [vmem:[%s1393 + $0xc0] sm:$0xff]
        %v1561 = vld [vmem:[%s1393 + $0xc8] sm:$0xff]
        %v1562 = vld [vmem:[%s1393 + $0xd0] sm:$0xff]
        %v1563 = vld [vmem:[%s1393 + $0xd8] sm:$0xff]
        %v1564 = vld [vmem:[%s1393 + $0xe0] sm:$0xff]
        %v1565 = vld [vmem:[%s1393 + $0xe8] sm:$0xff]
        %v1566 = vld [vmem:[%s1393 + $0xf0] sm:$0xff]
        %v1567 = vld [vmem:[%s1393 + $0xf8] sm:$0xff]
        %v1568 = vld [vmem:[%s1393 + $0x100] sm:$0xff]
        %v1569 = vld [vmem:[%s1393 + $0x108] sm:$0xff]
        %v1570 = vld [vmem:[%s1393 + $0x110] sm:$0xff]
        %v1571 = vld [vmem:[%s1393 + $0x118] sm:$0xff]
        %v1572 = vld [vmem:[%s1393 + $0x120] sm:$0xff]
        %v1573 = vld [vmem:[%s1393 + $0x128] sm:$0xff]
        %v1574 = vld [vmem:[%s1393 + $0x130] sm:$0xff]
        %v1575 = vld [vmem:[%s1393 + $0x138] sm:$0xff]
        %v1576 = vld [vmem:[%s1393 + $0x140] sm:$0xff]
        %v1577 = vld [vmem:[%s1393 + $0x148] sm:$0xff]
        %v1578 = vld [vmem:[%s1393 + $0x150] sm:$0xff]
        %v1579 = vld [vmem:[%s1393 + $0x158] sm:$0xff]
        %v1580 = vld [vmem:[%s1393 + $0x160] sm:$0xff]
        %v1581 = vld [vmem:[%s1393 + $0x168] sm:$0xff]
        %v1582 = vld [vmem:[%s1393 + $0x170] sm:$0xff]
        %v1583 = vld [vmem:[%s1393 + $0x178] sm:$0xff]
        %v1584 = vld [vmem:[%s1393 + $0x180] sm:$0xff]
        %v1585 = vld [vmem:[%s1393 + $0x188] sm:$0xff]
        %v1586 = vld [vmem:[%s1393 + $0x190] sm:$0xff]
        %v1587 = vld [vmem:[%s1393 + $0x198] sm:$0xff]
        %v1588 = vld [vmem:[%s1393 + $0x1a0] sm:$0xff]
        %v1589 = vld [vmem:[%s1393 + $0x1a8] sm:$0xff]
        %v1590 = vld [vmem:[%s1393 + $0x1b0] sm:$0xff]
        %v1591 = vld [vmem:[%s1393 + $0x1b8] sm:$0xff]
        %v1592 = vld [vmem:[%s1393 + $0x1c0] sm:$0xff]
        %v1593 = vld [vmem:[%s1393 + $0x1c8] sm:$0xff]
        %v1594 = vld [vmem:[%s1393 + $0x1d0] sm:$0xff]
        %v1595 = vld [vmem:[%s1393 + $0x1d8] sm:$0xff]
        %v1596 = vld [vmem:[%s1393 + $0x1e0] sm:$0xff]
        %v1597 = vld [vmem:[%s1393 + $0x1e8] sm:$0xff]
        %v1598 = vld [vmem:[%s1393 + $0x1f0] sm:$0xff]
        %v1599 = vld [vmem:[%s1393 + $0x1f8] sm:$0xff]
        %v1600 = vld [vmem:[%s1393 + $0x200] sm:$0xff]
        %v1601 = vld [vmem:[%s1393 + $0x208] sm:$0xff]
        %v1602 = vld [vmem:[%s1393 + $0x210] sm:$0xff]
        %v1603 = vld [vmem:[%s1393 + $0x218] sm:$0xff]
        %v1604 = vld [vmem:[%s1393 + $0x220] sm:$0xff]
        %v1605 = vld [vmem:[%s1393 + $0x228] sm:$0xff]
        %v1606 = vld [vmem:[%s1393 + $0x230] sm:$0xff]
        %v1607 = vld [vmem:[%s1393 + $0x238] sm:$0xff]
        %v1608 = vld [vmem:[%s1393 + $0x240] sm:$0xff]
        %v1609 = vld [vmem:[%s1393 + $0x248] sm:$0xff]
        %v1610 = vld [vmem:[%s1393 + $0x250] sm:$0xff]
        %v1611 = vld [vmem:[%s1393 + $0x258] sm:$0xff]
        %v1612 = vld [vmem:[%s1393 + $0x260] sm:$0xff]
        %v1613 = vld [vmem:[%s1393 + $0x268] sm:$0xff]
        %v1614 = vld [vmem:[%s1393 + $0x270] sm:$0xff]
        %v1615 = vld [vmem:[%s1393 + $0x278] sm:$0xff]
        %v1616 = vld [vmem:[%s1393 + $0x280] sm:$0xff]
        %v1617 = vld [vmem:[%s1393 + $0x288] sm:$0xff]
        %v1618 = vld [vmem:[%s1393 + $0x290] sm:$0xff]
        %v1619 = vld [vmem:[%s1393 + $0x298] sm:$0xff]
        %v1620 = vld [vmem:[%s1393 + $0x2a0] sm:$0xff]
        %v1621 = vld [vmem:[%s1393 + $0x2a8] sm:$0xff]
        %v1622 = vld [vmem:[%s1393 + $0x2b0] sm:$0xff]
        %v1623 = vld [vmem:[%s1393 + $0x2b8] sm:$0xff]
        %v1624 = vld [vmem:[%s1393 + $0x2c0] sm:$0xff]
        %v1625 = vld [vmem:[%s1393 + $0x2c8] sm:$0xff]
        %v1626 = vld [vmem:[%s1393 + $0x2d0] sm:$0xff]
        %v1627 = vld [vmem:[%s1393 + $0x2d8] sm:$0xff]
        %v1628 = vld [vmem:[%s1393 + $0x2e0] sm:$0xff]
        %v1629 = vld [vmem:[%s1393 + $0x2e8] sm:$0xff]
        %v1630 = vld [vmem:[%s1393 + $0x2f0] sm:$0xff]
        %v1631 = vld [vmem:[%s1393 + $0x2f8] sm:$0xff]
        %v1632 = vld [vmem:[%s1393 + $0x300] sm:$0xff]
        %v1633 = vld [vmem:[%s1393 + $0x308] sm:$0xff]
        %v1634 = vld [vmem:[%s1393 + $0x310] sm:$0xff]
        %v1635 = vld [vmem:[%s1393 + $0x318] sm:$0xff]
        %v1636 = vld [vmem:[%s1393 + $0x320] sm:$0xff]
        %v1637 = vld [vmem:[%s1393 + $0x328] sm:$0xff]
        %v1638 = vld [vmem:[%s1393 + $0x330] sm:$0xff]
        %v1639 = vld [vmem:[%s1393 + $0x338] sm:$0xff]
        %v1640 = vld [vmem:[%s1393 + $0x340] sm:$0xff]
        %v1641 = vld [vmem:[%s1393 + $0x348] sm:$0xff]
        %v1642 = vld [vmem:[%s1393 + $0x350] sm:$0xff]
        %v1643 = vld [vmem:[%s1393 + $0x358] sm:$0xff]
        %v1644 = vld [vmem:[%s1393 + $0x360] sm:$0xff]
        %v1645 = vld [vmem:[%s1393 + $0x368] sm:$0xff]
        %v1646 = vld [vmem:[%s1393 + $0x370] sm:$0xff]
        %v1647 = vld [vmem:[%s1393 + $0x378] sm:$0xff]
        %v1648 = vld [vmem:[%s1393 + $0x380] sm:$0xff]
        %v1649 = vld [vmem:[%s1393 + $0x388] sm:$0xff]
        %v1650 = vld [vmem:[%s1393 + $0x390] sm:$0xff]
        %v1651 = vld [vmem:[%s1393 + $0x398] sm:$0xff]
        %v1652 = vld [vmem:[%s1393 + $0x3a0] sm:$0xff]
        %v1653 = vld [vmem:[%s1393 + $0x3a8] sm:$0xff]
        %v1654 = vld [vmem:[%s1393 + $0x3b0] sm:$0xff]
        %v1655 = vld [vmem:[%s1393 + $0x3b8] sm:$0xff]
        %v1656 = vld [vmem:[%s1393 + $0x3c0] sm:$0xff]
        %v1657 = vld [vmem:[%s1393 + $0x3c8] sm:$0xff]
        %v1658 = vld [vmem:[%s1393 + $0x3d0] sm:$0xff]
        %v1659 = vld [vmem:[%s1393 + $0x3d8] sm:$0xff]
        %v1660 = vld [vmem:[%s1393 + $0x3e0] sm:$0xff]
        %v1661 = vld [vmem:[%s1393 + $0x3e8] sm:$0xff]
        %v1662 = vld [vmem:[%s1393 + $0x3f0] sm:$0xff]
        %v1663 = vld [vmem:[%s1393 + $0x3f8] sm:$0xff]
        %v1664 = vld [vmem:[%s1393 + $0x400] sm:$0xff]
        %v1665 = vld [vmem:[%s1393 + $0x408] sm:$0xff]
        %v1666 = vld [vmem:[%s1393 + $0x410] sm:$0xff]
        %v1667 = vld [vmem:[%s1393 + $0x418] sm:$0xff]
        %v1668 = vld [vmem:[%s1393 + $0x420] sm:$0xff]
        %v1669 = vld [vmem:[%s1393 + $0x428] sm:$0xff]
        %v1670 = vld [vmem:[%s1393 + $0x430] sm:$0xff]
        %v1671 = vld [vmem:[%s1393 + $0x438] sm:$0xff]
        %v1672 = vld [vmem:[%s1393 + $0x440] sm:$0xff]
        %v1673 = vld [vmem:[%s1393 + $0x448] sm:$0xff]
        %v1674 = vld [vmem:[%s1393 + $0x450] sm:$0xff]
        %v1675 = vld [vmem:[%s1393 + $0x458] sm:$0xff]
        %v1676 = vld [vmem:[%s1393 + $0x460] sm:$0xff]
        %v1677 = vld [vmem:[%s1393 + $0x468] sm:$0xff]
        %v1678 = vld [vmem:[%s1393 + $0x470] sm:$0xff]
        %v1679 = vld [vmem:[%s1393 + $0x478] sm:$0xff]
        %v1680 = vld [vmem:[%s1393 + $0x480] sm:$0xff]
        %v1681 = vld [vmem:[%s1393 + $0x488] sm:$0xff]
        %v1682 = vld [vmem:[%s1393 + $0x490] sm:$0xff]
        %v1683 = vld [vmem:[%s1393 + $0x498] sm:$0xff]
        %v1684 = vld [vmem:[%s1393 + $0x4a0] sm:$0xff]
        %v1685 = vld [vmem:[%s1393 + $0x4a8] sm:$0xff]
        %v1686 = vld [vmem:[%s1393 + $0x4b0] sm:$0xff]
        %v1687 = vld [vmem:[%s1393 + $0x4b8] sm:$0xff]
        %v1688 = vld [vmem:[%s1393 + $0x4c0] sm:$0xff]
        %v1689 = vld [vmem:[%s1393 + $0x4c8] sm:$0xff]
        %v1690 = vld [vmem:[%s1393 + $0x4d0] sm:$0xff]
        %v1691 = vld [vmem:[%s1393 + $0x4d8] sm:$0xff]
        %v1692 = vld [vmem:[%s1393 + $0x4e0] sm:$0xff]
        %v1693 = vld [vmem:[%s1393 + $0x4e8] sm:$0xff]
        %v1694 = vld [vmem:[%s1393 + $0x4f0] sm:$0xff]
        %v1695 = vld [vmem:[%s1393 + $0x4f8] sm:$0xff]
        %v1696 = vld [vmem:[%s1393 + $0x500] sm:$0xff]
        %v1697 = vld [vmem:[%s1393 + $0x508] sm:$0xff]
        %v1698 = vld [vmem:[%s1393 + $0x510] sm:$0xff]
        %v1699 = vld [vmem:[%s1393 + $0x518] sm:$0xff]
        %v1700 = vld [vmem:[%s1393 + $0x520] sm:$0xff]
        %v1701 = vld [vmem:[%s1393 + $0x528] sm:$0xff]
        %v1702 = vld [vmem:[%s1393 + $0x530] sm:$0xff]
        %v1703 = vld [vmem:[%s1393 + $0x538] sm:$0xff]
        %v1704 = vld [vmem:[%s1393 + $0x540] sm:$0xff]
        %v1705 = vld [vmem:[%s1393 + $0x548] sm:$0xff]
        %v1706 = vld [vmem:[%s1393 + $0x550] sm:$0xff]
        %v1707 = vld [vmem:[%s1393 + $0x558] sm:$0xff]
        %v1708 = vld [vmem:[%s1393 + $0x560] sm:$0xff]
        %v1709 = vld [vmem:[%s1393 + $0x568] sm:$0xff]
        %v1710 = vld [vmem:[%s1393 + $0x570] sm:$0xff]
        %v1711 = vld [vmem:[%s1393 + $0x578] sm:$0xff]
        %v1712 = vld [vmem:[%s1393 + $0x580] sm:$0xff]
        %v1713 = vld [vmem:[%s1393 + $0x588] sm:$0xff]
        %v1714 = vld [vmem:[%s1393 + $0x590] sm:$0xff]
        %v1715 = vld [vmem:[%s1393 + $0x598] sm:$0xff]
        %v1716 = vld [vmem:[%s1393 + $0x5a0] sm:$0xff]
        %v1717 = vld [vmem:[%s1393 + $0x5a8] sm:$0xff]
        %v1718 = vld [vmem:[%s1393 + $0x5b0] sm:$0xff]
        %v1719 = vld [vmem:[%s1393 + $0x5b8] sm:$0xff]
        %v1720 = vld [vmem:[%s1393 + $0x5c0] sm:$0xff]
        %v1721 = vld [vmem:[%s1393 + $0x5c8] sm:$0xff]
        %v1722 = vld [vmem:[%s1393 + $0x5d0] sm:$0xff]
        %v1723 = vld [vmem:[%s1393 + $0x5d8] sm:$0xff]
        %v1724 = vld [vmem:[%s1393 + $0x5e0] sm:$0xff]
        %v1725 = vld [vmem:[%s1393 + $0x5e8] sm:$0xff]
        %v1726 = vld [vmem:[%s1393 + $0x5f0] sm:$0xff]
        %v1727 = vld [vmem:[%s1393 + $0x5f8] sm:$0xff]
        %v1728 = vld [vmem:[%s1393 + $0x600] sm:$0xff]
        %v1729 = vld [vmem:[%s1393 + $0x608] sm:$0xff]
        %v1730 = vld [vmem:[%s1393 + $0x610] sm:$0xff]
        %v1731 = vld [vmem:[%s1393 + $0x618] sm:$0xff]
        %v1732 = vld [vmem:[%s1393 + $0x620] sm:$0xff]
        %v1733 = vld [vmem:[%s1393 + $0x628] sm:$0xff]
        %v1734 = vld [vmem:[%s1393 + $0x630] sm:$0xff]
        %v1735 = vld [vmem:[%s1393 + $0x638] sm:$0xff]
        %v1736 = vld [vmem:[%s1393 + $0x640] sm:$0xff]
        %v1737 = vld [vmem:[%s1393 + $0x648] sm:$0xff]
        %v1738 = vld [vmem:[%s1393 + $0x650] sm:$0xff]
        %v1739 = vld [vmem:[%s1393 + $0x658] sm:$0xff]
        %v1740 = vld [vmem:[%s1393 + $0x660] sm:$0xff]
        %v1741 = vld [vmem:[%s1393 + $0x668] sm:$0xff]
        %v1742 = vld [vmem:[%s1393 + $0x670] sm:$0xff]
        %v1743 = vld [vmem:[%s1393 + $0x678] sm:$0xff]
        %v1744 = vld [vmem:[%s1393 + $0x680] sm:$0xff]
        %v1745 = vld [vmem:[%s1393 + $0x688] sm:$0xff]
        %v1746 = vld [vmem:[%s1393 + $0x690] sm:$0xff]
        %v1747 = vld [vmem:[%s1393 + $0x698] sm:$0xff]
        %v1748 = vld [vmem:[%s1393 + $0x6a0] sm:$0xff]
        %v1749 = vld [vmem:[%s1393 + $0x6a8] sm:$0xff]
        %v1750 = vld [vmem:[%s1393 + $0x6b0] sm:$0xff]
        %v1751 = vld [vmem:[%s1393 + $0x6b8] sm:$0xff]
        %v1752 = vld [vmem:[%s1393 + $0x6c0] sm:$0xff]
        %v1753 = vld [vmem:[%s1393 + $0x6c8] sm:$0xff]
        %v1754 = vld [vmem:[%s1393 + $0x6d0] sm:$0xff]
        %v1755 = vld [vmem:[%s1393 + $0x6d8] sm:$0xff]
        %v1756 = vld [vmem:[%s1393 + $0x6e0] sm:$0xff]
        %v1757 = vld [vmem:[%s1393 + $0x6e8] sm:$0xff]
        %v1758 = vld [vmem:[%s1393 + $0x6f0] sm:$0xff]
        %v1759 = vld [vmem:[%s1393 + $0x6f8] sm:$0xff]
        %v1760 = vld [vmem:[%s1393 + $0x700] sm:$0xff]
        %v1761 = vld [vmem:[%s1393 + $0x708] sm:$0xff]
        %v1762 = vld [vmem:[%s1393 + $0x710] sm:$0xff]
        %v1763 = vld [vmem:[%s1393 + $0x718] sm:$0xff]
        %v1764 = vld [vmem:[%s1393 + $0x720] sm:$0xff]
        %v1765 = vld [vmem:[%s1393 + $0x728] sm:$0xff]
        %v1766 = vld [vmem:[%s1393 + $0x730] sm:$0xff]
        %v1767 = vld [vmem:[%s1393 + $0x738] sm:$0xff]
        %v1768 = vld [vmem:[%s1393 + $0x740] sm:$0xff]
        %v1769 = vld [vmem:[%s1393 + $0x748] sm:$0xff]
        %v1770 = vld [vmem:[%s1393 + $0x750] sm:$0xff]
        %v1771 = vld [vmem:[%s1393 + $0x758] sm:$0xff]
        %v1772 = vld [vmem:[%s1393 + $0x760] sm:$0xff]
        %v1773 = vld [vmem:[%s1393 + $0x768] sm:$0xff]
        %v1774 = vld [vmem:[%s1393 + $0x770] sm:$0xff]
        %v1775 = vld [vmem:[%s1393 + $0x778] sm:$0xff]
        %v1776 = vld [vmem:[%s1393 + $0x780] sm:$0xff]
        %v1777 = vld [vmem:[%s1393 + $0x788] sm:$0xff]
        %v1778 = vld [vmem:[%s1393 + $0x790] sm:$0xff]
        %v1779 = vld [vmem:[%s1393 + $0x798] sm:$0xff]
        %v1780 = vld [vmem:[%s1393 + $0x7a0] sm:$0xff]
        %v1781 = vld [vmem:[%s1393 + $0x7a8] sm:$0xff]
        %v1782 = vld [vmem:[%s1393 + $0x7b0] sm:$0xff]
        %v1783 = vld [vmem:[%s1393 + $0x7b8] sm:$0xff]
        %v1784 = vld [vmem:[%s1393 + $0x7c0] sm:$0xff]
        %v1785 = vld [vmem:[%s1393 + $0x7c8] sm:$0xff]
        %v1786 = vld [vmem:[%s1393 + $0x7d0] sm:$0xff]
        %v1787 = vld [vmem:[%s1393 + $0x7d8] sm:$0xff]
        %v1788 = vld [vmem:[%s1393 + $0x7e0] sm:$0xff]
        %v1789 = vld [vmem:[%s1393 + $0x7e8] sm:$0xff]
        %v1790 = vld [vmem:[%s1393 + $0x7f0] sm:$0xff]
        %v1791 = vld [vmem:[%s1393 + $0x7f8] sm:$0xff]
        %v1792 = vld [vmem:[%s1400] sm:$0xff]
        %v1793 = vld [vmem:[%s1400 + $0x8] sm:$0xff]
        %v1794 = vld [vmem:[%s1400 + $0x10] sm:$0xff]
        %v1795 = vld [vmem:[%s1400 + $0x18] sm:$0xff]
        %v1796 = vld [vmem:[%s1400 + $0x20] sm:$0xff]
        %v1797 = vld [vmem:[%s1400 + $0x28] sm:$0xff]
        %v1798 = vld [vmem:[%s1400 + $0x30] sm:$0xff]
        %v1799 = vld [vmem:[%s1400 + $0x38] sm:$0xff]
        %v1800 = vld [vmem:[%s1400 + $0x40] sm:$0xff]
        %v1801 = vld [vmem:[%s1400 + $0x48] sm:$0xff]
        %v1802 = vld [vmem:[%s1400 + $0x50] sm:$0xff]
        %v1803 = vld [vmem:[%s1400 + $0x58] sm:$0xff]
        %v1804 = vld [vmem:[%s1400 + $0x60] sm:$0xff]
        %v1805 = vld [vmem:[%s1400 + $0x68] sm:$0xff]
        %v1806 = vld [vmem:[%s1400 + $0x70] sm:$0xff]
        %v1807 = vld [vmem:[%s1400 + $0x78] sm:$0xff]
        %v1808 = vld [vmem:[%s1400 + $0x80] sm:$0xff]
        %v1809 = vld [vmem:[%s1400 + $0x88] sm:$0xff]
        %v1810 = vld [vmem:[%s1400 + $0x90] sm:$0xff]
        %v1811 = vld [vmem:[%s1400 + $0x98] sm:$0xff]
        %v1812 = vld [vmem:[%s1400 + $0xa0] sm:$0xff]
        %v1813 = vld [vmem:[%s1400 + $0xa8] sm:$0xff]
        %v1814 = vld [vmem:[%s1400 + $0xb0] sm:$0xff]
        %v1815 = vld [vmem:[%s1400 + $0xb8] sm:$0xff]
        %v1816 = vld [vmem:[%s1400 + $0xc0] sm:$0xff]
        %v1817 = vld [vmem:[%s1400 + $0xc8] sm:$0xff]
        %v1818 = vld [vmem:[%s1400 + $0xd0] sm:$0xff]
        %v1819 = vld [vmem:[%s1400 + $0xd8] sm:$0xff]
        %v1820 = vld [vmem:[%s1400 + $0xe0] sm:$0xff]
        %v1821 = vld [vmem:[%s1400 + $0xe8] sm:$0xff]
        %v1822 = vld [vmem:[%s1400 + $0xf0] sm:$0xff]
        %v1823 = vld [vmem:[%s1400 + $0xf8] sm:$0xff]
        %v1824 = vld [vmem:[%s1400 + $0x100] sm:$0xff]
        %v1825 = vld [vmem:[%s1400 + $0x108] sm:$0xff]
        %v1826 = vld [vmem:[%s1400 + $0x110] sm:$0xff]
        %v1827 = vld [vmem:[%s1400 + $0x118] sm:$0xff]
        %v1828 = vld [vmem:[%s1400 + $0x120] sm:$0xff]
        %v1829 = vld [vmem:[%s1400 + $0x128] sm:$0xff]
        %v1830 = vld [vmem:[%s1400 + $0x130] sm:$0xff]
        %v1831 = vld [vmem:[%s1400 + $0x138] sm:$0xff]
        %v1832 = vld [vmem:[%s1400 + $0x140] sm:$0xff]
        %v1833 = vld [vmem:[%s1400 + $0x148] sm:$0xff]
        %v1834 = vld [vmem:[%s1400 + $0x150] sm:$0xff]
        %v1835 = vld [vmem:[%s1400 + $0x158] sm:$0xff]
        %v1836 = vld [vmem:[%s1400 + $0x160] sm:$0xff]
        %v1837 = vld [vmem:[%s1400 + $0x168] sm:$0xff]
        %v1838 = vld [vmem:[%s1400 + $0x170] sm:$0xff]
        %v1839 = vld [vmem:[%s1400 + $0x178] sm:$0xff]
        %v1840 = vld [vmem:[%s1400 + $0x180] sm:$0xff]
        %v1841 = vld [vmem:[%s1400 + $0x188] sm:$0xff]
        %v1842 = vld [vmem:[%s1400 + $0x190] sm:$0xff]
        %v1843 = vld [vmem:[%s1400 + $0x198] sm:$0xff]
        %v1844 = vld [vmem:[%s1400 + $0x1a0] sm:$0xff]
        %v1845 = vld [vmem:[%s1400 + $0x1a8] sm:$0xff]
        %v1846 = vld [vmem:[%s1400 + $0x1b0] sm:$0xff]
        %v1847 = vld [vmem:[%s1400 + $0x1b8] sm:$0xff]
        %v1848 = vld [vmem:[%s1400 + $0x1c0] sm:$0xff]
        %v1849 = vld [vmem:[%s1400 + $0x1c8] sm:$0xff]
        %v1850 = vld [vmem:[%s1400 + $0x1d0] sm:$0xff]
        %v1851 = vld [vmem:[%s1400 + $0x1d8] sm:$0xff]
        %v1852 = vld [vmem:[%s1400 + $0x1e0] sm:$0xff]
        %v1853 = vld [vmem:[%s1400 + $0x1e8] sm:$0xff]
        %v1854 = vld [vmem:[%s1400 + $0x1f0] sm:$0xff]
        %v1855 = vld [vmem:[%s1400 + $0x1f8] sm:$0xff]
        %v1856 = vld [vmem:[%s1400 + $0x200] sm:$0xff]
        %v1857 = vld [vmem:[%s1400 + $0x208] sm:$0xff]
        %v1858 = vld [vmem:[%s1400 + $0x210] sm:$0xff]
        %v1859 = vld [vmem:[%s1400 + $0x218] sm:$0xff]
        %v1860 = vld [vmem:[%s1400 + $0x220] sm:$0xff]
        %v1861 = vld [vmem:[%s1400 + $0x228] sm:$0xff]
        %v1862 = vld [vmem:[%s1400 + $0x230] sm:$0xff]
        %v1863 = vld [vmem:[%s1400 + $0x238] sm:$0xff]
        %v1864 = vld [vmem:[%s1400 + $0x240] sm:$0xff]
        %v1865 = vld [vmem:[%s1400 + $0x248] sm:$0xff]
        %v1866 = vld [vmem:[%s1400 + $0x250] sm:$0xff]
        %v1867 = vld [vmem:[%s1400 + $0x258] sm:$0xff]
        %v1868 = vld [vmem:[%s1400 + $0x260] sm:$0xff]
        %v1869 = vld [vmem:[%s1400 + $0x268] sm:$0xff]
        %v1870 = vld [vmem:[%s1400 + $0x270] sm:$0xff]
        %v1871 = vld [vmem:[%s1400 + $0x278] sm:$0xff]
        %v1872 = vld [vmem:[%s1400 + $0x280] sm:$0xff]
        %v1873 = vld [vmem:[%s1400 + $0x288] sm:$0xff]
        %v1874 = vld [vmem:[%s1400 + $0x290] sm:$0xff]
        %v1875 = vld [vmem:[%s1400 + $0x298] sm:$0xff]
        %v1876 = vld [vmem:[%s1400 + $0x2a0] sm:$0xff]
        %v1877 = vld [vmem:[%s1400 + $0x2a8] sm:$0xff]
        %v1878 = vld [vmem:[%s1400 + $0x2b0] sm:$0xff]
        %v1879 = vld [vmem:[%s1400 + $0x2b8] sm:$0xff]
        %v1880 = vld [vmem:[%s1400 + $0x2c0] sm:$0xff]
        %v1881 = vld [vmem:[%s1400 + $0x2c8] sm:$0xff]
        %v1882 = vld [vmem:[%s1400 + $0x2d0] sm:$0xff]
        %v1883 = vld [vmem:[%s1400 + $0x2d8] sm:$0xff]
        %v1884 = vld [vmem:[%s1400 + $0x2e0] sm:$0xff]
        %v1885 = vld [vmem:[%s1400 + $0x2e8] sm:$0xff]
        %v1886 = vld [vmem:[%s1400 + $0x2f0] sm:$0xff]
        %v1887 = vld [vmem:[%s1400 + $0x2f8] sm:$0xff]
        %v1888 = vld [vmem:[%s1400 + $0x300] sm:$0xff]
        %v1889 = vld [vmem:[%s1400 + $0x308] sm:$0xff]
        %v1890 = vld [vmem:[%s1400 + $0x310] sm:$0xff]
        %v1891 = vld [vmem:[%s1400 + $0x318] sm:$0xff]
        %v1892 = vld [vmem:[%s1400 + $0x320] sm:$0xff]
        %v1893 = vld [vmem:[%s1400 + $0x328] sm:$0xff]
        %v1894 = vld [vmem:[%s1400 + $0x330] sm:$0xff]
        %v1895 = vld [vmem:[%s1400 + $0x338] sm:$0xff]
        %v1896 = vld [vmem:[%s1400 + $0x340] sm:$0xff]
        %v1897 = vld [vmem:[%s1400 + $0x348] sm:$0xff]
        %v1898 = vld [vmem:[%s1400 + $0x350] sm:$0xff]
        %v1899 = vld [vmem:[%s1400 + $0x358] sm:$0xff]
        %v1900 = vld [vmem:[%s1400 + $0x360] sm:$0xff]
        %v1901 = vld [vmem:[%s1400 + $0x368] sm:$0xff]
        %v1902 = vld [vmem:[%s1400 + $0x370] sm:$0xff]
        %v1903 = vld [vmem:[%s1400 + $0x378] sm:$0xff]
        %v1904 = vld [vmem:[%s1400 + $0x380] sm:$0xff]
        %v1905 = vld [vmem:[%s1400 + $0x388] sm:$0xff]
        %v1906 = vld [vmem:[%s1400 + $0x390] sm:$0xff]
        %v1907 = vld [vmem:[%s1400 + $0x398] sm:$0xff]
        %v1908 = vld [vmem:[%s1400 + $0x3a0] sm:$0xff]
        %v1909 = vld [vmem:[%s1400 + $0x3a8] sm:$0xff]
        %v1910 = vld [vmem:[%s1400 + $0x3b0] sm:$0xff]
        %v1911 = vld [vmem:[%s1400 + $0x3b8] sm:$0xff]
        %v1912 = vld [vmem:[%s1400 + $0x3c0] sm:$0xff]
        %v1913 = vld [vmem:[%s1400 + $0x3c8] sm:$0xff]
        %v1914 = vld [vmem:[%s1400 + $0x3d0] sm:$0xff]
        %v1915 = vld [vmem:[%s1400 + $0x3d8] sm:$0xff]
        %v1916 = vld [vmem:[%s1400 + $0x3e0] sm:$0xff]
        %v1917 = vld [vmem:[%s1400 + $0x3e8] sm:$0xff]
        %v1918 = vld [vmem:[%s1400 + $0x3f0] sm:$0xff]
        %v1919 = vld [vmem:[%s1400 + $0x3f8] sm:$0xff]
        %v1920 = vld [vmem:[%s1400 + $0x400] sm:$0xff]
        %v1921 = vld [vmem:[%s1400 + $0x408] sm:$0xff]
        %v1922 = vld [vmem:[%s1400 + $0x410] sm:$0xff]
        %v1923 = vld [vmem:[%s1400 + $0x418] sm:$0xff]
        %v1924 = vld [vmem:[%s1400 + $0x420] sm:$0xff]
        %v1925 = vld [vmem:[%s1400 + $0x428] sm:$0xff]
        %v1926 = vld [vmem:[%s1400 + $0x430] sm:$0xff]
        %v1927 = vld [vmem:[%s1400 + $0x438] sm:$0xff]
        %v1928 = vld [vmem:[%s1400 + $0x440] sm:$0xff]
        %v1929 = vld [vmem:[%s1400 + $0x448] sm:$0xff]
        %v1930 = vld [vmem:[%s1400 + $0x450] sm:$0xff]
        %v1931 = vld [vmem:[%s1400 + $0x458] sm:$0xff]
        %v1932 = vld [vmem:[%s1400 + $0x460] sm:$0xff]
        %v1933 = vld [vmem:[%s1400 + $0x468] sm:$0xff]
        %v1934 = vld [vmem:[%s1400 + $0x470] sm:$0xff]
        %v1935 = vld [vmem:[%s1400 + $0x478] sm:$0xff]
        %v1936 = vld [vmem:[%s1400 + $0x480] sm:$0xff]
        %v1937 = vld [vmem:[%s1400 + $0x488] sm:$0xff]
        %v1938 = vld [vmem:[%s1400 + $0x490] sm:$0xff]
        %v1939 = vld [vmem:[%s1400 + $0x498] sm:$0xff]
        %v1940 = vld [vmem:[%s1400 + $0x4a0] sm:$0xff]
        %v1941 = vld [vmem:[%s1400 + $0x4a8] sm:$0xff]
        %v1942 = vld [vmem:[%s1400 + $0x4b0] sm:$0xff]
        %v1943 = vld [vmem:[%s1400 + $0x4b8] sm:$0xff]
        %v1944 = vld [vmem:[%s1400 + $0x4c0] sm:$0xff]
        %v1945 = vld [vmem:[%s1400 + $0x4c8] sm:$0xff]
        %v1946 = vld [vmem:[%s1400 + $0x4d0] sm:$0xff]
        %v1947 = vld [vmem:[%s1400 + $0x4d8] sm:$0xff]
        %v1948 = vld [vmem:[%s1400 + $0x4e0] sm:$0xff]
        %v1949 = vld [vmem:[%s1400 + $0x4e8] sm:$0xff]
        %v1950 = vld [vmem:[%s1400 + $0x4f0] sm:$0xff]
        %v1951 = vld [vmem:[%s1400 + $0x4f8] sm:$0xff]
        %v1952 = vld [vmem:[%s1400 + $0x500] sm:$0xff]
        %v1953 = vld [vmem:[%s1400 + $0x508] sm:$0xff]
        %v1954 = vld [vmem:[%s1400 + $0x510] sm:$0xff]
        %v1955 = vld [vmem:[%s1400 + $0x518] sm:$0xff]
        %v1956 = vld [vmem:[%s1400 + $0x520] sm:$0xff]
        %v1957 = vld [vmem:[%s1400 + $0x528] sm:$0xff]
        %v1958 = vld [vmem:[%s1400 + $0x530] sm:$0xff]
        %v1959 = vld [vmem:[%s1400 + $0x538] sm:$0xff]
        %v1960 = vld [vmem:[%s1400 + $0x540] sm:$0xff]
        %v1961 = vld [vmem:[%s1400 + $0x548] sm:$0xff]
        %v1962 = vld [vmem:[%s1400 + $0x550] sm:$0xff]
        %v1963 = vld [vmem:[%s1400 + $0x558] sm:$0xff]
        %v1964 = vld [vmem:[%s1400 + $0x560] sm:$0xff]
        %v1965 = vld [vmem:[%s1400 + $0x568] sm:$0xff]
        %v1966 = vld [vmem:[%s1400 + $0x570] sm:$0xff]
        %v1967 = vld [vmem:[%s1400 + $0x578] sm:$0xff]
        %v1968 = vld [vmem:[%s1400 + $0x580] sm:$0xff]
        %v1969 = vld [vmem:[%s1400 + $0x588] sm:$0xff]
        %v1970 = vld [vmem:[%s1400 + $0x590] sm:$0xff]
        %v1971 = vld [vmem:[%s1400 + $0x598] sm:$0xff]
        %v1972 = vld [vmem:[%s1400 + $0x5a0] sm:$0xff]
        %v1973 = vld [vmem:[%s1400 + $0x5a8] sm:$0xff]
        %v1974 = vld [vmem:[%s1400 + $0x5b0] sm:$0xff]
        %v1975 = vld [vmem:[%s1400 + $0x5b8] sm:$0xff]
        %v1976 = vld [vmem:[%s1400 + $0x5c0] sm:$0xff]
        %v1977 = vld [vmem:[%s1400 + $0x5c8] sm:$0xff]
        %v1978 = vld [vmem:[%s1400 + $0x5d0] sm:$0xff]
        %v1979 = vld [vmem:[%s1400 + $0x5d8] sm:$0xff]
        %v1980 = vld [vmem:[%s1400 + $0x5e0] sm:$0xff]
        %v1981 = vld [vmem:[%s1400 + $0x5e8] sm:$0xff]
        %v1982 = vld [vmem:[%s1400 + $0x5f0] sm:$0xff]
        %v1983 = vld [vmem:[%s1400 + $0x5f8] sm:$0xff]
        %v1984 = vld [vmem:[%s1400 + $0x600] sm:$0xff]
        %v1985 = vld [vmem:[%s1400 + $0x608] sm:$0xff]
        %v1986 = vld [vmem:[%s1400 + $0x610] sm:$0xff]
        %v1987 = vld [vmem:[%s1400 + $0x618] sm:$0xff]
        %v1988 = vld [vmem:[%s1400 + $0x620] sm:$0xff]
        %v1989 = vld [vmem:[%s1400 + $0x628] sm:$0xff]
        %v1990 = vld [vmem:[%s1400 + $0x630] sm:$0xff]
        %v1991 = vld [vmem:[%s1400 + $0x638] sm:$0xff]
        %v1992 = vld [vmem:[%s1400 + $0x640] sm:$0xff]
        %v1993 = vld [vmem:[%s1400 + $0x648] sm:$0xff]
        %v1994 = vld [vmem:[%s1400 + $0x650] sm:$0xff]
        %v1995 = vld [vmem:[%s1400 + $0x658] sm:$0xff]
        %v1996 = vld [vmem:[%s1400 + $0x660] sm:$0xff]
        %v1997 = vld [vmem:[%s1400 + $0x668] sm:$0xff]
        %v1998 = vld [vmem:[%s1400 + $0x670] sm:$0xff]
        %v1999 = vld [vmem:[%s1400 + $0x678] sm:$0xff]
        %v2000 = vld [vmem:[%s1400 + $0x680] sm:$0xff]
        %v2001 = vld [vmem:[%s1400 + $0x688] sm:$0xff]
        %v2002 = vld [vmem:[%s1400 + $0x690] sm:$0xff]
        %v2003 = vld [vmem:[%s1400 + $0x698] sm:$0xff]
        %v2004 = vld [vmem:[%s1400 + $0x6a0] sm:$0xff]
        %v2005 = vld [vmem:[%s1400 + $0x6a8] sm:$0xff]
        %v2006 = vld [vmem:[%s1400 + $0x6b0] sm:$0xff]
        %v2007 = vld [vmem:[%s1400 + $0x6b8] sm:$0xff]
        %v2008 = vld [vmem:[%s1400 + $0x6c0] sm:$0xff]
        %v2009 = vld [vmem:[%s1400 + $0x6c8] sm:$0xff]
        %v2010 = vld [vmem:[%s1400 + $0x6d0] sm:$0xff]
        %v2011 = vld [vmem:[%s1400 + $0x6d8] sm:$0xff]
        %v2012 = vld [vmem:[%s1400 + $0x6e0] sm:$0xff]
        %v2013 = vld [vmem:[%s1400 + $0x6e8] sm:$0xff]
        %v2014 = vld [vmem:[%s1400 + $0x6f0] sm:$0xff]
        %v2015 = vld [vmem:[%s1400 + $0x6f8] sm:$0xff]
        %v2016 = vld [vmem:[%s1400 + $0x700] sm:$0xff]
        %v2017 = vld [vmem:[%s1400 + $0x708] sm:$0xff]
        %v2018 = vld [vmem:[%s1400 + $0x710] sm:$0xff]
        %v2019 = vld [vmem:[%s1400 + $0x718] sm:$0xff]
        %v2020 = vld [vmem:[%s1400 + $0x720] sm:$0xff]
        %v2021 = vld [vmem:[%s1400 + $0x728] sm:$0xff]
        %v2022 = vld [vmem:[%s1400 + $0x730] sm:$0xff]
        %v2023 = vld [vmem:[%s1400 + $0x738] sm:$0xff]
        %v2024 = vld [vmem:[%s1400 + $0x740] sm:$0xff]
        %v2025 = vld [vmem:[%s1400 + $0x748] sm:$0xff]
        %v2026 = vld [vmem:[%s1400 + $0x750] sm:$0xff]
        %v2027 = vld [vmem:[%s1400 + $0x758] sm:$0xff]
        %v2028 = vld [vmem:[%s1400 + $0x760] sm:$0xff]
        %v2029 = vld [vmem:[%s1400 + $0x768] sm:$0xff]
        %v2030 = vld [vmem:[%s1400 + $0x770] sm:$0xff]
        %v2031 = vld [vmem:[%s1400 + $0x778] sm:$0xff]
        %v2032 = vld [vmem:[%s1400 + $0x780] sm:$0xff]
        %v2033 = vld [vmem:[%s1400 + $0x788] sm:$0xff]
        %v2034 = vld [vmem:[%s1400 + $0x790] sm:$0xff]
        %v2035 = vld [vmem:[%s1400 + $0x798] sm:$0xff]
        %v2036 = vld [vmem:[%s1400 + $0x7a0] sm:$0xff]
        %v2037 = vld [vmem:[%s1400 + $0x7a8] sm:$0xff]
        %v2038 = vld [vmem:[%s1400 + $0x7b0] sm:$0xff]
        %v2039 = vld [vmem:[%s1400 + $0x7b8] sm:$0xff]
        %v2040 = vld [vmem:[%s1400 + $0x7c0] sm:$0xff]
        %v2041 = vld [vmem:[%s1400 + $0x7c8] sm:$0xff]
        %v2042 = vld [vmem:[%s1400 + $0x7d0] sm:$0xff]
        %v2043 = vld [vmem:[%s1400 + $0x7d8] sm:$0xff]
        %v2044 = vld [vmem:[%s1400 + $0x7e0] sm:$0xff]
        %v2045 = vld [vmem:[%s1400 + $0x7e8] sm:$0xff]
        %v2046 = vld [vmem:[%s1400 + $0x7f0] sm:$0xff]
        %v2047 = vld [vmem:[%s1400 + $0x7f8] sm:$0xff]
        %v2048 = vld [vmem:[%s1341] sm:$0xff]
        %v2049 = vld [vmem:[%s1341 + $0x8] sm:$0xff]
        %v2050 = vld [vmem:[%s1341 + $0x10] sm:$0xff]
        %v2051 = vld [vmem:[%s1341 + $0x18] sm:$0xff]
        %v2052 = vld [vmem:[%s1341 + $0x20] sm:$0xff]
        %v2053 = vld [vmem:[%s1341 + $0x28] sm:$0xff]
        %v2054 = vld [vmem:[%s1341 + $0x30] sm:$0xff]
        %v2055 = vld [vmem:[%s1341 + $0x38] sm:$0xff]
        %v2056 = vld [vmem:[%s1341 + $0x40] sm:$0xff]
        %v2057 = vld [vmem:[%s1341 + $0x48] sm:$0xff]
        %v2058 = vld [vmem:[%s1341 + $0x50] sm:$0xff]
        %v2059 = vld [vmem:[%s1341 + $0x58] sm:$0xff]
        %v2060 = vld [vmem:[%s1341 + $0x60] sm:$0xff]
        %v2061 = vld [vmem:[%s1341 + $0x68] sm:$0xff]
        %v2062 = vld [vmem:[%s1341 + $0x70] sm:$0xff]
        %v2063 = vld [vmem:[%s1341 + $0x78] sm:$0xff]
        %v2064 = vld [vmem:[%s1341 + $0x80] sm:$0xff]
        %v2065 = vld [vmem:[%s1341 + $0x88] sm:$0xff]
        %v2066 = vld [vmem:[%s1341 + $0x90] sm:$0xff]
        %v2067 = vld [vmem:[%s1341 + $0x98] sm:$0xff]
        %v2068 = vld [vmem:[%s1341 + $0xa0] sm:$0xff]
        %v2069 = vld [vmem:[%s1341 + $0xa8] sm:$0xff]
        %v2070 = vld [vmem:[%s1341 + $0xb0] sm:$0xff]
        %v2071 = vld [vmem:[%s1341 + $0xb8] sm:$0xff]
        %v2072 = vld [vmem:[%s1341 + $0xc0] sm:$0xff]
        %v2073 = vld [vmem:[%s1341 + $0xc8] sm:$0xff]
        %v2074 = vld [vmem:[%s1341 + $0xd0] sm:$0xff]
        %v2075 = vld [vmem:[%s1341 + $0xd8] sm:$0xff]
        %v2076 = vld [vmem:[%s1341 + $0xe0] sm:$0xff]
        %v2077 = vld [vmem:[%s1341 + $0xe8] sm:$0xff]
        %v2078 = vld [vmem:[%s1341 + $0xf0] sm:$0xff]
        %v2079 = vld [vmem:[%s1341 + $0xf8] sm:$0xff]
        %v2080 = vld [vmem:[%s1341 + $0x100] sm:$0xff]
        %v2081 = vld [vmem:[%s1341 + $0x108] sm:$0xff]
        %v2082 = vld [vmem:[%s1341 + $0x110] sm:$0xff]
        %v2083 = vld [vmem:[%s1341 + $0x118] sm:$0xff]
        %v2084 = vld [vmem:[%s1341 + $0x120] sm:$0xff]
        %v2085 = vld [vmem:[%s1341 + $0x128] sm:$0xff]
        %v2086 = vld [vmem:[%s1341 + $0x130] sm:$0xff]
        %v2087 = vld [vmem:[%s1341 + $0x138] sm:$0xff]
        %v2088 = vld [vmem:[%s1341 + $0x140] sm:$0xff]
        %v2089 = vld [vmem:[%s1341 + $0x148] sm:$0xff]
        %v2090 = vld [vmem:[%s1341 + $0x150] sm:$0xff]
        %v2091 = vld [vmem:[%s1341 + $0x158] sm:$0xff]
        %v2092 = vld [vmem:[%s1341 + $0x160] sm:$0xff]
        %v2093 = vld [vmem:[%s1341 + $0x168] sm:$0xff]
        %v2094 = vld [vmem:[%s1341 + $0x170] sm:$0xff]
        %v2095 = vld [vmem:[%s1341 + $0x178] sm:$0xff]
        %v2096 = vld [vmem:[%s1341 + $0x180] sm:$0xff]
        %v2097 = vld [vmem:[%s1341 + $0x188] sm:$0xff]
        %v2098 = vld [vmem:[%s1341 + $0x190] sm:$0xff]
        %v2099 = vld [vmem:[%s1341 + $0x198] sm:$0xff]
        %v2100 = vld [vmem:[%s1341 + $0x1a0] sm:$0xff]
        %v2101 = vld [vmem:[%s1341 + $0x1a8] sm:$0xff]
        %v2102 = vld [vmem:[%s1341 + $0x1b0] sm:$0xff]
        %v2103 = vld [vmem:[%s1341 + $0x1b8] sm:$0xff]
        %v2104 = vld [vmem:[%s1341 + $0x1c0] sm:$0xff]
        %v2105 = vld [vmem:[%s1341 + $0x1c8] sm:$0xff]
        %v2106 = vld [vmem:[%s1341 + $0x1d0] sm:$0xff]
        %v2107 = vld [vmem:[%s1341 + $0x1d8] sm:$0xff]
        %v2108 = vld [vmem:[%s1341 + $0x1e0] sm:$0xff]
        %v2109 = vld [vmem:[%s1341 + $0x1e8] sm:$0xff]
        %v2110 = vld [vmem:[%s1341 + $0x1f0] sm:$0xff]
        %v2111 = vld [vmem:[%s1341 + $0x1f8] sm:$0xff]
        %v2112 = vld [vmem:[%s1341 + $0x200] sm:$0xff]
        %v2113 = vld [vmem:[%s1341 + $0x208] sm:$0xff]
        %v2114 = vld [vmem:[%s1341 + $0x210] sm:$0xff]
        %v2115 = vld [vmem:[%s1341 + $0x218] sm:$0xff]
        %v2116 = vld [vmem:[%s1341 + $0x220] sm:$0xff]
        %v2117 = vld [vmem:[%s1341 + $0x228] sm:$0xff]
        %v2118 = vld [vmem:[%s1341 + $0x230] sm:$0xff]
        %v2119 = vld [vmem:[%s1341 + $0x238] sm:$0xff]
        %v2120 = vld [vmem:[%s1341 + $0x240] sm:$0xff]
        %v2121 = vld [vmem:[%s1341 + $0x248] sm:$0xff]
        %v2122 = vld [vmem:[%s1341 + $0x250] sm:$0xff]
        %v2123 = vld [vmem:[%s1341 + $0x258] sm:$0xff]
        %v2124 = vld [vmem:[%s1341 + $0x260] sm:$0xff]
        %v2125 = vld [vmem:[%s1341 + $0x268] sm:$0xff]
        %v2126 = vld [vmem:[%s1341 + $0x270] sm:$0xff]
        %v2127 = vld [vmem:[%s1341 + $0x278] sm:$0xff]
        %v2128 = vld [vmem:[%s1341 + $0x280] sm:$0xff]
        %v2129 = vld [vmem:[%s1341 + $0x288] sm:$0xff]
        %v2130 = vld [vmem:[%s1341 + $0x290] sm:$0xff]
        %v2131 = vld [vmem:[%s1341 + $0x298] sm:$0xff]
        %v2132 = vld [vmem:[%s1341 + $0x2a0] sm:$0xff]
        %v2133 = vld [vmem:[%s1341 + $0x2a8] sm:$0xff]
        %v2134 = vld [vmem:[%s1341 + $0x2b0] sm:$0xff]
        %v2135 = vld [vmem:[%s1341 + $0x2b8] sm:$0xff]
        %v2136 = vld [vmem:[%s1341 + $0x2c0] sm:$0xff]
        %v2137 = vld [vmem:[%s1341 + $0x2c8] sm:$0xff]
        %v2138 = vld [vmem:[%s1341 + $0x2d0] sm:$0xff]
        %v2139 = vld [vmem:[%s1341 + $0x2d8] sm:$0xff]
        %v2140 = vld [vmem:[%s1341 + $0x2e0] sm:$0xff]
        %v2141 = vld [vmem:[%s1341 + $0x2e8] sm:$0xff]
        %v2142 = vld [vmem:[%s1341 + $0x2f0] sm:$0xff]
        %v2143 = vld [vmem:[%s1341 + $0x2f8] sm:$0xff]
        %v2144 = vld [vmem:[%s1341 + $0x300] sm:$0xff]
        %v2145 = vld [vmem:[%s1341 + $0x308] sm:$0xff]
        %v2146 = vld [vmem:[%s1341 + $0x310] sm:$0xff]
        %v2147 = vld [vmem:[%s1341 + $0x318] sm:$0xff]
        %v2148 = vld [vmem:[%s1341 + $0x320] sm:$0xff]
        %v2149 = vld [vmem:[%s1341 + $0x328] sm:$0xff]
        %v2150 = vld [vmem:[%s1341 + $0x330] sm:$0xff]
        %v2151 = vld [vmem:[%s1341 + $0x338] sm:$0xff]
        %v2152 = vld [vmem:[%s1341 + $0x340] sm:$0xff]
        %v2153 = vld [vmem:[%s1341 + $0x348] sm:$0xff]
        %v2154 = vld [vmem:[%s1341 + $0x350] sm:$0xff]
        %v2155 = vld [vmem:[%s1341 + $0x358] sm:$0xff]
        %v2156 = vld [vmem:[%s1341 + $0x360] sm:$0xff]
        %v2157 = vld [vmem:[%s1341 + $0x368] sm:$0xff]
        %v2158 = vld [vmem:[%s1341 + $0x370] sm:$0xff]
        %v2159 = vld [vmem:[%s1341 + $0x378] sm:$0xff]
        %v2160 = vld [vmem:[%s1341 + $0x380] sm:$0xff]
        %v2161 = vld [vmem:[%s1341 + $0x388] sm:$0xff]
        %v2162 = vld [vmem:[%s1341 + $0x390] sm:$0xff]
        %v2163 = vld [vmem:[%s1341 + $0x398] sm:$0xff]
        %v2164 = vld [vmem:[%s1341 + $0x3a0] sm:$0xff]
        %v2165 = vld [vmem:[%s1341 + $0x3a8] sm:$0xff]
        %v2166 = vld [vmem:[%s1341 + $0x3b0] sm:$0xff]
        %v2167 = vld [vmem:[%s1341 + $0x3b8] sm:$0xff]
        %v2168 = vld [vmem:[%s1341 + $0x3c0] sm:$0xff]
        %v2169 = vld [vmem:[%s1341 + $0x3c8] sm:$0xff]
        %v2170 = vld [vmem:[%s1341 + $0x3d0] sm:$0xff]
        %v2171 = vld [vmem:[%s1341 + $0x3d8] sm:$0xff]
        %v2172 = vld [vmem:[%s1341 + $0x3e0] sm:$0xff]
        %v2173 = vld [vmem:[%s1341 + $0x3e8] sm:$0xff]
        %v2174 = vld [vmem:[%s1341 + $0x3f0] sm:$0xff]
        %v2175 = vld [vmem:[%s1341 + $0x3f8] sm:$0xff]
        %v2176 = vld [vmem:[%s1341 + $0x400] sm:$0xff]
        %v2177 = vld [vmem:[%s1341 + $0x408] sm:$0xff]
        %v2178 = vld [vmem:[%s1341 + $0x410] sm:$0xff]
        %v2179 = vld [vmem:[%s1341 + $0x418] sm:$0xff]
        %v2180 = vld [vmem:[%s1341 + $0x420] sm:$0xff]
        %v2181 = vld [vmem:[%s1341 + $0x428] sm:$0xff]
        %v2182 = vld [vmem:[%s1341 + $0x430] sm:$0xff]
        %v2183 = vld [vmem:[%s1341 + $0x438] sm:$0xff]
        %v2184 = vld [vmem:[%s1341 + $0x440] sm:$0xff]
        %v2185 = vld [vmem:[%s1341 + $0x448] sm:$0xff]
        %v2186 = vld [vmem:[%s1341 + $0x450] sm:$0xff]
        %v2187 = vld [vmem:[%s1341 + $0x458] sm:$0xff]
        %v2188 = vld [vmem:[%s1341 + $0x460] sm:$0xff]
        %v2189 = vld [vmem:[%s1341 + $0x468] sm:$0xff]
        %v2190 = vld [vmem:[%s1341 + $0x470] sm:$0xff]
        %v2191 = vld [vmem:[%s1341 + $0x478] sm:$0xff]
        %v2192 = vld [vmem:[%s1341 + $0x480] sm:$0xff]
        %v2193 = vld [vmem:[%s1341 + $0x488] sm:$0xff]
        %v2194 = vld [vmem:[%s1341 + $0x490] sm:$0xff]
        %v2195 = vld [vmem:[%s1341 + $0x498] sm:$0xff]
        %v2196 = vld [vmem:[%s1341 + $0x4a0] sm:$0xff]
        %v2197 = vld [vmem:[%s1341 + $0x4a8] sm:$0xff]
        %v2198 = vld [vmem:[%s1341 + $0x4b0] sm:$0xff]
        %v2199 = vld [vmem:[%s1341 + $0x4b8] sm:$0xff]
        %v2200 = vld [vmem:[%s1341 + $0x4c0] sm:$0xff]
        %v2201 = vld [vmem:[%s1341 + $0x4c8] sm:$0xff]
        %v2202 = vld [vmem:[%s1341 + $0x4d0] sm:$0xff]
        %v2203 = vld [vmem:[%s1341 + $0x4d8] sm:$0xff]
        %v2204 = vld [vmem:[%s1341 + $0x4e0] sm:$0xff]
        %v2205 = vld [vmem:[%s1341 + $0x4e8] sm:$0xff]
        %v2206 = vld [vmem:[%s1341 + $0x4f0] sm:$0xff]
        %v2207 = vld [vmem:[%s1341 + $0x4f8] sm:$0xff]
        %v2208 = vld [vmem:[%s1341 + $0x500] sm:$0xff]
        %v2209 = vld [vmem:[%s1341 + $0x508] sm:$0xff]
        %v2210 = vld [vmem:[%s1341 + $0x510] sm:$0xff]
        %v2211 = vld [vmem:[%s1341 + $0x518] sm:$0xff]
        %v2212 = vld [vmem:[%s1341 + $0x520] sm:$0xff]
        %v2213 = vld [vmem:[%s1341 + $0x528] sm:$0xff]
        %v2214 = vld [vmem:[%s1341 + $0x530] sm:$0xff]
        %v2215 = vld [vmem:[%s1341 + $0x538] sm:$0xff]
        %v2216 = vld [vmem:[%s1341 + $0x540] sm:$0xff]
        %v2217 = vld [vmem:[%s1341 + $0x548] sm:$0xff]
        %v2218 = vld [vmem:[%s1341 + $0x550] sm:$0xff]
        %v2219 = vld [vmem:[%s1341 + $0x558] sm:$0xff]
        %v2220 = vld [vmem:[%s1341 + $0x560] sm:$0xff]
        %v2221 = vld [vmem:[%s1341 + $0x568] sm:$0xff]
        %v2222 = vld [vmem:[%s1341 + $0x570] sm:$0xff]
        %v2223 = vld [vmem:[%s1341 + $0x578] sm:$0xff]
        %v2224 = vld [vmem:[%s1341 + $0x580] sm:$0xff]
        %v2225 = vld [vmem:[%s1341 + $0x588] sm:$0xff]
        %v2226 = vld [vmem:[%s1341 + $0x590] sm:$0xff]
        %v2227 = vld [vmem:[%s1341 + $0x598] sm:$0xff]
        %v2228 = vld [vmem:[%s1341 + $0x5a0] sm:$0xff]
        %v2229 = vld [vmem:[%s1341 + $0x5a8] sm:$0xff]
        %v2230 = vld [vmem:[%s1341 + $0x5b0] sm:$0xff]
        %v2231 = vld [vmem:[%s1341 + $0x5b8] sm:$0xff]
        %v2232 = vld [vmem:[%s1341 + $0x5c0] sm:$0xff]
        %v2233 = vld [vmem:[%s1341 + $0x5c8] sm:$0xff]
        %v2234 = vld [vmem:[%s1341 + $0x5d0] sm:$0xff]
        %v2235 = vld [vmem:[%s1341 + $0x5d8] sm:$0xff]
        %v2236 = vld [vmem:[%s1341 + $0x5e0] sm:$0xff]
        %v2237 = vld [vmem:[%s1341 + $0x5e8] sm:$0xff]
        %v2238 = vld [vmem:[%s1341 + $0x5f0] sm:$0xff]
        %v2239 = vld [vmem:[%s1341 + $0x5f8] sm:$0xff]
        %v2240 = vld [vmem:[%s1341 + $0x600] sm:$0xff]
        %v2241 = vld [vmem:[%s1341 + $0x608] sm:$0xff]
        %v2242 = vld [vmem:[%s1341 + $0x610] sm:$0xff]
        %v2243 = vld [vmem:[%s1341 + $0x618] sm:$0xff]
        %v2244 = vld [vmem:[%s1341 + $0x620] sm:$0xff]
        %v2245 = vld [vmem:[%s1341 + $0x628] sm:$0xff]
        %v2246 = vld [vmem:[%s1341 + $0x630] sm:$0xff]
        %v2247 = vld [vmem:[%s1341 + $0x638] sm:$0xff]
        %v2248 = vld [vmem:[%s1341 + $0x640] sm:$0xff]
        %v2249 = vld [vmem:[%s1341 + $0x648] sm:$0xff]
        %v2250 = vld [vmem:[%s1341 + $0x650] sm:$0xff]
        %v2251 = vld [vmem:[%s1341 + $0x658] sm:$0xff]
        %v2252 = vld [vmem:[%s1341 + $0x660] sm:$0xff]
        %v2253 = vld [vmem:[%s1341 + $0x668] sm:$0xff]
        %v2254 = vld [vmem:[%s1341 + $0x670] sm:$0xff]
        %v2255 = vld [vmem:[%s1341 + $0x678] sm:$0xff]
        %v2256 = vld [vmem:[%s1341 + $0x680] sm:$0xff]
        %v2257 = vld [vmem:[%s1341 + $0x688] sm:$0xff]
        %v2258 = vld [vmem:[%s1341 + $0x690] sm:$0xff]
        %v2259 = vld [vmem:[%s1341 + $0x698] sm:$0xff]
        %v2260 = vld [vmem:[%s1341 + $0x6a0] sm:$0xff]
        %v2261 = vld [vmem:[%s1341 + $0x6a8] sm:$0xff]
        %v2262 = vld [vmem:[%s1341 + $0x6b0] sm:$0xff]
        %v2263 = vld [vmem:[%s1341 + $0x6b8] sm:$0xff]
        %v2264 = vld [vmem:[%s1341 + $0x6c0] sm:$0xff]
        %v2265 = vld [vmem:[%s1341 + $0x6c8] sm:$0xff]
        %v2266 = vld [vmem:[%s1341 + $0x6d0] sm:$0xff]
        %v2267 = vld [vmem:[%s1341 + $0x6d8] sm:$0xff]
        %v2268 = vld [vmem:[%s1341 + $0x6e0] sm:$0xff]
        %v2269 = vld [vmem:[%s1341 + $0x6e8] sm:$0xff]
        %v2270 = vld [vmem:[%s1341 + $0x6f0] sm:$0xff]
        %v2271 = vld [vmem:[%s1341 + $0x6f8] sm:$0xff]
        %v2272 = vld [vmem:[%s1341 + $0x700] sm:$0xff]
        %v2273 = vld [vmem:[%s1341 + $0x708] sm:$0xff]
        %v2274 = vld [vmem:[%s1341 + $0x710] sm:$0xff]
        %v2275 = vld [vmem:[%s1341 + $0x718] sm:$0xff]
        %v2276 = vld [vmem:[%s1341 + $0x720] sm:$0xff]
        %v2277 = vld [vmem:[%s1341 + $0x728] sm:$0xff]
        %v2278 = vld [vmem:[%s1341 + $0x730] sm:$0xff]
        %v2279 = vld [vmem:[%s1341 + $0x738] sm:$0xff]
        %v2280 = vld [vmem:[%s1341 + $0x740] sm:$0xff]
        %v2281 = vld [vmem:[%s1341 + $0x748] sm:$0xff]
        %v2282 = vld [vmem:[%s1341 + $0x750] sm:$0xff]
        %v2283 = vld [vmem:[%s1341 + $0x758] sm:$0xff]
        %v2284 = vld [vmem:[%s1341 + $0x760] sm:$0xff]
        %v2285 = vld [vmem:[%s1341 + $0x768] sm:$0xff]
        %v2286 = vld [vmem:[%s1341 + $0x770] sm:$0xff]
        %v2287 = vld [vmem:[%s1341 + $0x778] sm:$0xff]
        %v2288 = vld [vmem:[%s1341 + $0x780] sm:$0xff]
        %v2289 = vld [vmem:[%s1341 + $0x788] sm:$0xff]
        %v2290 = vld [vmem:[%s1341 + $0x790] sm:$0xff]
        %v2291 = vld [vmem:[%s1341 + $0x798] sm:$0xff]
        %v2292 = vld [vmem:[%s1341 + $0x7a0] sm:$0xff]
        %v2293 = vld [vmem:[%s1341 + $0x7a8] sm:$0xff]
        %v2294 = vld [vmem:[%s1341 + $0x7b0] sm:$0xff]
        %v2295 = vld [vmem:[%s1341 + $0x7b8] sm:$0xff]
        %v2296 = vld [vmem:[%s1341 + $0x7c0] sm:$0xff]
        %v2297 = vld [vmem:[%s1341 + $0x7c8] sm:$0xff]
        %v2298 = vld [vmem:[%s1341 + $0x7d0] sm:$0xff]
        %v2299 = vld [vmem:[%s1341 + $0x7d8] sm:$0xff]
        %v2300 = vld [vmem:[%s1341 + $0x7e0] sm:$0xff]
        %v2301 = vld [vmem:[%s1341 + $0x7e8] sm:$0xff]
        %v2302 = vld [vmem:[%s1341 + $0x7f0] sm:$0xff]
        %v2303 = vld [vmem:[%s1341 + $0x7f8] sm:$0xff]
        %vm2304 = vcmp.ne.s32.totalorder %v2048, 0
        %vm2305 = vcmp.ne.s32.totalorder %v2049, 0
        %vm2306 = vcmp.ne.s32.totalorder %v2050, 0
        %vm2307 = vcmp.ne.s32.totalorder %v2051, 0
        %vm2308 = vcmp.ne.s32.totalorder %v2052, 0
        %vm2309 = vcmp.ne.s32.totalorder %v2053, 0
        %vm2310 = vcmp.ne.s32.totalorder %v2054, 0
        %vm2311 = vcmp.ne.s32.totalorder %v2055, 0
        %vm2312 = vcmp.ne.s32.totalorder %v2056, 0
        %vm2313 = vcmp.ne.s32.totalorder %v2057, 0
        %vm2314 = vcmp.ne.s32.totalorder %v2058, 0
        %vm2315 = vcmp.ne.s32.totalorder %v2059, 0
        %vm2316 = vcmp.ne.s32.totalorder %v2060, 0
        %vm2317 = vcmp.ne.s32.totalorder %v2061, 0
        %vm2318 = vcmp.ne.s32.totalorder %v2062, 0
        %vm2319 = vcmp.ne.s32.totalorder %v2063, 0
        %vm2320 = vcmp.ne.s32.totalorder %v2064, 0
        %vm2321 = vcmp.ne.s32.totalorder %v2065, 0
        %vm2322 = vcmp.ne.s32.totalorder %v2066, 0
        %vm2323 = vcmp.ne.s32.totalorder %v2067, 0
        %vm2324 = vcmp.ne.s32.totalorder %v2068, 0
        %vm2325 = vcmp.ne.s32.totalorder %v2069, 0
        %vm2326 = vcmp.ne.s32.totalorder %v2070, 0
        %vm2327 = vcmp.ne.s32.totalorder %v2071, 0
        %vm2328 = vcmp.ne.s32.totalorder %v2072, 0
        %vm2329 = vcmp.ne.s32.totalorder %v2073, 0
        %vm2330 = vcmp.ne.s32.totalorder %v2074, 0
        %vm2331 = vcmp.ne.s32.totalorder %v2075, 0
        %vm2332 = vcmp.ne.s32.totalorder %v2076, 0
        %vm2333 = vcmp.ne.s32.totalorder %v2077, 0
        %vm2334 = vcmp.ne.s32.totalorder %v2078, 0
        %vm2335 = vcmp.ne.s32.totalorder %v2079, 0
        %vm2336 = vcmp.ne.s32.totalorder %v2080, 0
        %vm2337 = vcmp.ne.s32.totalorder %v2081, 0
        %vm2338 = vcmp.ne.s32.totalorder %v2082, 0
        %vm2339 = vcmp.ne.s32.totalorder %v2083, 0
        %vm2340 = vcmp.ne.s32.totalorder %v2084, 0
        %vm2341 = vcmp.ne.s32.totalorder %v2085, 0
        %vm2342 = vcmp.ne.s32.totalorder %v2086, 0
        %vm2343 = vcmp.ne.s32.totalorder %v2087, 0
        %vm2344 = vcmp.ne.s32.totalorder %v2088, 0
        %vm2345 = vcmp.ne.s32.totalorder %v2089, 0
        %vm2346 = vcmp.ne.s32.totalorder %v2090, 0
        %vm2347 = vcmp.ne.s32.totalorder %v2091, 0
        %vm2348 = vcmp.ne.s32.totalorder %v2092, 0
        %vm2349 = vcmp.ne.s32.totalorder %v2093, 0
        %vm2350 = vcmp.ne.s32.totalorder %v2094, 0
        %vm2351 = vcmp.ne.s32.totalorder %v2095, 0
        %vm2352 = vcmp.ne.s32.totalorder %v2096, 0
        %vm2353 = vcmp.ne.s32.totalorder %v2097, 0
        %vm2354 = vcmp.ne.s32.totalorder %v2098, 0
        %vm2355 = vcmp.ne.s32.totalorder %v2099, 0
        %vm2356 = vcmp.ne.s32.totalorder %v2100, 0
        %vm2357 = vcmp.ne.s32.totalorder %v2101, 0
        %vm2358 = vcmp.ne.s32.totalorder %v2102, 0
        %vm2359 = vcmp.ne.s32.totalorder %v2103, 0
        %vm2360 = vcmp.ne.s32.totalorder %v2104, 0
        %vm2361 = vcmp.ne.s32.totalorder %v2105, 0
        %vm2362 = vcmp.ne.s32.totalorder %v2106, 0
        %vm2363 = vcmp.ne.s32.totalorder %v2107, 0
        %vm2364 = vcmp.ne.s32.totalorder %v2108, 0
        %vm2365 = vcmp.ne.s32.totalorder %v2109, 0
        %vm2366 = vcmp.ne.s32.totalorder %v2110, 0
        %vm2367 = vcmp.ne.s32.totalorder %v2111, 0
        %vm2368 = vcmp.ne.s32.totalorder %v2112, 0
        %vm2369 = vcmp.ne.s32.totalorder %v2113, 0
        %vm2370 = vcmp.ne.s32.totalorder %v2114, 0
        %vm2371 = vcmp.ne.s32.totalorder %v2115, 0
        %vm2372 = vcmp.ne.s32.totalorder %v2116, 0
        %vm2373 = vcmp.ne.s32.totalorder %v2117, 0
        %vm2374 = vcmp.ne.s32.totalorder %v2118, 0
        %vm2375 = vcmp.ne.s32.totalorder %v2119, 0
        %vm2376 = vcmp.ne.s32.totalorder %v2120, 0
        %vm2377 = vcmp.ne.s32.totalorder %v2121, 0
        %vm2378 = vcmp.ne.s32.totalorder %v2122, 0
        %vm2379 = vcmp.ne.s32.totalorder %v2123, 0
        %vm2380 = vcmp.ne.s32.totalorder %v2124, 0
        %vm2381 = vcmp.ne.s32.totalorder %v2125, 0
        %vm2382 = vcmp.ne.s32.totalorder %v2126, 0
        %vm2383 = vcmp.ne.s32.totalorder %v2127, 0
        %vm2384 = vcmp.ne.s32.totalorder %v2128, 0
        %vm2385 = vcmp.ne.s32.totalorder %v2129, 0
        %vm2386 = vcmp.ne.s32.totalorder %v2130, 0
        %vm2387 = vcmp.ne.s32.totalorder %v2131, 0
        %vm2388 = vcmp.ne.s32.totalorder %v2132, 0
        %vm2389 = vcmp.ne.s32.totalorder %v2133, 0
        %vm2390 = vcmp.ne.s32.totalorder %v2134, 0
        %vm2391 = vcmp.ne.s32.totalorder %v2135, 0
        %vm2392 = vcmp.ne.s32.totalorder %v2136, 0
        %vm2393 = vcmp.ne.s32.totalorder %v2137, 0
        %vm2394 = vcmp.ne.s32.totalorder %v2138, 0
        %vm2395 = vcmp.ne.s32.totalorder %v2139, 0
        %vm2396 = vcmp.ne.s32.totalorder %v2140, 0
        %vm2397 = vcmp.ne.s32.totalorder %v2141, 0
        %vm2398 = vcmp.ne.s32.totalorder %v2142, 0
        %vm2399 = vcmp.ne.s32.totalorder %v2143, 0
        %vm2400 = vcmp.ne.s32.totalorder %v2144, 0
        %vm2401 = vcmp.ne.s32.totalorder %v2145, 0
        %vm2402 = vcmp.ne.s32.totalorder %v2146, 0
        %vm2403 = vcmp.ne.s32.totalorder %v2147, 0
        %vm2404 = vcmp.ne.s32.totalorder %v2148, 0
        %vm2405 = vcmp.ne.s32.totalorder %v2149, 0
        %vm2406 = vcmp.ne.s32.totalorder %v2150, 0
        %vm2407 = vcmp.ne.s32.totalorder %v2151, 0
        %vm2408 = vcmp.ne.s32.totalorder %v2152, 0
        %vm2409 = vcmp.ne.s32.totalorder %v2153, 0
        %vm2410 = vcmp.ne.s32.totalorder %v2154, 0
        %vm2411 = vcmp.ne.s32.totalorder %v2155, 0
        %vm2412 = vcmp.ne.s32.totalorder %v2156, 0
        %vm2413 = vcmp.ne.s32.totalorder %v2157, 0
        %vm2414 = vcmp.ne.s32.totalorder %v2158, 0
        %vm2415 = vcmp.ne.s32.totalorder %v2159, 0
        %vm2416 = vcmp.ne.s32.totalorder %v2160, 0
        %vm2417 = vcmp.ne.s32.totalorder %v2161, 0
        %vm2418 = vcmp.ne.s32.totalorder %v2162, 0
        %vm2419 = vcmp.ne.s32.totalorder %v2163, 0
        %vm2420 = vcmp.ne.s32.totalorder %v2164, 0
        %vm2421 = vcmp.ne.s32.totalorder %v2165, 0
        %vm2422 = vcmp.ne.s32.totalorder %v2166, 0
        %vm2423 = vcmp.ne.s32.totalorder %v2167, 0
        %vm2424 = vcmp.ne.s32.totalorder %v2168, 0
        %vm2425 = vcmp.ne.s32.totalorder %v2169, 0
        %vm2426 = vcmp.ne.s32.totalorder %v2170, 0
        %vm2427 = vcmp.ne.s32.totalorder %v2171, 0
        %vm2428 = vcmp.ne.s32.totalorder %v2172, 0
        %vm2429 = vcmp.ne.s32.totalorder %v2173, 0
        %vm2430 = vcmp.ne.s32.totalorder %v2174, 0
        %vm2431 = vcmp.ne.s32.totalorder %v2175, 0
        %vm2432 = vcmp.ne.s32.totalorder %v2176, 0
        %vm2433 = vcmp.ne.s32.totalorder %v2177, 0
        %vm2434 = vcmp.ne.s32.totalorder %v2178, 0
        %vm2435 = vcmp.ne.s32.totalorder %v2179, 0
        %vm2436 = vcmp.ne.s32.totalorder %v2180, 0
        %vm2437 = vcmp.ne.s32.totalorder %v2181, 0
        %vm2438 = vcmp.ne.s32.totalorder %v2182, 0
        %vm2439 = vcmp.ne.s32.totalorder %v2183, 0
        %vm2440 = vcmp.ne.s32.totalorder %v2184, 0
        %vm2441 = vcmp.ne.s32.totalorder %v2185, 0
        %vm2442 = vcmp.ne.s32.totalorder %v2186, 0
        %vm2443 = vcmp.ne.s32.totalorder %v2187, 0
        %vm2444 = vcmp.ne.s32.totalorder %v2188, 0
        %vm2445 = vcmp.ne.s32.totalorder %v2189, 0
        %vm2446 = vcmp.ne.s32.totalorder %v2190, 0
        %vm2447 = vcmp.ne.s32.totalorder %v2191, 0
        %vm2448 = vcmp.ne.s32.totalorder %v2192, 0
        %vm2449 = vcmp.ne.s32.totalorder %v2193, 0
        %vm2450 = vcmp.ne.s32.totalorder %v2194, 0
        %vm2451 = vcmp.ne.s32.totalorder %v2195, 0
        %vm2452 = vcmp.ne.s32.totalorder %v2196, 0
        %vm2453 = vcmp.ne.s32.totalorder %v2197, 0
        %vm2454 = vcmp.ne.s32.totalorder %v2198, 0
        %vm2455 = vcmp.ne.s32.totalorder %v2199, 0
        %vm2456 = vcmp.ne.s32.totalorder %v2200, 0
        %vm2457 = vcmp.ne.s32.totalorder %v2201, 0
        %vm2458 = vcmp.ne.s32.totalorder %v2202, 0
        %vm2459 = vcmp.ne.s32.totalorder %v2203, 0
        %vm2460 = vcmp.ne.s32.totalorder %v2204, 0
        %vm2461 = vcmp.ne.s32.totalorder %v2205, 0
        %vm2462 = vcmp.ne.s32.totalorder %v2206, 0
        %vm2463 = vcmp.ne.s32.totalorder %v2207, 0
        %vm2464 = vcmp.ne.s32.totalorder %v2208, 0
        %vm2465 = vcmp.ne.s32.totalorder %v2209, 0
        %vm2466 = vcmp.ne.s32.totalorder %v2210, 0
        %vm2467 = vcmp.ne.s32.totalorder %v2211, 0
        %vm2468 = vcmp.ne.s32.totalorder %v2212, 0
        %vm2469 = vcmp.ne.s32.totalorder %v2213, 0
        %vm2470 = vcmp.ne.s32.totalorder %v2214, 0
        %vm2471 = vcmp.ne.s32.totalorder %v2215, 0
        %vm2472 = vcmp.ne.s32.totalorder %v2216, 0
        %vm2473 = vcmp.ne.s32.totalorder %v2217, 0
        %vm2474 = vcmp.ne.s32.totalorder %v2218, 0
        %vm2475 = vcmp.ne.s32.totalorder %v2219, 0
        %vm2476 = vcmp.ne.s32.totalorder %v2220, 0
        %vm2477 = vcmp.ne.s32.totalorder %v2221, 0
        %vm2478 = vcmp.ne.s32.totalorder %v2222, 0
        %vm2479 = vcmp.ne.s32.totalorder %v2223, 0
        %vm2480 = vcmp.ne.s32.totalorder %v2224, 0
        %vm2481 = vcmp.ne.s32.totalorder %v2225, 0
        %vm2482 = vcmp.ne.s32.totalorder %v2226, 0
        %vm2483 = vcmp.ne.s32.totalorder %v2227, 0
        %vm2484 = vcmp.ne.s32.totalorder %v2228, 0
        %vm2485 = vcmp.ne.s32.totalorder %v2229, 0
        %vm2486 = vcmp.ne.s32.totalorder %v2230, 0
        %vm2487 = vcmp.ne.s32.totalorder %v2231, 0
        %vm2488 = vcmp.ne.s32.totalorder %v2232, 0
        %vm2489 = vcmp.ne.s32.totalorder %v2233, 0
        %vm2490 = vcmp.ne.s32.totalorder %v2234, 0
        %vm2491 = vcmp.ne.s32.totalorder %v2235, 0
        %vm2492 = vcmp.ne.s32.totalorder %v2236, 0
        %vm2493 = vcmp.ne.s32.totalorder %v2237, 0
        %vm2494 = vcmp.ne.s32.totalorder %v2238, 0
        %vm2495 = vcmp.ne.s32.totalorder %v2239, 0
        %vm2496 = vcmp.ne.s32.totalorder %v2240, 0
        %vm2497 = vcmp.ne.s32.totalorder %v2241, 0
        %vm2498 = vcmp.ne.s32.totalorder %v2242, 0
        %vm2499 = vcmp.ne.s32.totalorder %v2243, 0
        %vm2500 = vcmp.ne.s32.totalorder %v2244, 0
        %vm2501 = vcmp.ne.s32.totalorder %v2245, 0
        %vm2502 = vcmp.ne.s32.totalorder %v2246, 0
        %vm2503 = vcmp.ne.s32.totalorder %v2247, 0
        %vm2504 = vcmp.ne.s32.totalorder %v2248, 0
        %vm2505 = vcmp.ne.s32.totalorder %v2249, 0
        %vm2506 = vcmp.ne.s32.totalorder %v2250, 0
        %vm2507 = vcmp.ne.s32.totalorder %v2251, 0
        %vm2508 = vcmp.ne.s32.totalorder %v2252, 0
        %vm2509 = vcmp.ne.s32.totalorder %v2253, 0
        %vm2510 = vcmp.ne.s32.totalorder %v2254, 0
        %vm2511 = vcmp.ne.s32.totalorder %v2255, 0
        %vm2512 = vcmp.ne.s32.totalorder %v2256, 0
        %vm2513 = vcmp.ne.s32.totalorder %v2257, 0
        %vm2514 = vcmp.ne.s32.totalorder %v2258, 0
        %vm2515 = vcmp.ne.s32.totalorder %v2259, 0
        %vm2516 = vcmp.ne.s32.totalorder %v2260, 0
        %vm2517 = vcmp.ne.s32.totalorder %v2261, 0
        %vm2518 = vcmp.ne.s32.totalorder %v2262, 0
        %vm2519 = vcmp.ne.s32.totalorder %v2263, 0
        %vm2520 = vcmp.ne.s32.totalorder %v2264, 0
        %vm2521 = vcmp.ne.s32.totalorder %v2265, 0
        %vm2522 = vcmp.ne.s32.totalorder %v2266, 0
        %vm2523 = vcmp.ne.s32.totalorder %v2267, 0
        %vm2524 = vcmp.ne.s32.totalorder %v2268, 0
        %vm2525 = vcmp.ne.s32.totalorder %v2269, 0
        %vm2526 = vcmp.ne.s32.totalorder %v2270, 0
        %vm2527 = vcmp.ne.s32.totalorder %v2271, 0
        %vm2528 = vcmp.ne.s32.totalorder %v2272, 0
        %vm2529 = vcmp.ne.s32.totalorder %v2273, 0
        %vm2530 = vcmp.ne.s32.totalorder %v2274, 0
        %vm2531 = vcmp.ne.s32.totalorder %v2275, 0
        %vm2532 = vcmp.ne.s32.totalorder %v2276, 0
        %vm2533 = vcmp.ne.s32.totalorder %v2277, 0
        %vm2534 = vcmp.ne.s32.totalorder %v2278, 0
        %vm2535 = vcmp.ne.s32.totalorder %v2279, 0
        %vm2536 = vcmp.ne.s32.totalorder %v2280, 0
        %vm2537 = vcmp.ne.s32.totalorder %v2281, 0
        %vm2538 = vcmp.ne.s32.totalorder %v2282, 0
        %vm2539 = vcmp.ne.s32.totalorder %v2283, 0
        %vm2540 = vcmp.ne.s32.totalorder %v2284, 0
        %vm2541 = vcmp.ne.s32.totalorder %v2285, 0
        %vm2542 = vcmp.ne.s32.totalorder %v2286, 0
        %vm2543 = vcmp.ne.s32.totalorder %v2287, 0
        %vm2544 = vcmp.ne.s32.totalorder %v2288, 0
        %vm2545 = vcmp.ne.s32.totalorder %v2289, 0
        %vm2546 = vcmp.ne.s32.totalorder %v2290, 0
        %vm2547 = vcmp.ne.s32.totalorder %v2291, 0
        %vm2548 = vcmp.ne.s32.totalorder %v2292, 0
        %vm2549 = vcmp.ne.s32.totalorder %v2293, 0
        %vm2550 = vcmp.ne.s32.totalorder %v2294, 0
        %vm2551 = vcmp.ne.s32.totalorder %v2295, 0
        %vm2552 = vcmp.ne.s32.totalorder %v2296, 0
        %vm2553 = vcmp.ne.s32.totalorder %v2297, 0
        %vm2554 = vcmp.ne.s32.totalorder %v2298, 0
        %vm2555 = vcmp.ne.s32.totalorder %v2299, 0
        %vm2556 = vcmp.ne.s32.totalorder %v2300, 0
        %vm2557 = vcmp.ne.s32.totalorder %v2301, 0
        %vm2558 = vcmp.ne.s32.totalorder %v2302, 0
        %vm2559 = vcmp.ne.s32.totalorder %v2303, 0
        %v2560 = vmul.f32 %v1408, 0.125
        %v2561 = vmul.f32 %v1409, 0.125
        %v2562 = vmul.f32 %v1410, 0.125
        %v2563 = vmul.f32 %v1411, 0.125
        %v2564 = vmul.f32 %v1412, 0.125
        %v2565 = vmul.f32 %v1413, 0.125
        %v2566 = vmul.f32 %v1414, 0.125
        %v2567 = vmul.f32 %v1415, 0.125
        %v2568 = vmul.f32 %v1416, 0.125
        %v2569 = vmul.f32 %v1417, 0.125
        %v2570 = vmul.f32 %v1418, 0.125
        %v2571 = vmul.f32 %v1419, 0.125
        %v2572 = vmul.f32 %v1420, 0.125
        %v2573 = vmul.f32 %v1421, 0.125
        %v2574 = vmul.f32 %v1422, 0.125
        %v2575 = vmul.f32 %v1423, 0.125
        %v2576 = vmul.f32 %v1424, 0.125
        %v2577 = vmul.f32 %v1425, 0.125
        %v2578 = vmul.f32 %v1426, 0.125
        %v2579 = vmul.f32 %v1427, 0.125
        %v2580 = vmul.f32 %v1428, 0.125
        %v2581 = vmul.f32 %v1429, 0.125
        %v2582 = vmul.f32 %v1430, 0.125
        %v2583 = vmul.f32 %v1431, 0.125
        %v2584 = vmul.f32 %v1432, 0.125
        %v2585 = vmul.f32 %v1433, 0.125
        %v2586 = vmul.f32 %v1434, 0.125
        %v2587 = vmul.f32 %v1435, 0.125
        %v2588 = vmul.f32 %v1436, 0.125
        %v2589 = vmul.f32 %v1437, 0.125
        %v2590 = vmul.f32 %v1438, 0.125
        %v2591 = vmul.f32 %v1439, 0.125
        %v2592 = vmul.f32 %v1440, 0.125
        %v2593 = vmul.f32 %v1441, 0.125
        %v2594 = vmul.f32 %v1442, 0.125
        %v2595 = vmul.f32 %v1443, 0.125
        %v2596 = vmul.f32 %v1444, 0.125
        %v2597 = vmul.f32 %v1445, 0.125
        %v2598 = vmul.f32 %v1446, 0.125
        %v2599 = vmul.f32 %v1447, 0.125
        %v2600 = vmul.f32 %v1448, 0.125
        %v2601 = vmul.f32 %v1449, 0.125
        %v2602 = vmul.f32 %v1450, 0.125
        %v2603 = vmul.f32 %v1451, 0.125
        %v2604 = vmul.f32 %v1452, 0.125
        %v2605 = vmul.f32 %v1453, 0.125
        %v2606 = vmul.f32 %v1454, 0.125
        %v2607 = vmul.f32 %v1455, 0.125
        %v2608 = vmul.f32 %v1456, 0.125
        %v2609 = vmul.f32 %v1457, 0.125
        %v2610 = vmul.f32 %v1458, 0.125
        %v2611 = vmul.f32 %v1459, 0.125
        %v2612 = vmul.f32 %v1460, 0.125
        %v2613 = vmul.f32 %v1461, 0.125
        %v2614 = vmul.f32 %v1462, 0.125
        %v2615 = vmul.f32 %v1463, 0.125
        %v2616 = vmul.f32 %v1464, 0.125
        %v2617 = vmul.f32 %v1465, 0.125
        %v2618 = vmul.f32 %v1466, 0.125
        %v2619 = vmul.f32 %v1467, 0.125
        %v2620 = vmul.f32 %v1468, 0.125
        %v2621 = vmul.f32 %v1469, 0.125
        %v2622 = vmul.f32 %v1470, 0.125
        %v2623 = vmul.f32 %v1471, 0.125
        %v2624 = vmul.f32 %v1472, 0.125
        %v2625 = vmul.f32 %v1473, 0.125
        %v2626 = vmul.f32 %v1474, 0.125
        %v2627 = vmul.f32 %v1475, 0.125
        %v2628 = vmul.f32 %v1476, 0.125
        %v2629 = vmul.f32 %v1477, 0.125
        %v2630 = vmul.f32 %v1478, 0.125
        %v2631 = vmul.f32 %v1479, 0.125
        %v2632 = vmul.f32 %v1480, 0.125
        %v2633 = vmul.f32 %v1481, 0.125
        %v2634 = vmul.f32 %v1482, 0.125
        %v2635 = vmul.f32 %v1483, 0.125
        %v2636 = vmul.f32 %v1484, 0.125
        %v2637 = vmul.f32 %v1485, 0.125
        %v2638 = vmul.f32 %v1486, 0.125
        %v2639 = vmul.f32 %v1487, 0.125
        %v2640 = vmul.f32 %v1488, 0.125
        %v2641 = vmul.f32 %v1489, 0.125
        %v2642 = vmul.f32 %v1490, 0.125
        %v2643 = vmul.f32 %v1491, 0.125
        %v2644 = vmul.f32 %v1492, 0.125
        %v2645 = vmul.f32 %v1493, 0.125
        %v2646 = vmul.f32 %v1494, 0.125
        %v2647 = vmul.f32 %v1495, 0.125
        %v2648 = vmul.f32 %v1496, 0.125
        %v2649 = vmul.f32 %v1497, 0.125
        %v2650 = vmul.f32 %v1498, 0.125
        %v2651 = vmul.f32 %v1499, 0.125
        %v2652 = vmul.f32 %v1500, 0.125
        %v2653 = vmul.f32 %v1501, 0.125
        %v2654 = vmul.f32 %v1502, 0.125
        %v2655 = vmul.f32 %v1503, 0.125
        %v2656 = vmul.f32 %v1504, 0.125
        %v2657 = vmul.f32 %v1505, 0.125
        %v2658 = vmul.f32 %v1506, 0.125
        %v2659 = vmul.f32 %v1507, 0.125
        %v2660 = vmul.f32 %v1508, 0.125
        %v2661 = vmul.f32 %v1509, 0.125
        %v2662 = vmul.f32 %v1510, 0.125
        %v2663 = vmul.f32 %v1511, 0.125
        %v2664 = vmul.f32 %v1512, 0.125
        %v2665 = vmul.f32 %v1513, 0.125
        %v2666 = vmul.f32 %v1514, 0.125
        %v2667 = vmul.f32 %v1515, 0.125
        %v2668 = vmul.f32 %v1516, 0.125
        %v2669 = vmul.f32 %v1517, 0.125
        %v2670 = vmul.f32 %v1518, 0.125
        %v2671 = vmul.f32 %v1519, 0.125
        %v2672 = vmul.f32 %v1520, 0.125
        %v2673 = vmul.f32 %v1521, 0.125
        %v2674 = vmul.f32 %v1522, 0.125
        %v2675 = vmul.f32 %v1523, 0.125
        %v2676 = vmul.f32 %v1524, 0.125
        %v2677 = vmul.f32 %v1525, 0.125
        %v2678 = vmul.f32 %v1526, 0.125
        %v2679 = vmul.f32 %v1527, 0.125
        %v2680 = vmul.f32 %v1528, 0.125
        %v2681 = vmul.f32 %v1529, 0.125
        %v2682 = vmul.f32 %v1530, 0.125
        %v2683 = vmul.f32 %v1531, 0.125
        %v2684 = vmul.f32 %v1532, 0.125
        %v2685 = vmul.f32 %v1533, 0.125
        %v2686 = vmul.f32 %v1534, 0.125
        %v2687 = vmul.f32 %v1535, 0.125
        %vm2688 = vcmask 523264
        %v2690 = vsel %vm2688, %v2560, 0
        %v2693 = vsel %vm2688, %v2561, 0
        %v2696 = vsel %vm2688, %v2562, 0
        %v2699 = vsel %vm2688, %v2563, 0
        %v2702 = vsel %vm2688, %v2564, 0
        %v2705 = vsel %vm2688, %v2565, 0
        %v2708 = vsel %vm2688, %v2566, 0
        %v2711 = vsel %vm2688, %v2567, 0
        %v2714 = vsel %vm2688, %v2568, 0
        %v2717 = vsel %vm2688, %v2569, 0
        %v2720 = vsel %vm2688, %v2570, 0
        %v2723 = vsel %vm2688, %v2571, 0
        %v2726 = vsel %vm2688, %v2572, 0
        %v2729 = vsel %vm2688, %v2573, 0
        %v2732 = vsel %vm2688, %v2574, 0
        %v2735 = vsel %vm2688, %v2575, 0
        %v2738 = vsel %vm2688, %v1536, 0
        %v2741 = vsel %vm2688, %v1537, 0
        %v2744 = vsel %vm2688, %v1538, 0
        %v2747 = vsel %vm2688, %v1539, 0
        %v2750 = vsel %vm2688, %v1540, 0
        %v2753 = vsel %vm2688, %v1541, 0
        %v2756 = vsel %vm2688, %v1542, 0
        %v2759 = vsel %vm2688, %v1543, 0
        %v2762 = vsel %vm2688, %v1544, 0
        %v2765 = vsel %vm2688, %v1545, 0
        %v2768 = vsel %vm2688, %v1546, 0
        %v2771 = vsel %vm2688, %v1547, 0
        %v2774 = vsel %vm2688, %v1548, 0
        %v2777 = vsel %vm2688, %v1549, 0
        %v2780 = vsel %vm2688, %v1550, 0
        %v2783 = vsel %vm2688, %v1551, 0
        %v2786 = vsel %vm2688, %v1552, 0
        %v2789 = vsel %vm2688, %v1553, 0
        %v2792 = vsel %vm2688, %v1554, 0
        %v2795 = vsel %vm2688, %v1555, 0
        %v2798 = vsel %vm2688, %v1556, 0
        %v2801 = vsel %vm2688, %v1557, 0
        %v2804 = vsel %vm2688, %v1558, 0
        %v2807 = vsel %vm2688, %v1559, 0
        %v2810 = vsel %vm2688, %v1560, 0
        %v2813 = vsel %vm2688, %v1561, 0
        %v2816 = vsel %vm2688, %v1562, 0
        %v2819 = vsel %vm2688, %v1563, 0
        %v2822 = vsel %vm2688, %v1564, 0
        %v2825 = vsel %vm2688, %v1565, 0
        %v2828 = vsel %vm2688, %v1566, 0
        %v2831 = vsel %vm2688, %v1567, 0
        %2833 = vmatprep.subr.mxu0 0.0
        %2834 = vmatpush1.xpose.msra.mxu0 %v2738
        %2835 = vmatprep.subr.mxu0 0.0
        %2836 = vmatpush1.xpose.msra.mxu0 %v2741
        %2837 = vmatprep.subr.mxu0 0.0
        %2838 = vmatpush1.xpose.msra.mxu0 %v2744
        %2839 = vmatprep.subr.mxu0 0.0
        %2840 = vmatpush1.xpose.msra.mxu0 %v2747
        %2841 = vmatprep.subr.mxu0 0.0
        %2842 = vmatpush1.xpose.msra.mxu0 %v2750
        %2843 = vmatprep.subr.mxu0 0.0
        %2844 = vmatpush1.xpose.msra.mxu0 %v2753
        %2845 = vmatprep.subr.mxu0 0.0
        %2846 = vmatpush1.xpose.msra.mxu0 %v2756
        %2847 = vmatprep.subr.mxu0 0.0
        %2848 = vmatpush1.xpose.msra.mxu0 %v2759
        %2849 = vmatprep.subr.mxu0 0.0
        %2850 = vmatpush1.xpose.msra.mxu0 %v2762
        %2851 = vmatprep.subr.mxu0 0.0
        %2852 = vmatpush1.xpose.msra.mxu0 %v2765
        %2853 = vmatprep.subr.mxu0 0.0
        %2854 = vmatpush1.xpose.msra.mxu0 %v2768
        %2855 = vmatprep.subr.mxu0 0.0
        %2856 = vmatpush1.xpose.msra.mxu0 %v2771
        %2857 = vmatprep.subr.mxu0 0.0
        %2858 = vmatpush1.xpose.msra.mxu0 %v2774
        %2859 = vmatprep.subr.mxu0 0.0
        %2860 = vmatpush1.xpose.msra.mxu0 %v2777
        %2861 = vmatprep.subr.mxu0 0.0
        %2862 = vmatpush1.xpose.msra.mxu0 %v2780
        %2863 = vmatprep.subr.mxu0 0.0
        %2864 = vmatpush1.xpose.msra.mxu0 %v2783
        %2865 = vmatprep.subr.mxu0 0.0
        %2866 = vmatpush1.xpose.msra.mxu0 %v2786
        %2867 = vmatprep.subr.mxu0 0.0
        %2868 = vmatpush1.xpose.msra.mxu0 %v2789
        %2869 = vmatprep.subr.mxu0 0.0
        %2870 = vmatpush1.xpose.msra.mxu0 %v2792
        %2871 = vmatprep.subr.mxu0 0.0
        %2872 = vmatpush1.xpose.msra.mxu0 %v2795
        %2873 = vmatprep.subr.mxu0 0.0
        %2874 = vmatpush1.xpose.msra.mxu0 %v2798
        %2875 = vmatprep.subr.mxu0 0.0
        %2876 = vmatpush1.xpose.msra.mxu0 %v2801
        %2877 = vmatprep.subr.mxu0 0.0
        %2878 = vmatpush1.xpose.msra.mxu0 %v2804
        %2879 = vmatprep.subr.mxu0 0.0
        %2880 = vmatpush1.xpose.msra.mxu0 %v2807
        %2881 = vmatprep.subr.mxu0 0.0
        %2882 = vmatpush1.xpose.msra.mxu0 %v2810
        %2883 = vmatprep.subr.mxu0 0.0
        %2884 = vmatpush1.xpose.msra.mxu0 %v2813
        %2885 = vmatprep.subr.mxu0 0.0
        %2886 = vmatpush1.xpose.msra.mxu0 %v2816
        %2887 = vmatprep.subr.mxu0 0.0
        %2888 = vmatpush1.xpose.msra.mxu0 %v2819
        %2889 = vmatprep.subr.mxu0 0.0
        %2890 = vmatpush1.xpose.msra.mxu0 %v2822
        %2891 = vmatprep.subr.mxu0 0.0
        %2892 = vmatpush1.xpose.msra.mxu0 %v2825
        %2893 = vmatprep.subr.mxu0 0.0
        %2894 = vmatpush1.xpose.msra.mxu0 %v2828
        %2895 = vmatprep.subr.mxu0 0.0
        %2896 = vmatpush1.xpose.msra.mxu0 %v2831
        %2897 = vmatprep.mubr.f32.mxu0 0.0
        %2898 = vmatmul.mubr.f32.gmra.mrb[0].mxu0 %v2690
        %v2899 = vpop.f32.mrb[0].mxu0
        %v2900 = vadd.f32 0.0, %v2899
        %v2901 = vpop.f32.mrb[0].mxu0
        %v2902 = vadd.f32 0.0, %v2901
        %2903 = vmatprep.mubr.f32.mxu0 0.0
        %2904 = vmatmul.mubr.f32.gmra.mrb[0].mxu0 %v2693
        %v2905 = vpop.f32.mrb[0].mxu0
        %v2906 = vadd.f32 0.0, %v2905
        %v2907 = vpop.f32.mrb[0].mxu0
        %v2908 = vadd.f32 0.0, %v2907
        %2909 = vmatprep.mubr.f32.mxu0 0.0
        %2910 = vmatmul.mubr.f32.gmra.mrb[0].mxu0 %v2696
        %v2911 = vpop.f32.mrb[0].mxu0
        %v2912 = vadd.f32 0.0, %v2911
        %v2913 = vpop.f32.mrb[0].mxu0
        %v2914 = vadd.f32 0.0, %v2913
        %2915 = vmatprep.mubr.f32.mxu0 0.0
        %2916 = vmatmul.mubr.f32.gmra.mrb[0].mxu0 %v2699
        %v2917 = vpop.f32.mrb[0].mxu0
        %v2918 = vadd.f32 0.0, %v2917
        %v2919 = vpop.f32.mrb[0].mxu0
        %v2920 = vadd.f32 0.0, %v2919
        %2921 = vmatprep.mubr.f32.mxu0 0.0
        %2922 = vmatmul.mubr.f32.gmra.mrb[0].mxu0 %v2702
        %v2923 = vpop.f32.mrb[0].mxu0
        %v2924 = vadd.f32 0.0, %v2923
        %v2925 = vpop.f32.mrb[0].mxu0
        %v2926 = vadd.f32 0.0, %v2925
        %2927 = vmatprep.mubr.f32.mxu0 0.0
        %2928 = vmatmul.mubr.f32.gmra.mrb[0].mxu0 %v2705
        %v2929 = vpop.f32.mrb[0].mxu0
        %v2930 = vadd.f32 0.0, %v2929
        %v2931 = vpop.f32.mrb[0].mxu0
        %v2932 = vadd.f32 0.0, %v2931
        %2933 = vmatprep.mubr.f32.mxu0 0.0
        %2934 = vmatmul.mubr.f32.gmra.mrb[0].mxu0 %v2708
        %v2935 = vpop.f32.mrb[0].mxu0
        %v2936 = vadd.f32 0.0, %v2935
        %v2937 = vpop.f32.mrb[0].mxu0
        %v2938 = vadd.f32 0.0, %v2937
        %2939 = vmatprep.mubr.f32.mxu0 0.0
        %2940 = vmatmul.mubr.f32.gmra.mrb[0].mxu0 %v2711
        %v2941 = vpop.f32.mrb[0].mxu0
        %v2942 = vadd.f32 0.0, %v2941
        %v2943 = vpop.f32.mrb[0].mxu0
        %v2944 = vadd.f32 0.0, %v2943
        %2945 = vmatprep.mubr.f32.mxu0 0.0
        %2946 = vmatmul.mubr.f32.gmra.mrb[0].mxu0 %v2714
        %v2947 = vpop.f32.mrb[0].mxu0
        %v2948 = vadd.f32 0.0, %v2947
        %v2949 = vpop.f32.mrb[0].mxu0
        %v2950 = vadd.f32 0.0, %v2949
        %2951 = vmatprep.mubr.f32.mxu0 0.0
        %2952 = vmatmul.mubr.f32.gmra.mrb[0].mxu0 %v2717
        %v2953 = vpop.f32.mrb[0].mxu0
        %v2954 = vadd.f32 0.0, %v2953
        %v2955 = vpop.f32.mrb[0].mxu0
        %v2956 = vadd.f32 0.0, %v2955
        %2957 = vmatprep.mubr.f32.mxu0 0.0
        %2958 = vmatmul.mubr.f32.gmra.mrb[0].mxu0 %v2720
        %v2959 = vpop.f32.mrb[0].mxu0
        %v2960 = vadd.f32 0.0, %v2959
        %v2961 = vpop.f32.mrb[0].mxu0
        %v2962 = vadd.f32 0.0, %v2961
        %2963 = vmatprep.mubr.f32.mxu0 0.0
        %2964 = vmatmul.mubr.f32.gmra.mrb[0].mxu0 %v2723
        %v2965 = vpop.f32.mrb[0].mxu0
        %v2966 = vadd.f32 0.0, %v2965
        %v2967 = vpop.f32.mrb[0].mxu0
        %v2968 = vadd.f32 0.0, %v2967
        %2969 = vmatprep.mubr.f32.mxu0 0.0
        %2970 = vmatmul.mubr.f32.gmra.mrb[0].mxu0 %v2726
        %v2971 = vpop.f32.mrb[0].mxu0
        %v2972 = vadd.f32 0.0, %v2971
        %v2973 = vpop.f32.mrb[0].mxu0
        %v2974 = vadd.f32 0.0, %v2973
        %2975 = vmatprep.mubr.f32.mxu0 0.0
        %2976 = vmatmul.mubr.f32.gmra.mrb[0].mxu0 %v2729
        %v2977 = vpop.f32.mrb[0].mxu0
        %v2978 = vadd.f32 0.0, %v2977
        %v2979 = vpop.f32.mrb[0].mxu0
        %v2980 = vadd.f32 0.0, %v2979
        %2981 = vmatprep.mubr.f32.mxu0 0.0
        %2982 = vmatmul.mubr.f32.gmra.mrb[0].mxu0 %v2732
        %v2983 = vpop.f32.mrb[0].mxu0
        %v2984 = vadd.f32 0.0, %v2983
        %v2985 = vpop.f32.mrb[0].mxu0
        %v2986 = vadd.f32 0.0, %v2985
        %2987 = vmatprep.mubr.f32.mxu0 0.0
        %2988 = vmatmul.mubr.f32.gmra.mrb[0].mxu0 %v2735
        %v2989 = vpop.f32.mrb[0].mxu0
        %v2990 = vadd.f32 0.0, %v2989
        %v2991 = vpop.f32.mrb[0].mxu0
        %v2992 = vadd.f32 0.0, %v2991
        %2993 = vdwg.mxu0
        %v2995 = vsel %vm2688, %v2576, 0
        %v2998 = vsel %vm2688, %v2577, 0
        %v3001 = vsel %vm2688, %v2578, 0
        %v3004 = vsel %vm2688, %v2579, 0
        %v3007 = vsel %vm2688, %v2580, 0
        %v3010 = vsel %vm2688, %v2581, 0
        %v3013 = vsel %vm2688, %v2582, 0
        %v3016 = vsel %vm2688, %v2583, 0
        %v3019 = vsel %vm2688, %v2584, 0
        %v3022 = vsel %vm2688, %v2585, 0
        %v3025 = vsel %vm2688, %v2586, 0
        %v3028 = vsel %vm2688, %v2587, 0
        %v3031 = vsel %vm2688, %v2588, 0
        %v3034 = vsel %vm2688, %v2589, 0
        %v3037 = vsel %vm2688, %v2590, 0
        %v3040 = vsel %vm2688, %v2591, 0
        %v3043 = vsel %vm2688, %v1568, 0
        %v3046 = vsel %vm2688, %v1569, 0
        %v3049 = vsel %vm2688, %v1570, 0
        %v3052 = vsel %vm2688, %v1571, 0
        %v3055 = vsel %vm2688, %v1572, 0
        %v3058 = vsel %vm2688, %v1573, 0
        %v3061 = vsel %vm2688, %v1574, 0
        %v3064 = vsel %vm2688, %v1575, 0
        %v3067 = vsel %vm2688, %v1576, 0
        %v3070 = vsel %vm2688, %v1577, 0
        %v3073 = vsel %vm2688, %v1578, 0
        %v3076 = vsel %vm2688, %v1579, 0
        %v3079 = vsel %vm2688, %v1580, 0
        %v3082 = vsel %vm2688, %v1581, 0
        %v3085 = vsel %vm2688, %v1582, 0
        %v3088 = vsel %vm2688, %v1583, 0
        %v3091 = vsel %vm2688, %v1584, 0
        %v3094 = vsel %vm2688, %v1585, 0
        %v3097 = vsel %vm2688, %v1586, 0
        %v3100 = vsel %vm2688, %v1587, 0
        %v3103 = vsel %vm2688, %v1588, 0
        %v3106 = vsel %vm2688, %v1589, 0
        %v3109 = vsel %vm2688, %v1590, 0
        %v3112 = vsel %vm2688, %v1591, 0
        %v3115 = vsel %vm2688, %v1592, 0
        %v3118 = vsel %vm2688, %v1593, 0
        %v3121 = vsel %vm2688, %v1594, 0
        %v3124 = vsel %vm2688, %v1595, 0
        %v3127 = vsel %vm2688, %v1596, 0
        %v3130 = vsel %vm2688, %v1597, 0
        %v3133 = vsel %vm2688, %v1598, 0
        %v3136 = vsel %vm2688, %v1599, 0
        %3138 = vmatprep.subr.mxu0 0.0
        %3139 = vmatpush1.xpose.msra.mxu0 %v3043
        %3140 = vmatprep.subr.mxu0 0.0
        %3141 = vmatpush1.xpose.msra.mxu0 %v3046
        %3142 = vmatprep.subr.mxu0 0.0
        %3143 = vmatpush1.xpose.msra.mxu0 %v3049
        %3144 = vmatprep.subr.mxu0 0.0
        %3145 = vmatpush1.xpose.msra.mxu0 %v3052
        %3146 = vmatprep.subr.mxu0 0.0
        %3147 = vmatpush1.xpose.msra.mxu0 %v3055
        %3148 = vmatprep.subr.mxu0 0.0
        %3149 = vmatpush1.xpose.msra.mxu0 %v3058
        %3150 = vmatprep.subr.mxu0 0.0
        %3151 = vmatpush1.xpose.msra.mxu0 %v3061
        %3152 = vmatprep.subr.mxu0 0.0
        %3153 = vmatpush1.xpose.msra.mxu0 %v3064
        %3154 = vmatprep.subr.mxu0 0.0
        %3155 = vmatpush1.xpose.msra.mxu0 %v3067
        %3156 = vmatprep.subr.mxu0 0.0
        %3157 = vmatpush1.xpose.msra.mxu0 %v3070
        %3158 = vmatprep.subr.mxu0 0.0
        %3159 = vmatpush1.xpose.msra.mxu0 %v3073
        %3160 = vmatprep.subr.mxu0 0.0
        %3161 = vmatpush1.xpose.msra.mxu0 %v3076
        %3162 = vmatprep.subr.mxu0 0.0
        %3163 = vmatpush1.xpose.msra.mxu0 %v3079
        %3164 = vmatprep.subr.mxu0 0.0
        %3165 = vmatpush1.xpose.msra.mxu0 %v3082
        %3166 = vmatprep.subr.mxu0 0.0
        %3167 = vmatpush1.xpose.msra.mxu0 %v3085
        %3168 = vmatprep.subr.mxu0 0.0
        %3169 = vmatpush1.xpose.msra.mxu0 %v3088
        %3170 = vmatprep.subr.mxu0 0.0
        %3171 = vmatpush1.xpose.msra.mxu0 %v3091
        %3172 = vmatprep.subr.mxu0 0.0
        %3173 = vmatpush1.xpose.msra.mxu0 %v3094
        %3174 = vmatprep.subr.mxu0 0.0
        %3175 = vmatpush1.xpose.msra.mxu0 %v3097
        %3176 = vmatprep.subr.mxu0 0.0
        %3177 = vmatpush1.xpose.msra.mxu0 %v3100
        %3178 = vmatprep.subr.mxu0 0.0
        %3179 = vmatpush1.xpose.msra.mxu0 %v3103
        %3180 = vmatprep.subr.mxu0 0.0
        %3181 = vmatpush1.xpose.msra.mxu0 %v3106
        %3182 = vmatprep.subr.mxu0 0.0
        %3183 = vmatpush1.xpose.msra.mxu0 %v3109
        %3184 = vmatprep.subr.mxu0 0.0
        %3185 = vmatpush1.xpose.msra.mxu0 %v3112
        %3186 = vmatprep.subr.mxu0 0.0
        %3187 = vmatpush1.xpose.msra.mxu0 %v3115
        %3188 = vmatprep.subr.mxu0 0.0
        %3189 = vmatpush1.xpose.msra.mxu0 %v3118
        %3190 = vmatprep.subr.mxu0 0.0
        %3191 = vmatpush1.xpose.msra.mxu0 %v3121
        %3192 = vmatprep.subr.mxu0 0.0
        %3193 = vmatpush1.xpose.msra.mxu0 %v3124
        %3194 = vmatprep.subr.mxu0 0.0
        %3195 = vmatpush1.xpose.msra.mxu0 %v3127
        %3196 = vmatprep.subr.mxu0 0.0
        %3197 = vmatpush1.xpose.msra.mxu0 %v3130
        %3198 = vmatprep.subr.mxu0 0.0
        %3199 = vmatpush1.xpose.msra.mxu0 %v3133
        %3200 = vmatprep.subr.mxu0 0.0
        %3201 = vmatpush1.xpose.msra.mxu0 %v3136
        %3202 = vmatprep.mubr.f32.mxu0 0.0
        %3203 = vmatmul.mubr.f32.gmra.mrb[0].mxu0 %v2995
        %v3204 = vpop.f32.mrb[0].mxu0
        %v3205 = vadd.f32 0.0, %v3204
        %v3206 = vpop.f32.mrb[0].mxu0
        %v3207 = vadd.f32 0.0, %v3206
        %3208 = vmatprep.mubr.f32.mxu0 0.0
        %3209 = vmatmul.mubr.f32.gmra.mrb[0].mxu0 %v2998
        %v3210 = vpop.f32.mrb[0].mxu0
        %v3211 = vadd.f32 0.0, %v3210
        %v3212 = vpop.f32.mrb[0].mxu0
        %v3213 = vadd.f32 0.0, %v3212
        %3214 = vmatprep.mubr.f32.mxu0 0.0
        %3215 = vmatmul.mubr.f32.gmra.mrb[0].mxu0 %v3001
        %v3216 = vpop.f32.mrb[0].mxu0
        %v3217 = vadd.f32 0.0, %v3216
        %v3218 = vpop.f32.mrb[0].mxu0
        %v3219 = vadd.f32 0.0, %v3218
        %3220 = vmatprep.mubr.f32.mxu0 0.0
        %3221 = vmatmul.mubr.f32.gmra.mrb[0].mxu0 %v3004
        %v3222 = vpop.f32.mrb[0].mxu0
        %v3223 = vadd.f32 0.0, %v3222
        %v3224 = vpop.f32.mrb[0].mxu0
        %v3225 = vadd.f32 0.0, %v3224
        %3226 = vmatprep.mubr.f32.mxu0 0.0
        %3227 = vmatmul.mubr.f32.gmra.mrb[0].mxu0 %v3007
        %v3228 = vpop.f32.mrb[0].mxu0
        %v3229 = vadd.f32 0.0, %v3228
        %v3230 = vpop.f32.mrb[0].mxu0
        %v3231 = vadd.f32 0.0, %v3230
        %3232 = vmatprep.mubr.f32.mxu0 0.0
        %3233 = vmatmul.mubr.f32.gmra.mrb[0].mxu0 %v3010
        %v3234 = vpop.f32.mrb[0].mxu0
        %v3235 = vadd.f32 0.0, %v3234
        %v3236 = vpop.f32.mrb[0].mxu0
        %v3237 = vadd.f32 0.0, %v3236
        %3238 = vmatprep.mubr.f32.mxu0 0.0
        %3239 = vmatmul.mubr.f32.gmra.mrb[0].mxu0 %v3013
        %v3240 = vpop.f32.mrb[0].mxu0
        %v3241 = vadd.f32 0.0, %v3240
        %v3242 = vpop.f32.mrb[0].mxu0
        %v3243 = vadd.f32 0.0, %v3242
        %3244 = vmatprep.mubr.f32.mxu0 0.0
        %3245 = vmatmul.mubr.f32.gmra.mrb[0].mxu0 %v3016
        %v3246 = vpop.f32.mrb[0].mxu0
        %v3247 = vadd.f32 0.0, %v3246
        %v3248 = vpop.f32.mrb[0].mxu0
        %v3249 = vadd.f32 0.0, %v3248
        %3250 = vmatprep.mubr.f32.mxu0 0.0
        %3251 = vmatmul.mubr.f32.gmra.mrb[0].mxu0 %v3019
        %v3252 = vpop.f32.mrb[0].mxu0
        %v3253 = vadd.f32 0.0, %v3252
        %v3254 = vpop.f32.mrb[0].mxu0
        %v3255 = vadd.f32 0.0, %v3254
        %3256 = vmatprep.mubr.f32.mxu0 0.0
        %3257 = vmatmul.mubr.f32.gmra.mrb[0].mxu0 %v3022
        %v3258 = vpop.f32.mrb[0].mxu0
        %v3259 = vadd.f32 0.0, %v3258
        %v3260 = vpop.f32.mrb[0].mxu0
        %v3261 = vadd.f32 0.0, %v3260
        %3262 = vmatprep.mubr.f32.mxu0 0.0
        %3263 = vmatmul.mubr.f32.gmra.mrb[0].mxu0 %v3025
        %v3264 = vpop.f32.mrb[0].mxu0
        %v3265 = vadd.f32 0.0, %v3264
        %v3266 = vpop.f32.mrb[0].mxu0
        %v3267 = vadd.f32 0.0, %v3266
        %3268 = vmatprep.mubr.f32.mxu0 0.0
        %3269 = vmatmul.mubr.f32.gmra.mrb[0].mxu0 %v3028
        %v3270 = vpop.f32.mrb[0].mxu0
        %v3271 = vadd.f32 0.0, %v3270
        %v3272 = vpop.f32.mrb[0].mxu0
        %v3273 = vadd.f32 0.0, %v3272
        %3274 = vmatprep.mubr.f32.mxu0 0.0
        %3275 = vmatmul.mubr.f32.gmra.mrb[0].mxu0 %v3031
        %v3276 = vpop.f32.mrb[0].mxu0
        %v3277 = vadd.f32 0.0, %v3276
        %v3278 = vpop.f32.mrb[0].mxu0
        %v3279 = vadd.f32 0.0, %v3278
        %3280 = vmatprep.mubr.f32.mxu0 0.0
        %3281 = vmatmul.mubr.f32.gmra.mrb[0].mxu0 %v3034
        %v3282 = vpop.f32.mrb[0].mxu0
        %v3283 = vadd.f32 0.0, %v3282
        %v3284 = vpop.f32.mrb[0].mxu0
        %v3285 = vadd.f32 0.0, %v3284
        %3286 = vmatprep.mubr.f32.mxu0 0.0
        %3287 = vmatmul.mubr.f32.gmra.mrb[0].mxu0 %v3037
        %v3288 = vpop.f32.mrb[0].mxu0
        %v3289 = vadd.f32 0.0, %v3288
        %v3290 = vpop.f32.mrb[0].mxu0
        %v3291 = vadd.f32 0.0, %v3290
        %3292 = vmatprep.mubr.f32.mxu0 0.0
        %3293 = vmatmul.mubr.f32.gmra.mrb[0].mxu0 %v3040
        %v3294 = vpop.f32.mrb[0].mxu0
        %v3295 = vadd.f32 0.0, %v3294
        %v3296 = vpop.f32.mrb[0].mxu0
        %v3297 = vadd.f32 0.0, %v3296
        %3298 = vdwg.mxu0
        %v3300 = vsel %vm2688, %v2592, 0
        %v3303 = vsel %vm2688, %v2593, 0
        %v3306 = vsel %vm2688, %v2594, 0
        %v3309 = vsel %vm2688, %v2595, 0
        %v3312 = vsel %vm2688, %v2596, 0
        %v3315 = vsel %vm2688, %v2597, 0
        %v3318 = vsel %vm2688, %v2598, 0
        %v3321 = vsel %vm2688, %v2599, 0
        %v3324 = vsel %vm2688, %v2600, 0
        %v3327 = vsel %vm2688, %v2601, 0
        %v3330 = vsel %vm2688, %v2602, 0
        %v3333 = vsel %vm2688, %v2603, 0
        %v3336 = vsel %vm2688, %v2604, 0
        %v3339 = vsel %vm2688, %v2605, 0
        %v3342 = vsel %vm2688, %v2606, 0
        %v3345 = vsel %vm2688, %v2607, 0
        %v3348 = vsel %vm2688, %v1600, 0
        %v3351 = vsel %vm2688, %v1601, 0
        %v3354 = vsel %vm2688, %v1602, 0
        %v3357 = vsel %vm2688, %v1603, 0
        %v3360 = vsel %vm2688, %v1604, 0
        %v3363 = vsel %vm2688, %v1605, 0
        %v3366 = vsel %vm2688, %v1606, 0
        %v3369 = vsel %vm2688, %v1607, 0
        %v3372 = vsel %vm2688, %v1608, 0
        %v3375 = vsel %vm2688, %v1609, 0
        %v3378 = vsel %vm2688, %v1610, 0
        %v3381 = vsel %vm2688, %v1611, 0
        %v3384 = vsel %vm2688, %v1612, 0
        %v3387 = vsel %vm2688, %v1613, 0
        %v3390 = vsel %vm2688, %v1614, 0
        %v3393 = vsel %vm2688, %v1615, 0
        %v3396 = vsel %vm2688, %v1616, 0
        %v3399 = vsel %vm2688, %v1617, 0
        %v3402 = vsel %vm2688, %v1618, 0
        %v3405 = vsel %vm2688, %v1619, 0
        %v3408 = vsel %vm2688, %v1620, 0
        %v3411 = vsel %vm2688, %v1621, 0
        %v3414 = vsel %vm2688, %v1622, 0
        %v3417 = vsel %vm2688, %v1623, 0
        %v3420 = vsel %vm2688, %v1624, 0
        %v3423 = vsel %vm2688, %v1625, 0
        %v3426 = vsel %vm2688, %v1626, 0
        %v3429 = vsel %vm2688, %v1627, 0
        %v3432 = vsel %vm2688, %v1628, 0
        %v3435 = vsel %vm2688, %v1629, 0
        %v3438 = vsel %vm2688, %v1630, 0
        %v3441 = vsel %vm2688, %v1631, 0
        %3443 = vmatprep.subr.mxu0 0.0
        %3444 = vmatpush1.xpose.msra.mxu0 %v3348
        %3445 = vmatprep.subr.mxu0 0.0
        %3446 = vmatpush1.xpose.msra.mxu0 %v3351
        %3447 = vmatprep.subr.mxu0 0.0
        %3448 = vmatpush1.xpose.msra.mxu0 %v3354
        %3449 = vmatprep.subr.mxu0 0.0
        %3450 = vmatpush1.xpose.msra.mxu0 %v3357
        %3451 = vmatprep.subr.mxu0 0.0
        %3452 = vmatpush1.xpose.msra.mxu0 %v3360
        %3453 = vmatprep.subr.mxu0 0.0
        %3454 = vmatpush1.xpose.msra.mxu0 %v3363
        %3455 = vmatprep.subr.mxu0 0.0
        %3456 = vmatpush1.xpose.msra.mxu0 %v3366
        %3457 = vmatprep.subr.mxu0 0.0
        %3458 = vmatpush1.xpose.msra.mxu0 %v3369
        %3459 = vmatprep.subr.mxu0 0.0
        %3460 = vmatpush1.xpose.msra.mxu0 %v3372
        %3461 = vmatprep.subr.mxu0 0.0
        %3462 = vmatpush1.xpose.msra.mxu0 %v3375
        %3463 = vmatprep.subr.mxu0 0.0
        %3464 = vmatpush1.xpose.msra.mxu0 %v3378
        %3465 = vmatprep.subr.mxu0 0.0
        %3466 = vmatpush1.xpose.msra.mxu0 %v3381
        %3467 = vmatprep.subr.mxu0 0.0
        %3468 = vmatpush1.xpose.msra.mxu0 %v3384
        %3469 = vmatprep.subr.mxu0 0.0
        %3470 = vmatpush1.xpose.msra.mxu0 %v3387
        %3471 = vmatprep.subr.mxu0 0.0
        %3472 = vmatpush1.xpose.msra.mxu0 %v3390
        %3473 = vmatprep.subr.mxu0 0.0
        %3474 = vmatpush1.xpose.msra.mxu0 %v3393
        %3475 = vmatprep.subr.mxu0 0.0
        %3476 = vmatpush1.xpose.msra.mxu0 %v3396
        %3477 = vmatprep.subr.mxu0 0.0
        %3478 = vmatpush1.xpose.msra.mxu0 %v3399
        %3479 = vmatprep.subr.mxu0 0.0
        %3480 = vmatpush1.xpose.msra.mxu0 %v3402
        %3481 = vmatprep.subr.mxu0 0.0
        %3482 = vmatpush1.xpose.msra.mxu0 %v3405
        %3483 = vmatprep.subr.mxu0 0.0
        %3484 = vmatpush1.xpose.msra.mxu0 %v3408
        %3485 = vmatprep.subr.mxu0 0.0
        %3486 = vmatpush1.xpose.msra.mxu0 %v3411
        %3487 = vmatprep.subr.mxu0 0.0
        %3488 = vmatpush1.xpose.msra.mxu0 %v3414
        %3489 = vmatprep.subr.mxu0 0.0
        %3490 = vmatpush1.xpose.msra.mxu0 %v3417
        %3491 = vmatprep.subr.mxu0 0.0
        %3492 = vmatpush1.xpose.msra.mxu0 %v3420
        %3493 = vmatprep.subr.mxu0 0.0
        %3494 = vmatpush1.xpose.msra.mxu0 %v3423
        %3495 = vmatprep.subr.mxu0 0.0
        %3496 = vmatpush1.xpose.msra.mxu0 %v3426
        %3497 = vmatprep.subr.mxu0 0.0
        %3498 = vmatpush1.xpose.msra.mxu0 %v3429
        %3499 = vmatprep.subr.mxu0 0.0
        %3500 = vmatpush1.xpose.msra.mxu0 %v3432
        %3501 = vmatprep.subr.mxu0 0.0
        %3502 = vmatpush1.xpose.msra.mxu0 %v3435
        %3503 = vmatprep.subr.mxu0 0.0
        %3504 = vmatpush1.xpose.msra.mxu0 %v3438
        %3505 = vmatprep.subr.mxu0 0.0
        %3506 = vmatpush1.xpose.msra.mxu0 %v3441
        %3507 = vmatprep.mubr.f32.mxu0 0.0
        %3508 = vmatmul.mubr.f32.gmra.mrb[0].mxu0 %v3300
        %v3509 = vpop.f32.mrb[0].mxu0
        %v3510 = vadd.f32 0.0, %v3509
        %v3511 = vpop.f32.mrb[0].mxu0
        %v3512 = vadd.f32 0.0, %v3511
        %3513 = vmatprep.mubr.f32.mxu0 0.0
        %3514 = vmatmul.mubr.f32.gmra.mrb[0].mxu0 %v3303
        %v3515 = vpop.f32.mrb[0].mxu0
        %v3516 = vadd.f32 0.0, %v3515
        %v3517 = vpop.f32.mrb[0].mxu0
        %v3518 = vadd.f32 0.0, %v3517
        %3519 = vmatprep.mubr.f32.mxu0 0.0
        %3520 = vmatmul.mubr.f32.gmra.mrb[0].mxu0 %v3306
        %v3521 = vpop.f32.mrb[0].mxu0
        %v3522 = vadd.f32 0.0, %v3521
        %v3523 = vpop.f32.mrb[0].mxu0
        %v3524 = vadd.f32 0.0, %v3523
        %3525 = vmatprep.mubr.f32.mxu0 0.0
        %3526 = vmatmul.mubr.f32.gmra.mrb[0].mxu0 %v3309
        %v3527 = vpop.f32.mrb[0].mxu0
        %v3528 = vadd.f32 0.0, %v3527
        %v3529 = vpop.f32.mrb[0].mxu0
        %v3530 = vadd.f32 0.0, %v3529
        %3531 = vmatprep.mubr.f32.mxu0 0.0
        %3532 = vmatmul.mubr.f32.gmra.mrb[0].mxu0 %v3312
        %v3533 = vpop.f32.mrb[0].mxu0
        %v3534 = vadd.f32 0.0, %v3533
        %v3535 = vpop.f32.mrb[0].mxu0
        %v3536 = vadd.f32 0.0, %v3535
        %3537 = vmatprep.mubr.f32.mxu0 0.0
        %3538 = vmatmul.mubr.f32.gmra.mrb[0].mxu0 %v3315
        %v3539 = vpop.f32.mrb[0].mxu0
        %v3540 = vadd.f32 0.0, %v3539
        %v3541 = vpop.f32.mrb[0].mxu0
        %v3542 = vadd.f32 0.0, %v3541
        %3543 = vmatprep.mubr.f32.mxu0 0.0
        %3544 = vmatmul.mubr.f32.gmra.mrb[0].mxu0 %v3318
        %v3545 = vpop.f32.mrb[0].mxu0
        %v3546 = vadd.f32 0.0, %v3545
        %v3547 = vpop.f32.mrb[0].mxu0
        %v3548 = vadd.f32 0.0, %v3547
        %3549 = vmatprep.mubr.f32.mxu0 0.0
        %3550 = vmatmul.mubr.f32.gmra.mrb[0].mxu0 %v3321
        %v3551 = vpop.f32.mrb[0].mxu0
        %v3552 = vadd.f32 0.0, %v3551
        %v3553 = vpop.f32.mrb[0].mxu0
        %v3554 = vadd.f32 0.0, %v3553
        %3555 = vmatprep.mubr.f32.mxu0 0.0
        %3556 = vmatmul.mubr.f32.gmra.mrb[0].mxu0 %v3324
        %v3557 = vpop.f32.mrb[0].mxu0
        %v3558 = vadd.f32 0.0, %v3557
        %v3559 = vpop.f32.mrb[0].mxu0
        %v3560 = vadd.f32 0.0, %v3559
        %3561 = vmatprep.mubr.f32.mxu0 0.0
        %3562 = vmatmul.mubr.f32.gmra.mrb[0].mxu0 %v3327
        %v3563 = vpop.f32.mrb[0].mxu0
        %v3564 = vadd.f32 0.0, %v3563
        %v3565 = vpop.f32.mrb[0].mxu0
        %v3566 = vadd.f32 0.0, %v3565
        %3567 = vmatprep.mubr.f32.mxu0 0.0
        %3568 = vmatmul.mubr.f32.gmra.mrb[0].mxu0 %v3330
        %v3569 = vpop.f32.mrb[0].mxu0
        %v3570 = vadd.f32 0.0, %v3569
        %v3571 = vpop.f32.mrb[0].mxu0
        %v3572 = vadd.f32 0.0, %v3571
        %3573 = vmatprep.mubr.f32.mxu0 0.0
        %3574 = vmatmul.mubr.f32.gmra.mrb[0].mxu0 %v3333
        %v3575 = vpop.f32.mrb[0].mxu0
        %v3576 = vadd.f32 0.0, %v3575
        %v3577 = vpop.f32.mrb[0].mxu0
        %v3578 = vadd.f32 0.0, %v3577
        %3579 = vmatprep.mubr.f32.mxu0 0.0
        %3580 = vmatmul.mubr.f32.gmra.mrb[0].mxu0 %v3336
        %v3581 = vpop.f32.mrb[0].mxu0
        %v3582 = vadd.f32 0.0, %v3581
        %v3583 = vpop.f32.mrb[0].mxu0
        %v3584 = vadd.f32 0.0, %v3583
        %3585 = vmatprep.mubr.f32.mxu0 0.0
        %3586 = vmatmul.mubr.f32.gmra.mrb[0].mxu0 %v3339
        %v3587 = vpop.f32.mrb[0].mxu0
        %v3588 = vadd.f32 0.0, %v3587
        %v3589 = vpop.f32.mrb[0].mxu0
        %v3590 = vadd.f32 0.0, %v3589
        %3591 = vmatprep.mubr.f32.mxu0 0.0
        %3592 = vmatmul.mubr.f32.gmra.mrb[0].mxu0 %v3342
        %v3593 = vpop.f32.mrb[0].mxu0
        %v3594 = vadd.f32 0.0, %v3593
        %v3595 = vpop.f32.mrb[0].mxu0
        %v3596 = vadd.f32 0.0, %v3595
        %3597 = vmatprep.mubr.f32.mxu0 0.0
        %3598 = vmatmul.mubr.f32.gmra.mrb[0].mxu0 %v3345
        %v3599 = vpop.f32.mrb[0].mxu0
        %v3600 = vadd.f32 0.0, %v3599
        %v3601 = vpop.f32.mrb[0].mxu0
        %v3602 = vadd.f32 0.0, %v3601
        %3603 = vdwg.mxu0
        %v3605 = vsel %vm2688, %v2608, 0
        %v3608 = vsel %vm2688, %v2609, 0
        %v3611 = vsel %vm2688, %v2610, 0
        %v3614 = vsel %vm2688, %v2611, 0
        %v3617 = vsel %vm2688, %v2612, 0
        %v3620 = vsel %vm2688, %v2613, 0
        %v3623 = vsel %vm2688, %v2614, 0
        %v3626 = vsel %vm2688, %v2615, 0
        %v3629 = vsel %vm2688, %v2616, 0
        %v3632 = vsel %vm2688, %v2617, 0
        %v3635 = vsel %vm2688, %v2618, 0
        %v3638 = vsel %vm2688, %v2619, 0
        %v3641 = vsel %vm2688, %v2620, 0
        %v3644 = vsel %vm2688, %v2621, 0
        %v3647 = vsel %vm2688, %v2622, 0
        %v3650 = vsel %vm2688, %v2623, 0
        %v3653 = vsel %vm2688, %v1632, 0
        %v3656 = vsel %vm2688, %v1633, 0
        %v3659 = vsel %vm2688, %v1634, 0
        %v3662 = vsel %vm2688, %v1635, 0
        %v3665 = vsel %vm2688, %v1636, 0
        %v3668 = vsel %vm2688, %v1637, 0
        %v3671 = vsel %vm2688, %v1638, 0
        %v3674 = vsel %vm2688, %v1639, 0
        %v3677 = vsel %vm2688, %v1640, 0
        %v3680 = vsel %vm2688, %v1641, 0
        %v3683 = vsel %vm2688, %v1642, 0
        %v3686 = vsel %vm2688, %v1643, 0
        %v3689 = vsel %vm2688, %v1644, 0
        %v3692 = vsel %vm2688, %v1645, 0
        %v3695 = vsel %vm2688, %v1646, 0
        %v3698 = vsel %vm2688, %v1647, 0
        %v3701 = vsel %vm2688, %v1648, 0
        %v3704 = vsel %vm2688, %v1649, 0
        %v3707 = vsel %vm2688, %v1650, 0
        %v3710 = vsel %vm2688, %v1651, 0
        %v3713 = vsel %vm2688, %v1652, 0
        %v3716 = vsel %vm2688, %v1653, 0
        %v3719 = vsel %vm2688, %v1654, 0
        %v3722 = vsel %vm2688, %v1655, 0
        %v3725 = vsel %vm2688, %v1656, 0
        %v3728 = vsel %vm2688, %v1657, 0
        %v3731 = vsel %vm2688, %v1658, 0
        %v3734 = vsel %vm2688, %v1659, 0
        %v3737 = vsel %vm2688, %v1660, 0
        %v3740 = vsel %vm2688, %v1661, 0
        %v3743 = vsel %vm2688, %v1662, 0
        %v3746 = vsel %vm2688, %v1663, 0
        %3748 = vmatprep.subr.mxu0 0.0
        %3749 = vmatpush1.xpose.msra.mxu0 %v3653
        %3750 = vmatprep.subr.mxu0 0.0
        %3751 = vmatpush1.xpose.msra.mxu0 %v3656
        %3752 = vmatprep.subr.mxu0 0.0
        %3753 = vmatpush1.xpose.msra.mxu0 %v3659
        %3754 = vmatprep.subr.mxu0 0.0
        %3755 = vmatpush1.xpose.msra.mxu0 %v3662
        %3756 = vmatprep.subr.mxu0 0.0
        %3757 = vmatpush1.xpose.msra.mxu0 %v3665
        %3758 = vmatprep.subr.mxu0 0.0
        %3759 = vmatpush1.xpose.msra.mxu0 %v3668
        %3760 = vmatprep.subr.mxu0 0.0
        %3761 = vmatpush1.xpose.msra.mxu0 %v3671
        %3762 = vmatprep.subr.mxu0 0.0
        %3763 = vmatpush1.xpose.msra.mxu0 %v3674
        %3764 = vmatprep.subr.mxu0 0.0
        %3765 = vmatpush1.xpose.msra.mxu0 %v3677
        %3766 = vmatprep.subr.mxu0 0.0
        %3767 = vmatpush1.xpose.msra.mxu0 %v3680
        %3768 = vmatprep.subr.mxu0 0.0
        %3769 = vmatpush1.xpose.msra.mxu0 %v3683
        %3770 = vmatprep.subr.mxu0 0.0
        %3771 = vmatpush1.xpose.msra.mxu0 %v3686
        %3772 = vmatprep.subr.mxu0 0.0
        %3773 = vmatpush1.xpose.msra.mxu0 %v3689
        %3774 = vmatprep.subr.mxu0 0.0
        %3775 = vmatpush1.xpose.msra.mxu0 %v3692
        %3776 = vmatprep.subr.mxu0 0.0
        %3777 = vmatpush1.xpose.msra.mxu0 %v3695
        %3778 = vmatprep.subr.mxu0 0.0
        %3779 = vmatpush1.xpose.msra.mxu0 %v3698
        %3780 = vmatprep.subr.mxu0 0.0
        %3781 = vmatpush1.xpose.msra.mxu0 %v3701
        %3782 = vmatprep.subr.mxu0 0.0
        %3783 = vmatpush1.xpose.msra.mxu0 %v3704
        %3784 = vmatprep.subr.mxu0 0.0
        %3785 = vmatpush1.xpose.msra.mxu0 %v3707
        %3786 = vmatprep.subr.mxu0 0.0
        %3787 = vmatpush1.xpose.msra.mxu0 %v3710
        %3788 = vmatprep.subr.mxu0 0.0
        %3789 = vmatpush1.xpose.msra.mxu0 %v3713
        %3790 = vmatprep.subr.mxu0 0.0
        %3791 = vmatpush1.xpose.msra.mxu0 %v3716
        %3792 = vmatprep.subr.mxu0 0.0
        %3793 = vmatpush1.xpose.msra.mxu0 %v3719
        %3794 = vmatprep.subr.mxu0 0.0
        %3795 = vmatpush1.xpose.msra.mxu0 %v3722
        %3796 = vmatprep.subr.mxu0 0.0
        %3797 = vmatpush1.xpose.msra.mxu0 %v3725
        %3798 = vmatprep.subr.mxu0 0.0
        %3799 = vmatpush1.xpose.msra.mxu0 %v3728
        %3800 = vmatprep.subr.mxu0 0.0
        %3801 = vmatpush1.xpose.msra.mxu0 %v3731
        %3802 = vmatprep.subr.mxu0 0.0
        %3803 = vmatpush1.xpose.msra.mxu0 %v3734
        %3804 = vmatprep.subr.mxu0 0.0
        %3805 = vmatpush1.xpose.msra.mxu0 %v3737
        %3806 = vmatprep.subr.mxu0 0.0
        %3807 = vmatpush1.xpose.msra.mxu0 %v3740
        %3808 = vmatprep.subr.mxu0 0.0
        %3809 = vmatpush1.xpose.msra.mxu0 %v3743
        %3810 = vmatprep.subr.mxu0 0.0
        %3811 = vmatpush1.xpose.msra.mxu0 %v3746
        %3812 = vmatprep.mubr.f32.mxu0 0.0
        %3813 = vmatmul.mubr.f32.gmra.mrb[0].mxu0 %v3605
        %v3814 = vpop.f32.mrb[0].mxu0
        %v3815 = vadd.f32 0.0, %v3814
        %v3816 = vpop.f32.mrb[0].mxu0
        %v3817 = vadd.f32 0.0, %v3816
        %3818 = vmatprep.mubr.f32.mxu0 0.0
        %3819 = vmatmul.mubr.f32.gmra.mrb[0].mxu0 %v3608
        %v3820 = vpop.f32.mrb[0].mxu0
        %v3821 = vadd.f32 0.0, %v3820
        %v3822 = vpop.f32.mrb[0].mxu0
        %v3823 = vadd.f32 0.0, %v3822
        %3824 = vmatprep.mubr.f32.mxu0 0.0
        %3825 = vmatmul.mubr.f32.gmra.mrb[0].mxu0 %v3611
        %v3826 = vpop.f32.mrb[0].mxu0
        %v3827 = vadd.f32 0.0, %v3826
        %v3828 = vpop.f32.mrb[0].mxu0
        %v3829 = vadd.f32 0.0, %v3828
        %3830 = vmatprep.mubr.f32.mxu0 0.0
        %3831 = vmatmul.mubr.f32.gmra.mrb[0].mxu0 %v3614
        %v3832 = vpop.f32.mrb[0].mxu0
        %v3833 = vadd.f32 0.0, %v3832
        %v3834 = vpop.f32.mrb[0].mxu0
        %v3835 = vadd.f32 0.0, %v3834
        %3836 = vmatprep.mubr.f32.mxu0 0.0
        %3837 = vmatmul.mubr.f32.gmra.mrb[0].mxu0 %v3617
        %v3838 = vpop.f32.mrb[0].mxu0
        %v3839 = vadd.f32 0.0, %v3838
        %v3840 = vpop.f32.mrb[0].mxu0
        %v3841 = vadd.f32 0.0, %v3840
        %3842 = vmatprep.mubr.f32.mxu0 0.0
        %3843 = vmatmul.mubr.f32.gmra.mrb[0].mxu0 %v3620
        %v3844 = vpop.f32.mrb[0].mxu0
        %v3845 = vadd.f32 0.0, %v3844
        %v3846 = vpop.f32.mrb[0].mxu0
        %v3847 = vadd.f32 0.0, %v3846
        %3848 = vmatprep.mubr.f32.mxu0 0.0
        %3849 = vmatmul.mubr.f32.gmra.mrb[0].mxu0 %v3623
        %v3850 = vpop.f32.mrb[0].mxu0
        %v3851 = vadd.f32 0.0, %v3850
        %v3852 = vpop.f32.mrb[0].mxu0
        %v3853 = vadd.f32 0.0, %v3852
        %3854 = vmatprep.mubr.f32.mxu0 0.0
        %3855 = vmatmul.mubr.f32.gmra.mrb[0].mxu0 %v3626
        %v3856 = vpop.f32.mrb[0].mxu0
        %v3857 = vadd.f32 0.0, %v3856
        %v3858 = vpop.f32.mrb[0].mxu0
        %v3859 = vadd.f32 0.0, %v3858
        %3860 = vmatprep.mubr.f32.mxu0 0.0
        %3861 = vmatmul.mubr.f32.gmra.mrb[0].mxu0 %v3629
        %v3862 = vpop.f32.mrb[0].mxu0
        %v3863 = vadd.f32 0.0, %v3862
        %v3864 = vpop.f32.mrb[0].mxu0
        %v3865 = vadd.f32 0.0, %v3864
        %3866 = vmatprep.mubr.f32.mxu0 0.0
        %3867 = vmatmul.mubr.f32.gmra.mrb[0].mxu0 %v3632
        %v3868 = vpop.f32.mrb[0].mxu0
        %v3869 = vadd.f32 0.0, %v3868
        %v3870 = vpop.f32.mrb[0].mxu0
        %v3871 = vadd.f32 0.0, %v3870
        %3872 = vmatprep.mubr.f32.mxu0 0.0
        %3873 = vmatmul.mubr.f32.gmra.mrb[0].mxu0 %v3635
        %v3874 = vpop.f32.mrb[0].mxu0
        %v3875 = vadd.f32 0.0, %v3874
        %v3876 = vpop.f32.mrb[0].mxu0
        %v3877 = vadd.f32 0.0, %v3876
        %3878 = vmatprep.mubr.f32.mxu0 0.0
        %3879 = vmatmul.mubr.f32.gmra.mrb[0].mxu0 %v3638
        %v3880 = vpop.f32.mrb[0].mxu0
        %v3881 = vadd.f32 0.0, %v3880
        %v3882 = vpop.f32.mrb[0].mxu0
        %v3883 = vadd.f32 0.0, %v3882
        %3884 = vmatprep.mubr.f32.mxu0 0.0
        %3885 = vmatmul.mubr.f32.gmra.mrb[0].mxu0 %v3641
        %v3886 = vpop.f32.mrb[0].mxu0
        %v3887 = vadd.f32 0.0, %v3886
        %v3888 = vpop.f32.mrb[0].mxu0
        %v3889 = vadd.f32 0.0, %v3888
        %3890 = vmatprep.mubr.f32.mxu0 0.0
        %3891 = vmatmul.mubr.f32.gmra.mrb[0].mxu0 %v3644
        %v3892 = vpop.f32.mrb[0].mxu0
        %v3893 = vadd.f32 0.0, %v3892
        %v3894 = vpop.f32.mrb[0].mxu0
        %v3895 = vadd.f32 0.0, %v3894
        %3896 = vmatprep.mubr.f32.mxu0 0.0
        %3897 = vmatmul.mubr.f32.gmra.mrb[0].mxu0 %v3647
        %v3898 = vpop.f32.mrb[0].mxu0
        %v3899 = vadd.f32 0.0, %v3898
        %v3900 = vpop.f32.mrb[0].mxu0
        %v3901 = vadd.f32 0.0, %v3900
        %3902 = vmatprep.mubr.f32.mxu0 0.0
        %3903 = vmatmul.mubr.f32.gmra.mrb[0].mxu0 %v3650
        %v3904 = vpop.f32.mrb[0].mxu0
        %v3905 = vadd.f32 0.0, %v3904
        %v3906 = vpop.f32.mrb[0].mxu0
        %v3907 = vadd.f32 0.0, %v3906
        %3908 = vdwg.mxu0
        %v3910 = vsel %vm2688, %v2624, 0
        %v3913 = vsel %vm2688, %v2625, 0
        %v3916 = vsel %vm2688, %v2626, 0
        %v3919 = vsel %vm2688, %v2627, 0
        %v3922 = vsel %vm2688, %v2628, 0
        %v3925 = vsel %vm2688, %v2629, 0
        %v3928 = vsel %vm2688, %v2630, 0
        %v3931 = vsel %vm2688, %v2631, 0
        %v3934 = vsel %vm2688, %v2632, 0
        %v3937 = vsel %vm2688, %v2633, 0
        %v3940 = vsel %vm2688, %v2634, 0
        %v3943 = vsel %vm2688, %v2635, 0
        %v3946 = vsel %vm2688, %v2636, 0
        %v3949 = vsel %vm2688, %v2637, 0
        %v3952 = vsel %vm2688, %v2638, 0
        %v3955 = vsel %vm2688, %v2639, 0
        %v3958 = vsel %vm2688, %v1664, 0
        %v3961 = vsel %vm2688, %v1665, 0
        %v3964 = vsel %vm2688, %v1666, 0
        %v3967 = vsel %vm2688, %v1667, 0
        %v3970 = vsel %vm2688, %v1668, 0
        %v3973 = vsel %vm2688, %v1669, 0
        %v3976 = vsel %vm2688, %v1670, 0
        %v3979 = vsel %vm2688, %v1671, 0
        %v3982 = vsel %vm2688, %v1672, 0
        %v3985 = vsel %vm2688, %v1673, 0
        %v3988 = vsel %vm2688, %v1674, 0
        %v3991 = vsel %vm2688, %v1675, 0
        %v3994 = vsel %vm2688, %v1676, 0
        %v3997 = vsel %vm2688, %v1677, 0
        %v4000 = vsel %vm2688, %v1678, 0
        %v4003 = vsel %vm2688, %v1679, 0
        %v4006 = vsel %vm2688, %v1680, 0
        %v4009 = vsel %vm2688, %v1681, 0
        %v4012 = vsel %vm2688, %v1682, 0
        %v4015 = vsel %vm2688, %v1683, 0
        %v4018 = vsel %vm2688, %v1684, 0
        %v4021 = vsel %vm2688, %v1685, 0
        %v4024 = vsel %vm2688, %v1686, 0
        %v4027 = vsel %vm2688, %v1687, 0
        %v4030 = vsel %vm2688, %v1688, 0
        %v4033 = vsel %vm2688, %v1689, 0
        %v4036 = vsel %vm2688, %v1690, 0
        %v4039 = vsel %vm2688, %v1691, 0
        %v4042 = vsel %vm2688, %v1692, 0
        %v4045 = vsel %vm2688, %v1693, 0
        %v4048 = vsel %vm2688, %v1694, 0
        %v4051 = vsel %vm2688, %v1695, 0
        %4053 = vmatprep.subr.mxu0 0.0
        %4054 = vmatpush1.xpose.msra.mxu0 %v3958
        %4055 = vmatprep.subr.mxu0 0.0
        %4056 = vmatpush1.xpose.msra.mxu0 %v3961
        %4057 = vmatprep.subr.mxu0 0.0
        %4058 = vmatpush1.xpose.msra.mxu0 %v3964
        %4059 = vmatprep.subr.mxu0 0.0
        %4060 = vmatpush1.xpose.msra.mxu0 %v3967
        %4061 = vmatprep.subr.mxu0 0.0
        %4062 = vmatpush1.xpose.msra.mxu0 %v3970
        %4063 = vmatprep.subr.mxu0 0.0
        %4064 = vmatpush1.xpose.msra.mxu0 %v3973
        %4065 = vmatprep.subr.mxu0 0.0
        %4066 = vmatpush1.xpose.msra.mxu0 %v3976
        %4067 = vmatprep.subr.mxu0 0.0
        %4068 = vmatpush1.xpose.msra.mxu0 %v3979
        %4069 = vmatprep.subr.mxu0 0.0
        %4070 = vmatpush1.xpose.msra.mxu0 %v3982
        %4071 = vmatprep.subr.mxu0 0.0
        %4072 = vmatpush1.xpose.msra.mxu0 %v3985
        %4073 = vmatprep.subr.mxu0 0.0
        %4074 = vmatpush1.xpose.msra.mxu0 %v3988
        %4075 = vmatprep.subr.mxu0 0.0
        %4076 = vmatpush1.xpose.msra.mxu0 %v3991
        %4077 = vmatprep.subr.mxu0 0.0
        %4078 = vmatpush1.xpose.msra.mxu0 %v3994
        %4079 = vmatprep.subr.mxu0 0.0
        %4080 = vmatpush1.xpose.msra.mxu0 %v3997
        %4081 = vmatprep.subr.mxu0 0.0
        %4082 = vmatpush1.xpose.msra.mxu0 %v4000
        %4083 = vmatprep.subr.mxu0 0.0
        %4084 = vmatpush1.xpose.msra.mxu0 %v4003
        %4085 = vmatprep.subr.mxu0 0.0
        %4086 = vmatpush1.xpose.msra.mxu0 %v4006
        %4087 = vmatprep.subr.mxu0 0.0
        %4088 = vmatpush1.xpose.msra.mxu0 %v4009
        %4089 = vmatprep.subr.mxu0 0.0
        %4090 = vmatpush1.xpose.msra.mxu0 %v4012
        %4091 = vmatprep.subr.mxu0 0.0
        %4092 = vmatpush1.xpose.msra.mxu0 %v4015
        %4093 = vmatprep.subr.mxu0 0.0
        %4094 = vmatpush1.xpose.msra.mxu0 %v4018
        %4095 = vmatprep.subr.mxu0 0.0
        %4096 = vmatpush1.xpose.msra.mxu0 %v4021
        %4097 = vmatprep.subr.mxu0 0.0
        %4098 = vmatpush1.xpose.msra.mxu0 %v4024
        %4099 = vmatprep.subr.mxu0 0.0
        %4100 = vmatpush1.xpose.msra.mxu0 %v4027
        %4101 = vmatprep.subr.mxu0 0.0
        %4102 = vmatpush1.xpose.msra.mxu0 %v4030
        %4103 = vmatprep.subr.mxu0 0.0
        %4104 = vmatpush1.xpose.msra.mxu0 %v4033
        %4105 = vmatprep.subr.mxu0 0.0
        %4106 = vmatpush1.xpose.msra.mxu0 %v4036
        %4107 = vmatprep.subr.mxu0 0.0
        %4108 = vmatpush1.xpose.msra.mxu0 %v4039
        %4109 = vmatprep.subr.mxu0 0.0
        %4110 = vmatpush1.xpose.msra.mxu0 %v4042
        %4111 = vmatprep.subr.mxu0 0.0
        %4112 = vmatpush1.xpose.msra.mxu0 %v4045
        %4113 = vmatprep.subr.mxu0 0.0
        %4114 = vmatpush1.xpose.msra.mxu0 %v4048
        %4115 = vmatprep.subr.mxu0 0.0
        %4116 = vmatpush1.xpose.msra.mxu0 %v4051
        %4117 = vmatprep.mubr.f32.mxu0 0.0
        %4118 = vmatmul.mubr.f32.gmra.mrb[0].mxu0 %v3910
        %v4119 = vpop.f32.mrb[0].mxu0
        %v4120 = vadd.f32 0.0, %v4119
        %v4121 = vpop.f32.mrb[0].mxu0
        %v4122 = vadd.f32 0.0, %v4121
        %4123 = vmatprep.mubr.f32.mxu0 0.0
        %4124 = vmatmul.mubr.f32.gmra.mrb[0].mxu0 %v3913
        %v4125 = vpop.f32.mrb[0].mxu0
        %v4126 = vadd.f32 0.0, %v4125
        %v4127 = vpop.f32.mrb[0].mxu0
        %v4128 = vadd.f32 0.0, %v4127
        %4129 = vmatprep.mubr.f32.mxu0 0.0
        %4130 = vmatmul.mubr.f32.gmra.mrb[0].mxu0 %v3916
        %v4131 = vpop.f32.mrb[0].mxu0
        %v4132 = vadd.f32 0.0, %v4131
        %v4133 = vpop.f32.mrb[0].mxu0
        %v4134 = vadd.f32 0.0, %v4133
        %4135 = vmatprep.mubr.f32.mxu0 0.0
        %4136 = vmatmul.mubr.f32.gmra.mrb[0].mxu0 %v3919
        %v4137 = vpop.f32.mrb[0].mxu0
        %v4138 = vadd.f32 0.0, %v4137
        %v4139 = vpop.f32.mrb[0].mxu0
        %v4140 = vadd.f32 0.0, %v4139
        %4141 = vmatprep.mubr.f32.mxu0 0.0
        %4142 = vmatmul.mubr.f32.gmra.mrb[0].mxu0 %v3922
        %v4143 = vpop.f32.mrb[0].mxu0
        %v4144 = vadd.f32 0.0, %v4143
        %v4145 = vpop.f32.mrb[0].mxu0
        %v4146 = vadd.f32 0.0, %v4145
        %4147 = vmatprep.mubr.f32.mxu0 0.0
        %4148 = vmatmul.mubr.f32.gmra.mrb[0].mxu0 %v3925
        %v4149 = vpop.f32.mrb[0].mxu0
        %v4150 = vadd.f32 0.0, %v4149
        %v4151 = vpop.f32.mrb[0].mxu0
        %v4152 = vadd.f32 0.0, %v4151
        %4153 = vmatprep.mubr.f32.mxu0 0.0
        %4154 = vmatmul.mubr.f32.gmra.mrb[0].mxu0 %v3928
        %v4155 = vpop.f32.mrb[0].mxu0
        %v4156 = vadd.f32 0.0, %v4155
        %v4157 = vpop.f32.mrb[0].mxu0
        %v4158 = vadd.f32 0.0, %v4157
        %4159 = vmatprep.mubr.f32.mxu0 0.0
        %4160 = vmatmul.mubr.f32.gmra.mrb[0].mxu0 %v3931
        %v4161 = vpop.f32.mrb[0].mxu0
        %v4162 = vadd.f32 0.0, %v4161
        %v4163 = vpop.f32.mrb[0].mxu0
        %v4164 = vadd.f32 0.0, %v4163
        %4165 = vmatprep.mubr.f32.mxu0 0.0
        %4166 = vmatmul.mubr.f32.gmra.mrb[0].mxu0 %v3934
        %v4167 = vpop.f32.mrb[0].mxu0
        %v4168 = vadd.f32 0.0, %v4167
        %v4169 = vpop.f32.mrb[0].mxu0
        %v4170 = vadd.f32 0.0, %v4169
        %4171 = vmatprep.mubr.f32.mxu0 0.0
        %4172 = vmatmul.mubr.f32.gmra.mrb[0].mxu0 %v3937
        %v4173 = vpop.f32.mrb[0].mxu0
        %v4174 = vadd.f32 0.0, %v4173
        %v4175 = vpop.f32.mrb[0].mxu0
        %v4176 = vadd.f32 0.0, %v4175
        %4177 = vmatprep.mubr.f32.mxu0 0.0
        %4178 = vmatmul.mubr.f32.gmra.mrb[0].mxu0 %v3940
        %v4179 = vpop.f32.mrb[0].mxu0
        %v4180 = vadd.f32 0.0, %v4179
        %v4181 = vpop.f32.mrb[0].mxu0
        %v4182 = vadd.f32 0.0, %v4181
        %4183 = vmatprep.mubr.f32.mxu0 0.0
        %4184 = vmatmul.mubr.f32.gmra.mrb[0].mxu0 %v3943
        %v4185 = vpop.f32.mrb[0].mxu0
        %v4186 = vadd.f32 0.0, %v4185
        %v4187 = vpop.f32.mrb[0].mxu0
        %v4188 = vadd.f32 0.0, %v4187
        %4189 = vmatprep.mubr.f32.mxu0 0.0
        %4190 = vmatmul.mubr.f32.gmra.mrb[0].mxu0 %v3946
        %v4191 = vpop.f32.mrb[0].mxu0
        %v4192 = vadd.f32 0.0, %v4191
        %v4193 = vpop.f32.mrb[0].mxu0
        %v4194 = vadd.f32 0.0, %v4193
        %4195 = vmatprep.mubr.f32.mxu0 0.0
        %4196 = vmatmul.mubr.f32.gmra.mrb[0].mxu0 %v3949
        %v4197 = vpop.f32.mrb[0].mxu0
        %v4198 = vadd.f32 0.0, %v4197
        %v4199 = vpop.f32.mrb[0].mxu0
        %v4200 = vadd.f32 0.0, %v4199
        %4201 = vmatprep.mubr.f32.mxu0 0.0
        %4202 = vmatmul.mubr.f32.gmra.mrb[0].mxu0 %v3952
        %v4203 = vpop.f32.mrb[0].mxu0
        %v4204 = vadd.f32 0.0, %v4203
        %v4205 = vpop.f32.mrb[0].mxu0
        %v4206 = vadd.f32 0.0, %v4205
        %4207 = vmatprep.mubr.f32.mxu0 0.0
        %4208 = vmatmul.mubr.f32.gmra.mrb[0].mxu0 %v3955
        %v4209 = vpop.f32.mrb[0].mxu0
        %v4210 = vadd.f32 0.0, %v4209
        %v4211 = vpop.f32.mrb[0].mxu0
        %v4212 = vadd.f32 0.0, %v4211
        %4213 = vdwg.mxu0
        %v4215 = vsel %vm2688, %v2640, 0
        %v4218 = vsel %vm2688, %v2641, 0
        %v4221 = vsel %vm2688, %v2642, 0
        %v4224 = vsel %vm2688, %v2643, 0
        %v4227 = vsel %vm2688, %v2644, 0
        %v4230 = vsel %vm2688, %v2645, 0
        %v4233 = vsel %vm2688, %v2646, 0
        %v4236 = vsel %vm2688, %v2647, 0
        %v4239 = vsel %vm2688, %v2648, 0
        %v4242 = vsel %vm2688, %v2649, 0
        %v4245 = vsel %vm2688, %v2650, 0
        %v4248 = vsel %vm2688, %v2651, 0
        %v4251 = vsel %vm2688, %v2652, 0
        %v4254 = vsel %vm2688, %v2653, 0
        %v4257 = vsel %vm2688, %v2654, 0
        %v4260 = vsel %vm2688, %v2655, 0
        %v4263 = vsel %vm2688, %v1696, 0
        %v4266 = vsel %vm2688, %v1697, 0
        %v4269 = vsel %vm2688, %v1698, 0
        %v4272 = vsel %vm2688, %v1699, 0
        %v4275 = vsel %vm2688, %v1700, 0
        %v4278 = vsel %vm2688, %v1701, 0
        %v4281 = vsel %vm2688, %v1702, 0
        %v4284 = vsel %vm2688, %v1703, 0
        %v4287 = vsel %vm2688, %v1704, 0
        %v4290 = vsel %vm2688, %v1705, 0
        %v4293 = vsel %vm2688, %v1706, 0
        %v4296 = vsel %vm2688, %v1707, 0
        %v4299 = vsel %vm2688, %v1708, 0
        %v4302 = vsel %vm2688, %v1709, 0
        %v4305 = vsel %vm2688, %v1710, 0
        %v4308 = vsel %vm2688, %v1711, 0
        %v4311 = vsel %vm2688, %v1712, 0
        %v4314 = vsel %vm2688, %v1713, 0
        %v4317 = vsel %vm2688, %v1714, 0
        %v4320 = vsel %vm2688, %v1715, 0
        %v4323 = vsel %vm2688, %v1716, 0
        %v4326 = vsel %vm2688, %v1717, 0
        %v4329 = vsel %vm2688, %v1718, 0
        %v4332 = vsel %vm2688, %v1719, 0
        %v4335 = vsel %vm2688, %v1720, 0
        %v4338 = vsel %vm2688, %v1721, 0
        %v4341 = vsel %vm2688, %v1722, 0
        %v4344 = vsel %vm2688, %v1723, 0
        %v4347 = vsel %vm2688, %v1724, 0
        %v4350 = vsel %vm2688, %v1725, 0
        %v4353 = vsel %vm2688, %v1726, 0
        %v4356 = vsel %vm2688, %v1727, 0
        %4358 = vmatprep.subr.mxu0 0.0
        %4359 = vmatpush1.xpose.msra.mxu0 %v4263
        %4360 = vmatprep.subr.mxu0 0.0
        %4361 = vmatpush1.xpose.msra.mxu0 %v4266
        %4362 = vmatprep.subr.mxu0 0.0
        %4363 = vmatpush1.xpose.msra.mxu0 %v4269
        %4364 = vmatprep.subr.mxu0 0.0
        %4365 = vmatpush1.xpose.msra.mxu0 %v4272
        %4366 = vmatprep.subr.mxu0 0.0
        %4367 = vmatpush1.xpose.msra.mxu0 %v4275
        %4368 = vmatprep.subr.mxu0 0.0
        %4369 = vmatpush1.xpose.msra.mxu0 %v4278
        %4370 = vmatprep.subr.mxu0 0.0
        %4371 = vmatpush1.xpose.msra.mxu0 %v4281
        %4372 = vmatprep.subr.mxu0 0.0
        %4373 = vmatpush1.xpose.msra.mxu0 %v4284
        %4374 = vmatprep.subr.mxu0 0.0
        %4375 = vmatpush1.xpose.msra.mxu0 %v4287
        %4376 = vmatprep.subr.mxu0 0.0
        %4377 = vmatpush1.xpose.msra.mxu0 %v4290
        %4378 = vmatprep.subr.mxu0 0.0
        %4379 = vmatpush1.xpose.msra.mxu0 %v4293
        %4380 = vmatprep.subr.mxu0 0.0
        %4381 = vmatpush1.xpose.msra.mxu0 %v4296
        %4382 = vmatprep.subr.mxu0 0.0
        %4383 = vmatpush1.xpose.msra.mxu0 %v4299
        %4384 = vmatprep.subr.mxu0 0.0
        %4385 = vmatpush1.xpose.msra.mxu0 %v4302
        %4386 = vmatprep.subr.mxu0 0.0
        %4387 = vmatpush1.xpose.msra.mxu0 %v4305
        %4388 = vmatprep.subr.mxu0 0.0
        %4389 = vmatpush1.xpose.msra.mxu0 %v4308
        %4390 = vmatprep.subr.mxu0 0.0
        %4391 = vmatpush1.xpose.msra.mxu0 %v4311
        %4392 = vmatprep.subr.mxu0 0.0
        %4393 = vmatpush1.xpose.msra.mxu0 %v4314
        %4394 = vmatprep.subr.mxu0 0.0
        %4395 = vmatpush1.xpose.msra.mxu0 %v4317
        %4396 = vmatprep.subr.mxu0 0.0
        %4397 = vmatpush1.xpose.msra.mxu0 %v4320
        %4398 = vmatprep.subr.mxu0 0.0
        %4399 = vmatpush1.xpose.msra.mxu0 %v4323
        %4400 = vmatprep.subr.mxu0 0.0
        %4401 = vmatpush1.xpose.msra.mxu0 %v4326
        %4402 = vmatprep.subr.mxu0 0.0
        %4403 = vmatpush1.xpose.msra.mxu0 %v4329
        %4404 = vmatprep.subr.mxu0 0.0
        %4405 = vmatpush1.xpose.msra.mxu0 %v4332
        %4406 = vmatprep.subr.mxu0 0.0
        %4407 = vmatpush1.xpose.msra.mxu0 %v4335
        %4408 = vmatprep.subr.mxu0 0.0
        %4409 = vmatpush1.xpose.msra.mxu0 %v4338
        %4410 = vmatprep.subr.mxu0 0.0
        %4411 = vmatpush1.xpose.msra.mxu0 %v4341
        %4412 = vmatprep.subr.mxu0 0.0
        %4413 = vmatpush1.xpose.msra.mxu0 %v4344
        %4414 = vmatprep.subr.mxu0 0.0
        %4415 = vmatpush1.xpose.msra.mxu0 %v4347
        %4416 = vmatprep.subr.mxu0 0.0
        %4417 = vmatpush1.xpose.msra.mxu0 %v4350
        %4418 = vmatprep.subr.mxu0 0.0
        %4419 = vmatpush1.xpose.msra.mxu0 %v4353
        %4420 = vmatprep.subr.mxu0 0.0
        %4421 = vmatpush1.xpose.msra.mxu0 %v4356
        %4422 = vmatprep.mubr.f32.mxu0 0.0
        %4423 = vmatmul.mubr.f32.gmra.mrb[0].mxu0 %v4215
        %v4424 = vpop.f32.mrb[0].mxu0
        %v4425 = vadd.f32 0.0, %v4424
        %v4426 = vpop.f32.mrb[0].mxu0
        %v4427 = vadd.f32 0.0, %v4426
        %4428 = vmatprep.mubr.f32.mxu0 0.0
        %4429 = vmatmul.mubr.f32.gmra.mrb[0].mxu0 %v4218
        %v4430 = vpop.f32.mrb[0].mxu0
        %v4431 = vadd.f32 0.0, %v4430
        %v4432 = vpop.f32.mrb[0].mxu0
        %v4433 = vadd.f32 0.0, %v4432
        %4434 = vmatprep.mubr.f32.mxu0 0.0
        %4435 = vmatmul.mubr.f32.gmra.mrb[0].mxu0 %v4221
        %v4436 = vpop.f32.mrb[0].mxu0
        %v4437 = vadd.f32 0.0, %v4436
        %v4438 = vpop.f32.mrb[0].mxu0
        %v4439 = vadd.f32 0.0, %v4438
        %4440 = vmatprep.mubr.f32.mxu0 0.0
        %4441 = vmatmul.mubr.f32.gmra.mrb[0].mxu0 %v4224
        %v4442 = vpop.f32.mrb[0].mxu0
        %v4443 = vadd.f32 0.0, %v4442
        %v4444 = vpop.f32.mrb[0].mxu0
        %v4445 = vadd.f32 0.0, %v4444
        %4446 = vmatprep.mubr.f32.mxu0 0.0
        %4447 = vmatmul.mubr.f32.gmra.mrb[0].mxu0 %v4227
        %v4448 = vpop.f32.mrb[0].mxu0
        %v4449 = vadd.f32 0.0, %v4448
        %v4450 = vpop.f32.mrb[0].mxu0
        %v4451 = vadd.f32 0.0, %v4450
        %4452 = vmatprep.mubr.f32.mxu0 0.0
        %4453 = vmatmul.mubr.f32.gmra.mrb[0].mxu0 %v4230
        %v4454 = vpop.f32.mrb[0].mxu0
        %v4455 = vadd.f32 0.0, %v4454
        %v4456 = vpop.f32.mrb[0].mxu0
        %v4457 = vadd.f32 0.0, %v4456
        %4458 = vmatprep.mubr.f32.mxu0 0.0
        %4459 = vmatmul.mubr.f32.gmra.mrb[0].mxu0 %v4233
        %v4460 = vpop.f32.mrb[0].mxu0
        %v4461 = vadd.f32 0.0, %v4460
        %v4462 = vpop.f32.mrb[0].mxu0
        %v4463 = vadd.f32 0.0, %v4462
        %4464 = vmatprep.mubr.f32.mxu0 0.0
        %4465 = vmatmul.mubr.f32.gmra.mrb[0].mxu0 %v4236
        %v4466 = vpop.f32.mrb[0].mxu0
        %v4467 = vadd.f32 0.0, %v4466
        %v4468 = vpop.f32.mrb[0].mxu0
        %v4469 = vadd.f32 0.0, %v4468
        %4470 = vmatprep.mubr.f32.mxu0 0.0
        %4471 = vmatmul.mubr.f32.gmra.mrb[0].mxu0 %v4239
        %v4472 = vpop.f32.mrb[0].mxu0
        %v4473 = vadd.f32 0.0, %v4472
        %v4474 = vpop.f32.mrb[0].mxu0
        %v4475 = vadd.f32 0.0, %v4474
        %4476 = vmatprep.mubr.f32.mxu0 0.0
        %4477 = vmatmul.mubr.f32.gmra.mrb[0].mxu0 %v4242
        %v4478 = vpop.f32.mrb[0].mxu0
        %v4479 = vadd.f32 0.0, %v4478
        %v4480 = vpop.f32.mrb[0].mxu0
        %v4481 = vadd.f32 0.0, %v4480
        %4482 = vmatprep.mubr.f32.mxu0 0.0
        %4483 = vmatmul.mubr.f32.gmra.mrb[0].mxu0 %v4245
        %v4484 = vpop.f32.mrb[0].mxu0
        %v4485 = vadd.f32 0.0, %v4484
        %v4486 = vpop.f32.mrb[0].mxu0
        %v4487 = vadd.f32 0.0, %v4486
        %4488 = vmatprep.mubr.f32.mxu0 0.0
        %4489 = vmatmul.mubr.f32.gmra.mrb[0].mxu0 %v4248
        %v4490 = vpop.f32.mrb[0].mxu0
        %v4491 = vadd.f32 0.0, %v4490
        %v4492 = vpop.f32.mrb[0].mxu0
        %v4493 = vadd.f32 0.0, %v4492
        %4494 = vmatprep.mubr.f32.mxu0 0.0
        %4495 = vmatmul.mubr.f32.gmra.mrb[0].mxu0 %v4251
        %v4496 = vpop.f32.mrb[0].mxu0
        %v4497 = vadd.f32 0.0, %v4496
        %v4498 = vpop.f32.mrb[0].mxu0
        %v4499 = vadd.f32 0.0, %v4498
        %4500 = vmatprep.mubr.f32.mxu0 0.0
        %4501 = vmatmul.mubr.f32.gmra.mrb[0].mxu0 %v4254
        %v4502 = vpop.f32.mrb[0].mxu0
        %v4503 = vadd.f32 0.0, %v4502
        %v4504 = vpop.f32.mrb[0].mxu0
        %v4505 = vadd.f32 0.0, %v4504
        %4506 = vmatprep.mubr.f32.mxu0 0.0
        %4507 = vmatmul.mubr.f32.gmra.mrb[0].mxu0 %v4257
        %v4508 = vpop.f32.mrb[0].mxu0
        %v4509 = vadd.f32 0.0, %v4508
        %v4510 = vpop.f32.mrb[0].mxu0
        %v4511 = vadd.f32 0.0, %v4510
        %4512 = vmatprep.mubr.f32.mxu0 0.0
        %4513 = vmatmul.mubr.f32.gmra.mrb[0].mxu0 %v4260
        %v4514 = vpop.f32.mrb[0].mxu0
        %v4515 = vadd.f32 0.0, %v4514
        %v4516 = vpop.f32.mrb[0].mxu0
        %v4517 = vadd.f32 0.0, %v4516
        %4518 = vdwg.mxu0
        %v4520 = vsel %vm2688, %v2656, 0
        %v4523 = vsel %vm2688, %v2657, 0
        %v4526 = vsel %vm2688, %v2658, 0
        %v4529 = vsel %vm2688, %v2659, 0
        %v4532 = vsel %vm2688, %v2660, 0
        %v4535 = vsel %vm2688, %v2661, 0
        %v4538 = vsel %vm2688, %v2662, 0
        %v4541 = vsel %vm2688, %v2663, 0
        %v4544 = vsel %vm2688, %v2664, 0
        %v4547 = vsel %vm2688, %v2665, 0
        %v4550 = vsel %vm2688, %v2666, 0
        %v4553 = vsel %vm2688, %v2667, 0
        %v4556 = vsel %vm2688, %v2668, 0
        %v4559 = vsel %vm2688, %v2669, 0
        %v4562 = vsel %vm2688, %v2670, 0
        %v4565 = vsel %vm2688, %v2671, 0
        %v4568 = vsel %vm2688, %v1728, 0
        %v4571 = vsel %vm2688, %v1729, 0
        %v4574 = vsel %vm2688, %v1730, 0
        %v4577 = vsel %vm2688, %v1731, 0
        %v4580 = vsel %vm2688, %v1732, 0
        %v4583 = vsel %vm2688, %v1733, 0
        %v4586 = vsel %vm2688, %v1734, 0
        %v4589 = vsel %vm2688, %v1735, 0
        %v4592 = vsel %vm2688, %v1736, 0
        %v4595 = vsel %vm2688, %v1737, 0
        %v4598 = vsel %vm2688, %v1738, 0
        %v4601 = vsel %vm2688, %v1739, 0
        %v4604 = vsel %vm2688, %v1740, 0
        %v4607 = vsel %vm2688, %v1741, 0
        %v4610 = vsel %vm2688, %v1742, 0
        %v4613 = vsel %vm2688, %v1743, 0
        %v4616 = vsel %vm2688, %v1744, 0
        %v4619 = vsel %vm2688, %v1745, 0
        %v4622 = vsel %vm2688, %v1746, 0
        %v4625 = vsel %vm2688, %v1747, 0
        %v4628 = vsel %vm2688, %v1748, 0
        %v4631 = vsel %vm2688, %v1749, 0
        %v4634 = vsel %vm2688, %v1750, 0
        %v4637 = vsel %vm2688, %v1751, 0
        %v4640 = vsel %vm2688, %v1752, 0
        %v4643 = vsel %vm2688, %v1753, 0
        %v4646 = vsel %vm2688, %v1754, 0
        %v4649 = vsel %vm2688, %v1755, 0
        %v4652 = vsel %vm2688, %v1756, 0
        %v4655 = vsel %vm2688, %v1757, 0
        %v4658 = vsel %vm2688, %v1758, 0
        %v4661 = vsel %vm2688, %v1759, 0
        %4663 = vmatprep.subr.mxu0 0.0
        %4664 = vmatpush1.xpose.msra.mxu0 %v4568
        %4665 = vmatprep.subr.mxu0 0.0
        %4666 = vmatpush1.xpose.msra.mxu0 %v4571
        %4667 = vmatprep.subr.mxu0 0.0
        %4668 = vmatpush1.xpose.msra.mxu0 %v4574
        %4669 = vmatprep.subr.mxu0 0.0
        %4670 = vmatpush1.xpose.msra.mxu0 %v4577
        %4671 = vmatprep.subr.mxu0 0.0
        %4672 = vmatpush1.xpose.msra.mxu0 %v4580
        %4673 = vmatprep.subr.mxu0 0.0
        %4674 = vmatpush1.xpose.msra.mxu0 %v4583
        %4675 = vmatprep.subr.mxu0 0.0
        %4676 = vmatpush1.xpose.msra.mxu0 %v4586
        %4677 = vmatprep.subr.mxu0 0.0
        %4678 = vmatpush1.xpose.msra.mxu0 %v4589
        %4679 = vmatprep.subr.mxu0 0.0
        %4680 = vmatpush1.xpose.msra.mxu0 %v4592
        %4681 = vmatprep.subr.mxu0 0.0
        %4682 = vmatpush1.xpose.msra.mxu0 %v4595
        %4683 = vmatprep.subr.mxu0 0.0
        %4684 = vmatpush1.xpose.msra.mxu0 %v4598
        %4685 = vmatprep.subr.mxu0 0.0
        %4686 = vmatpush1.xpose.msra.mxu0 %v4601
        %4687 = vmatprep.subr.mxu0 0.0
        %4688 = vmatpush1.xpose.msra.mxu0 %v4604
        %4689 = vmatprep.subr.mxu0 0.0
        %4690 = vmatpush1.xpose.msra.mxu0 %v4607
        %4691 = vmatprep.subr.mxu0 0.0
        %4692 = vmatpush1.xpose.msra.mxu0 %v4610
        %4693 = vmatprep.subr.mxu0 0.0
        %4694 = vmatpush1.xpose.msra.mxu0 %v4613
        %4695 = vmatprep.subr.mxu0 0.0
        %4696 = vmatpush1.xpose.msra.mxu0 %v4616
        %4697 = vmatprep.subr.mxu0 0.0
        %4698 = vmatpush1.xpose.msra.mxu0 %v4619
        %4699 = vmatprep.subr.mxu0 0.0
        %4700 = vmatpush1.xpose.msra.mxu0 %v4622
        %4701 = vmatprep.subr.mxu0 0.0
        %4702 = vmatpush1.xpose.msra.mxu0 %v4625
        %4703 = vmatprep.subr.mxu0 0.0
        %4704 = vmatpush1.xpose.msra.mxu0 %v4628
        %4705 = vmatprep.subr.mxu0 0.0
        %4706 = vmatpush1.xpose.msra.mxu0 %v4631
        %4707 = vmatprep.subr.mxu0 0.0
        %4708 = vmatpush1.xpose.msra.mxu0 %v4634
        %4709 = vmatprep.subr.mxu0 0.0
        %4710 = vmatpush1.xpose.msra.mxu0 %v4637
        %4711 = vmatprep.subr.mxu0 0.0
        %4712 = vmatpush1.xpose.msra.mxu0 %v4640
        %4713 = vmatprep.subr.mxu0 0.0
        %4714 = vmatpush1.xpose.msra.mxu0 %v4643
        %4715 = vmatprep.subr.mxu0 0.0
        %4716 = vmatpush1.xpose.msra.mxu0 %v4646
        %4717 = vmatprep.subr.mxu0 0.0
        %4718 = vmatpush1.xpose.msra.mxu0 %v4649
        %4719 = vmatprep.subr.mxu0 0.0
        %4720 = vmatpush1.xpose.msra.mxu0 %v4652
        %4721 = vmatprep.subr.mxu0 0.0
        %4722 = vmatpush1.xpose.msra.mxu0 %v4655
        %4723 = vmatprep.subr.mxu0 0.0
        %4724 = vmatpush1.xpose.msra.mxu0 %v4658
        %4725 = vmatprep.subr.mxu0 0.0
        %4726 = vmatpush1.xpose.msra.mxu0 %v4661
        %4727 = vmatprep.mubr.f32.mxu0 0.0
        %4728 = vmatmul.mubr.f32.gmra.mrb[0].mxu0 %v4520
        %v4729 = vpop.f32.mrb[0].mxu0
        %v4730 = vadd.f32 0.0, %v4729
        %v4731 = vpop.f32.mrb[0].mxu0
        %v4732 = vadd.f32 0.0, %v4731
        %4733 = vmatprep.mubr.f32.mxu0 0.0
        %4734 = vmatmul.mubr.f32.gmra.mrb[0].mxu0 %v4523
        %v4735 = vpop.f32.mrb[0].mxu0
        %v4736 = vadd.f32 0.0, %v4735
        %v4737 = vpop.f32.mrb[0].mxu0
        %v4738 = vadd.f32 0.0, %v4737
        %4739 = vmatprep.mubr.f32.mxu0 0.0
        %4740 = vmatmul.mubr.f32.gmra.mrb[0].mxu0 %v4526
        %v4741 = vpop.f32.mrb[0].mxu0
        %v4742 = vadd.f32 0.0, %v4741
        %v4743 = vpop.f32.mrb[0].mxu0
        %v4744 = vadd.f32 0.0, %v4743
        %4745 = vmatprep.mubr.f32.mxu0 0.0
        %4746 = vmatmul.mubr.f32.gmra.mrb[0].mxu0 %v4529
        %v4747 = vpop.f32.mrb[0].mxu0
        %v4748 = vadd.f32 0.0, %v4747
        %v4749 = vpop.f32.mrb[0].mxu0
        %v4750 = vadd.f32 0.0, %v4749
        %4751 = vmatprep.mubr.f32.mxu0 0.0
        %4752 = vmatmul.mubr.f32.gmra.mrb[0].mxu0 %v4532
        %v4753 = vpop.f32.mrb[0].mxu0
        %v4754 = vadd.f32 0.0, %v4753
        %v4755 = vpop.f32.mrb[0].mxu0
        %v4756 = vadd.f32 0.0, %v4755
        %4757 = vmatprep.mubr.f32.mxu0 0.0
        %4758 = vmatmul.mubr.f32.gmra.mrb[0].mxu0 %v4535
        %v4759 = vpop.f32.mrb[0].mxu0
        %v4760 = vadd.f32 0.0, %v4759
        %v4761 = vpop.f32.mrb[0].mxu0
        %v4762 = vadd.f32 0.0, %v4761
        %4763 = vmatprep.mubr.f32.mxu0 0.0
        %4764 = vmatmul.mubr.f32.gmra.mrb[0].mxu0 %v4538
        %v4765 = vpop.f32.mrb[0].mxu0
        %v4766 = vadd.f32 0.0, %v4765
        %v4767 = vpop.f32.mrb[0].mxu0
        %v4768 = vadd.f32 0.0, %v4767
        %4769 = vmatprep.mubr.f32.mxu0 0.0
        %4770 = vmatmul.mubr.f32.gmra.mrb[0].mxu0 %v4541
        %v4771 = vpop.f32.mrb[0].mxu0
        %v4772 = vadd.f32 0.0, %v4771
        %v4773 = vpop.f32.mrb[0].mxu0
        %v4774 = vadd.f32 0.0, %v4773
        %4775 = vmatprep.mubr.f32.mxu0 0.0
        %4776 = vmatmul.mubr.f32.gmra.mrb[0].mxu0 %v4544
        %v4777 = vpop.f32.mrb[0].mxu0
        %v4778 = vadd.f32 0.0, %v4777
        %v4779 = vpop.f32.mrb[0].mxu0
        %v4780 = vadd.f32 0.0, %v4779
        %4781 = vmatprep.mubr.f32.mxu0 0.0
        %4782 = vmatmul.mubr.f32.gmra.mrb[0].mxu0 %v4547
        %v4783 = vpop.f32.mrb[0].mxu0
        %v4784 = vadd.f32 0.0, %v4783
        %v4785 = vpop.f32.mrb[0].mxu0
        %v4786 = vadd.f32 0.0, %v4785
        %4787 = vmatprep.mubr.f32.mxu0 0.0
        %4788 = vmatmul.mubr.f32.gmra.mrb[0].mxu0 %v4550
        %v4789 = vpop.f32.mrb[0].mxu0
        %v4790 = vadd.f32 0.0, %v4789
        %v4791 = vpop.f32.mrb[0].mxu0
        %v4792 = vadd.f32 0.0, %v4791
        %4793 = vmatprep.mubr.f32.mxu0 0.0
        %4794 = vmatmul.mubr.f32.gmra.mrb[0].mxu0 %v4553
        %v4795 = vpop.f32.mrb[0].mxu0
        %v4796 = vadd.f32 0.0, %v4795
        %v4797 = vpop.f32.mrb[0].mxu0
        %v4798 = vadd.f32 0.0, %v4797
        %4799 = vmatprep.mubr.f32.mxu0 0.0
        %4800 = vmatmul.mubr.f32.gmra.mrb[0].mxu0 %v4556
        %v4801 = vpop.f32.mrb[0].mxu0
        %v4802 = vadd.f32 0.0, %v4801
        %v4803 = vpop.f32.mrb[0].mxu0
        %v4804 = vadd.f32 0.0, %v4803
        %4805 = vmatprep.mubr.f32.mxu0 0.0
        %4806 = vmatmul.mubr.f32.gmra.mrb[0].mxu0 %v4559
        %v4807 = vpop.f32.mrb[0].mxu0
        %v4808 = vadd.f32 0.0, %v4807
        %v4809 = vpop.f32.mrb[0].mxu0
        %v4810 = vadd.f32 0.0, %v4809
        %4811 = vmatprep.mubr.f32.mxu0 0.0
        %4812 = vmatmul.mubr.f32.gmra.mrb[0].mxu0 %v4562
        %v4813 = vpop.f32.mrb[0].mxu0
        %v4814 = vadd.f32 0.0, %v4813
        %v4815 = vpop.f32.mrb[0].mxu0
        %v4816 = vadd.f32 0.0, %v4815
        %4817 = vmatprep.mubr.f32.mxu0 0.0
        %4818 = vmatmul.mubr.f32.gmra.mrb[0].mxu0 %v4565
        %v4819 = vpop.f32.mrb[0].mxu0
        %v4820 = vadd.f32 0.0, %v4819
        %v4821 = vpop.f32.mrb[0].mxu0
        %v4822 = vadd.f32 0.0, %v4821
        %4823 = vdwg.mxu0
        %v4825 = vsel %vm2688, %v2672, 0
        %v4828 = vsel %vm2688, %v2673, 0
        %v4831 = vsel %vm2688, %v2674, 0
        %v4834 = vsel %vm2688, %v2675, 0
        %v4837 = vsel %vm2688, %v2676, 0
        %v4840 = vsel %vm2688, %v2677, 0
        %v4843 = vsel %vm2688, %v2678, 0
        %v4846 = vsel %vm2688, %v2679, 0
        %v4849 = vsel %vm2688, %v2680, 0
        %v4852 = vsel %vm2688, %v2681, 0
        %v4855 = vsel %vm2688, %v2682, 0
        %v4858 = vsel %vm2688, %v2683, 0
        %v4861 = vsel %vm2688, %v2684, 0
        %v4864 = vsel %vm2688, %v2685, 0
        %v4867 = vsel %vm2688, %v2686, 0
        %v4870 = vsel %vm2688, %v2687, 0
        %v4873 = vsel %vm2688, %v1760, 0
        %v4876 = vsel %vm2688, %v1761, 0
        %v4879 = vsel %vm2688, %v1762, 0
        %v4882 = vsel %vm2688, %v1763, 0
        %v4885 = vsel %vm2688, %v1764, 0
        %v4888 = vsel %vm2688, %v1765, 0
        %v4891 = vsel %vm2688, %v1766, 0
        %v4894 = vsel %vm2688, %v1767, 0
        %v4897 = vsel %vm2688, %v1768, 0
        %v4900 = vsel %vm2688, %v1769, 0
        %v4903 = vsel %vm2688, %v1770, 0
        %v4906 = vsel %vm2688, %v1771, 0
        %v4909 = vsel %vm2688, %v1772, 0
        %v4912 = vsel %vm2688, %v1773, 0
        %v4915 = vsel %vm2688, %v1774, 0
        %v4918 = vsel %vm2688, %v1775, 0
        %v4921 = vsel %vm2688, %v1776, 0
        %v4924 = vsel %vm2688, %v1777, 0
        %v4927 = vsel %vm2688, %v1778, 0
        %v4930 = vsel %vm2688, %v1779, 0
        %v4933 = vsel %vm2688, %v1780, 0
        %v4936 = vsel %vm2688, %v1781, 0
        %v4939 = vsel %vm2688, %v1782, 0
        %v4942 = vsel %vm2688, %v1783, 0
        %v4945 = vsel %vm2688, %v1784, 0
        %v4948 = vsel %vm2688, %v1785, 0
        %v4951 = vsel %vm2688, %v1786, 0
        %v4954 = vsel %vm2688, %v1787, 0
        %v4957 = vsel %vm2688, %v1788, 0
        %v4960 = vsel %vm2688, %v1789, 0
        %v4963 = vsel %vm2688, %v1790, 0
        %v4966 = vsel %vm2688, %v1791, 0
        %4968 = vmatprep.subr.mxu0 0.0
        %4969 = vmatpush1.xpose.msra.mxu0 %v4873
        %4970 = vmatprep.subr.mxu0 0.0
        %4971 = vmatpush1.xpose.msra.mxu0 %v4876
        %4972 = vmatprep.subr.mxu0 0.0
        %4973 = vmatpush1.xpose.msra.mxu0 %v4879
        %4974 = vmatprep.subr.mxu0 0.0
        %4975 = vmatpush1.xpose.msra.mxu0 %v4882
        %4976 = vmatprep.subr.mxu0 0.0
        %4977 = vmatpush1.xpose.msra.mxu0 %v4885
        %4978 = vmatprep.subr.mxu0 0.0
        %4979 = vmatpush1.xpose.msra.mxu0 %v4888
        %4980 = vmatprep.subr.mxu0 0.0
        %4981 = vmatpush1.xpose.msra.mxu0 %v4891
        %4982 = vmatprep.subr.mxu0 0.0
        %4983 = vmatpush1.xpose.msra.mxu0 %v4894
        %4984 = vmatprep.subr.mxu0 0.0
        %4985 = vmatpush1.xpose.msra.mxu0 %v4897
        %4986 = vmatprep.subr.mxu0 0.0
        %4987 = vmatpush1.xpose.msra.mxu0 %v4900
        %4988 = vmatprep.subr.mxu0 0.0
        %4989 = vmatpush1.xpose.msra.mxu0 %v4903
        %4990 = vmatprep.subr.mxu0 0.0
        %4991 = vmatpush1.xpose.msra.mxu0 %v4906
        %4992 = vmatprep.subr.mxu0 0.0
        %4993 = vmatpush1.xpose.msra.mxu0 %v4909
        %4994 = vmatprep.subr.mxu0 0.0
        %4995 = vmatpush1.xpose.msra.mxu0 %v4912
        %4996 = vmatprep.subr.mxu0 0.0
        %4997 = vmatpush1.xpose.msra.mxu0 %v4915
        %4998 = vmatprep.subr.mxu0 0.0
        %4999 = vmatpush1.xpose.msra.mxu0 %v4918
        %5000 = vmatprep.subr.mxu0 0.0
        %5001 = vmatpush1.xpose.msra.mxu0 %v4921
        %5002 = vmatprep.subr.mxu0 0.0
        %5003 = vmatpush1.xpose.msra.mxu0 %v4924
        %5004 = vmatprep.subr.mxu0 0.0
        %5005 = vmatpush1.xpose.msra.mxu0 %v4927
        %5006 = vmatprep.subr.mxu0 0.0
        %5007 = vmatpush1.xpose.msra.mxu0 %v4930
        %5008 = vmatprep.subr.mxu0 0.0
        %5009 = vmatpush1.xpose.msra.mxu0 %v4933
        %5010 = vmatprep.subr.mxu0 0.0
        %5011 = vmatpush1.xpose.msra.mxu0 %v4936
        %5012 = vmatprep.subr.mxu0 0.0
        %5013 = vmatpush1.xpose.msra.mxu0 %v4939
        %5014 = vmatprep.subr.mxu0 0.0
        %5015 = vmatpush1.xpose.msra.mxu0 %v4942
        %5016 = vmatprep.subr.mxu0 0.0
        %5017 = vmatpush1.xpose.msra.mxu0 %v4945
        %5018 = vmatprep.subr.mxu0 0.0
        %5019 = vmatpush1.xpose.msra.mxu0 %v4948
        %5020 = vmatprep.subr.mxu0 0.0
        %5021 = vmatpush1.xpose.msra.mxu0 %v4951
        %5022 = vmatprep.subr.mxu0 0.0
        %5023 = vmatpush1.xpose.msra.mxu0 %v4954
        %5024 = vmatprep.subr.mxu0 0.0
        %5025 = vmatpush1.xpose.msra.mxu0 %v4957
        %5026 = vmatprep.subr.mxu0 0.0
        %5027 = vmatpush1.xpose.msra.mxu0 %v4960
        %5028 = vmatprep.subr.mxu0 0.0
        %5029 = vmatpush1.xpose.msra.mxu0 %v4963
        %5030 = vmatprep.subr.mxu0 0.0
        %5031 = vmatpush1.xpose.msra.mxu0 %v4966
        %5032 = vmatprep.mubr.f32.mxu0 0.0
        %5033 = vmatmul.mubr.f32.gmra.mrb[0].mxu0 %v4825
        %v5034 = vpop.f32.mrb[0].mxu0
        %v5035 = vadd.f32 0.0, %v5034
        %v5036 = vpop.f32.mrb[0].mxu0
        %v5037 = vadd.f32 0.0, %v5036
        %5038 = vmatprep.mubr.f32.mxu0 0.0
        %5039 = vmatmul.mubr.f32.gmra.mrb[0].mxu0 %v4828
        %v5040 = vpop.f32.mrb[0].mxu0
        %v5041 = vadd.f32 0.0, %v5040
        %v5042 = vpop.f32.mrb[0].mxu0
        %v5043 = vadd.f32 0.0, %v5042
        %5044 = vmatprep.mubr.f32.mxu0 0.0
        %5045 = vmatmul.mubr.f32.gmra.mrb[0].mxu0 %v4831
        %v5046 = vpop.f32.mrb[0].mxu0
        %v5047 = vadd.f32 0.0, %v5046
        %v5048 = vpop.f32.mrb[0].mxu0
        %v5049 = vadd.f32 0.0, %v5048
        %5050 = vmatprep.mubr.f32.mxu0 0.0
        %5051 = vmatmul.mubr.f32.gmra.mrb[0].mxu0 %v4834
        %v5052 = vpop.f32.mrb[0].mxu0
        %v5053 = vadd.f32 0.0, %v5052
        %v5054 = vpop.f32.mrb[0].mxu0
        %v5055 = vadd.f32 0.0, %v5054
        %5056 = vmatprep.mubr.f32.mxu0 0.0
        %5057 = vmatmul.mubr.f32.gmra.mrb[0].mxu0 %v4837
        %v5058 = vpop.f32.mrb[0].mxu0
        %v5059 = vadd.f32 0.0, %v5058
        %v5060 = vpop.f32.mrb[0].mxu0
        %v5061 = vadd.f32 0.0, %v5060
        %5062 = vmatprep.mubr.f32.mxu0 0.0
        %5063 = vmatmul.mubr.f32.gmra.mrb[0].mxu0 %v4840
        %v5064 = vpop.f32.mrb[0].mxu0
        %v5065 = vadd.f32 0.0, %v5064
        %v5066 = vpop.f32.mrb[0].mxu0
        %v5067 = vadd.f32 0.0, %v5066
        %5068 = vmatprep.mubr.f32.mxu0 0.0
        %5069 = vmatmul.mubr.f32.gmra.mrb[0].mxu0 %v4843
        %v5070 = vpop.f32.mrb[0].mxu0
        %v5071 = vadd.f32 0.0, %v5070
        %v5072 = vpop.f32.mrb[0].mxu0
        %v5073 = vadd.f32 0.0, %v5072
        %5074 = vmatprep.mubr.f32.mxu0 0.0
        %5075 = vmatmul.mubr.f32.gmra.mrb[0].mxu0 %v4846
        %v5076 = vpop.f32.mrb[0].mxu0
        %v5077 = vadd.f32 0.0, %v5076
        %v5078 = vpop.f32.mrb[0].mxu0
        %v5079 = vadd.f32 0.0, %v5078
        %5080 = vmatprep.mubr.f32.mxu0 0.0
        %5081 = vmatmul.mubr.f32.gmra.mrb[0].mxu0 %v4849
        %v5082 = vpop.f32.mrb[0].mxu0
        %v5083 = vadd.f32 0.0, %v5082
        %v5084 = vpop.f32.mrb[0].mxu0
        %v5085 = vadd.f32 0.0, %v5084
        %5086 = vmatprep.mubr.f32.mxu0 0.0
        %5087 = vmatmul.mubr.f32.gmra.mrb[0].mxu0 %v4852
        %v5088 = vpop.f32.mrb[0].mxu0
        %v5089 = vadd.f32 0.0, %v5088
        %v5090 = vpop.f32.mrb[0].mxu0
        %v5091 = vadd.f32 0.0, %v5090
        %5092 = vmatprep.mubr.f32.mxu0 0.0
        %5093 = vmatmul.mubr.f32.gmra.mrb[0].mxu0 %v4855
        %v5094 = vpop.f32.mrb[0].mxu0
        %v5095 = vadd.f32 0.0, %v5094
        %v5096 = vpop.f32.mrb[0].mxu0
        %v5097 = vadd.f32 0.0, %v5096
        %5098 = vmatprep.mubr.f32.mxu0 0.0
        %5099 = vmatmul.mubr.f32.gmra.mrb[0].mxu0 %v4858
        %v5100 = vpop.f32.mrb[0].mxu0
        %v5101 = vadd.f32 0.0, %v5100
        %v5102 = vpop.f32.mrb[0].mxu0
        %v5103 = vadd.f32 0.0, %v5102
        %5104 = vmatprep.mubr.f32.mxu0 0.0
        %5105 = vmatmul.mubr.f32.gmra.mrb[0].mxu0 %v4861
        %v5106 = vpop.f32.mrb[0].mxu0
        %v5107 = vadd.f32 0.0, %v5106
        %v5108 = vpop.f32.mrb[0].mxu0
        %v5109 = vadd.f32 0.0, %v5108
        %5110 = vmatprep.mubr.f32.mxu0 0.0
        %5111 = vmatmul.mubr.f32.gmra.mrb[0].mxu0 %v4864
        %v5112 = vpop.f32.mrb[0].mxu0
        %v5113 = vadd.f32 0.0, %v5112
        %v5114 = vpop.f32.mrb[0].mxu0
        %v5115 = vadd.f32 0.0, %v5114
        %5116 = vmatprep.mubr.f32.mxu0 0.0
        %5117 = vmatmul.mubr.f32.gmra.mrb[0].mxu0 %v4867
        %v5118 = vpop.f32.mrb[0].mxu0
        %v5119 = vadd.f32 0.0, %v5118
        %v5120 = vpop.f32.mrb[0].mxu0
        %v5121 = vadd.f32 0.0, %v5120
        %5122 = vmatprep.mubr.f32.mxu0 0.0
        %5123 = vmatmul.mubr.f32.gmra.mrb[0].mxu0 %v4870
        %v5124 = vpop.f32.mrb[0].mxu0
        %v5125 = vadd.f32 0.0, %v5124
        %v5126 = vpop.f32.mrb[0].mxu0
        %v5127 = vadd.f32 0.0, %v5126
        %5128 = vdwg.mxu0
        %v5129 = vsel %vm2304, -1e+09, %v2900
        %v5130 = vsel %vm2305, -1e+09, %v2902
        %v5131 = vsel %vm2306, -1e+09, %v2906
        %v5132 = vsel %vm2307, -1e+09, %v2908
        %v5133 = vsel %vm2308, -1e+09, %v2912
        %v5134 = vsel %vm2309, -1e+09, %v2914
        %v5135 = vsel %vm2310, -1e+09, %v2918
        %v5136 = vsel %vm2311, -1e+09, %v2920
        %v5137 = vsel %vm2312, -1e+09, %v2924
        %v5138 = vsel %vm2313, -1e+09, %v2926
        %v5139 = vsel %vm2314, -1e+09, %v2930
        %v5140 = vsel %vm2315, -1e+09, %v2932
        %v5141 = vsel %vm2316, -1e+09, %v2936
        %v5142 = vsel %vm2317, -1e+09, %v2938
        %v5143 = vsel %vm2318, -1e+09, %v2942
        %v5144 = vsel %vm2319, -1e+09, %v2944
        %v5145 = vsel %vm2320, -1e+09, %v2948
        %v5146 = vsel %vm2321, -1e+09, %v2950
        %v5147 = vsel %vm2322, -1e+09, %v2954
        %v5148 = vsel %vm2323, -1e+09, %v2956
        %v5149 = vsel %vm2324, -1e+09, %v2960
        %v5150 = vsel %vm2325, -1e+09, %v2962
        %v5151 = vsel %vm2326, -1e+09, %v2966
        %v5152 = vsel %vm2327, -1e+09, %v2968
        %v5153 = vsel %vm2328, -1e+09, %v2972
        %v5154 = vsel %vm2329, -1e+09, %v2974
        %v5155 = vsel %vm2330, -1e+09, %v2978
        %v5156 = vsel %vm2331, -1e+09, %v2980
        %v5157 = vsel %vm2332, -1e+09, %v2984
        %v5158 = vsel %vm2333, -1e+09, %v2986
        %v5159 = vsel %vm2334, -1e+09, %v2990
        %v5160 = vsel %vm2335, -1e+09, %v2992
        %v5161 = vsel %vm2336, -1e+09, %v3205
        %v5162 = vsel %vm2337, -1e+09, %v3207
        %v5163 = vsel %vm2338, -1e+09, %v3211
        %v5164 = vsel %vm2339, -1e+09, %v3213
        %v5165 = vsel %vm2340, -1e+09, %v3217
        %v5166 = vsel %vm2341, -1e+09, %v3219
        %v5167 = vsel %vm2342, -1e+09, %v3223
        %v5168 = vsel %vm2343, -1e+09, %v3225
        %v5169 = vsel %vm2344, -1e+09, %v3229
        %v5170 = vsel %vm2345, -1e+09, %v3231
        %v5171 = vsel %vm2346, -1e+09, %v3235
        %v5172 = vsel %vm2347, -1e+09, %v3237
        %v5173 = vsel %vm2348, -1e+09, %v3241
        %v5174 = vsel %vm2349, -1e+09, %v3243
        %v5175 = vsel %vm2350, -1e+09, %v3247
        %v5176 = vsel %vm2351, -1e+09, %v3249
        %v5177 = vsel %vm2352, -1e+09, %v3253
        %v5178 = vsel %vm2353, -1e+09, %v3255
        %v5179 = vsel %vm2354, -1e+09, %v3259
        %v5180 = vsel %vm2355, -1e+09, %v3261
        %v5181 = vsel %vm2356, -1e+09, %v3265
        %v5182 = vsel %vm2357, -1e+09, %v3267
        %v5183 = vsel %vm2358, -1e+09, %v3271
        %v5184 = vsel %vm2359, -1e+09, %v3273
        %v5185 = vsel %vm2360, -1e+09, %v3277
        %v5186 = vsel %vm2361, -1e+09, %v3279
        %v5187 = vsel %vm2362, -1e+09, %v3283
        %v5188 = vsel %vm2363, -1e+09, %v3285
        %v5189 = vsel %vm2364, -1e+09, %v3289
        %v5190 = vsel %vm2365, -1e+09, %v3291
        %v5191 = vsel %vm2366, -1e+09, %v3295
        %v5192 = vsel %vm2367, -1e+09, %v3297
        %v5193 = vsel %vm2368, -1e+09, %v3510
        %v5194 = vsel %vm2369, -1e+09, %v3512
        %v5195 = vsel %vm2370, -1e+09, %v3516
        %v5196 = vsel %vm2371, -1e+09, %v3518
        %v5197 = vsel %vm2372, -1e+09, %v3522
        %v5198 = vsel %vm2373, -1e+09, %v3524
        %v5199 = vsel %vm2374, -1e+09, %v3528
        %v5200 = vsel %vm2375, -1e+09, %v3530
        %v5201 = vsel %vm2376, -1e+09, %v3534
        %v5202 = vsel %vm2377, -1e+09, %v3536
        %v5203 = vsel %vm2378, -1e+09, %v3540
        %v5204 = vsel %vm2379, -1e+09, %v3542
        %v5205 = vsel %vm2380, -1e+09, %v3546
        %v5206 = vsel %vm2381, -1e+09, %v3548
        %v5207 = vsel %vm2382, -1e+09, %v3552
        %v5208 = vsel %vm2383, -1e+09, %v3554
        %v5209 = vsel %vm2384, -1e+09, %v3558
        %v5210 = vsel %vm2385, -1e+09, %v3560
        %v5211 = vsel %vm2386, -1e+09, %v3564
        %v5212 = vsel %vm2387, -1e+09, %v3566
        %v5213 = vsel %vm2388, -1e+09, %v3570
        %v5214 = vsel %vm2389, -1e+09, %v3572
        %v5215 = vsel %vm2390, -1e+09, %v3576
        %v5216 = vsel %vm2391, -1e+09, %v3578
        %v5217 = vsel %vm2392, -1e+09, %v3582
        %v5218 = vsel %vm2393, -1e+09, %v3584
        %v5219 = vsel %vm2394, -1e+09, %v3588
        %v5220 = vsel %vm2395, -1e+09, %v3590
        %v5221 = vsel %vm2396, -1e+09, %v3594
        %v5222 = vsel %vm2397, -1e+09, %v3596
        %v5223 = vsel %vm2398, -1e+09, %v3600
        %v5224 = vsel %vm2399, -1e+09, %v3602
        %v5225 = vsel %vm2400, -1e+09, %v3815
        %v5226 = vsel %vm2401, -1e+09, %v3817
        %v5227 = vsel %vm2402, -1e+09, %v3821
        %v5228 = vsel %vm2403, -1e+09, %v3823
        %v5229 = vsel %vm2404, -1e+09, %v3827
        %v5230 = vsel %vm2405, -1e+09, %v3829
        %v5231 = vsel %vm2406, -1e+09, %v3833
        %v5232 = vsel %vm2407, -1e+09, %v3835
        %v5233 = vsel %vm2408, -1e+09, %v3839
        %v5234 = vsel %vm2409, -1e+09, %v3841
        %v5235 = vsel %vm2410, -1e+09, %v3845
        %v5236 = vsel %vm2411, -1e+09, %v3847
        %v5237 = vsel %vm2412, -1e+09, %v3851
        %v5238 = vsel %vm2413, -1e+09, %v3853
        %v5239 = vsel %vm2414, -1e+09, %v3857
        %v5240 = vsel %vm2415, -1e+09, %v3859
        %v5241 = vsel %vm2416, -1e+09, %v3863
        %v5242 = vsel %vm2417, -1e+09, %v3865
        %v5243 = vsel %vm2418, -1e+09, %v3869
        %v5244 = vsel %vm2419, -1e+09, %v3871
        %v5245 = vsel %vm2420, -1e+09, %v3875
        %v5246 = vsel %vm2421, -1e+09, %v3877
        %v5247 = vsel %vm2422, -1e+09, %v3881
        %v5248 = vsel %vm2423, -1e+09, %v3883
        %v5249 = vsel %vm2424, -1e+09, %v3887
        %v5250 = vsel %vm2425, -1e+09, %v3889
        %v5251 = vsel %vm2426, -1e+09, %v3893
        %v5252 = vsel %vm2427, -1e+09, %v3895
        %v5253 = vsel %vm2428, -1e+09, %v3899
        %v5254 = vsel %vm2429, -1e+09, %v3901
        %v5255 = vsel %vm2430, -1e+09, %v3905
        %v5256 = vsel %vm2431, -1e+09, %v3907
        %v5257 = vsel %vm2432, -1e+09, %v4120
        %v5258 = vsel %vm2433, -1e+09, %v4122
        %v5259 = vsel %vm2434, -1e+09, %v4126
        %v5260 = vsel %vm2435, -1e+09, %v4128
        %v5261 = vsel %vm2436, -1e+09, %v4132
        %v5262 = vsel %vm2437, -1e+09, %v4134
        %v5263 = vsel %vm2438, -1e+09, %v4138
        %v5264 = vsel %vm2439, -1e+09, %v4140
        %v5265 = vsel %vm2440, -1e+09, %v4144
        %v5266 = vsel %vm2441, -1e+09, %v4146
        %v5267 = vsel %vm2442, -1e+09, %v4150
        %v5268 = vsel %vm2443, -1e+09, %v4152
        %v5269 = vsel %vm2444, -1e+09, %v4156
        %v5270 = vsel %vm2445, -1e+09, %v4158
        %v5271 = vsel %vm2446, -1e+09, %v4162
        %v5272 = vsel %vm2447, -1e+09, %v4164
        %v5273 = vsel %vm2448, -1e+09, %v4168
        %v5274 = vsel %vm2449, -1e+09, %v4170
        %v5275 = vsel %vm2450, -1e+09, %v4174
        %v5276 = vsel %vm2451, -1e+09, %v4176
        %v5277 = vsel %vm2452, -1e+09, %v4180
        %v5278 = vsel %vm2453, -1e+09, %v4182
        %v5279 = vsel %vm2454, -1e+09, %v4186
        %v5280 = vsel %vm2455, -1e+09, %v4188
        %v5281 = vsel %vm2456, -1e+09, %v4192
        %v5282 = vsel %vm2457, -1e+09, %v4194
        %v5283 = vsel %vm2458, -1e+09, %v4198
        %v5284 = vsel %vm2459, -1e+09, %v4200
        %v5285 = vsel %vm2460, -1e+09, %v4204
        %v5286 = vsel %vm2461, -1e+09, %v4206
        %v5287 = vsel %vm2462, -1e+09, %v4210
        %v5288 = vsel %vm2463, -1e+09, %v4212
        %v5289 = vsel %vm2464, -1e+09, %v4425
        %v5290 = vsel %vm2465, -1e+09, %v4427
        %v5291 = vsel %vm2466, -1e+09, %v4431
        %v5292 = vsel %vm2467, -1e+09, %v4433
        %v5293 = vsel %vm2468, -1e+09, %v4437
        %v5294 = vsel %vm2469, -1e+09, %v4439
        %v5295 = vsel %vm2470, -1e+09, %v4443
        %v5296 = vsel %vm2471, -1e+09, %v4445
        %v5297 = vsel %vm2472, -1e+09, %v4449
        %v5298 = vsel %vm2473, -1e+09, %v4451
        %v5299 = vsel %vm2474, -1e+09, %v4455
        %v5300 = vsel %vm2475, -1e+09, %v4457
        %v5301 = vsel %vm2476, -1e+09, %v4461
        %v5302 = vsel %vm2477, -1e+09, %v4463
        %v5303 = vsel %vm2478, -1e+09, %v4467
        %v5304 = vsel %vm2479, -1e+09, %v4469
        %v5305 = vsel %vm2480, -1e+09, %v4473
        %v5306 = vsel %vm2481, -1e+09, %v4475
        %v5307 = vsel %vm2482, -1e+09, %v4479
        %v5308 = vsel %vm2483, -1e+09, %v4481
        %v5309 = vsel %vm2484, -1e+09, %v4485
        %v5310 = vsel %vm2485, -1e+09, %v4487
        %v5311 = vsel %vm2486, -1e+09, %v4491
        %v5312 = vsel %vm2487, -1e+09, %v4493
        %v5313 = vsel %vm2488, -1e+09, %v4497
        %v5314 = vsel %vm2489, -1e+09, %v4499
        %v5315 = vsel %vm2490, -1e+09, %v4503
        %v5316 = vsel %vm2491, -1e+09, %v4505
        %v5317 = vsel %vm2492, -1e+09, %v4509
        %v5318 = vsel %vm2493, -1e+09, %v4511
        %v5319 = vsel %vm2494, -1e+09, %v4515
        %v5320 = vsel %vm2495, -1e+09, %v4517
        %v5321 = vsel %vm2496, -1e+09, %v4730
        %v5322 = vsel %vm2497, -1e+09, %v4732
        %v5323 = vsel %vm2498, -1e+09, %v4736
        %v5324 = vsel %vm2499, -1e+09, %v4738
        %v5325 = vsel %vm2500, -1e+09, %v4742
        %v5326 = vsel %vm2501, -1e+09, %v4744
        %v5327 = vsel %vm2502, -1e+09, %v4748
        %v5328 = vsel %vm2503, -1e+09, %v4750
        %v5329 = vsel %vm2504, -1e+09, %v4754
        %v5330 = vsel %vm2505, -1e+09, %v4756
        %v5331 = vsel %vm2506, -1e+09, %v4760
        %v5332 = vsel %vm2507, -1e+09, %v4762
        %v5333 = vsel %vm2508, -1e+09, %v4766
        %v5334 = vsel %vm2509, -1e+09, %v4768
        %v5335 = vsel %vm2510, -1e+09, %v4772
        %v5336 = vsel %vm2511, -1e+09, %v4774
        %v5337 = vsel %vm2512, -1e+09, %v4778
        %v5338 = vsel %vm2513, -1e+09, %v4780
        %v5339 = vsel %vm2514, -1e+09, %v4784
        %v5340 = vsel %vm2515, -1e+09, %v4786
        %v5341 = vsel %vm2516, -1e+09, %v4790
        %v5342 = vsel %vm2517, -1e+09, %v4792
        %v5343 = vsel %vm2518, -1e+09, %v4796
        %v5344 = vsel %vm2519, -1e+09, %v4798
        %v5345 = vsel %vm2520, -1e+09, %v4802
        %v5346 = vsel %vm2521, -1e+09, %v4804
        %v5347 = vsel %vm2522, -1e+09, %v4808
        %v5348 = vsel %vm2523, -1e+09, %v4810
        %v5349 = vsel %vm2524, -1e+09, %v4814
        %v5350 = vsel %vm2525, -1e+09, %v4816
        %v5351 = vsel %vm2526, -1e+09, %v4820
        %v5352 = vsel %vm2527, -1e+09, %v4822
        %v5353 = vsel %vm2528, -1e+09, %v5035
        %v5354 = vsel %vm2529, -1e+09, %v5037
        %v5355 = vsel %vm2530, -1e+09, %v5041
        %v5356 = vsel %vm2531, -1e+09, %v5043
        %v5357 = vsel %vm2532, -1e+09, %v5047
        %v5358 = vsel %vm2533, -1e+09, %v5049
        %v5359 = vsel %vm2534, -1e+09, %v5053
        %v5360 = vsel %vm2535, -1e+09, %v5055
        %v5361 = vsel %vm2536, -1e+09, %v5059
        %v5362 = vsel %vm2537, -1e+09, %v5061
        %v5363 = vsel %vm2538, -1e+09, %v5065
        %v5364 = vsel %vm2539, -1e+09, %v5067
        %v5365 = vsel %vm2540, -1e+09, %v5071
        %v5366 = vsel %vm2541, -1e+09, %v5073
        %v5367 = vsel %vm2542, -1e+09, %v5077
        %v5368 = vsel %vm2543, -1e+09, %v5079
        %v5369 = vsel %vm2544, -1e+09, %v5083
        %v5370 = vsel %vm2545, -1e+09, %v5085
        %v5371 = vsel %vm2546, -1e+09, %v5089
        %v5372 = vsel %vm2547, -1e+09, %v5091
        %v5373 = vsel %vm2548, -1e+09, %v5095
        %v5374 = vsel %vm2549, -1e+09, %v5097
        %v5375 = vsel %vm2550, -1e+09, %v5101
        %v5376 = vsel %vm2551, -1e+09, %v5103
        %v5377 = vsel %vm2552, -1e+09, %v5107
        %v5378 = vsel %vm2553, -1e+09, %v5109
        %v5379 = vsel %vm2554, -1e+09, %v5113
        %v5380 = vsel %vm2555, -1e+09, %v5115
        %v5381 = vsel %vm2556, -1e+09, %v5119
        %v5382 = vsel %vm2557, -1e+09, %v5121
        %v5383 = vsel %vm2558, -1e+09, %v5125
        %v5384 = vsel %vm2559, -1e+09, %v5127
        %v5385 = vmax.f32 %v5129, %v5130
        %5386 = vmax.xlane.f32.xlu0 %v5385
        %v5387 = vpop.xlane.xlu0 %5386
        %v5388 = vmax.f32 %v5131, %v5132
        %5389 = vmax.xlane.f32.xlu0 %v5388
        %v5390 = vpop.xlane.xlu0 %5389
        %v5391 = vmax.f32 %v5133, %v5134
        %5392 = vmax.xlane.f32.xlu0 %v5391
        %v5393 = vpop.xlane.xlu0 %5392
        %v5394 = vmax.f32 %v5135, %v5136
        %5395 = vmax.xlane.f32.xlu0 %v5394
        %v5396 = vpop.xlane.xlu0 %5395
        %v5397 = vmax.f32 %v5137, %v5138
        %5398 = vmax.xlane.f32.xlu0 %v5397
        %v5399 = vpop.xlane.xlu0 %5398
        %v5400 = vmax.f32 %v5139, %v5140
        %5401 = vmax.xlane.f32.xlu0 %v5400
        %v5402 = vpop.xlane.xlu0 %5401
        %v5403 = vmax.f32 %v5141, %v5142
        %5404 = vmax.xlane.f32.xlu0 %v5403
        %v5405 = vpop.xlane.xlu0 %5404
        %v5406 = vmax.f32 %v5143, %v5144
        %5407 = vmax.xlane.f32.xlu0 %v5406
        %v5408 = vpop.xlane.xlu0 %5407
        %v5409 = vmax.f32 %v5145, %v5146
        %5410 = vmax.xlane.f32.xlu0 %v5409
        %v5411 = vpop.xlane.xlu0 %5410
        %v5412 = vmax.f32 %v5147, %v5148
        %5413 = vmax.xlane.f32.xlu0 %v5412
        %v5414 = vpop.xlane.xlu0 %5413
        %v5415 = vmax.f32 %v5149, %v5150
        %5416 = vmax.xlane.f32.xlu0 %v5415
        %v5417 = vpop.xlane.xlu0 %5416
        %v5418 = vmax.f32 %v5151, %v5152
        %5419 = vmax.xlane.f32.xlu0 %v5418
        %v5420 = vpop.xlane.xlu0 %5419
        %v5421 = vmax.f32 %v5153, %v5154
        %5422 = vmax.xlane.f32.xlu0 %v5421
        %v5423 = vpop.xlane.xlu0 %5422
        %v5424 = vmax.f32 %v5155, %v5156
        %5425 = vmax.xlane.f32.xlu0 %v5424
        %v5426 = vpop.xlane.xlu0 %5425
        %v5427 = vmax.f32 %v5157, %v5158
        %5428 = vmax.xlane.f32.xlu0 %v5427
        %v5429 = vpop.xlane.xlu0 %5428
        %v5430 = vmax.f32 %v5159, %v5160
        %5431 = vmax.xlane.f32.xlu0 %v5430
        %v5432 = vpop.xlane.xlu0 %5431
        %v5433 = vmax.f32 %v5161, %v5162
        %5434 = vmax.xlane.f32.xlu0 %v5433
        %v5435 = vpop.xlane.xlu0 %5434
        %v5436 = vmax.f32 %v5163, %v5164
        %5437 = vmax.xlane.f32.xlu0 %v5436
        %v5438 = vpop.xlane.xlu0 %5437
        %v5439 = vmax.f32 %v5165, %v5166
        %5440 = vmax.xlane.f32.xlu0 %v5439
        %v5441 = vpop.xlane.xlu0 %5440
        %v5442 = vmax.f32 %v5167, %v5168
        %5443 = vmax.xlane.f32.xlu0 %v5442
        %v5444 = vpop.xlane.xlu0 %5443
        %v5445 = vmax.f32 %v5169, %v5170
        %5446 = vmax.xlane.f32.xlu0 %v5445
        %v5447 = vpop.xlane.xlu0 %5446
        %v5448 = vmax.f32 %v5171, %v5172
        %5449 = vmax.xlane.f32.xlu0 %v5448
        %v5450 = vpop.xlane.xlu0 %5449
        %v5451 = vmax.f32 %v5173, %v5174
        %5452 = vmax.xlane.f32.xlu0 %v5451
        %v5453 = vpop.xlane.xlu0 %5452
        %v5454 = vmax.f32 %v5175, %v5176
        %5455 = vmax.xlane.f32.xlu0 %v5454
        %v5456 = vpop.xlane.xlu0 %5455
        %v5457 = vmax.f32 %v5177, %v5178
        %5458 = vmax.xlane.f32.xlu0 %v5457
        %v5459 = vpop.xlane.xlu0 %5458
        %v5460 = vmax.f32 %v5179, %v5180
        %5461 = vmax.xlane.f32.xlu0 %v5460
        %v5462 = vpop.xlane.xlu0 %5461
        %v5463 = vmax.f32 %v5181, %v5182
        %5464 = vmax.xlane.f32.xlu0 %v5463
        %v5465 = vpop.xlane.xlu0 %5464
        %v5466 = vmax.f32 %v5183, %v5184
        %5467 = vmax.xlane.f32.xlu0 %v5466
        %v5468 = vpop.xlane.xlu0 %5467
        %v5469 = vmax.f32 %v5185, %v5186
        %5470 = vmax.xlane.f32.xlu0 %v5469
        %v5471 = vpop.xlane.xlu0 %5470
        %v5472 = vmax.f32 %v5187, %v5188
        %5473 = vmax.xlane.f32.xlu0 %v5472
        %v5474 = vpop.xlane.xlu0 %5473
        %v5475 = vmax.f32 %v5189, %v5190
        %5476 = vmax.xlane.f32.xlu0 %v5475
        %v5477 = vpop.xlane.xlu0 %5476
        %v5478 = vmax.f32 %v5191, %v5192
        %5479 = vmax.xlane.f32.xlu0 %v5478
        %v5480 = vpop.xlane.xlu0 %5479
        %v5481 = vmax.f32 %v5193, %v5194
        %5482 = vmax.xlane.f32.xlu0 %v5481
        %v5483 = vpop.xlane.xlu0 %5482
        %v5484 = vmax.f32 %v5195, %v5196
        %5485 = vmax.xlane.f32.xlu0 %v5484
        %v5486 = vpop.xlane.xlu0 %5485
        %v5487 = vmax.f32 %v5197, %v5198
        %5488 = vmax.xlane.f32.xlu0 %v5487
        %v5489 = vpop.xlane.xlu0 %5488
        %v5490 = vmax.f32 %v5199, %v5200
        %5491 = vmax.xlane.f32.xlu0 %v5490
        %v5492 = vpop.xlane.xlu0 %5491
        %v5493 = vmax.f32 %v5201, %v5202
        %5494 = vmax.xlane.f32.xlu0 %v5493
        %v5495 = vpop.xlane.xlu0 %5494
        %v5496 = vmax.f32 %v5203, %v5204
        %5497 = vmax.xlane.f32.xlu0 %v5496
        %v5498 = vpop.xlane.xlu0 %5497
        %v5499 = vmax.f32 %v5205, %v5206
        %5500 = vmax.xlane.f32.xlu0 %v5499
        %v5501 = vpop.xlane.xlu0 %5500
        %v5502 = vmax.f32 %v5207, %v5208
        %5503 = vmax.xlane.f32.xlu0 %v5502
        %v5504 = vpop.xlane.xlu0 %5503
        %v5505 = vmax.f32 %v5209, %v5210
        %5506 = vmax.xlane.f32.xlu0 %v5505
        %v5507 = vpop.xlane.xlu0 %5506
        %v5508 = vmax.f32 %v5211, %v5212
        %5509 = vmax.xlane.f32.xlu0 %v5508
        %v5510 = vpop.xlane.xlu0 %5509
        %v5511 = vmax.f32 %v5213, %v5214
        %5512 = vmax.xlane.f32.xlu0 %v5511
        %v5513 = vpop.xlane.xlu0 %5512
        %v5514 = vmax.f32 %v5215, %v5216
        %5515 = vmax.xlane.f32.xlu0 %v5514
        %v5516 = vpop.xlane.xlu0 %5515
        %v5517 = vmax.f32 %v5217, %v5218
        %5518 = vmax.xlane.f32.xlu0 %v5517
        %v5519 = vpop.xlane.xlu0 %5518
        %v5520 = vmax.f32 %v5219, %v5220
        %5521 = vmax.xlane.f32.xlu0 %v5520
        %v5522 = vpop.xlane.xlu0 %5521
        %v5523 = vmax.f32 %v5221, %v5222
        %5524 = vmax.xlane.f32.xlu0 %v5523
        %v5525 = vpop.xlane.xlu0 %5524
        %v5526 = vmax.f32 %v5223, %v5224
        %5527 = vmax.xlane.f32.xlu0 %v5526
        %v5528 = vpop.xlane.xlu0 %5527
        %v5529 = vmax.f32 %v5225, %v5226
        %5530 = vmax.xlane.f32.xlu0 %v5529
        %v5531 = vpop.xlane.xlu0 %5530
        %v5532 = vmax.f32 %v5227, %v5228
        %5533 = vmax.xlane.f32.xlu0 %v5532
        %v5534 = vpop.xlane.xlu0 %5533
        %v5535 = vmax.f32 %v5229, %v5230
        %5536 = vmax.xlane.f32.xlu0 %v5535
        %v5537 = vpop.xlane.xlu0 %5536
        %v5538 = vmax.f32 %v5231, %v5232
        %5539 = vmax.xlane.f32.xlu0 %v5538
        %v5540 = vpop.xlane.xlu0 %5539
        %v5541 = vmax.f32 %v5233, %v5234
        %5542 = vmax.xlane.f32.xlu0 %v5541
        %v5543 = vpop.xlane.xlu0 %5542
        %v5544 = vmax.f32 %v5235, %v5236
        %5545 = vmax.xlane.f32.xlu0 %v5544
        %v5546 = vpop.xlane.xlu0 %5545
        %v5547 = vmax.f32 %v5237, %v5238
        %5548 = vmax.xlane.f32.xlu0 %v5547
        %v5549 = vpop.xlane.xlu0 %5548
        %v5550 = vmax.f32 %v5239, %v5240
        %5551 = vmax.xlane.f32.xlu0 %v5550
        %v5552 = vpop.xlane.xlu0 %5551
        %v5553 = vmax.f32 %v5241, %v5242
        %5554 = vmax.xlane.f32.xlu0 %v5553
        %v5555 = vpop.xlane.xlu0 %5554
        %v5556 = vmax.f32 %v5243, %v5244
        %5557 = vmax.xlane.f32.xlu0 %v5556
        %v5558 = vpop.xlane.xlu0 %5557
        %v5559 = vmax.f32 %v5245, %v5246
        %5560 = vmax.xlane.f32.xlu0 %v5559
        %v5561 = vpop.xlane.xlu0 %5560
        %v5562 = vmax.f32 %v5247, %v5248
        %5563 = vmax.xlane.f32.xlu0 %v5562
        %v5564 = vpop.xlane.xlu0 %5563
        %v5565 = vmax.f32 %v5249, %v5250
        %5566 = vmax.xlane.f32.xlu0 %v5565
        %v5567 = vpop.xlane.xlu0 %5566
        %v5568 = vmax.f32 %v5251, %v5252
        %5569 = vmax.xlane.f32.xlu0 %v5568
        %v5570 = vpop.xlane.xlu0 %5569
        %v5571 = vmax.f32 %v5253, %v5254
        %5572 = vmax.xlane.f32.xlu0 %v5571
        %v5573 = vpop.xlane.xlu0 %5572
        %v5574 = vmax.f32 %v5255, %v5256
        %5575 = vmax.xlane.f32.xlu0 %v5574
        %v5576 = vpop.xlane.xlu0 %5575
        %v5577 = vmax.f32 %v5257, %v5258
        %5578 = vmax.xlane.f32.xlu0 %v5577
        %v5579 = vpop.xlane.xlu0 %5578
        %v5580 = vmax.f32 %v5259, %v5260
        %5581 = vmax.xlane.f32.xlu0 %v5580
        %v5582 = vpop.xlane.xlu0 %5581
        %v5583 = vmax.f32 %v5261, %v5262
        %5584 = vmax.xlane.f32.xlu0 %v5583
        %v5585 = vpop.xlane.xlu0 %5584
        %v5586 = vmax.f32 %v5263, %v5264
        %5587 = vmax.xlane.f32.xlu0 %v5586
        %v5588 = vpop.xlane.xlu0 %5587
        %v5589 = vmax.f32 %v5265, %v5266
        %5590 = vmax.xlane.f32.xlu0 %v5589
        %v5591 = vpop.xlane.xlu0 %5590
        %v5592 = vmax.f32 %v5267, %v5268
        %5593 = vmax.xlane.f32.xlu0 %v5592
        %v5594 = vpop.xlane.xlu0 %5593
        %v5595 = vmax.f32 %v5269, %v5270
        %5596 = vmax.xlane.f32.xlu0 %v5595
        %v5597 = vpop.xlane.xlu0 %5596
        %v5598 = vmax.f32 %v5271, %v5272
        %5599 = vmax.xlane.f32.xlu0 %v5598
        %v5600 = vpop.xlane.xlu0 %5599
        %v5601 = vmax.f32 %v5273, %v5274
        %5602 = vmax.xlane.f32.xlu0 %v5601
        %v5603 = vpop.xlane.xlu0 %5602
        %v5604 = vmax.f32 %v5275, %v5276
        %5605 = vmax.xlane.f32.xlu0 %v5604
        %v5606 = vpop.xlane.xlu0 %5605
        %v5607 = vmax.f32 %v5277, %v5278
        %5608 = vmax.xlane.f32.xlu0 %v5607
        %v5609 = vpop.xlane.xlu0 %5608
        %v5610 = vmax.f32 %v5279, %v5280
        %5611 = vmax.xlane.f32.xlu0 %v5610
        %v5612 = vpop.xlane.xlu0 %5611
        %v5613 = vmax.f32 %v5281, %v5282
        %5614 = vmax.xlane.f32.xlu0 %v5613
        %v5615 = vpop.xlane.xlu0 %5614
        %v5616 = vmax.f32 %v5283, %v5284
        %5617 = vmax.xlane.f32.xlu0 %v5616
        %v5618 = vpop.xlane.xlu0 %5617
        %v5619 = vmax.f32 %v5285, %v5286
        %5620 = vmax.xlane.f32.xlu0 %v5619
        %v5621 = vpop.xlane.xlu0 %5620
        %v5622 = vmax.f32 %v5287, %v5288
        %5623 = vmax.xlane.f32.xlu0 %v5622
        %v5624 = vpop.xlane.xlu0 %5623
        %v5625 = vmax.f32 %v5289, %v5290
        %5626 = vmax.xlane.f32.xlu0 %v5625
        %v5627 = vpop.xlane.xlu0 %5626
        %v5628 = vmax.f32 %v5291, %v5292
        %5629 = vmax.xlane.f32.xlu0 %v5628
        %v5630 = vpop.xlane.xlu0 %5629
        %v5631 = vmax.f32 %v5293, %v5294
        %5632 = vmax.xlane.f32.xlu0 %v5631
        %v5633 = vpop.xlane.xlu0 %5632
        %v5634 = vmax.f32 %v5295, %v5296
        %5635 = vmax.xlane.f32.xlu0 %v5634
        %v5636 = vpop.xlane.xlu0 %5635
        %v5637 = vmax.f32 %v5297, %v5298
        %5638 = vmax.xlane.f32.xlu0 %v5637
        %v5639 = vpop.xlane.xlu0 %5638
        %v5640 = vmax.f32 %v5299, %v5300
        %5641 = vmax.xlane.f32.xlu0 %v5640
        %v5642 = vpop.xlane.xlu0 %5641
        %v5643 = vmax.f32 %v5301, %v5302
        %5644 = vmax.xlane.f32.xlu0 %v5643
        %v5645 = vpop.xlane.xlu0 %5644
        %v5646 = vmax.f32 %v5303, %v5304
        %5647 = vmax.xlane.f32.xlu0 %v5646
        %v5648 = vpop.xlane.xlu0 %5647
        %v5649 = vmax.f32 %v5305, %v5306
        %5650 = vmax.xlane.f32.xlu0 %v5649
        %v5651 = vpop.xlane.xlu0 %5650
        %v5652 = vmax.f32 %v5307, %v5308
        %5653 = vmax.xlane.f32.xlu0 %v5652
        %v5654 = vpop.xlane.xlu0 %5653
        %v5655 = vmax.f32 %v5309, %v5310
        %5656 = vmax.xlane.f32.xlu0 %v5655
        %v5657 = vpop.xlane.xlu0 %5656
        %v5658 = vmax.f32 %v5311, %v5312
        %5659 = vmax.xlane.f32.xlu0 %v5658
        %v5660 = vpop.xlane.xlu0 %5659
        %v5661 = vmax.f32 %v5313, %v5314
        %5662 = vmax.xlane.f32.xlu0 %v5661
        %v5663 = vpop.xlane.xlu0 %5662
        %v5664 = vmax.f32 %v5315, %v5316
        %5665 = vmax.xlane.f32.xlu0 %v5664
        %v5666 = vpop.xlane.xlu0 %5665
        %v5667 = vmax.f32 %v5317, %v5318
        %5668 = vmax.xlane.f32.xlu0 %v5667
        %v5669 = vpop.xlane.xlu0 %5668
        %v5670 = vmax.f32 %v5319, %v5320
        %5671 = vmax.xlane.f32.xlu0 %v5670
        %v5672 = vpop.xlane.xlu0 %5671
        %v5673 = vmax.f32 %v5321, %v5322
        %5674 = vmax.xlane.f32.xlu0 %v5673
        %v5675 = vpop.xlane.xlu0 %5674
        %v5676 = vmax.f32 %v5323, %v5324
        %5677 = vmax.xlane.f32.xlu0 %v5676
        %v5678 = vpop.xlane.xlu0 %5677
        %v5679 = vmax.f32 %v5325, %v5326
        %5680 = vmax.xlane.f32.xlu0 %v5679
        %v5681 = vpop.xlane.xlu0 %5680
        %v5682 = vmax.f32 %v5327, %v5328
        %5683 = vmax.xlane.f32.xlu0 %v5682
        %v5684 = vpop.xlane.xlu0 %5683
        %v5685 = vmax.f32 %v5329, %v5330
        %5686 = vmax.xlane.f32.xlu0 %v5685
        %v5687 = vpop.xlane.xlu0 %5686
        %v5688 = vmax.f32 %v5331, %v5332
        %5689 = vmax.xlane.f32.xlu0 %v5688
        %v5690 = vpop.xlane.xlu0 %5689
        %v5691 = vmax.f32 %v5333, %v5334
        %5692 = vmax.xlane.f32.xlu0 %v5691
        %v5693 = vpop.xlane.xlu0 %5692
        %v5694 = vmax.f32 %v5335, %v5336
        %5695 = vmax.xlane.f32.xlu0 %v5694
        %v5696 = vpop.xlane.xlu0 %5695
        %v5697 = vmax.f32 %v5337, %v5338
        %5698 = vmax.xlane.f32.xlu0 %v5697
        %v5699 = vpop.xlane.xlu0 %5698
        %v5700 = vmax.f32 %v5339, %v5340
        %5701 = vmax.xlane.f32.xlu0 %v5700
        %v5702 = vpop.xlane.xlu0 %5701
        %v5703 = vmax.f32 %v5341, %v5342
        %5704 = vmax.xlane.f32.xlu0 %v5703
        %v5705 = vpop.xlane.xlu0 %5704
        %v5706 = vmax.f32 %v5343, %v5344
        %5707 = vmax.xlane.f32.xlu0 %v5706
        %v5708 = vpop.xlane.xlu0 %5707
        %v5709 = vmax.f32 %v5345, %v5346
        %5710 = vmax.xlane.f32.xlu0 %v5709
        %v5711 = vpop.xlane.xlu0 %5710
        %v5712 = vmax.f32 %v5347, %v5348
        %5713 = vmax.xlane.f32.xlu0 %v5712
        %v5714 = vpop.xlane.xlu0 %5713
        %v5715 = vmax.f32 %v5349, %v5350
        %5716 = vmax.xlane.f32.xlu0 %v5715
        %v5717 = vpop.xlane.xlu0 %5716
        %v5718 = vmax.f32 %v5351, %v5352
        %5719 = vmax.xlane.f32.xlu0 %v5718
        %v5720 = vpop.xlane.xlu0 %5719
        %v5721 = vmax.f32 %v5353, %v5354
        %5722 = vmax.xlane.f32.xlu0 %v5721
        %v5723 = vpop.xlane.xlu0 %5722
        %v5724 = vmax.f32 %v5355, %v5356
        %5725 = vmax.xlane.f32.xlu0 %v5724
        %v5726 = vpop.xlane.xlu0 %5725
        %v5727 = vmax.f32 %v5357, %v5358
        %5728 = vmax.xlane.f32.xlu0 %v5727
        %v5729 = vpop.xlane.xlu0 %5728
        %v5730 = vmax.f32 %v5359, %v5360
        %5731 = vmax.xlane.f32.xlu0 %v5730
        %v5732 = vpop.xlane.xlu0 %5731
        %v5733 = vmax.f32 %v5361, %v5362
        %5734 = vmax.xlane.f32.xlu0 %v5733
        %v5735 = vpop.xlane.xlu0 %5734
        %v5736 = vmax.f32 %v5363, %v5364
        %5737 = vmax.xlane.f32.xlu0 %v5736
        %v5738 = vpop.xlane.xlu0 %5737
        %v5739 = vmax.f32 %v5365, %v5366
        %5740 = vmax.xlane.f32.xlu0 %v5739
        %v5741 = vpop.xlane.xlu0 %5740
        %v5742 = vmax.f32 %v5367, %v5368
        %5743 = vmax.xlane.f32.xlu0 %v5742
        %v5744 = vpop.xlane.xlu0 %5743
        %v5745 = vmax.f32 %v5369, %v5370
        %5746 = vmax.xlane.f32.xlu0 %v5745
        %v5747 = vpop.xlane.xlu0 %5746
        %v5748 = vmax.f32 %v5371, %v5372
        %5749 = vmax.xlane.f32.xlu0 %v5748
        %v5750 = vpop.xlane.xlu0 %5749
        %v5751 = vmax.f32 %v5373, %v5374
        %5752 = vmax.xlane.f32.xlu0 %v5751
        %v5753 = vpop.xlane.xlu0 %5752
        %v5754 = vmax.f32 %v5375, %v5376
        %5755 = vmax.xlane.f32.xlu0 %v5754
        %v5756 = vpop.xlane.xlu0 %5755
        %v5757 = vmax.f32 %v5377, %v5378
        %5758 = vmax.xlane.f32.xlu0 %v5757
        %v5759 = vpop.xlane.xlu0 %5758
        %v5760 = vmax.f32 %v5379, %v5380
        %5761 = vmax.xlane.f32.xlu0 %v5760
        %v5762 = vpop.xlane.xlu0 %5761
        %v5763 = vmax.f32 %v5381, %v5382
        %5764 = vmax.xlane.f32.xlu0 %v5763
        %v5765 = vpop.xlane.xlu0 %5764
        %v5766 = vmax.f32 %v5383, %v5384
        %5767 = vmax.xlane.f32.xlu0 %v5766
        %v5768 = vpop.xlane.xlu0 %5767
        %v5769 = vsub.f32 %v5129, %v5387
        %v5770 = vsub.f32 %v5130, %v5387
        %v5771 = vsub.f32 %v5131, %v5390
        %v5772 = vsub.f32 %v5132, %v5390
        %v5773 = vsub.f32 %v5133, %v5393
        %v5774 = vsub.f32 %v5134, %v5393
        %v5775 = vsub.f32 %v5135, %v5396
        %v5776 = vsub.f32 %v5136, %v5396
        %v5777 = vsub.f32 %v5137, %v5399
        %v5778 = vsub.f32 %v5138, %v5399
        %v5779 = vsub.f32 %v5139, %v5402
        %v5780 = vsub.f32 %v5140, %v5402
        %v5781 = vsub.f32 %v5141, %v5405
        %v5782 = vsub.f32 %v5142, %v5405
        %v5783 = vsub.f32 %v5143, %v5408
        %v5784 = vsub.f32 %v5144, %v5408
        %v5785 = vsub.f32 %v5145, %v5411
        %v5786 = vsub.f32 %v5146, %v5411
        %v5787 = vsub.f32 %v5147, %v5414
        %v5788 = vsub.f32 %v5148, %v5414
        %v5789 = vsub.f32 %v5149, %v5417
        %v5790 = vsub.f32 %v5150, %v5417
        %v5791 = vsub.f32 %v5151, %v5420
        %v5792 = vsub.f32 %v5152, %v5420
        %v5793 = vsub.f32 %v5153, %v5423
        %v5794 = vsub.f32 %v5154, %v5423
        %v5795 = vsub.f32 %v5155, %v5426
        %v5796 = vsub.f32 %v5156, %v5426
        %v5797 = vsub.f32 %v5157, %v5429
        %v5798 = vsub.f32 %v5158, %v5429
        %v5799 = vsub.f32 %v5159, %v5432
        %v5800 = vsub.f32 %v5160, %v5432
        %v5801 = vsub.f32 %v5161, %v5435
        %v5802 = vsub.f32 %v5162, %v5435
        %v5803 = vsub.f32 %v5163, %v5438
        %v5804 = vsub.f32 %v5164, %v5438
        %v5805 = vsub.f32 %v5165, %v5441
        %v5806 = vsub.f32 %v5166, %v5441
        %v5807 = vsub.f32 %v5167, %v5444
        %v5808 = vsub.f32 %v5168, %v5444
        %v5809 = vsub.f32 %v5169, %v5447
        %v5810 = vsub.f32 %v5170, %v5447
        %v5811 = vsub.f32 %v5171, %v5450
        %v5812 = vsub.f32 %v5172, %v5450
        %v5813 = vsub.f32 %v5173, %v5453
        %v5814 = vsub.f32 %v5174, %v5453
        %v5815 = vsub.f32 %v5175, %v5456
        %v5816 = vsub.f32 %v5176, %v5456
        %v5817 = vsub.f32 %v5177, %v5459
        %v5818 = vsub.f32 %v5178, %v5459
        %v5819 = vsub.f32 %v5179, %v5462
        %v5820 = vsub.f32 %v5180, %v5462
        %v5821 = vsub.f32 %v5181, %v5465
        %v5822 = vsub.f32 %v5182, %v5465
        %v5823 = vsub.f32 %v5183, %v5468
        %v5824 = vsub.f32 %v5184, %v5468
        %v5825 = vsub.f32 %v5185, %v5471
        %v5826 = vsub.f32 %v5186, %v5471
        %v5827 = vsub.f32 %v5187, %v5474
        %v5828 = vsub.f32 %v5188, %v5474
        %v5829 = vsub.f32 %v5189, %v5477
        %v5830 = vsub.f32 %v5190, %v5477
        %v5831 = vsub.f32 %v5191, %v5480
        %v5832 = vsub.f32 %v5192, %v5480
        %v5833 = vsub.f32 %v5193, %v5483
        %v5834 = vsub.f32 %v5194, %v5483
        %v5835 = vsub.f32 %v5195, %v5486
        %v5836 = vsub.f32 %v5196, %v5486
        %v5837 = vsub.f32 %v5197, %v5489
        %v5838 = vsub.f32 %v5198, %v5489
        %v5839 = vsub.f32 %v5199, %v5492
        %v5840 = vsub.f32 %v5200, %v5492
        %v5841 = vsub.f32 %v5201, %v5495
        %v5842 = vsub.f32 %v5202, %v5495
        %v5843 = vsub.f32 %v5203, %v5498
        %v5844 = vsub.f32 %v5204, %v5498
        %v5845 = vsub.f32 %v5205, %v5501
        %v5846 = vsub.f32 %v5206, %v5501
        %v5847 = vsub.f32 %v5207, %v5504
        %v5848 = vsub.f32 %v5208, %v5504
        %v5849 = vsub.f32 %v5209, %v5507
        %v5850 = vsub.f32 %v5210, %v5507
        %v5851 = vsub.f32 %v5211, %v5510
        %v5852 = vsub.f32 %v5212, %v5510
        %v5853 = vsub.f32 %v5213, %v5513
        %v5854 = vsub.f32 %v5214, %v5513
        %v5855 = vsub.f32 %v5215, %v5516
        %v5856 = vsub.f32 %v5216, %v5516
        %v5857 = vsub.f32 %v5217, %v5519
        %v5858 = vsub.f32 %v5218, %v5519
        %v5859 = vsub.f32 %v5219, %v5522
        %v5860 = vsub.f32 %v5220, %v5522
        %v5861 = vsub.f32 %v5221, %v5525
        %v5862 = vsub.f32 %v5222, %v5525
        %v5863 = vsub.f32 %v5223, %v5528
        %v5864 = vsub.f32 %v5224, %v5528
        %v5865 = vsub.f32 %v5225, %v5531
        %v5866 = vsub.f32 %v5226, %v5531
        %v5867 = vsub.f32 %v5227, %v5534
        %v5868 = vsub.f32 %v5228, %v5534
        %v5869 = vsub.f32 %v5229, %v5537
        %v5870 = vsub.f32 %v5230, %v5537
        %v5871 = vsub.f32 %v5231, %v5540
        %v5872 = vsub.f32 %v5232, %v5540
        %v5873 = vsub.f32 %v5233, %v5543
        %v5874 = vsub.f32 %v5234, %v5543
        %v5875 = vsub.f32 %v5235, %v5546
        %v5876 = vsub.f32 %v5236, %v5546
        %v5877 = vsub.f32 %v5237, %v5549
        %v5878 = vsub.f32 %v5238, %v5549
        %v5879 = vsub.f32 %v5239, %v5552
        %v5880 = vsub.f32 %v5240, %v5552
        %v5881 = vsub.f32 %v5241, %v5555
        %v5882 = vsub.f32 %v5242, %v5555
        %v5883 = vsub.f32 %v5243, %v5558
        %v5884 = vsub.f32 %v5244, %v5558
        %v5885 = vsub.f32 %v5245, %v5561
        %v5886 = vsub.f32 %v5246, %v5561
        %v5887 = vsub.f32 %v5247, %v5564
        %v5888 = vsub.f32 %v5248, %v5564
        %v5889 = vsub.f32 %v5249, %v5567
        %v5890 = vsub.f32 %v5250, %v5567
        %v5891 = vsub.f32 %v5251, %v5570
        %v5892 = vsub.f32 %v5252, %v5570
        %v5893 = vsub.f32 %v5253, %v5573
        %v5894 = vsub.f32 %v5254, %v5573
        %v5895 = vsub.f32 %v5255, %v5576
        %v5896 = vsub.f32 %v5256, %v5576
        %v5897 = vsub.f32 %v5257, %v5579
        %v5898 = vsub.f32 %v5258, %v5579
        %v5899 = vsub.f32 %v5259, %v5582
        %v5900 = vsub.f32 %v5260, %v5582
        %v5901 = vsub.f32 %v5261, %v5585
        %v5902 = vsub.f32 %v5262, %v5585
        %v5903 = vsub.f32 %v5263, %v5588
        %v5904 = vsub.f32 %v5264, %v5588
        %v5905 = vsub.f32 %v5265, %v5591
        %v5906 = vsub.f32 %v5266, %v5591
        %v5907 = vsub.f32 %v5267, %v5594
        %v5908 = vsub.f32 %v5268, %v5594
        %v5909 = vsub.f32 %v5269, %v5597
        %v5910 = vsub.f32 %v5270, %v5597
        %v5911 = vsub.f32 %v5271, %v5600
        %v5912 = vsub.f32 %v5272, %v5600
        %v5913 = vsub.f32 %v5273, %v5603
        %v5914 = vsub.f32 %v5274, %v5603
        %v5915 = vsub.f32 %v5275, %v5606
        %v5916 = vsub.f32 %v5276, %v5606
        %v5917 = vsub.f32 %v5277, %v5609
        %v5918 = vsub.f32 %v5278, %v5609
        %v5919 = vsub.f32 %v5279, %v5612
        %v5920 = vsub.f32 %v5280, %v5612
        %v5921 = vsub.f32 %v5281, %v5615
        %v5922 = vsub.f32 %v5282, %v5615
        %v5923 = vsub.f32 %v5283, %v5618
        %v5924 = vsub.f32 %v5284, %v5618
        %v5925 = vsub.f32 %v5285, %v5621
        %v5926 = vsub.f32 %v5286, %v5621
        %v5927 = vsub.f32 %v5287, %v5624
        %v5928 = vsub.f32 %v5288, %v5624
        %v5929 = vsub.f32 %v5289, %v5627
        %v5930 = vsub.f32 %v5290, %v5627
        %v5931 = vsub.f32 %v5291, %v5630
        %v5932 = vsub.f32 %v5292, %v5630
        %v5933 = vsub.f32 %v5293, %v5633
        %v5934 = vsub.f32 %v5294, %v5633
        %v5935 = vsub.f32 %v5295, %v5636
        %v5936 = vsub.f32 %v5296, %v5636
        %v5937 = vsub.f32 %v5297, %v5639
        %v5938 = vsub.f32 %v5298, %v5639
        %v5939 = vsub.f32 %v5299, %v5642
        %v5940 = vsub.f32 %v5300, %v5642
        %v5941 = vsub.f32 %v5301, %v5645
        %v5942 = vsub.f32 %v5302, %v5645
        %v5943 = vsub.f32 %v5303, %v5648
        %v5944 = vsub.f32 %v5304, %v5648
        %v5945 = vsub.f32 %v5305, %v5651
        %v5946 = vsub.f32 %v5306, %v5651
        %v5947 = vsub.f32 %v5307, %v5654
        %v5948 = vsub.f32 %v5308, %v5654
        %v5949 = vsub.f32 %v5309, %v5657
        %v5950 = vsub.f32 %v5310, %v5657
        %v5951 = vsub.f32 %v5311, %v5660
        %v5952 = vsub.f32 %v5312, %v5660
        %v5953 = vsub.f32 %v5313, %v5663
        %v5954 = vsub.f32 %v5314, %v5663
        %v5955 = vsub.f32 %v5315, %v5666
        %v5956 = vsub.f32 %v5316, %v5666
        %v5957 = vsub.f32 %v5317, %v5669
        %v5958 = vsub.f32 %v5318, %v5669
        %v5959 = vsub.f32 %v5319, %v5672
        %v5960 = vsub.f32 %v5320, %v5672
        %v5961 = vsub.f32 %v5321, %v5675
        %v5962 = vsub.f32 %v5322, %v5675
        %v5963 = vsub.f32 %v5323, %v5678
        %v5964 = vsub.f32 %v5324, %v5678
        %v5965 = vsub.f32 %v5325, %v5681
        %v5966 = vsub.f32 %v5326, %v5681
        %v5967 = vsub.f32 %v5327, %v5684
        %v5968 = vsub.f32 %v5328, %v5684
        %v5969 = vsub.f32 %v5329, %v5687
        %v5970 = vsub.f32 %v5330, %v5687
        %v5971 = vsub.f32 %v5331, %v5690
        %v5972 = vsub.f32 %v5332, %v5690
        %v5973 = vsub.f32 %v5333, %v5693
        %v5974 = vsub.f32 %v5334, %v5693
        %v5975 = vsub.f32 %v5335, %v5696
        %v5976 = vsub.f32 %v5336, %v5696
        %v5977 = vsub.f32 %v5337, %v5699
        %v5978 = vsub.f32 %v5338, %v5699
        %v5979 = vsub.f32 %v5339, %v5702
        %v5980 = vsub.f32 %v5340, %v5702
        %v5981 = vsub.f32 %v5341, %v5705
        %v5982 = vsub.f32 %v5342, %v5705
        %v5983 = vsub.f32 %v5343, %v5708
        %v5984 = vsub.f32 %v5344, %v5708
        %v5985 = vsub.f32 %v5345, %v5711
        %v5986 = vsub.f32 %v5346, %v5711
        %v5987 = vsub.f32 %v5347, %v5714
        %v5988 = vsub.f32 %v5348, %v5714
        %v5989 = vsub.f32 %v5349, %v5717
        %v5990 = vsub.f32 %v5350, %v5717
        %v5991 = vsub.f32 %v5351, %v5720
        %v5992 = vsub.f32 %v5352, %v5720
        %v5993 = vsub.f32 %v5353, %v5723
        %v5994 = vsub.f32 %v5354, %v5723
        %v5995 = vsub.f32 %v5355, %v5726
        %v5996 = vsub.f32 %v5356, %v5726
        %v5997 = vsub.f32 %v5357, %v5729
        %v5998 = vsub.f32 %v5358, %v5729
        %v5999 = vsub.f32 %v5359, %v5732
        %v6000 = vsub.f32 %v5360, %v5732
        %v6001 = vsub.f32 %v5361, %v5735
        %v6002 = vsub.f32 %v5362, %v5735
        %v6003 = vsub.f32 %v5363, %v5738
        %v6004 = vsub.f32 %v5364, %v5738
        %v6005 = vsub.f32 %v5365, %v5741
        %v6006 = vsub.f32 %v5366, %v5741
        %v6007 = vsub.f32 %v5367, %v5744
        %v6008 = vsub.f32 %v5368, %v5744
        %v6009 = vsub.f32 %v5369, %v5747
        %v6010 = vsub.f32 %v5370, %v5747
        %v6011 = vsub.f32 %v5371, %v5750
        %v6012 = vsub.f32 %v5372, %v5750
        %v6013 = vsub.f32 %v5373, %v5753
        %v6014 = vsub.f32 %v5374, %v5753
        %v6015 = vsub.f32 %v5375, %v5756
        %v6016 = vsub.f32 %v5376, %v5756
        %v6017 = vsub.f32 %v5377, %v5759
        %v6018 = vsub.f32 %v5378, %v5759
        %v6019 = vsub.f32 %v5379, %v5762
        %v6020 = vsub.f32 %v5380, %v5762
        %v6021 = vsub.f32 %v5381, %v5765
        %v6022 = vsub.f32 %v5382, %v5765
        %v6023 = vsub.f32 %v5383, %v5768
        %v6024 = vsub.f32 %v5384, %v5768
        %v6025 = vmul.f32 %v5769, 1.442695
        %v6026 = vpow.pop %v6025
        %v6027 = vmul.f32 %v5770, 1.442695
        %v6028 = vpow.pop %v6027
        %v6029 = vmul.f32 %v5771, 1.442695
        %v6030 = vpow.pop %v6029
        %v6031 = vmul.f32 %v5772, 1.442695
        %v6032 = vpow.pop %v6031
        %v6033 = vmul.f32 %v5773, 1.442695
        %v6034 = vpow.pop %v6033
        %v6035 = vmul.f32 %v5774, 1.442695
        %v6036 = vpow.pop %v6035
        %v6037 = vmul.f32 %v5775, 1.442695
        %v6038 = vpow.pop %v6037
        %v6039 = vmul.f32 %v5776, 1.442695
        %v6040 = vpow.pop %v6039
        %v6041 = vmul.f32 %v5777, 1.442695
        %v6042 = vpow.pop %v6041
        %v6043 = vmul.f32 %v5778, 1.442695
        %v6044 = vpow.pop %v6043
        %v6045 = vmul.f32 %v5779, 1.442695
        %v6046 = vpow.pop %v6045
        %v6047 = vmul.f32 %v5780, 1.442695
        %v6048 = vpow.pop %v6047
        %v6049 = vmul.f32 %v5781, 1.442695
        %v6050 = vpow.pop %v6049
        %v6051 = vmul.f32 %v5782, 1.442695
        %v6052 = vpow.pop %v6051
        %v6053 = vmul.f32 %v5783, 1.442695
        %v6054 = vpow.pop %v6053
        %v6055 = vmul.f32 %v5784, 1.442695
        %v6056 = vpow.pop %v6055
        %v6057 = vmul.f32 %v5785, 1.442695
        %v6058 = vpow.pop %v6057
        %v6059 = vmul.f32 %v5786, 1.442695
        %v6060 = vpow.pop %v6059
        %v6061 = vmul.f32 %v5787, 1.442695
        %v6062 = vpow.pop %v6061
        %v6063 = vmul.f32 %v5788, 1.442695
        %v6064 = vpow.pop %v6063
        %v6065 = vmul.f32 %v5789, 1.442695
        %v6066 = vpow.pop %v6065
        %v6067 = vmul.f32 %v5790, 1.442695
        %v6068 = vpow.pop %v6067
        %v6069 = vmul.f32 %v5791, 1.442695
        %v6070 = vpow.pop %v6069
        %v6071 = vmul.f32 %v5792, 1.442695
        %v6072 = vpow.pop %v6071
        %v6073 = vmul.f32 %v5793, 1.442695
        %v6074 = vpow.pop %v6073
        %v6075 = vmul.f32 %v5794, 1.442695
        %v6076 = vpow.pop %v6075
        %v6077 = vmul.f32 %v5795, 1.442695
        %v6078 = vpow.pop %v6077
        %v6079 = vmul.f32 %v5796, 1.442695
        %v6080 = vpow.pop %v6079
        %v6081 = vmul.f32 %v5797, 1.442695
        %v6082 = vpow.pop %v6081
        %v6083 = vmul.f32 %v5798, 1.442695
        %v6084 = vpow.pop %v6083
        %v6085 = vmul.f32 %v5799, 1.442695
        %v6086 = vpow.pop %v6085
        %v6087 = vmul.f32 %v5800, 1.442695
        %v6088 = vpow.pop %v6087
        %v6089 = vmul.f32 %v5801, 1.442695
        %v6090 = vpow.pop %v6089
        %v6091 = vmul.f32 %v5802, 1.442695
        %v6092 = vpow.pop %v6091
        %v6093 = vmul.f32 %v5803, 1.442695
        %v6094 = vpow.pop %v6093
        %v6095 = vmul.f32 %v5804, 1.442695
        %v6096 = vpow.pop %v6095
        %v6097 = vmul.f32 %v5805, 1.442695
        %v6098 = vpow.pop %v6097
        %v6099 = vmul.f32 %v5806, 1.442695
        %v6100 = vpow.pop %v6099
        %v6101 = vmul.f32 %v5807, 1.442695
        %v6102 = vpow.pop %v6101
        %v6103 = vmul.f32 %v5808, 1.442695
        %v6104 = vpow.pop %v6103
        %v6105 = vmul.f32 %v5809, 1.442695
        %v6106 = vpow.pop %v6105
        %v6107 = vmul.f32 %v5810, 1.442695
        %v6108 = vpow.pop %v6107
        %v6109 = vmul.f32 %v5811, 1.442695
        %v6110 = vpow.pop %v6109
        %v6111 = vmul.f32 %v5812, 1.442695
        %v6112 = vpow.pop %v6111
        %v6113 = vmul.f32 %v5813, 1.442695
        %v6114 = vpow.pop %v6113
        %v6115 = vmul.f32 %v5814, 1.442695
        %v6116 = vpow.pop %v6115
        %v6117 = vmul.f32 %v5815, 1.442695
        %v6118 = vpow.pop %v6117
        %v6119 = vmul.f32 %v5816, 1.442695
        %v6120 = vpow.pop %v6119
        %v6121 = vmul.f32 %v5817, 1.442695
        %v6122 = vpow.pop %v6121
        %v6123 = vmul.f32 %v5818, 1.442695
        %v6124 = vpow.pop %v6123
        %v6125 = vmul.f32 %v5819, 1.442695
        %v6126 = vpow.pop %v6125
        %v6127 = vmul.f32 %v5820, 1.442695
        %v6128 = vpow.pop %v6127
        %v6129 = vmul.f32 %v5821, 1.442695
        %v6130 = vpow.pop %v6129
        %v6131 = vmul.f32 %v5822, 1.442695
        %v6132 = vpow.pop %v6131
        %v6133 = vmul.f32 %v5823, 1.442695
        %v6134 = vpow.pop %v6133
        %v6135 = vmul.f32 %v5824, 1.442695
        %v6136 = vpow.pop %v6135
        %v6137 = vmul.f32 %v5825, 1.442695
        %v6138 = vpow.pop %v6137
        %v6139 = vmul.f32 %v5826, 1.442695
        %v6140 = vpow.pop %v6139
        %v6141 = vmul.f32 %v5827, 1.442695
        %v6142 = vpow.pop %v6141
        %v6143 = vmul.f32 %v5828, 1.442695
        %v6144 = vpow.pop %v6143
        %v6145 = vmul.f32 %v5829, 1.442695
        %v6146 = vpow.pop %v6145
        %v6147 = vmul.f32 %v5830, 1.442695
        %v6148 = vpow.pop %v6147
        %v6149 = vmul.f32 %v5831, 1.442695
        %v6150 = vpow.pop %v6149
        %v6151 = vmul.f32 %v5832, 1.442695
        %v6152 = vpow.pop %v6151
        %v6153 = vmul.f32 %v5833, 1.442695
        %v6154 = vpow.pop %v6153
        %v6155 = vmul.f32 %v5834, 1.442695
        %v6156 = vpow.pop %v6155
        %v6157 = vmul.f32 %v5835, 1.442695
        %v6158 = vpow.pop %v6157
        %v6159 = vmul.f32 %v5836, 1.442695
        %v6160 = vpow.pop %v6159
        %v6161 = vmul.f32 %v5837, 1.442695
        %v6162 = vpow.pop %v6161
        %v6163 = vmul.f32 %v5838, 1.442695
        %v6164 = vpow.pop %v6163
        %v6165 = vmul.f32 %v5839, 1.442695
        %v6166 = vpow.pop %v6165
        %v6167 = vmul.f32 %v5840, 1.442695
        %v6168 = vpow.pop %v6167
        %v6169 = vmul.f32 %v5841, 1.442695
        %v6170 = vpow.pop %v6169
        %v6171 = vmul.f32 %v5842, 1.442695
        %v6172 = vpow.pop %v6171
        %v6173 = vmul.f32 %v5843, 1.442695
        %v6174 = vpow.pop %v6173
        %v6175 = vmul.f32 %v5844, 1.442695
        %v6176 = vpow.pop %v6175
        %v6177 = vmul.f32 %v5845, 1.442695
        %v6178 = vpow.pop %v6177
        %v6179 = vmul.f32 %v5846, 1.442695
        %v6180 = vpow.pop %v6179
        %v6181 = vmul.f32 %v5847, 1.442695
        %v6182 = vpow.pop %v6181
        %v6183 = vmul.f32 %v5848, 1.442695
        %v6184 = vpow.pop %v6183
        %v6185 = vmul.f32 %v5849, 1.442695
        %v6186 = vpow.pop %v6185
        %v6187 = vmul.f32 %v5850, 1.442695
        %v6188 = vpow.pop %v6187
        %v6189 = vmul.f32 %v5851, 1.442695
        %v6190 = vpow.pop %v6189
        %v6191 = vmul.f32 %v5852, 1.442695
        %v6192 = vpow.pop %v6191
        %v6193 = vmul.f32 %v5853, 1.442695
        %v6194 = vpow.pop %v6193
        %v6195 = vmul.f32 %v5854, 1.442695
        %v6196 = vpow.pop %v6195
        %v6197 = vmul.f32 %v5855, 1.442695
        %v6198 = vpow.pop %v6197
        %v6199 = vmul.f32 %v5856, 1.442695
        %v6200 = vpow.pop %v6199
        %v6201 = vmul.f32 %v5857, 1.442695
        %v6202 = vpow.pop %v6201
        %v6203 = vmul.f32 %v5858, 1.442695
        %v6204 = vpow.pop %v6203
        %v6205 = vmul.f32 %v5859, 1.442695
        %v6206 = vpow.pop %v6205
        %v6207 = vmul.f32 %v5860, 1.442695
        %v6208 = vpow.pop %v6207
        %v6209 = vmul.f32 %v5861, 1.442695
        %v6210 = vpow.pop %v6209
        %v6211 = vmul.f32 %v5862, 1.442695
        %v6212 = vpow.pop %v6211
        %v6213 = vmul.f32 %v5863, 1.442695
        %v6214 = vpow.pop %v6213
        %v6215 = vmul.f32 %v5864, 1.442695
        %v6216 = vpow.pop %v6215
        %v6217 = vmul.f32 %v5865, 1.442695
        %v6218 = vpow.pop %v6217
        %v6219 = vmul.f32 %v5866, 1.442695
        %v6220 = vpow.pop %v6219
        %v6221 = vmul.f32 %v5867, 1.442695
        %v6222 = vpow.pop %v6221
        %v6223 = vmul.f32 %v5868, 1.442695
        %v6224 = vpow.pop %v6223
        %v6225 = vmul.f32 %v5869, 1.442695
        %v6226 = vpow.pop %v6225
        %v6227 = vmul.f32 %v5870, 1.442695
        %v6228 = vpow.pop %v6227
        %v6229 = vmul.f32 %v5871, 1.442695
        %v6230 = vpow.pop %v6229
        %v6231 = vmul.f32 %v5872, 1.442695
        %v6232 = vpow.pop %v6231
        %v6233 = vmul.f32 %v5873, 1.442695
        %v6234 = vpow.pop %v6233
        %v6235 = vmul.f32 %v5874, 1.442695
        %v6236 = vpow.pop %v6235
        %v6237 = vmul.f32 %v5875, 1.442695
        %v6238 = vpow.pop %v6237
        %v6239 = vmul.f32 %v5876, 1.442695
        %v6240 = vpow.pop %v6239
        %v6241 = vmul.f32 %v5877, 1.442695
        %v6242 = vpow.pop %v6241
        %v6243 = vmul.f32 %v5878, 1.442695
        %v6244 = vpow.pop %v6243
        %v6245 = vmul.f32 %v5879, 1.442695
        %v6246 = vpow.pop %v6245
        %v6247 = vmul.f32 %v5880, 1.442695
        %v6248 = vpow.pop %v6247
        %v6249 = vmul.f32 %v5881, 1.442695
        %v6250 = vpow.pop %v6249
        %v6251 = vmul.f32 %v5882, 1.442695
        %v6252 = vpow.pop %v6251
        %v6253 = vmul.f32 %v5883, 1.442695
        %v6254 = vpow.pop %v6253
        %v6255 = vmul.f32 %v5884, 1.442695
        %v6256 = vpow.pop %v6255
        %v6257 = vmul.f32 %v5885, 1.442695
        %v6258 = vpow.pop %v6257
        %v6259 = vmul.f32 %v5886, 1.442695
        %v6260 = vpow.pop %v6259
        %v6261 = vmul.f32 %v5887, 1.442695
        %v6262 = vpow.pop %v6261
        %v6263 = vmul.f32 %v5888, 1.442695
        %v6264 = vpow.pop %v6263
        %v6265 = vmul.f32 %v5889, 1.442695
        %v6266 = vpow.pop %v6265
        %v6267 = vmul.f32 %v5890, 1.442695
        %v6268 = vpow.pop %v6267
        %v6269 = vmul.f32 %v5891, 1.442695
        %v6270 = vpow.pop %v6269
        %v6271 = vmul.f32 %v5892, 1.442695
        %v6272 = vpow.pop %v6271
        %v6273 = vmul.f32 %v5893, 1.442695
        %v6274 = vpow.pop %v6273
        %v6275 = vmul.f32 %v5894, 1.442695
        %v6276 = vpow.pop %v6275
        %v6277 = vmul.f32 %v5895, 1.442695
        %v6278 = vpow.pop %v6277
        %v6279 = vmul.f32 %v5896, 1.442695
        %v6280 = vpow.pop %v6279
        %v6281 = vmul.f32 %v5897, 1.442695
        %v6282 = vpow.pop %v6281
        %v6283 = vmul.f32 %v5898, 1.442695
        %v6284 = vpow.pop %v6283
        %v6285 = vmul.f32 %v5899, 1.442695
        %v6286 = vpow.pop %v6285
        %v6287 = vmul.f32 %v5900, 1.442695
        %v6288 = vpow.pop %v6287
        %v6289 = vmul.f32 %v5901, 1.442695
        %v6290 = vpow.pop %v6289
        %v6291 = vmul.f32 %v5902, 1.442695
        %v6292 = vpow.pop %v6291
        %v6293 = vmul.f32 %v5903, 1.442695
        %v6294 = vpow.pop %v6293
        %v6295 = vmul.f32 %v5904, 1.442695
        %v6296 = vpow.pop %v6295
        %v6297 = vmul.f32 %v5905, 1.442695
        %v6298 = vpow.pop %v6297
        %v6299 = vmul.f32 %v5906, 1.442695
        %v6300 = vpow.pop %v6299
        %v6301 = vmul.f32 %v5907, 1.442695
        %v6302 = vpow.pop %v6301
        %v6303 = vmul.f32 %v5908, 1.442695
        %v6304 = vpow.pop %v6303
        %v6305 = vmul.f32 %v5909, 1.442695
        %v6306 = vpow.pop %v6305
        %v6307 = vmul.f32 %v5910, 1.442695
        %v6308 = vpow.pop %v6307
        %v6309 = vmul.f32 %v5911, 1.442695
        %v6310 = vpow.pop %v6309
        %v6311 = vmul.f32 %v5912, 1.442695
        %v6312 = vpow.pop %v6311
        %v6313 = vmul.f32 %v5913, 1.442695
        %v6314 = vpow.pop %v6313
        %v6315 = vmul.f32 %v5914, 1.442695
        %v6316 = vpow.pop %v6315
        %v6317 = vmul.f32 %v5915, 1.442695
        %v6318 = vpow.pop %v6317
        %v6319 = vmul.f32 %v5916, 1.442695
        %v6320 = vpow.pop %v6319
        %v6321 = vmul.f32 %v5917, 1.442695
        %v6322 = vpow.pop %v6321
        %v6323 = vmul.f32 %v5918, 1.442695
        %v6324 = vpow.pop %v6323
        %v6325 = vmul.f32 %v5919, 1.442695
        %v6326 = vpow.pop %v6325
        %v6327 = vmul.f32 %v5920, 1.442695
        %v6328 = vpow.pop %v6327
        %v6329 = vmul.f32 %v5921, 1.442695
        %v6330 = vpow.pop %v6329
        %v6331 = vmul.f32 %v5922, 1.442695
        %v6332 = vpow.pop %v6331
        %v6333 = vmul.f32 %v5923, 1.442695
        %v6334 = vpow.pop %v6333
        %v6335 = vmul.f32 %v5924, 1.442695
        %v6336 = vpow.pop %v6335
        %v6337 = vmul.f32 %v5925, 1.442695
        %v6338 = vpow.pop %v6337
        %v6339 = vmul.f32 %v5926, 1.442695
        %v6340 = vpow.pop %v6339
        %v6341 = vmul.f32 %v5927, 1.442695
        %v6342 = vpow.pop %v6341
        %v6343 = vmul.f32 %v5928, 1.442695
        %v6344 = vpow.pop %v6343
        %v6345 = vmul.f32 %v5929, 1.442695
        %v6346 = vpow.pop %v6345
        %v6347 = vmul.f32 %v5930, 1.442695
        %v6348 = vpow.pop %v6347
        %v6349 = vmul.f32 %v5931, 1.442695
        %v6350 = vpow.pop %v6349
        %v6351 = vmul.f32 %v5932, 1.442695
        %v6352 = vpow.pop %v6351
        %v6353 = vmul.f32 %v5933, 1.442695
        %v6354 = vpow.pop %v6353
        %v6355 = vmul.f32 %v5934, 1.442695
        %v6356 = vpow.pop %v6355
        %v6357 = vmul.f32 %v5935, 1.442695
        %v6358 = vpow.pop %v6357
        %v6359 = vmul.f32 %v5936, 1.442695
        %v6360 = vpow.pop %v6359
        %v6361 = vmul.f32 %v5937, 1.442695
        %v6362 = vpow.pop %v6361
        %v6363 = vmul.f32 %v5938, 1.442695
        %v6364 = vpow.pop %v6363
        %v6365 = vmul.f32 %v5939, 1.442695
        %v6366 = vpow.pop %v6365
        %v6367 = vmul.f32 %v5940, 1.442695
        %v6368 = vpow.pop %v6367
        %v6369 = vmul.f32 %v5941, 1.442695
        %v6370 = vpow.pop %v6369
        %v6371 = vmul.f32 %v5942, 1.442695
        %v6372 = vpow.pop %v6371
        %v6373 = vmul.f32 %v5943, 1.442695
        %v6374 = vpow.pop %v6373
        %v6375 = vmul.f32 %v5944, 1.442695
        %v6376 = vpow.pop %v6375
        %v6377 = vmul.f32 %v5945, 1.442695
        %v6378 = vpow.pop %v6377
        %v6379 = vmul.f32 %v5946, 1.442695
        %v6380 = vpow.pop %v6379
        %v6381 = vmul.f32 %v5947, 1.442695
        %v6382 = vpow.pop %v6381
        %v6383 = vmul.f32 %v5948, 1.442695
        %v6384 = vpow.pop %v6383
        %v6385 = vmul.f32 %v5949, 1.442695
        %v6386 = vpow.pop %v6385
        %v6387 = vmul.f32 %v5950, 1.442695
        %v6388 = vpow.pop %v6387
        %v6389 = vmul.f32 %v5951, 1.442695
        %v6390 = vpow.pop %v6389
        %v6391 = vmul.f32 %v5952, 1.442695
        %v6392 = vpow.pop %v6391
        %v6393 = vmul.f32 %v5953, 1.442695
        %v6394 = vpow.pop %v6393
        %v6395 = vmul.f32 %v5954, 1.442695
        %v6396 = vpow.pop %v6395
        %v6397 = vmul.f32 %v5955, 1.442695
        %v6398 = vpow.pop %v6397
        %v6399 = vmul.f32 %v5956, 1.442695
        %v6400 = vpow.pop %v6399
        %v6401 = vmul.f32 %v5957, 1.442695
        %v6402 = vpow.pop %v6401
        %v6403 = vmul.f32 %v5958, 1.442695
        %v6404 = vpow.pop %v6403
        %v6405 = vmul.f32 %v5959, 1.442695
        %v6406 = vpow.pop %v6405
        %v6407 = vmul.f32 %v5960, 1.442695
        %v6408 = vpow.pop %v6407
        %v6409 = vmul.f32 %v5961, 1.442695
        %v6410 = vpow.pop %v6409
        %v6411 = vmul.f32 %v5962, 1.442695
        %v6412 = vpow.pop %v6411
        %v6413 = vmul.f32 %v5963, 1.442695
        %v6414 = vpow.pop %v6413
        %v6415 = vmul.f32 %v5964, 1.442695
        %v6416 = vpow.pop %v6415
        %v6417 = vmul.f32 %v5965, 1.442695
        %v6418 = vpow.pop %v6417
        %v6419 = vmul.f32 %v5966, 1.442695
        %v6420 = vpow.pop %v6419
        %v6421 = vmul.f32 %v5967, 1.442695
        %v6422 = vpow.pop %v6421
        %v6423 = vmul.f32 %v5968, 1.442695
        %v6424 = vpow.pop %v6423
        %v6425 = vmul.f32 %v5969, 1.442695
        %v6426 = vpow.pop %v6425
        %v6427 = vmul.f32 %v5970, 1.442695
        %v6428 = vpow.pop %v6427
        %v6429 = vmul.f32 %v5971, 1.442695
        %v6430 = vpow.pop %v6429
        %v6431 = vmul.f32 %v5972, 1.442695
        %v6432 = vpow.pop %v6431
        %v6433 = vmul.f32 %v5973, 1.442695
        %v6434 = vpow.pop %v6433
        %v6435 = vmul.f32 %v5974, 1.442695
        %v6436 = vpow.pop %v6435
        %v6437 = vmul.f32 %v5975, 1.442695
        %v6438 = vpow.pop %v6437
        %v6439 = vmul.f32 %v5976, 1.442695
        %v6440 = vpow.pop %v6439
        %v6441 = vmul.f32 %v5977, 1.442695
        %v6442 = vpow.pop %v6441
        %v6443 = vmul.f32 %v5978, 1.442695
        %v6444 = vpow.pop %v6443
        %v6445 = vmul.f32 %v5979, 1.442695
        %v6446 = vpow.pop %v6445
        %v6447 = vmul.f32 %v5980, 1.442695
        %v6448 = vpow.pop %v6447
        %v6449 = vmul.f32 %v5981, 1.442695
        %v6450 = vpow.pop %v6449
        %v6451 = vmul.f32 %v5982, 1.442695
        %v6452 = vpow.pop %v6451
        %v6453 = vmul.f32 %v5983, 1.442695
        %v6454 = vpow.pop %v6453
        %v6455 = vmul.f32 %v5984, 1.442695
        %v6456 = vpow.pop %v6455
        %v6457 = vmul.f32 %v5985, 1.442695
        %v6458 = vpow.pop %v6457
        %v6459 = vmul.f32 %v5986, 1.442695
        %v6460 = vpow.pop %v6459
        %v6461 = vmul.f32 %v5987, 1.442695
        %v6462 = vpow.pop %v6461
        %v6463 = vmul.f32 %v5988, 1.442695
        %v6464 = vpow.pop %v6463
        %v6465 = vmul.f32 %v5989, 1.442695
        %v6466 = vpow.pop %v6465
        %v6467 = vmul.f32 %v5990, 1.442695
        %v6468 = vpow.pop %v6467
        %v6469 = vmul.f32 %v5991, 1.442695
        %v6470 = vpow.pop %v6469
        %v6471 = vmul.f32 %v5992, 1.442695
        %v6472 = vpow.pop %v6471
        %v6473 = vmul.f32 %v5993, 1.442695
        %v6474 = vpow.pop %v6473
        %v6475 = vmul.f32 %v5994, 1.442695
        %v6476 = vpow.pop %v6475
        %v6477 = vmul.f32 %v5995, 1.442695
        %v6478 = vpow.pop %v6477
        %v6479 = vmul.f32 %v5996, 1.442695
        %v6480 = vpow.pop %v6479
        %v6481 = vmul.f32 %v5997, 1.442695
        %v6482 = vpow.pop %v6481
        %v6483 = vmul.f32 %v5998, 1.442695
        %v6484 = vpow.pop %v6483
        %v6485 = vmul.f32 %v5999, 1.442695
        %v6486 = vpow.pop %v6485
        %v6487 = vmul.f32 %v6000, 1.442695
        %v6488 = vpow.pop %v6487
        %v6489 = vmul.f32 %v6001, 1.442695
        %v6490 = vpow.pop %v6489
        %v6491 = vmul.f32 %v6002, 1.442695
        %v6492 = vpow.pop %v6491
        %v6493 = vmul.f32 %v6003, 1.442695
        %v6494 = vpow.pop %v6493
        %v6495 = vmul.f32 %v6004, 1.442695
        %v6496 = vpow.pop %v6495
        %v6497 = vmul.f32 %v6005, 1.442695
        %v6498 = vpow.pop %v6497
        %v6499 = vmul.f32 %v6006, 1.442695
        %v6500 = vpow.pop %v6499
        %v6501 = vmul.f32 %v6007, 1.442695
        %v6502 = vpow.pop %v6501
        %v6503 = vmul.f32 %v6008, 1.442695
        %v6504 = vpow.pop %v6503
        %v6505 = vmul.f32 %v6009, 1.442695
        %v6506 = vpow.pop %v6505
        %v6507 = vmul.f32 %v6010, 1.442695
        %v6508 = vpow.pop %v6507
        %v6509 = vmul.f32 %v6011, 1.442695
        %v6510 = vpow.pop %v6509
        %v6511 = vmul.f32 %v6012, 1.442695
        %v6512 = vpow.pop %v6511
        %v6513 = vmul.f32 %v6013, 1.442695
        %v6514 = vpow.pop %v6513
        %v6515 = vmul.f32 %v6014, 1.442695
        %v6516 = vpow.pop %v6515
        %v6517 = vmul.f32 %v6015, 1.442695
        %v6518 = vpow.pop %v6517
        %v6519 = vmul.f32 %v6016, 1.442695
        %v6520 = vpow.pop %v6519
        %v6521 = vmul.f32 %v6017, 1.442695
        %v6522 = vpow.pop %v6521
        %v6523 = vmul.f32 %v6018, 1.442695
        %v6524 = vpow.pop %v6523
        %v6525 = vmul.f32 %v6019, 1.442695
        %v6526 = vpow.pop %v6525
        %v6527 = vmul.f32 %v6020, 1.442695
        %v6528 = vpow.pop %v6527
        %v6529 = vmul.f32 %v6021, 1.442695
        %v6530 = vpow.pop %v6529
        %v6531 = vmul.f32 %v6022, 1.442695
        %v6532 = vpow.pop %v6531
        %v6533 = vmul.f32 %v6023, 1.442695
        %v6534 = vpow.pop %v6533
        %v6535 = vmul.f32 %v6024, 1.442695
        %v6536 = vpow.pop %v6535
        %v6537 = vadd.f32 %v6026, %v6028
        %6538 = vadd.xlane.f32.xlu0 %v6537
        %v6539 = vpop.xlane.xlu0 %6538
        %v6540 = vadd.f32 %v6030, %v6032
        %6541 = vadd.xlane.f32.xlu0 %v6540
        %v6542 = vpop.xlane.xlu0 %6541
        %v6543 = vadd.f32 %v6034, %v6036
        %6544 = vadd.xlane.f32.xlu0 %v6543
        %v6545 = vpop.xlane.xlu0 %6544
        %v6546 = vadd.f32 %v6038, %v6040
        %6547 = vadd.xlane.f32.xlu0 %v6546
        %v6548 = vpop.xlane.xlu0 %6547
        %v6549 = vadd.f32 %v6042, %v6044
        %6550 = vadd.xlane.f32.xlu0 %v6549
        %v6551 = vpop.xlane.xlu0 %6550
        %v6552 = vadd.f32 %v6046, %v6048
        %6553 = vadd.xlane.f32.xlu0 %v6552
        %v6554 = vpop.xlane.xlu0 %6553
        %v6555 = vadd.f32 %v6050, %v6052
        %6556 = vadd.xlane.f32.xlu0 %v6555
        %v6557 = vpop.xlane.xlu0 %6556
        %v6558 = vadd.f32 %v6054, %v6056
        %6559 = vadd.xlane.f32.xlu0 %v6558
        %v6560 = vpop.xlane.xlu0 %6559
        %v6561 = vadd.f32 %v6058, %v6060
        %6562 = vadd.xlane.f32.xlu0 %v6561
        %v6563 = vpop.xlane.xlu0 %6562
        %v6564 = vadd.f32 %v6062, %v6064
        %6565 = vadd.xlane.f32.xlu0 %v6564
        %v6566 = vpop.xlane.xlu0 %6565
        %v6567 = vadd.f32 %v6066, %v6068
        %6568 = vadd.xlane.f32.xlu0 %v6567
        %v6569 = vpop.xlane.xlu0 %6568
        %v6570 = vadd.f32 %v6070, %v6072
        %6571 = vadd.xlane.f32.xlu0 %v6570
        %v6572 = vpop.xlane.xlu0 %6571
        %v6573 = vadd.f32 %v6074, %v6076
        %6574 = vadd.xlane.f32.xlu0 %v6573
        %v6575 = vpop.xlane.xlu0 %6574
        %v6576 = vadd.f32 %v6078, %v6080
        %6577 = vadd.xlane.f32.xlu0 %v6576
        %v6578 = vpop.xlane.xlu0 %6577
        %v6579 = vadd.f32 %v6082, %v6084
        %6580 = vadd.xlane.f32.xlu0 %v6579
        %v6581 = vpop.xlane.xlu0 %6580
        %v6582 = vadd.f32 %v6086, %v6088
        %6583 = vadd.xlane.f32.xlu0 %v6582
        %v6584 = vpop.xlane.xlu0 %6583
        %v6585 = vadd.f32 %v6090, %v6092
        %6586 = vadd.xlane.f32.xlu0 %v6585
        %v6587 = vpop.xlane.xlu0 %6586
        %v6588 = vadd.f32 %v6094, %v6096
        %6589 = vadd.xlane.f32.xlu0 %v6588
        %v6590 = vpop.xlane.xlu0 %6589
        %v6591 = vadd.f32 %v6098, %v6100
        %6592 = vadd.xlane.f32.xlu0 %v6591
        %v6593 = vpop.xlane.xlu0 %6592
        %v6594 = vadd.f32 %v6102, %v6104
        %6595 = vadd.xlane.f32.xlu0 %v6594
        %v6596 = vpop.xlane.xlu0 %6595
        %v6597 = vadd.f32 %v6106, %v6108
        %6598 = vadd.xlane.f32.xlu0 %v6597
        %v6599 = vpop.xlane.xlu0 %6598
        %v6600 = vadd.f32 %v6110, %v6112
        %6601 = vadd.xlane.f32.xlu0 %v6600
        %v6602 = vpop.xlane.xlu0 %6601
        %v6603 = vadd.f32 %v6114, %v6116
        %6604 = vadd.xlane.f32.xlu0 %v6603
        %v6605 = vpop.xlane.xlu0 %6604
        %v6606 = vadd.f32 %v6118, %v6120
        %6607 = vadd.xlane.f32.xlu0 %v6606
        %v6608 = vpop.xlane.xlu0 %6607
        %v6609 = vadd.f32 %v6122, %v6124
        %6610 = vadd.xlane.f32.xlu0 %v6609
        %v6611 = vpop.xlane.xlu0 %6610
        %v6612 = vadd.f32 %v6126, %v6128
        %6613 = vadd.xlane.f32.xlu0 %v6612
        %v6614 = vpop.xlane.xlu0 %6613
        %v6615 = vadd.f32 %v6130, %v6132
        %6616 = vadd.xlane.f32.xlu0 %v6615
        %v6617 = vpop.xlane.xlu0 %6616
        %v6618 = vadd.f32 %v6134, %v6136
        %6619 = vadd.xlane.f32.xlu0 %v6618
        %v6620 = vpop.xlane.xlu0 %6619
        %v6621 = vadd.f32 %v6138, %v6140
        %6622 = vadd.xlane.f32.xlu0 %v6621
        %v6623 = vpop.xlane.xlu0 %6622
        %v6624 = vadd.f32 %v6142, %v6144
        %6625 = vadd.xlane.f32.xlu0 %v6624
        %v6626 = vpop.xlane.xlu0 %6625
        %v6627 = vadd.f32 %v6146, %v6148
        %6628 = vadd.xlane.f32.xlu0 %v6627
        %v6629 = vpop.xlane.xlu0 %6628
        %v6630 = vadd.f32 %v6150, %v6152
        %6631 = vadd.xlane.f32.xlu0 %v6630
        %v6632 = vpop.xlane.xlu0 %6631
        %v6633 = vadd.f32 %v6154, %v6156
        %6634 = vadd.xlane.f32.xlu0 %v6633
        %v6635 = vpop.xlane.xlu0 %6634
        %v6636 = vadd.f32 %v6158, %v6160
        %6637 = vadd.xlane.f32.xlu0 %v6636
        %v6638 = vpop.xlane.xlu0 %6637
        %v6639 = vadd.f32 %v6162, %v6164
        %6640 = vadd.xlane.f32.xlu0 %v6639
        %v6641 = vpop.xlane.xlu0 %6640
        %v6642 = vadd.f32 %v6166, %v6168
        %6643 = vadd.xlane.f32.xlu0 %v6642
        %v6644 = vpop.xlane.xlu0 %6643
        %v6645 = vadd.f32 %v6170, %v6172
        %6646 = vadd.xlane.f32.xlu0 %v6645
        %v6647 = vpop.xlane.xlu0 %6646
        %v6648 = vadd.f32 %v6174, %v6176
        %6649 = vadd.xlane.f32.xlu0 %v6648
        %v6650 = vpop.xlane.xlu0 %6649
        %v6651 = vadd.f32 %v6178, %v6180
        %6652 = vadd.xlane.f32.xlu0 %v6651
        %v6653 = vpop.xlane.xlu0 %6652
        %v6654 = vadd.f32 %v6182, %v6184
        %6655 = vadd.xlane.f32.xlu0 %v6654
        %v6656 = vpop.xlane.xlu0 %6655
        %v6657 = vadd.f32 %v6186, %v6188
        %6658 = vadd.xlane.f32.xlu0 %v6657
        %v6659 = vpop.xlane.xlu0 %6658
        %v6660 = vadd.f32 %v6190, %v6192
        %6661 = vadd.xlane.f32.xlu0 %v6660
        %v6662 = vpop.xlane.xlu0 %6661
        %v6663 = vadd.f32 %v6194, %v6196
        %6664 = vadd.xlane.f32.xlu0 %v6663
        %v6665 = vpop.xlane.xlu0 %6664
        %v6666 = vadd.f32 %v6198, %v6200
        %6667 = vadd.xlane.f32.xlu0 %v6666
        %v6668 = vpop.xlane.xlu0 %6667
        %v6669 = vadd.f32 %v6202, %v6204
        %6670 = vadd.xlane.f32.xlu0 %v6669
        %v6671 = vpop.xlane.xlu0 %6670
        %v6672 = vadd.f32 %v6206, %v6208
        %6673 = vadd.xlane.f32.xlu0 %v6672
        %v6674 = vpop.xlane.xlu0 %6673
        %v6675 = vadd.f32 %v6210, %v6212
        %6676 = vadd.xlane.f32.xlu0 %v6675
        %v6677 = vpop.xlane.xlu0 %6676
        %v6678 = vadd.f32 %v6214, %v6216
        %6679 = vadd.xlane.f32.xlu0 %v6678
        %v6680 = vpop.xlane.xlu0 %6679
        %v6681 = vadd.f32 %v6218, %v6220
        %6682 = vadd.xlane.f32.xlu0 %v6681
        %v6683 = vpop.xlane.xlu0 %6682
        %v6684 = vadd.f32 %v6222, %v6224
        %6685 = vadd.xlane.f32.xlu0 %v6684
        %v6686 = vpop.xlane.xlu0 %6685
        %v6687 = vadd.f32 %v6226, %v6228
        %6688 = vadd.xlane.f32.xlu0 %v6687
        %v6689 = vpop.xlane.xlu0 %6688
        %v6690 = vadd.f32 %v6230, %v6232
        %6691 = vadd.xlane.f32.xlu0 %v6690
        %v6692 = vpop.xlane.xlu0 %6691
        %v6693 = vadd.f32 %v6234, %v6236
        %6694 = vadd.xlane.f32.xlu0 %v6693
        %v6695 = vpop.xlane.xlu0 %6694
        %v6696 = vadd.f32 %v6238, %v6240
        %6697 = vadd.xlane.f32.xlu0 %v6696
        %v6698 = vpop.xlane.xlu0 %6697
        %v6699 = vadd.f32 %v6242, %v6244
        %6700 = vadd.xlane.f32.xlu0 %v6699
        %v6701 = vpop.xlane.xlu0 %6700
        %v6702 = vadd.f32 %v6246, %v6248
        %6703 = vadd.xlane.f32.xlu0 %v6702
        %v6704 = vpop.xlane.xlu0 %6703
        %v6705 = vadd.f32 %v6250, %v6252
        %6706 = vadd.xlane.f32.xlu0 %v6705
        %v6707 = vpop.xlane.xlu0 %6706
        %v6708 = vadd.f32 %v6254, %v6256
        %6709 = vadd.xlane.f32.xlu0 %v6708
        %v6710 = vpop.xlane.xlu0 %6709
        %v6711 = vadd.f32 %v6258, %v6260
        %6712 = vadd.xlane.f32.xlu0 %v6711
        %v6713 = vpop.xlane.xlu0 %6712
        %v6714 = vadd.f32 %v6262, %v6264
        %6715 = vadd.xlane.f32.xlu0 %v6714
        %v6716 = vpop.xlane.xlu0 %6715
        %v6717 = vadd.f32 %v6266, %v6268
        %6718 = vadd.xlane.f32.xlu0 %v6717
        %v6719 = vpop.xlane.xlu0 %6718
        %v6720 = vadd.f32 %v6270, %v6272
        %6721 = vadd.xlane.f32.xlu0 %v6720
        %v6722 = vpop.xlane.xlu0 %6721
        %v6723 = vadd.f32 %v6274, %v6276
        %6724 = vadd.xlane.f32.xlu0 %v6723
        %v6725 = vpop.xlane.xlu0 %6724
        %v6726 = vadd.f32 %v6278, %v6280
        %6727 = vadd.xlane.f32.xlu0 %v6726
        %v6728 = vpop.xlane.xlu0 %6727
        %v6729 = vadd.f32 %v6282, %v6284
        %6730 = vadd.xlane.f32.xlu0 %v6729
        %v6731 = vpop.xlane.xlu0 %6730
        %v6732 = vadd.f32 %v6286, %v6288
        %6733 = vadd.xlane.f32.xlu0 %v6732
        %v6734 = vpop.xlane.xlu0 %6733
        %v6735 = vadd.f32 %v6290, %v6292
        %6736 = vadd.xlane.f32.xlu0 %v6735
        %v6737 = vpop.xlane.xlu0 %6736
        %v6738 = vadd.f32 %v6294, %v6296
        %6739 = vadd.xlane.f32.xlu0 %v6738
        %v6740 = vpop.xlane.xlu0 %6739
        %v6741 = vadd.f32 %v6298, %v6300
        %6742 = vadd.xlane.f32.xlu0 %v6741
        %v6743 = vpop.xlane.xlu0 %6742
        %v6744 = vadd.f32 %v6302, %v6304
        %6745 = vadd.xlane.f32.xlu0 %v6744
        %v6746 = vpop.xlane.xlu0 %6745
        %v6747 = vadd.f32 %v6306, %v6308
        %6748 = vadd.xlane.f32.xlu0 %v6747
        %v6749 = vpop.xlane.xlu0 %6748
        %v6750 = vadd.f32 %v6310, %v6312
        %6751 = vadd.xlane.f32.xlu0 %v6750
        %v6752 = vpop.xlane.xlu0 %6751
        %v6753 = vadd.f32 %v6314, %v6316
        %6754 = vadd.xlane.f32.xlu0 %v6753
        %v6755 = vpop.xlane.xlu0 %6754
        %v6756 = vadd.f32 %v6318, %v6320
        %6757 = vadd.xlane.f32.xlu0 %v6756
        %v6758 = vpop.xlane.xlu0 %6757
        %v6759 = vadd.f32 %v6322, %v6324
        %6760 = vadd.xlane.f32.xlu0 %v6759
        %v6761 = vpop.xlane.xlu0 %6760
        %v6762 = vadd.f32 %v6326, %v6328
        %6763 = vadd.xlane.f32.xlu0 %v6762
        %v6764 = vpop.xlane.xlu0 %6763
        %v6765 = vadd.f32 %v6330, %v6332
        %6766 = vadd.xlane.f32.xlu0 %v6765
        %v6767 = vpop.xlane.xlu0 %6766
        %v6768 = vadd.f32 %v6334, %v6336
        %6769 = vadd.xlane.f32.xlu0 %v6768
        %v6770 = vpop.xlane.xlu0 %6769
        %v6771 = vadd.f32 %v6338, %v6340
        %6772 = vadd.xlane.f32.xlu0 %v6771
        %v6773 = vpop.xlane.xlu0 %6772
        %v6774 = vadd.f32 %v6342, %v6344
        %6775 = vadd.xlane.f32.xlu0 %v6774
        %v6776 = vpop.xlane.xlu0 %6775
        %v6777 = vadd.f32 %v6346, %v6348
        %6778 = vadd.xlane.f32.xlu0 %v6777
        %v6779 = vpop.xlane.xlu0 %6778
        %v6780 = vadd.f32 %v6350, %v6352
        %6781 = vadd.xlane.f32.xlu0 %v6780
        %v6782 = vpop.xlane.xlu0 %6781
        %v6783 = vadd.f32 %v6354, %v6356
        %6784 = vadd.xlane.f32.xlu0 %v6783
        %v6785 = vpop.xlane.xlu0 %6784
        %v6786 = vadd.f32 %v6358, %v6360
        %6787 = vadd.xlane.f32.xlu0 %v6786
        %v6788 = vpop.xlane.xlu0 %6787
        %v6789 = vadd.f32 %v6362, %v6364
        %6790 = vadd.xlane.f32.xlu0 %v6789
        %v6791 = vpop.xlane.xlu0 %6790
        %v6792 = vadd.f32 %v6366, %v6368
        %6793 = vadd.xlane.f32.xlu0 %v6792
        %v6794 = vpop.xlane.xlu0 %6793
        %v6795 = vadd.f32 %v6370, %v6372
        %6796 = vadd.xlane.f32.xlu0 %v6795
        %v6797 = vpop.xlane.xlu0 %6796
        %v6798 = vadd.f32 %v6374, %v6376
        %6799 = vadd.xlane.f32.xlu0 %v6798
        %v6800 = vpop.xlane.xlu0 %6799
        %v6801 = vadd.f32 %v6378, %v6380
        %6802 = vadd.xlane.f32.xlu0 %v6801
        %v6803 = vpop.xlane.xlu0 %6802
        %v6804 = vadd.f32 %v6382, %v6384
        %6805 = vadd.xlane.f32.xlu0 %v6804
        %v6806 = vpop.xlane.xlu0 %6805
        %v6807 = vadd.f32 %v6386, %v6388
        %6808 = vadd.xlane.f32.xlu0 %v6807
        %v6809 = vpop.xlane.xlu0 %6808
        %v6810 = vadd.f32 %v6390, %v6392
        %6811 = vadd.xlane.f32.xlu0 %v6810
        %v6812 = vpop.xlane.xlu0 %6811
        %v6813 = vadd.f32 %v6394, %v6396
        %6814 = vadd.xlane.f32.xlu0 %v6813
        %v6815 = vpop.xlane.xlu0 %6814
        %v6816 = vadd.f32 %v6398, %v6400
        %6817 = vadd.xlane.f32.xlu0 %v6816
        %v6818 = vpop.xlane.xlu0 %6817
        %v6819 = vadd.f32 %v6402, %v6404
        %6820 = vadd.xlane.f32.xlu0 %v6819
        %v6821 = vpop.xlane.xlu0 %6820
        %v6822 = vadd.f32 %v6406, %v6408
        %6823 = vadd.xlane.f32.xlu0 %v6822
        %v6824 = vpop.xlane.xlu0 %6823
        %v6825 = vadd.f32 %v6410, %v6412
        %6826 = vadd.xlane.f32.xlu0 %v6825
        %v6827 = vpop.xlane.xlu0 %6826
        %v6828 = vadd.f32 %v6414, %v6416
        %6829 = vadd.xlane.f32.xlu0 %v6828
        %v6830 = vpop.xlane.xlu0 %6829
        %v6831 = vadd.f32 %v6418, %v6420
        %6832 = vadd.xlane.f32.xlu0 %v6831
        %v6833 = vpop.xlane.xlu0 %6832
        %v6834 = vadd.f32 %v6422, %v6424
        %6835 = vadd.xlane.f32.xlu0 %v6834
        %v6836 = vpop.xlane.xlu0 %6835
        %v6837 = vadd.f32 %v6426, %v6428
        %6838 = vadd.xlane.f32.xlu0 %v6837
        %v6839 = vpop.xlane.xlu0 %6838
        %v6840 = vadd.f32 %v6430, %v6432
        %6841 = vadd.xlane.f32.xlu0 %v6840
        %v6842 = vpop.xlane.xlu0 %6841
        %v6843 = vadd.f32 %v6434, %v6436
        %6844 = vadd.xlane.f32.xlu0 %v6843
        %v6845 = vpop.xlane.xlu0 %6844
        %v6846 = vadd.f32 %v6438, %v6440
        %6847 = vadd.xlane.f32.xlu0 %v6846
        %v6848 = vpop.xlane.xlu0 %6847
        %v6849 = vadd.f32 %v6442, %v6444
        %6850 = vadd.xlane.f32.xlu0 %v6849
        %v6851 = vpop.xlane.xlu0 %6850
        %v6852 = vadd.f32 %v6446, %v6448
        %6853 = vadd.xlane.f32.xlu0 %v6852
        %v6854 = vpop.xlane.xlu0 %6853
        %v6855 = vadd.f32 %v6450, %v6452
        %6856 = vadd.xlane.f32.xlu0 %v6855
        %v6857 = vpop.xlane.xlu0 %6856
        %v6858 = vadd.f32 %v6454, %v6456
        %6859 = vadd.xlane.f32.xlu0 %v6858
        %v6860 = vpop.xlane.xlu0 %6859
        %v6861 = vadd.f32 %v6458, %v6460
        %6862 = vadd.xlane.f32.xlu0 %v6861
        %v6863 = vpop.xlane.xlu0 %6862
        %v6864 = vadd.f32 %v6462, %v6464
        %6865 = vadd.xlane.f32.xlu0 %v6864
        %v6866 = vpop.xlane.xlu0 %6865
        %v6867 = vadd.f32 %v6466, %v6468
        %6868 = vadd.xlane.f32.xlu0 %v6867
        %v6869 = vpop.xlane.xlu0 %6868
        %v6870 = vadd.f32 %v6470, %v6472
        %6871 = vadd.xlane.f32.xlu0 %v6870
        %v6872 = vpop.xlane.xlu0 %6871
        %v6873 = vadd.f32 %v6474, %v6476
        %6874 = vadd.xlane.f32.xlu0 %v6873
        %v6875 = vpop.xlane.xlu0 %6874
        %v6876 = vadd.f32 %v6478, %v6480
        %6877 = vadd.xlane.f32.xlu0 %v6876
        %v6878 = vpop.xlane.xlu0 %6877
        %v6879 = vadd.f32 %v6482, %v6484
        %6880 = vadd.xlane.f32.xlu0 %v6879
        %v6881 = vpop.xlane.xlu0 %6880
        %v6882 = vadd.f32 %v6486, %v6488
        %6883 = vadd.xlane.f32.xlu0 %v6882
        %v6884 = vpop.xlane.xlu0 %6883
        %v6885 = vadd.f32 %v6490, %v6492
        %6886 = vadd.xlane.f32.xlu0 %v6885
        %v6887 = vpop.xlane.xlu0 %6886
        %v6888 = vadd.f32 %v6494, %v6496
        %6889 = vadd.xlane.f32.xlu0 %v6888
        %v6890 = vpop.xlane.xlu0 %6889
        %v6891 = vadd.f32 %v6498, %v6500
        %6892 = vadd.xlane.f32.xlu0 %v6891
        %v6893 = vpop.xlane.xlu0 %6892
        %v6894 = vadd.f32 %v6502, %v6504
        %6895 = vadd.xlane.f32.xlu0 %v6894
        %v6896 = vpop.xlane.xlu0 %6895
        %v6897 = vadd.f32 %v6506, %v6508
        %6898 = vadd.xlane.f32.xlu0 %v6897
        %v6899 = vpop.xlane.xlu0 %6898
        %v6900 = vadd.f32 %v6510, %v6512
        %6901 = vadd.xlane.f32.xlu0 %v6900
        %v6902 = vpop.xlane.xlu0 %6901
        %v6903 = vadd.f32 %v6514, %v6516
        %6904 = vadd.xlane.f32.xlu0 %v6903
        %v6905 = vpop.xlane.xlu0 %6904
        %v6906 = vadd.f32 %v6518, %v6520
        %6907 = vadd.xlane.f32.xlu0 %v6906
        %v6908 = vpop.xlane.xlu0 %6907
        %v6909 = vadd.f32 %v6522, %v6524
        %6910 = vadd.xlane.f32.xlu0 %v6909
        %v6911 = vpop.xlane.xlu0 %6910
        %v6912 = vadd.f32 %v6526, %v6528
        %6913 = vadd.xlane.f32.xlu0 %v6912
        %v6914 = vpop.xlane.xlu0 %6913
        %v6915 = vadd.f32 %v6530, %v6532
        %6916 = vadd.xlane.f32.xlu0 %v6915
        %v6917 = vpop.xlane.xlu0 %6916
        %v6918 = vadd.f32 %v6534, %v6536
        %6919 = vadd.xlane.f32.xlu0 %v6918
        %v6920 = vpop.xlane.xlu0 %6919
        %v6921 = vrcp.pop %v6539
        %v6922 = vrcp.pop %v6542
        %v6923 = vrcp.pop %v6545
        %v6924 = vrcp.pop %v6548
        %v6925 = vrcp.pop %v6551
        %v6926 = vrcp.pop %v6554
        %v6927 = vrcp.pop %v6557
        %v6928 = vrcp.pop %v6560
        %v6929 = vrcp.pop %v6563
        %v6930 = vrcp.pop %v6566
        %v6931 = vrcp.pop %v6569
        %v6932 = vrcp.pop %v6572
        %v6933 = vrcp.pop %v6575
        %v6934 = vrcp.pop %v6578
        %v6935 = vrcp.pop %v6581
        %v6936 = vrcp.pop %v6584
        %v6937 = vrcp.pop %v6587
        %v6938 = vrcp.pop %v6590
        %v6939 = vrcp.pop %v6593
        %v6940 = vrcp.pop %v6596
        %v6941 = vrcp.pop %v6599
        %v6942 = vrcp.pop %v6602
        %v6943 = vrcp.pop %v6605
        %v6944 = vrcp.pop %v6608
        %v6945 = vrcp.pop %v6611
        %v6946 = vrcp.pop %v6614
        %v6947 = vrcp.pop %v6617
        %v6948 = vrcp.pop %v6620
        %v6949 = vrcp.pop %v6623
        %v6950 = vrcp.pop %v6626
        %v6951 = vrcp.pop %v6629
        %v6952 = vrcp.pop %v6632
        %v6953 = vrcp.pop %v6635
        %v6954 = vrcp.pop %v6638
        %v6955 = vrcp.pop %v6641
        %v6956 = vrcp.pop %v6644
        %v6957 = vrcp.pop %v6647
        %v6958 = vrcp.pop %v6650
        %v6959 = vrcp.pop %v6653
        %v6960 = vrcp.pop %v6656
        %v6961 = vrcp.pop %v6659
        %v6962 = vrcp.pop %v6662
        %v6963 = vrcp.pop %v6665
        %v6964 = vrcp.pop %v6668
        %v6965 = vrcp.pop %v6671
        %v6966 = vrcp.pop %v6674
        %v6967 = vrcp.pop %v6677
        %v6968 = vrcp.pop %v6680
        %v6969 = vrcp.pop %v6683
        %v6970 = vrcp.pop %v6686
        %v6971 = vrcp.pop %v6689
        %v6972 = vrcp.pop %v6692
        %v6973 = vrcp.pop %v6695
        %v6974 = vrcp.pop %v6698
        %v6975 = vrcp.pop %v6701
        %v6976 = vrcp.pop %v6704
        %v6977 = vrcp.pop %v6707
        %v6978 = vrcp.pop %v6710
        %v6979 = vrcp.pop %v6713
        %v6980 = vrcp.pop %v6716
        %v6981 = vrcp.pop %v6719
        %v6982 = vrcp.pop %v6722
        %v6983 = vrcp.pop %v6725
        %v6984 = vrcp.pop %v6728
        %v6985 = vrcp.pop %v6731
        %v6986 = vrcp.pop %v6734
        %v6987 = vrcp.pop %v6737
        %v6988 = vrcp.pop %v6740
        %v6989 = vrcp.pop %v6743
        %v6990 = vrcp.pop %v6746
        %v6991 = vrcp.pop %v6749
        %v6992 = vrcp.pop %v6752
        %v6993 = vrcp.pop %v6755
        %v6994 = vrcp.pop %v6758
        %v6995 = vrcp.pop %v6761
        %v6996 = vrcp.pop %v6764
        %v6997 = vrcp.pop %v6767
        %v6998 = vrcp.pop %v6770
        %v6999 = vrcp.pop %v6773
        %v7000 = vrcp.pop %v6776
        %v7001 = vrcp.pop %v6779
        %v7002 = vrcp.pop %v6782
        %v7003 = vrcp.pop %v6785
        %v7004 = vrcp.pop %v6788
        %v7005 = vrcp.pop %v6791
        %v7006 = vrcp.pop %v6794
        %v7007 = vrcp.pop %v6797
        %v7008 = vrcp.pop %v6800
        %v7009 = vrcp.pop %v6803
        %v7010 = vrcp.pop %v6806
        %v7011 = vrcp.pop %v6809
        %v7012 = vrcp.pop %v6812
        %v7013 = vrcp.pop %v6815
        %v7014 = vrcp.pop %v6818
        %v7015 = vrcp.pop %v6821
        %v7016 = vrcp.pop %v6824
        %v7017 = vrcp.pop %v6827
        %v7018 = vrcp.pop %v6830
        %v7019 = vrcp.pop %v6833
        %v7020 = vrcp.pop %v6836
        %v7021 = vrcp.pop %v6839
        %v7022 = vrcp.pop %v6842
        %v7023 = vrcp.pop %v6845
        %v7024 = vrcp.pop %v6848
        %v7025 = vrcp.pop %v6851
        %v7026 = vrcp.pop %v6854
        %v7027 = vrcp.pop %v6857
        %v7028 = vrcp.pop %v6860
        %v7029 = vrcp.pop %v6863
        %v7030 = vrcp.pop %v6866
        %v7031 = vrcp.pop %v6869
        %v7032 = vrcp.pop %v6872
        %v7033 = vrcp.pop %v6875
        %v7034 = vrcp.pop %v6878
        %v7035 = vrcp.pop %v6881
        %v7036 = vrcp.pop %v6884
        %v7037 = vrcp.pop %v6887
        %v7038 = vrcp.pop %v6890
        %v7039 = vrcp.pop %v6893
        %v7040 = vrcp.pop %v6896
        %v7041 = vrcp.pop %v6899
        %v7042 = vrcp.pop %v6902
        %v7043 = vrcp.pop %v6905
        %v7044 = vrcp.pop %v6908
        %v7045 = vrcp.pop %v6911
        %v7046 = vrcp.pop %v6914
        %v7047 = vrcp.pop %v6917
        %v7048 = vrcp.pop %v6920
        %v7049 = vmul.f32 %v6026, %v6921
        %v7050 = vmul.f32 %v6028, %v6921
        %v7051 = vmul.f32 %v6030, %v6922
        %v7052 = vmul.f32 %v6032, %v6922
        %v7053 = vmul.f32 %v6034, %v6923
        %v7054 = vmul.f32 %v6036, %v6923
        %v7055 = vmul.f32 %v6038, %v6924
        %v7056 = vmul.f32 %v6040, %v6924
        %v7057 = vmul.f32 %v6042, %v6925
        %v7058 = vmul.f32 %v6044, %v6925
        %v7059 = vmul.f32 %v6046, %v6926
        %v7060 = vmul.f32 %v6048, %v6926
        %v7061 = vmul.f32 %v6050, %v6927
        %v7062 = vmul.f32 %v6052, %v6927
        %v7063 = vmul.f32 %v6054, %v6928
        %v7064 = vmul.f32 %v6056, %v6928
        %v7065 = vmul.f32 %v6058, %v6929
        %v7066 = vmul.f32 %v6060, %v6929
        %v7067 = vmul.f32 %v6062, %v6930
        %v7068 = vmul.f32 %v6064, %v6930
        %v7069 = vmul.f32 %v6066, %v6931
        %v7070 = vmul.f32 %v6068, %v6931
        %v7071 = vmul.f32 %v6070, %v6932
        %v7072 = vmul.f32 %v6072, %v6932
        %v7073 = vmul.f32 %v6074, %v6933
        %v7074 = vmul.f32 %v6076, %v6933
        %v7075 = vmul.f32 %v6078, %v6934
        %v7076 = vmul.f32 %v6080, %v6934
        %v7077 = vmul.f32 %v6082, %v6935
        %v7078 = vmul.f32 %v6084, %v6935
        %v7079 = vmul.f32 %v6086, %v6936
        %v7080 = vmul.f32 %v6088, %v6936
        %v7081 = vmul.f32 %v6090, %v6937
        %v7082 = vmul.f32 %v6092, %v6937
        %v7083 = vmul.f32 %v6094, %v6938
        %v7084 = vmul.f32 %v6096, %v6938
        %v7085 = vmul.f32 %v6098, %v6939
        %v7086 = vmul.f32 %v6100, %v6939
        %v7087 = vmul.f32 %v6102, %v6940
        %v7088 = vmul.f32 %v6104, %v6940
        %v7089 = vmul.f32 %v6106, %v6941
        %v7090 = vmul.f32 %v6108, %v6941
        %v7091 = vmul.f32 %v6110, %v6942
        %v7092 = vmul.f32 %v6112, %v6942
        %v7093 = vmul.f32 %v6114, %v6943
        %v7094 = vmul.f32 %v6116, %v6943
        %v7095 = vmul.f32 %v6118, %v6944
        %v7096 = vmul.f32 %v6120, %v6944
        %v7097 = vmul.f32 %v6122, %v6945
        %v7098 = vmul.f32 %v6124, %v6945
        %v7099 = vmul.f32 %v6126, %v6946
        %v7100 = vmul.f32 %v6128, %v6946
        %v7101 = vmul.f32 %v6130, %v6947
        %v7102 = vmul.f32 %v6132, %v6947
        %v7103 = vmul.f32 %v6134, %v6948
        %v7104 = vmul.f32 %v6136, %v6948
        %v7105 = vmul.f32 %v6138, %v6949
        %v7106 = vmul.f32 %v6140, %v6949
        %v7107 = vmul.f32 %v6142, %v6950
        %v7108 = vmul.f32 %v6144, %v6950
        %v7109 = vmul.f32 %v6146, %v6951
        %v7110 = vmul.f32 %v6148, %v6951
        %v7111 = vmul.f32 %v6150, %v6952
        %v7112 = vmul.f32 %v6152, %v6952
        %v7113 = vmul.f32 %v6154, %v6953
        %v7114 = vmul.f32 %v6156, %v6953
        %v7115 = vmul.f32 %v6158, %v6954
        %v7116 = vmul.f32 %v6160, %v6954
        %v7117 = vmul.f32 %v6162, %v6955
        %v7118 = vmul.f32 %v6164, %v6955
        %v7119 = vmul.f32 %v6166, %v6956
        %v7120 = vmul.f32 %v6168, %v6956
        %v7121 = vmul.f32 %v6170, %v6957
        %v7122 = vmul.f32 %v6172, %v6957
        %v7123 = vmul.f32 %v6174, %v6958
        %v7124 = vmul.f32 %v6176, %v6958
        %v7125 = vmul.f32 %v6178, %v6959
        %v7126 = vmul.f32 %v6180, %v6959
        %v7127 = vmul.f32 %v6182, %v6960
        %v7128 = vmul.f32 %v6184, %v6960
        %v7129 = vmul.f32 %v6186, %v6961
        %v7130 = vmul.f32 %v6188, %v6961
        %v7131 = vmul.f32 %v6190, %v6962
        %v7132 = vmul.f32 %v6192, %v6962
        %v7133 = vmul.f32 %v6194, %v6963
        %v7134 = vmul.f32 %v6196, %v6963
        %v7135 = vmul.f32 %v6198, %v6964
        %v7136 = vmul.f32 %v6200, %v6964
        %v7137 = vmul.f32 %v6202, %v6965
        %v7138 = vmul.f32 %v6204, %v6965
        %v7139 = vmul.f32 %v6206, %v6966
        %v7140 = vmul.f32 %v6208, %v6966
        %v7141 = vmul.f32 %v6210, %v6967
        %v7142 = vmul.f32 %v6212, %v6967
        %v7143 = vmul.f32 %v6214, %v6968
        %v7144 = vmul.f32 %v6216, %v6968
        %v7145 = vmul.f32 %v6218, %v6969
        %v7146 = vmul.f32 %v6220, %v6969
        %v7147 = vmul.f32 %v6222, %v6970
        %v7148 = vmul.f32 %v6224, %v6970
        %v7149 = vmul.f32 %v6226, %v6971
        %v7150 = vmul.f32 %v6228, %v6971
        %v7151 = vmul.f32 %v6230, %v6972
        %v7152 = vmul.f32 %v6232, %v6972
        %v7153 = vmul.f32 %v6234, %v6973
        %v7154 = vmul.f32 %v6236, %v6973
        %v7155 = vmul.f32 %v6238, %v6974
        %v7156 = vmul.f32 %v6240, %v6974
        %v7157 = vmul.f32 %v6242, %v6975
        %v7158 = vmul.f32 %v6244, %v6975
        %v7159 = vmul.f32 %v6246, %v6976
        %v7160 = vmul.f32 %v6248, %v6976
        %v7161 = vmul.f32 %v6250, %v6977
        %v7162 = vmul.f32 %v6252, %v6977
        %v7163 = vmul.f32 %v6254, %v6978
        %v7164 = vmul.f32 %v6256, %v6978
        %v7165 = vmul.f32 %v6258, %v6979
        %v7166 = vmul.f32 %v6260, %v6979
        %v7167 = vmul.f32 %v6262, %v6980
        %v7168 = vmul.f32 %v6264, %v6980
        %v7169 = vmul.f32 %v6266, %v6981
        %v7170 = vmul.f32 %v6268, %v6981
        %v7171 = vmul.f32 %v6270, %v6982
        %v7172 = vmul.f32 %v6272, %v6982
        %v7173 = vmul.f32 %v6274, %v6983
        %v7174 = vmul.f32 %v6276, %v6983
        %v7175 = vmul.f32 %v6278, %v6984
        %v7176 = vmul.f32 %v6280, %v6984
        %v7177 = vmul.f32 %v6282, %v6985
        %v7178 = vmul.f32 %v6284, %v6985
        %v7179 = vmul.f32 %v6286, %v6986
        %v7180 = vmul.f32 %v6288, %v6986
        %v7181 = vmul.f32 %v6290, %v6987
        %v7182 = vmul.f32 %v6292, %v6987
        %v7183 = vmul.f32 %v6294, %v6988
        %v7184 = vmul.f32 %v6296, %v6988
        %v7185 = vmul.f32 %v6298, %v6989
        %v7186 = vmul.f32 %v6300, %v6989
        %v7187 = vmul.f32 %v6302, %v6990
        %v7188 = vmul.f32 %v6304, %v6990
        %v7189 = vmul.f32 %v6306, %v6991
        %v7190 = vmul.f32 %v6308, %v6991
        %v7191 = vmul.f32 %v6310, %v6992
        %v7192 = vmul.f32 %v6312, %v6992
        %v7193 = vmul.f32 %v6314, %v6993
        %v7194 = vmul.f32 %v6316, %v6993
        %v7195 = vmul.f32 %v6318, %v6994
        %v7196 = vmul.f32 %v6320, %v6994
        %v7197 = vmul.f32 %v6322, %v6995
        %v7198 = vmul.f32 %v6324, %v6995
        %v7199 = vmul.f32 %v6326, %v6996
        %v7200 = vmul.f32 %v6328, %v6996
        %v7201 = vmul.f32 %v6330, %v6997
        %v7202 = vmul.f32 %v6332, %v6997
        %v7203 = vmul.f32 %v6334, %v6998
        %v7204 = vmul.f32 %v6336, %v6998
        %v7205 = vmul.f32 %v6338, %v6999
        %v7206 = vmul.f32 %v6340, %v6999
        %v7207 = vmul.f32 %v6342, %v7000
        %v7208 = vmul.f32 %v6344, %v7000
        %v7209 = vmul.f32 %v6346, %v7001
        %v7210 = vmul.f32 %v6348, %v7001
        %v7211 = vmul.f32 %v6350, %v7002
        %v7212 = vmul.f32 %v6352, %v7002
        %v7213 = vmul.f32 %v6354, %v7003
        %v7214 = vmul.f32 %v6356, %v7003
        %v7215 = vmul.f32 %v6358, %v7004
        %v7216 = vmul.f32 %v6360, %v7004
        %v7217 = vmul.f32 %v6362, %v7005
        %v7218 = vmul.f32 %v6364, %v7005
        %v7219 = vmul.f32 %v6366, %v7006
        %v7220 = vmul.f32 %v6368, %v7006
        %v7221 = vmul.f32 %v6370, %v7007
        %v7222 = vmul.f32 %v6372, %v7007
        %v7223 = vmul.f32 %v6374, %v7008
        %v7224 = vmul.f32 %v6376, %v7008
        %v7225 = vmul.f32 %v6378, %v7009
        %v7226 = vmul.f32 %v6380, %v7009
        %v7227 = vmul.f32 %v6382, %v7010
        %v7228 = vmul.f32 %v6384, %v7010
        %v7229 = vmul.f32 %v6386, %v7011
        %v7230 = vmul.f32 %v6388, %v7011
        %v7231 = vmul.f32 %v6390, %v7012
        %v7232 = vmul.f32 %v6392, %v7012
        %v7233 = vmul.f32 %v6394, %v7013
        %v7234 = vmul.f32 %v6396, %v7013
        %v7235 = vmul.f32 %v6398, %v7014
        %v7236 = vmul.f32 %v6400, %v7014
        %v7237 = vmul.f32 %v6402, %v7015
        %v7238 = vmul.f32 %v6404, %v7015
        %v7239 = vmul.f32 %v6406, %v7016
        %v7240 = vmul.f32 %v6408, %v7016
        %v7241 = vmul.f32 %v6410, %v7017
        %v7242 = vmul.f32 %v6412, %v7017
        %v7243 = vmul.f32 %v6414, %v7018
        %v7244 = vmul.f32 %v6416, %v7018
        %v7245 = vmul.f32 %v6418, %v7019
        %v7246 = vmul.f32 %v6420, %v7019
        %v7247 = vmul.f32 %v6422, %v7020
        %v7248 = vmul.f32 %v6424, %v7020
        %v7249 = vmul.f32 %v6426, %v7021
        %v7250 = vmul.f32 %v6428, %v7021
        %v7251 = vmul.f32 %v6430, %v7022
        %v7252 = vmul.f32 %v6432, %v7022
        %v7253 = vmul.f32 %v6434, %v7023
        %v7254 = vmul.f32 %v6436, %v7023
        %v7255 = vmul.f32 %v6438, %v7024
        %v7256 = vmul.f32 %v6440, %v7024
        %v7257 = vmul.f32 %v6442, %v7025
        %v7258 = vmul.f32 %v6444, %v7025
        %v7259 = vmul.f32 %v6446, %v7026
        %v7260 = vmul.f32 %v6448, %v7026
        %v7261 = vmul.f32 %v6450, %v7027
        %v7262 = vmul.f32 %v6452, %v7027
        %v7263 = vmul.f32 %v6454, %v7028
        %v7264 = vmul.f32 %v6456, %v7028
        %v7265 = vmul.f32 %v6458, %v7029
        %v7266 = vmul.f32 %v6460, %v7029
        %v7267 = vmul.f32 %v6462, %v7030
        %v7268 = vmul.f32 %v6464, %v7030
        %v7269 = vmul.f32 %v6466, %v7031
        %v7270 = vmul.f32 %v6468, %v7031
        %v7271 = vmul.f32 %v6470, %v7032
        %v7272 = vmul.f32 %v6472, %v7032
        %v7273 = vmul.f32 %v6474, %v7033
        %v7274 = vmul.f32 %v6476, %v7033
        %v7275 = vmul.f32 %v6478, %v7034
        %v7276 = vmul.f32 %v6480, %v7034
        %v7277 = vmul.f32 %v6482, %v7035
        %v7278 = vmul.f32 %v6484, %v7035
        %v7279 = vmul.f32 %v6486, %v7036
        %v7280 = vmul.f32 %v6488, %v7036
        %v7281 = vmul.f32 %v6490, %v7037
        %v7282 = vmul.f32 %v6492, %v7037
        %v7283 = vmul.f32 %v6494, %v7038
        %v7284 = vmul.f32 %v6496, %v7038
        %v7285 = vmul.f32 %v6498, %v7039
        %v7286 = vmul.f32 %v6500, %v7039
        %v7287 = vmul.f32 %v6502, %v7040
        %v7288 = vmul.f32 %v6504, %v7040
        %v7289 = vmul.f32 %v6506, %v7041
        %v7290 = vmul.f32 %v6508, %v7041
        %v7291 = vmul.f32 %v6510, %v7042
        %v7292 = vmul.f32 %v6512, %v7042
        %v7293 = vmul.f32 %v6514, %v7043
        %v7294 = vmul.f32 %v6516, %v7043
        %v7295 = vmul.f32 %v6518, %v7044
        %v7296 = vmul.f32 %v6520, %v7044
        %v7297 = vmul.f32 %v6522, %v7045
        %v7298 = vmul.f32 %v6524, %v7045
        %v7299 = vmul.f32 %v6526, %v7046
        %v7300 = vmul.f32 %v6528, %v7046
        %v7301 = vmul.f32 %v6530, %v7047
        %v7302 = vmul.f32 %v6532, %v7047
        %v7303 = vmul.f32 %v6534, %v7048
        %v7304 = vmul.f32 %v6536, %v7048
        %7305 = vmatprep.subr.mxu0 0.0
        %7306 = vmatpush1.msra.mxu0 %v1792
        %7307 = vmatprep.subr.mxu0 0.0
        %7308 = vmatpush1.msra.mxu0 %v1793
        %7309 = vmatprep.subr.mxu0 0.0
        %7310 = vmatpush1.msra.mxu0 %v1794
        %7311 = vmatprep.subr.mxu0 0.0
        %7312 = vmatpush1.msra.mxu0 %v1795
        %7313 = vmatprep.subr.mxu0 0.0
        %7314 = vmatpush1.msra.mxu0 %v1796
        %7315 = vmatprep.subr.mxu0 0.0
        %7316 = vmatpush1.msra.mxu0 %v1797
        %7317 = vmatprep.subr.mxu0 0.0
        %7318 = vmatpush1.msra.mxu0 %v1798
        %7319 = vmatprep.subr.mxu0 0.0
        %7320 = vmatpush1.msra.mxu0 %v1799
        %7321 = vmatprep.subr.mxu0 0.0
        %7322 = vmatpush1.msra.mxu0 %v1800
        %7323 = vmatprep.subr.mxu0 0.0
        %7324 = vmatpush1.msra.mxu0 %v1801
        %7325 = vmatprep.subr.mxu0 0.0
        %7326 = vmatpush1.msra.mxu0 %v1802
        %7327 = vmatprep.subr.mxu0 0.0
        %7328 = vmatpush1.msra.mxu0 %v1803
        %7329 = vmatprep.subr.mxu0 0.0
        %7330 = vmatpush1.msra.mxu0 %v1804
        %7331 = vmatprep.subr.mxu0 0.0
        %7332 = vmatpush1.msra.mxu0 %v1805
        %7333 = vmatprep.subr.mxu0 0.0
        %7334 = vmatpush1.msra.mxu0 %v1806
        %7335 = vmatprep.subr.mxu0 0.0
        %7336 = vmatpush1.msra.mxu0 %v1807
        %7337 = vmatprep.subr.mxu0 0.0
        %7338 = vmatpush1.msra.mxu0 %v1808
        %7339 = vmatprep.subr.mxu0 0.0
        %7340 = vmatpush1.msra.mxu0 %v1809
        %7341 = vmatprep.subr.mxu0 0.0
        %7342 = vmatpush1.msra.mxu0 %v1810
        %7343 = vmatprep.subr.mxu0 0.0
        %7344 = vmatpush1.msra.mxu0 %v1811
        %7345 = vmatprep.subr.mxu0 0.0
        %7346 = vmatpush1.msra.mxu0 %v1812
        %7347 = vmatprep.subr.mxu0 0.0
        %7348 = vmatpush1.msra.mxu0 %v1813
        %7349 = vmatprep.subr.mxu0 0.0
        %7350 = vmatpush1.msra.mxu0 %v1814
        %7351 = vmatprep.subr.mxu0 0.0
        %7352 = vmatpush1.msra.mxu0 %v1815
        %7353 = vmatprep.subr.mxu0 0.0
        %7354 = vmatpush1.msra.mxu0 %v1816
        %7355 = vmatprep.subr.mxu0 0.0
        %7356 = vmatpush1.msra.mxu0 %v1817
        %7357 = vmatprep.subr.mxu0 0.0
        %7358 = vmatpush1.msra.mxu0 %v1818
        %7359 = vmatprep.subr.mxu0 0.0
        %7360 = vmatpush1.msra.mxu0 %v1819
        %7361 = vmatprep.subr.mxu0 0.0
        %7362 = vmatpush1.msra.mxu0 %v1820
        %7363 = vmatprep.subr.mxu0 0.0
        %7364 = vmatpush1.msra.mxu0 %v1821
        %7365 = vmatprep.subr.mxu0 0.0
        %7366 = vmatpush1.msra.mxu0 %v1822
        %7367 = vmatprep.subr.mxu0 0.0
        %7368 = vmatpush1.msra.mxu0 %v1823
        %7369 = vmatprep.mubr.f32.mxu0 %v7050
        %7370 = vmatmul.mubr.f32.gmra.mrb[0].mxu0 %v7049
        %v7371 = vpop.f32.mrb[0].mxu0
        %v7372 = vadd.f32 0.0, %v7371
        %v7373 = vpop.f32.mrb[0].mxu0
        %7374 = vmatprep.mubr.f32.mxu0 %v7052
        %7375 = vmatmul.mubr.f32.gmra.mrb[0].mxu0 %v7051
        %v7376 = vpop.f32.mrb[0].mxu0
        %v7377 = vadd.f32 0.0, %v7376
        %v7378 = vpop.f32.mrb[0].mxu0
        %7379 = vmatprep.mubr.f32.mxu0 %v7054
        %7380 = vmatmul.mubr.f32.gmra.mrb[0].mxu0 %v7053
        %v7381 = vpop.f32.mrb[0].mxu0
        %v7382 = vadd.f32 0.0, %v7381
        %v7383 = vpop.f32.mrb[0].mxu0
        %7384 = vmatprep.mubr.f32.mxu0 %v7056
        %7385 = vmatmul.mubr.f32.gmra.mrb[0].mxu0 %v7055
        %v7386 = vpop.f32.mrb[0].mxu0
        %v7387 = vadd.f32 0.0, %v7386
        %v7388 = vpop.f32.mrb[0].mxu0
        %7389 = vmatprep.mubr.f32.mxu0 %v7058
        %7390 = vmatmul.mubr.f32.gmra.mrb[0].mxu0 %v7057
        %v7391 = vpop.f32.mrb[0].mxu0
        %v7392 = vadd.f32 0.0, %v7391
        %v7393 = vpop.f32.mrb[0].mxu0
        %7394 = vmatprep.mubr.f32.mxu0 %v7060
        %7395 = vmatmul.mubr.f32.gmra.mrb[0].mxu0 %v7059
        %v7396 = vpop.f32.mrb[0].mxu0
        %v7397 = vadd.f32 0.0, %v7396
        %v7398 = vpop.f32.mrb[0].mxu0
        %7399 = vmatprep.mubr.f32.mxu0 %v7062
        %7400 = vmatmul.mubr.f32.gmra.mrb[0].mxu0 %v7061
        %v7401 = vpop.f32.mrb[0].mxu0
        %v7402 = vadd.f32 0.0, %v7401
        %v7403 = vpop.f32.mrb[0].mxu0
        %7404 = vmatprep.mubr.f32.mxu0 %v7064
        %7405 = vmatmul.mubr.f32.gmra.mrb[0].mxu0 %v7063
        %v7406 = vpop.f32.mrb[0].mxu0
        %v7407 = vadd.f32 0.0, %v7406
        %v7408 = vpop.f32.mrb[0].mxu0
        %7409 = vmatprep.mubr.f32.mxu0 %v7066
        %7410 = vmatmul.mubr.f32.gmra.mrb[0].mxu0 %v7065
        %v7411 = vpop.f32.mrb[0].mxu0
        %v7412 = vadd.f32 0.0, %v7411
        %v7413 = vpop.f32.mrb[0].mxu0
        %7414 = vmatprep.mubr.f32.mxu0 %v7068
        %7415 = vmatmul.mubr.f32.gmra.mrb[0].mxu0 %v7067
        %v7416 = vpop.f32.mrb[0].mxu0
        %v7417 = vadd.f32 0.0, %v7416
        %v7418 = vpop.f32.mrb[0].mxu0
        %7419 = vmatprep.mubr.f32.mxu0 %v7070
        %7420 = vmatmul.mubr.f32.gmra.mrb[0].mxu0 %v7069
        %v7421 = vpop.f32.mrb[0].mxu0
        %v7422 = vadd.f32 0.0, %v7421
        %v7423 = vpop.f32.mrb[0].mxu0
        %7424 = vmatprep.mubr.f32.mxu0 %v7072
        %7425 = vmatmul.mubr.f32.gmra.mrb[0].mxu0 %v7071
        %v7426 = vpop.f32.mrb[0].mxu0
        %v7427 = vadd.f32 0.0, %v7426
        %v7428 = vpop.f32.mrb[0].mxu0
        %7429 = vmatprep.mubr.f32.mxu0 %v7074
        %7430 = vmatmul.mubr.f32.gmra.mrb[0].mxu0 %v7073
        %v7431 = vpop.f32.mrb[0].mxu0
        %v7432 = vadd.f32 0.0, %v7431
        %v7433 = vpop.f32.mrb[0].mxu0
        %7434 = vmatprep.mubr.f32.mxu0 %v7076
        %7435 = vmatmul.mubr.f32.gmra.mrb[0].mxu0 %v7075
        %v7436 = vpop.f32.mrb[0].mxu0
        %v7437 = vadd.f32 0.0, %v7436
        %v7438 = vpop.f32.mrb[0].mxu0
        %7439 = vmatprep.mubr.f32.mxu0 %v7078
        %7440 = vmatmul.mubr.f32.gmra.mrb[0].mxu0 %v7077
        %v7441 = vpop.f32.mrb[0].mxu0
        %v7442 = vadd.f32 0.0, %v7441
        %v7443 = vpop.f32.mrb[0].mxu0
        %7444 = vmatprep.mubr.f32.mxu0 %v7080
        %7445 = vmatmul.mubr.f32.gmra.mrb[0].mxu0 %v7079
        %v7446 = vpop.f32.mrb[0].mxu0
        %v7447 = vadd.f32 0.0, %v7446
        %v7448 = vpop.f32.mrb[0].mxu0
        %7449 = vdwg.mxu0
        %7450 = vmatprep.subr.mxu0 0.0
        %7451 = vmatpush1.msra.mxu0 %v1824
        %7452 = vmatprep.subr.mxu0 0.0
        %7453 = vmatpush1.msra.mxu0 %v1825
        %7454 = vmatprep.subr.mxu0 0.0
        %7455 = vmatpush1.msra.mxu0 %v1826
        %7456 = vmatprep.subr.mxu0 0.0
        %7457 = vmatpush1.msra.mxu0 %v1827
        %7458 = vmatprep.subr.mxu0 0.0
        %7459 = vmatpush1.msra.mxu0 %v1828
        %7460 = vmatprep.subr.mxu0 0.0
        %7461 = vmatpush1.msra.mxu0 %v1829
        %7462 = vmatprep.subr.mxu0 0.0
        %7463 = vmatpush1.msra.mxu0 %v1830
        %7464 = vmatprep.subr.mxu0 0.0
        %7465 = vmatpush1.msra.mxu0 %v1831
        %7466 = vmatprep.subr.mxu0 0.0
        %7467 = vmatpush1.msra.mxu0 %v1832
        %7468 = vmatprep.subr.mxu0 0.0
        %7469 = vmatpush1.msra.mxu0 %v1833
        %7470 = vmatprep.subr.mxu0 0.0
        %7471 = vmatpush1.msra.mxu0 %v1834
        %7472 = vmatprep.subr.mxu0 0.0
        %7473 = vmatpush1.msra.mxu0 %v1835
        %7474 = vmatprep.subr.mxu0 0.0
        %7475 = vmatpush1.msra.mxu0 %v1836
        %7476 = vmatprep.subr.mxu0 0.0
        %7477 = vmatpush1.msra.mxu0 %v1837
        %7478 = vmatprep.subr.mxu0 0.0
        %7479 = vmatpush1.msra.mxu0 %v1838
        %7480 = vmatprep.subr.mxu0 0.0
        %7481 = vmatpush1.msra.mxu0 %v1839
        %7482 = vmatprep.subr.mxu0 0.0
        %7483 = vmatpush1.msra.mxu0 %v1840
        %7484 = vmatprep.subr.mxu0 0.0
        %7485 = vmatpush1.msra.mxu0 %v1841
        %7486 = vmatprep.subr.mxu0 0.0
        %7487 = vmatpush1.msra.mxu0 %v1842
        %7488 = vmatprep.subr.mxu0 0.0
        %7489 = vmatpush1.msra.mxu0 %v1843
        %7490 = vmatprep.subr.mxu0 0.0
        %7491 = vmatpush1.msra.mxu0 %v1844
        %7492 = vmatprep.subr.mxu0 0.0
        %7493 = vmatpush1.msra.mxu0 %v1845
        %7494 = vmatprep.subr.mxu0 0.0
        %7495 = vmatpush1.msra.mxu0 %v1846
        %7496 = vmatprep.subr.mxu0 0.0
        %7497 = vmatpush1.msra.mxu0 %v1847
        %7498 = vmatprep.subr.mxu0 0.0
        %7499 = vmatpush1.msra.mxu0 %v1848
        %7500 = vmatprep.subr.mxu0 0.0
        %7501 = vmatpush1.msra.mxu0 %v1849
        %7502 = vmatprep.subr.mxu0 0.0
        %7503 = vmatpush1.msra.mxu0 %v1850
        %7504 = vmatprep.subr.mxu0 0.0
        %7505 = vmatpush1.msra.mxu0 %v1851
        %7506 = vmatprep.subr.mxu0 0.0
        %7507 = vmatpush1.msra.mxu0 %v1852
        %7508 = vmatprep.subr.mxu0 0.0
        %7509 = vmatpush1.msra.mxu0 %v1853
        %7510 = vmatprep.subr.mxu0 0.0
        %7511 = vmatpush1.msra.mxu0 %v1854
        %7512 = vmatprep.subr.mxu0 0.0
        %7513 = vmatpush1.msra.mxu0 %v1855
        %7514 = vmatprep.mubr.f32.mxu0 %v7082
        %7515 = vmatmul.mubr.f32.gmra.mrb[0].mxu0 %v7081
        %v7516 = vpop.f32.mrb[0].mxu0
        %v7517 = vadd.f32 0.0, %v7516
        %v7518 = vpop.f32.mrb[0].mxu0
        %7519 = vmatprep.mubr.f32.mxu0 %v7084
        %7520 = vmatmul.mubr.f32.gmra.mrb[0].mxu0 %v7083
        %v7521 = vpop.f32.mrb[0].mxu0
        %v7522 = vadd.f32 0.0, %v7521
        %v7523 = vpop.f32.mrb[0].mxu0
        %7524 = vmatprep.mubr.f32.mxu0 %v7086
        %7525 = vmatmul.mubr.f32.gmra.mrb[0].mxu0 %v7085
        %v7526 = vpop.f32.mrb[0].mxu0
        %v7527 = vadd.f32 0.0, %v7526
        %v7528 = vpop.f32.mrb[0].mxu0
        %7529 = vmatprep.mubr.f32.mxu0 %v7088
        %7530 = vmatmul.mubr.f32.gmra.mrb[0].mxu0 %v7087
        %v7531 = vpop.f32.mrb[0].mxu0
        %v7532 = vadd.f32 0.0, %v7531
        %v7533 = vpop.f32.mrb[0].mxu0
        %7534 = vmatprep.mubr.f32.mxu0 %v7090
        %7535 = vmatmul.mubr.f32.gmra.mrb[0].mxu0 %v7089
        %v7536 = vpop.f32.mrb[0].mxu0
        %v7537 = vadd.f32 0.0, %v7536
        %v7538 = vpop.f32.mrb[0].mxu0
        %7539 = vmatprep.mubr.f32.mxu0 %v7092
        %7540 = vmatmul.mubr.f32.gmra.mrb[0].mxu0 %v7091
        %v7541 = vpop.f32.mrb[0].mxu0
        %v7542 = vadd.f32 0.0, %v7541
        %v7543 = vpop.f32.mrb[0].mxu0
        %7544 = vmatprep.mubr.f32.mxu0 %v7094
        %7545 = vmatmul.mubr.f32.gmra.mrb[0].mxu0 %v7093
        %v7546 = vpop.f32.mrb[0].mxu0
        %v7547 = vadd.f32 0.0, %v7546
        %v7548 = vpop.f32.mrb[0].mxu0
        %7549 = vmatprep.mubr.f32.mxu0 %v7096
        %7550 = vmatmul.mubr.f32.gmra.mrb[0].mxu0 %v7095
        %v7551 = vpop.f32.mrb[0].mxu0
        %v7552 = vadd.f32 0.0, %v7551
        %v7553 = vpop.f32.mrb[0].mxu0
        %7554 = vmatprep.mubr.f32.mxu0 %v7098
        %7555 = vmatmul.mubr.f32.gmra.mrb[0].mxu0 %v7097
        %v7556 = vpop.f32.mrb[0].mxu0
        %v7557 = vadd.f32 0.0, %v7556
        %v7558 = vpop.f32.mrb[0].mxu0
        %7559 = vmatprep.mubr.f32.mxu0 %v7100
        %7560 = vmatmul.mubr.f32.gmra.mrb[0].mxu0 %v7099
        %v7561 = vpop.f32.mrb[0].mxu0
        %v7562 = vadd.f32 0.0, %v7561
        %v7563 = vpop.f32.mrb[0].mxu0
        %7564 = vmatprep.mubr.f32.mxu0 %v7102
        %7565 = vmatmul.mubr.f32.gmra.mrb[0].mxu0 %v7101
        %v7566 = vpop.f32.mrb[0].mxu0
        %v7567 = vadd.f32 0.0, %v7566
        %v7568 = vpop.f32.mrb[0].mxu0
        %7569 = vmatprep.mubr.f32.mxu0 %v7104
        %7570 = vmatmul.mubr.f32.gmra.mrb[0].mxu0 %v7103
        %v7571 = vpop.f32.mrb[0].mxu0
        %v7572 = vadd.f32 0.0, %v7571
        %v7573 = vpop.f32.mrb[0].mxu0
        %7574 = vmatprep.mubr.f32.mxu0 %v7106
        %7575 = vmatmul.mubr.f32.gmra.mrb[0].mxu0 %v7105
        %v7576 = vpop.f32.mrb[0].mxu0
        %v7577 = vadd.f32 0.0, %v7576
        %v7578 = vpop.f32.mrb[0].mxu0
        %7579 = vmatprep.mubr.f32.mxu0 %v7108
        %7580 = vmatmul.mubr.f32.gmra.mrb[0].mxu0 %v7107
        %v7581 = vpop.f32.mrb[0].mxu0
        %v7582 = vadd.f32 0.0, %v7581
        %v7583 = vpop.f32.mrb[0].mxu0
        %7584 = vmatprep.mubr.f32.mxu0 %v7110
        %7585 = vmatmul.mubr.f32.gmra.mrb[0].mxu0 %v7109
        %v7586 = vpop.f32.mrb[0].mxu0
        %v7587 = vadd.f32 0.0, %v7586
        %v7588 = vpop.f32.mrb[0].mxu0
        %7589 = vmatprep.mubr.f32.mxu0 %v7112
        %7590 = vmatmul.mubr.f32.gmra.mrb[0].mxu0 %v7111
        %v7591 = vpop.f32.mrb[0].mxu0
        %v7592 = vadd.f32 0.0, %v7591
        %v7593 = vpop.f32.mrb[0].mxu0
        %7594 = vdwg.mxu0
        %7595 = vmatprep.subr.mxu0 0.0
        %7596 = vmatpush1.msra.mxu0 %v1856
        %7597 = vmatprep.subr.mxu0 0.0
        %7598 = vmatpush1.msra.mxu0 %v1857
        %7599 = vmatprep.subr.mxu0 0.0
        %7600 = vmatpush1.msra.mxu0 %v1858
        %7601 = vmatprep.subr.mxu0 0.0
        %7602 = vmatpush1.msra.mxu0 %v1859
        %7603 = vmatprep.subr.mxu0 0.0
        %7604 = vmatpush1.msra.mxu0 %v1860
        %7605 = vmatprep.subr.mxu0 0.0
        %7606 = vmatpush1.msra.mxu0 %v1861
        %7607 = vmatprep.subr.mxu0 0.0
        %7608 = vmatpush1.msra.mxu0 %v1862
        %7609 = vmatprep.subr.mxu0 0.0
        %7610 = vmatpush1.msra.mxu0 %v1863
        %7611 = vmatprep.subr.mxu0 0.0
        %7612 = vmatpush1.msra.mxu0 %v1864
        %7613 = vmatprep.subr.mxu0 0.0
        %7614 = vmatpush1.msra.mxu0 %v1865
        %7615 = vmatprep.subr.mxu0 0.0
        %7616 = vmatpush1.msra.mxu0 %v1866
        %7617 = vmatprep.subr.mxu0 0.0
        %7618 = vmatpush1.msra.mxu0 %v1867
        %7619 = vmatprep.subr.mxu0 0.0
        %7620 = vmatpush1.msra.mxu0 %v1868
        %7621 = vmatprep.subr.mxu0 0.0
        %7622 = vmatpush1.msra.mxu0 %v1869
        %7623 = vmatprep.subr.mxu0 0.0
        %7624 = vmatpush1.msra.mxu0 %v1870
        %7625 = vmatprep.subr.mxu0 0.0
        %7626 = vmatpush1.msra.mxu0 %v1871
        %7627 = vmatprep.subr.mxu0 0.0
        %7628 = vmatpush1.msra.mxu0 %v1872
        %7629 = vmatprep.subr.mxu0 0.0
        %7630 = vmatpush1.msra.mxu0 %v1873
        %7631 = vmatprep.subr.mxu0 0.0
        %7632 = vmatpush1.msra.mxu0 %v1874
        %7633 = vmatprep.subr.mxu0 0.0
        %7634 = vmatpush1.msra.mxu0 %v1875
        %7635 = vmatprep.subr.mxu0 0.0
        %7636 = vmatpush1.msra.mxu0 %v1876
        %7637 = vmatprep.subr.mxu0 0.0
        %7638 = vmatpush1.msra.mxu0 %v1877
        %7639 = vmatprep.subr.mxu0 0.0
        %7640 = vmatpush1.msra.mxu0 %v1878
        %7641 = vmatprep.subr.mxu0 0.0
        %7642 = vmatpush1.msra.mxu0 %v1879
        %7643 = vmatprep.subr.mxu0 0.0
        %7644 = vmatpush1.msra.mxu0 %v1880
        %7645 = vmatprep.subr.mxu0 0.0
        %7646 = vmatpush1.msra.mxu0 %v1881
        %7647 = vmatprep.subr.mxu0 0.0
        %7648 = vmatpush1.msra.mxu0 %v1882
        %7649 = vmatprep.subr.mxu0 0.0
        %7650 = vmatpush1.msra.mxu0 %v1883
        %7651 = vmatprep.subr.mxu0 0.0
        %7652 = vmatpush1.msra.mxu0 %v1884
        %7653 = vmatprep.subr.mxu0 0.0
        %7654 = vmatpush1.msra.mxu0 %v1885
        %7655 = vmatprep.subr.mxu0 0.0
        %7656 = vmatpush1.msra.mxu0 %v1886
        %7657 = vmatprep.subr.mxu0 0.0
        %7658 = vmatpush1.msra.mxu0 %v1887
        %7659 = vmatprep.mubr.f32.mxu0 %v7114
        %7660 = vmatmul.mubr.f32.gmra.mrb[0].mxu0 %v7113
        %v7661 = vpop.f32.mrb[0].mxu0
        %v7662 = vadd.f32 0.0, %v7661
        %v7663 = vpop.f32.mrb[0].mxu0
        %7664 = vmatprep.mubr.f32.mxu0 %v7116
        %7665 = vmatmul.mubr.f32.gmra.mrb[0].mxu0 %v7115
        %v7666 = vpop.f32.mrb[0].mxu0
        %v7667 = vadd.f32 0.0, %v7666
        %v7668 = vpop.f32.mrb[0].mxu0
        %7669 = vmatprep.mubr.f32.mxu0 %v7118
        %7670 = vmatmul.mubr.f32.gmra.mrb[0].mxu0 %v7117
        %v7671 = vpop.f32.mrb[0].mxu0
        %v7672 = vadd.f32 0.0, %v7671
        %v7673 = vpop.f32.mrb[0].mxu0
        %7674 = vmatprep.mubr.f32.mxu0 %v7120
        %7675 = vmatmul.mubr.f32.gmra.mrb[0].mxu0 %v7119
        %v7676 = vpop.f32.mrb[0].mxu0
        %v7677 = vadd.f32 0.0, %v7676
        %v7678 = vpop.f32.mrb[0].mxu0
        %7679 = vmatprep.mubr.f32.mxu0 %v7122
        %7680 = vmatmul.mubr.f32.gmra.mrb[0].mxu0 %v7121
        %v7681 = vpop.f32.mrb[0].mxu0
        %v7682 = vadd.f32 0.0, %v7681
        %v7683 = vpop.f32.mrb[0].mxu0
        %7684 = vmatprep.mubr.f32.mxu0 %v7124
        %7685 = vmatmul.mubr.f32.gmra.mrb[0].mxu0 %v7123
        %v7686 = vpop.f32.mrb[0].mxu0
        %v7687 = vadd.f32 0.0, %v7686
        %v7688 = vpop.f32.mrb[0].mxu0
        %7689 = vmatprep.mubr.f32.mxu0 %v7126
        %7690 = vmatmul.mubr.f32.gmra.mrb[0].mxu0 %v7125
        %v7691 = vpop.f32.mrb[0].mxu0
        %v7692 = vadd.f32 0.0, %v7691
        %v7693 = vpop.f32.mrb[0].mxu0
        %7694 = vmatprep.mubr.f32.mxu0 %v7128
        %7695 = vmatmul.mubr.f32.gmra.mrb[0].mxu0 %v7127
        %v7696 = vpop.f32.mrb[0].mxu0
        %v7697 = vadd.f32 0.0, %v7696
        %v7698 = vpop.f32.mrb[0].mxu0
        %7699 = vmatprep.mubr.f32.mxu0 %v7130
        %7700 = vmatmul.mubr.f32.gmra.mrb[0].mxu0 %v7129
        %v7701 = vpop.f32.mrb[0].mxu0
        %v7702 = vadd.f32 0.0, %v7701
        %v7703 = vpop.f32.mrb[0].mxu0
        %7704 = vmatprep.mubr.f32.mxu0 %v7132
        %7705 = vmatmul.mubr.f32.gmra.mrb[0].mxu0 %v7131
        %v7706 = vpop.f32.mrb[0].mxu0
        %v7707 = vadd.f32 0.0, %v7706
        %v7708 = vpop.f32.mrb[0].mxu0
        %7709 = vmatprep.mubr.f32.mxu0 %v7134
        %7710 = vmatmul.mubr.f32.gmra.mrb[0].mxu0 %v7133
        %v7711 = vpop.f32.mrb[0].mxu0
        %v7712 = vadd.f32 0.0, %v7711
        %v7713 = vpop.f32.mrb[0].mxu0
        %7714 = vmatprep.mubr.f32.mxu0 %v7136
        %7715 = vmatmul.mubr.f32.gmra.mrb[0].mxu0 %v7135
        %v7716 = vpop.f32.mrb[0].mxu0
        %v7717 = vadd.f32 0.0, %v7716
        %v7718 = vpop.f32.mrb[0].mxu0
        %7719 = vmatprep.mubr.f32.mxu0 %v7138
        %7720 = vmatmul.mubr.f32.gmra.mrb[0].mxu0 %v7137
        %v7721 = vpop.f32.mrb[0].mxu0
        %v7722 = vadd.f32 0.0, %v7721
        %v7723 = vpop.f32.mrb[0].mxu0
        %7724 = vmatprep.mubr.f32.mxu0 %v7140
        %7725 = vmatmul.mubr.f32.gmra.mrb[0].mxu0 %v7139
        %v7726 = vpop.f32.mrb[0].mxu0
        %v7727 = vadd.f32 0.0, %v7726
        %v7728 = vpop.f32.mrb[0].mxu0
        %7729 = vmatprep.mubr.f32.mxu0 %v7142
        %7730 = vmatmul.mubr.f32.gmra.mrb[0].mxu0 %v7141
        %v7731 = vpop.f32.mrb[0].mxu0
        %v7732 = vadd.f32 0.0, %v7731
        %v7733 = vpop.f32.mrb[0].mxu0
        %7734 = vmatprep.mubr.f32.mxu0 %v7144
        %7735 = vmatmul.mubr.f32.gmra.mrb[0].mxu0 %v7143
        %v7736 = vpop.f32.mrb[0].mxu0
        %v7737 = vadd.f32 0.0, %v7736
        %v7738 = vpop.f32.mrb[0].mxu0
        %7739 = vdwg.mxu0
        %7740 = vmatprep.subr.mxu0 0.0
        %7741 = vmatpush1.msra.mxu0 %v1888
        %7742 = vmatprep.subr.mxu0 0.0
        %7743 = vmatpush1.msra.mxu0 %v1889
        %7744 = vmatprep.subr.mxu0 0.0
        %7745 = vmatpush1.msra.mxu0 %v1890
        %7746 = vmatprep.subr.mxu0 0.0
        %7747 = vmatpush1.msra.mxu0 %v1891
        %7748 = vmatprep.subr.mxu0 0.0
        %7749 = vmatpush1.msra.mxu0 %v1892
        %7750 = vmatprep.subr.mxu0 0.0
        %7751 = vmatpush1.msra.mxu0 %v1893
        %7752 = vmatprep.subr.mxu0 0.0
        %7753 = vmatpush1.msra.mxu0 %v1894
        %7754 = vmatprep.subr.mxu0 0.0
        %7755 = vmatpush1.msra.mxu0 %v1895
        %7756 = vmatprep.subr.mxu0 0.0
        %7757 = vmatpush1.msra.mxu0 %v1896
        %7758 = vmatprep.subr.mxu0 0.0
        %7759 = vmatpush1.msra.mxu0 %v1897
        %7760 = vmatprep.subr.mxu0 0.0
        %7761 = vmatpush1.msra.mxu0 %v1898
        %7762 = vmatprep.subr.mxu0 0.0
        %7763 = vmatpush1.msra.mxu0 %v1899
        %7764 = vmatprep.subr.mxu0 0.0
        %7765 = vmatpush1.msra.mxu0 %v1900
        %7766 = vmatprep.subr.mxu0 0.0
        %7767 = vmatpush1.msra.mxu0 %v1901
        %7768 = vmatprep.subr.mxu0 0.0
        %7769 = vmatpush1.msra.mxu0 %v1902
        %7770 = vmatprep.subr.mxu0 0.0
        %7771 = vmatpush1.msra.mxu0 %v1903
        %7772 = vmatprep.subr.mxu0 0.0
        %7773 = vmatpush1.msra.mxu0 %v1904
        %7774 = vmatprep.subr.mxu0 0.0
        %7775 = vmatpush1.msra.mxu0 %v1905
        %7776 = vmatprep.subr.mxu0 0.0
        %7777 = vmatpush1.msra.mxu0 %v1906
        %7778 = vmatprep.subr.mxu0 0.0
        %7779 = vmatpush1.msra.mxu0 %v1907
        %7780 = vmatprep.subr.mxu0 0.0
        %7781 = vmatpush1.msra.mxu0 %v1908
        %7782 = vmatprep.subr.mxu0 0.0
        %7783 = vmatpush1.msra.mxu0 %v1909
        %7784 = vmatprep.subr.mxu0 0.0
        %7785 = vmatpush1.msra.mxu0 %v1910
        %7786 = vmatprep.subr.mxu0 0.0
        %7787 = vmatpush1.msra.mxu0 %v1911
        %7788 = vmatprep.subr.mxu0 0.0
        %7789 = vmatpush1.msra.mxu0 %v1912
        %7790 = vmatprep.subr.mxu0 0.0
        %7791 = vmatpush1.msra.mxu0 %v1913
        %7792 = vmatprep.subr.mxu0 0.0
        %7793 = vmatpush1.msra.mxu0 %v1914
        %7794 = vmatprep.subr.mxu0 0.0
        %7795 = vmatpush1.msra.mxu0 %v1915
        %7796 = vmatprep.subr.mxu0 0.0
        %7797 = vmatpush1.msra.mxu0 %v1916
        %7798 = vmatprep.subr.mxu0 0.0
        %7799 = vmatpush1.msra.mxu0 %v1917
        %7800 = vmatprep.subr.mxu0 0.0
        %7801 = vmatpush1.msra.mxu0 %v1918
        %7802 = vmatprep.subr.mxu0 0.0
        %7803 = vmatpush1.msra.mxu0 %v1919
        %7804 = vmatprep.mubr.f32.mxu0 %v7146
        %7805 = vmatmul.mubr.f32.gmra.mrb[0].mxu0 %v7145
        %v7806 = vpop.f32.mrb[0].mxu0
        %v7807 = vadd.f32 0.0, %v7806
        %v7808 = vpop.f32.mrb[0].mxu0
        %7809 = vmatprep.mubr.f32.mxu0 %v7148
        %7810 = vmatmul.mubr.f32.gmra.mrb[0].mxu0 %v7147
        %v7811 = vpop.f32.mrb[0].mxu0
        %v7812 = vadd.f32 0.0, %v7811
        %v7813 = vpop.f32.mrb[0].mxu0
        %7814 = vmatprep.mubr.f32.mxu0 %v7150
        %7815 = vmatmul.mubr.f32.gmra.mrb[0].mxu0 %v7149
        %v7816 = vpop.f32.mrb[0].mxu0
        %v7817 = vadd.f32 0.0, %v7816
        %v7818 = vpop.f32.mrb[0].mxu0
        %7819 = vmatprep.mubr.f32.mxu0 %v7152
        %7820 = vmatmul.mubr.f32.gmra.mrb[0].mxu0 %v7151
        %v7821 = vpop.f32.mrb[0].mxu0
        %v7822 = vadd.f32 0.0, %v7821
        %v7823 = vpop.f32.mrb[0].mxu0
        %7824 = vmatprep.mubr.f32.mxu0 %v7154
        %7825 = vmatmul.mubr.f32.gmra.mrb[0].mxu0 %v7153
        %v7826 = vpop.f32.mrb[0].mxu0
        %v7827 = vadd.f32 0.0, %v7826
        %v7828 = vpop.f32.mrb[0].mxu0
        %7829 = vmatprep.mubr.f32.mxu0 %v7156
        %7830 = vmatmul.mubr.f32.gmra.mrb[0].mxu0 %v7155
        %v7831 = vpop.f32.mrb[0].mxu0
        %v7832 = vadd.f32 0.0, %v7831
        %v7833 = vpop.f32.mrb[0].mxu0
        %7834 = vmatprep.mubr.f32.mxu0 %v7158
        %7835 = vmatmul.mubr.f32.gmra.mrb[0].mxu0 %v7157
        %v7836 = vpop.f32.mrb[0].mxu0
        %v7837 = vadd.f32 0.0, %v7836
        %v7838 = vpop.f32.mrb[0].mxu0
        %7839 = vmatprep.mubr.f32.mxu0 %v7160
        %7840 = vmatmul.mubr.f32.gmra.mrb[0].mxu0 %v7159
        %v7841 = vpop.f32.mrb[0].mxu0
        %v7842 = vadd.f32 0.0, %v7841
        %v7843 = vpop.f32.mrb[0].mxu0
        %7844 = vmatprep.mubr.f32.mxu0 %v7162
        %7845 = vmatmul.mubr.f32.gmra.mrb[0].mxu0 %v7161
        %v7846 = vpop.f32.mrb[0].mxu0
        %v7847 = vadd.f32 0.0, %v7846
        %v7848 = vpop.f32.mrb[0].mxu0
        %7849 = vmatprep.mubr.f32.mxu0 %v7164
        %7850 = vmatmul.mubr.f32.gmra.mrb[0].mxu0 %v7163
        %v7851 = vpop.f32.mrb[0].mxu0
        %v7852 = vadd.f32 0.0, %v7851
        %v7853 = vpop.f32.mrb[0].mxu0
        %7854 = vmatprep.mubr.f32.mxu0 %v7166
        %7855 = vmatmul.mubr.f32.gmra.mrb[0].mxu0 %v7165
        %v7856 = vpop.f32.mrb[0].mxu0
        %v7857 = vadd.f32 0.0, %v7856
        %v7858 = vpop.f32.mrb[0].mxu0
        %7859 = vmatprep.mubr.f32.mxu0 %v7168
        %7860 = vmatmul.mubr.f32.gmra.mrb[0].mxu0 %v7167
        %v7861 = vpop.f32.mrb[0].mxu0
        %v7862 = vadd.f32 0.0, %v7861
        %v7863 = vpop.f32.mrb[0].mxu0
        %7864 = vmatprep.mubr.f32.mxu0 %v7170
        %7865 = vmatmul.mubr.f32.gmra.mrb[0].mxu0 %v7169
        %v7866 = vpop.f32.mrb[0].mxu0
        %v7867 = vadd.f32 0.0, %v7866
        %v7868 = vpop.f32.mrb[0].mxu0
        %7869 = vmatprep.mubr.f32.mxu0 %v7172
        %7870 = vmatmul.mubr.f32.gmra.mrb[0].mxu0 %v7171
        %v7871 = vpop.f32.mrb[0].mxu0
        %v7872 = vadd.f32 0.0, %v7871
        %v7873 = vpop.f32.mrb[0].mxu0
        %7874 = vmatprep.mubr.f32.mxu0 %v7174
        %7875 = vmatmul.mubr.f32.gmra.mrb[0].mxu0 %v7173
        %v7876 = vpop.f32.mrb[0].mxu0
        %v7877 = vadd.f32 0.0, %v7876
        %v7878 = vpop.f32.mrb[0].mxu0
        %7879 = vmatprep.mubr.f32.mxu0 %v7176
        %7880 = vmatmul.mubr.f32.gmra.mrb[0].mxu0 %v7175
        %v7881 = vpop.f32.mrb[0].mxu0
        %v7882 = vadd.f32 0.0, %v7881
        %v7883 = vpop.f32.mrb[0].mxu0
        %7884 = vdwg.mxu0
        %7885 = vmatprep.subr.mxu0 0.0
        %7886 = vmatpush1.msra.mxu0 %v1920
        %7887 = vmatprep.subr.mxu0 0.0
        %7888 = vmatpush1.msra.mxu0 %v1921
        %7889 = vmatprep.subr.mxu0 0.0
        %7890 = vmatpush1.msra.mxu0 %v1922
        %7891 = vmatprep.subr.mxu0 0.0
        %7892 = vmatpush1.msra.mxu0 %v1923
        %7893 = vmatprep.subr.mxu0 0.0
        %7894 = vmatpush1.msra.mxu0 %v1924
        %7895 = vmatprep.subr.mxu0 0.0
        %7896 = vmatpush1.msra.mxu0 %v1925
        %7897 = vmatprep.subr.mxu0 0.0
        %7898 = vmatpush1.msra.mxu0 %v1926
        %7899 = vmatprep.subr.mxu0 0.0
        %7900 = vmatpush1.msra.mxu0 %v1927
        %7901 = vmatprep.subr.mxu0 0.0
        %7902 = vmatpush1.msra.mxu0 %v1928
        %7903 = vmatprep.subr.mxu0 0.0
        %7904 = vmatpush1.msra.mxu0 %v1929
        %7905 = vmatprep.subr.mxu0 0.0
        %7906 = vmatpush1.msra.mxu0 %v1930
        %7907 = vmatprep.subr.mxu0 0.0
        %7908 = vmatpush1.msra.mxu0 %v1931
        %7909 = vmatprep.subr.mxu0 0.0
        %7910 = vmatpush1.msra.mxu0 %v1932
        %7911 = vmatprep.subr.mxu0 0.0
        %7912 = vmatpush1.msra.mxu0 %v1933
        %7913 = vmatprep.subr.mxu0 0.0
        %7914 = vmatpush1.msra.mxu0 %v1934
        %7915 = vmatprep.subr.mxu0 0.0
        %7916 = vmatpush1.msra.mxu0 %v1935
        %7917 = vmatprep.subr.mxu0 0.0
        %7918 = vmatpush1.msra.mxu0 %v1936
        %7919 = vmatprep.subr.mxu0 0.0
        %7920 = vmatpush1.msra.mxu0 %v1937
        %7921 = vmatprep.subr.mxu0 0.0
        %7922 = vmatpush1.msra.mxu0 %v1938
        %7923 = vmatprep.subr.mxu0 0.0
        %7924 = vmatpush1.msra.mxu0 %v1939
        %7925 = vmatprep.subr.mxu0 0.0
        %7926 = vmatpush1.msra.mxu0 %v1940
        %7927 = vmatprep.subr.mxu0 0.0
        %7928 = vmatpush1.msra.mxu0 %v1941
        %7929 = vmatprep.subr.mxu0 0.0
        %7930 = vmatpush1.msra.mxu0 %v1942
        %7931 = vmatprep.subr.mxu0 0.0
        %7932 = vmatpush1.msra.mxu0 %v1943
        %7933 = vmatprep.subr.mxu0 0.0
        %7934 = vmatpush1.msra.mxu0 %v1944
        %7935 = vmatprep.subr.mxu0 0.0
        %7936 = vmatpush1.msra.mxu0 %v1945
        %7937 = vmatprep.subr.mxu0 0.0
        %7938 = vmatpush1.msra.mxu0 %v1946
        %7939 = vmatprep.subr.mxu0 0.0
        %7940 = vmatpush1.msra.mxu0 %v1947
        %7941 = vmatprep.subr.mxu0 0.0
        %7942 = vmatpush1.msra.mxu0 %v1948
        %7943 = vmatprep.subr.mxu0 0.0
        %7944 = vmatpush1.msra.mxu0 %v1949
        %7945 = vmatprep.subr.mxu0 0.0
        %7946 = vmatpush1.msra.mxu0 %v1950
        %7947 = vmatprep.subr.mxu0 0.0
        %7948 = vmatpush1.msra.mxu0 %v1951
        %7949 = vmatprep.mubr.f32.mxu0 %v7178
        %7950 = vmatmul.mubr.f32.gmra.mrb[0].mxu0 %v7177
        %v7951 = vpop.f32.mrb[0].mxu0
        %v7952 = vadd.f32 0.0, %v7951
        %v7953 = vpop.f32.mrb[0].mxu0
        %7954 = vmatprep.mubr.f32.mxu0 %v7180
        %7955 = vmatmul.mubr.f32.gmra.mrb[0].mxu0 %v7179
        %v7956 = vpop.f32.mrb[0].mxu0
        %v7957 = vadd.f32 0.0, %v7956
        %v7958 = vpop.f32.mrb[0].mxu0
        %7959 = vmatprep.mubr.f32.mxu0 %v7182
        %7960 = vmatmul.mubr.f32.gmra.mrb[0].mxu0 %v7181
        %v7961 = vpop.f32.mrb[0].mxu0
        %v7962 = vadd.f32 0.0, %v7961
        %v7963 = vpop.f32.mrb[0].mxu0
        %7964 = vmatprep.mubr.f32.mxu0 %v7184
        %7965 = vmatmul.mubr.f32.gmra.mrb[0].mxu0 %v7183
        %v7966 = vpop.f32.mrb[0].mxu0
        %v7967 = vadd.f32 0.0, %v7966
        %v7968 = vpop.f32.mrb[0].mxu0
        %7969 = vmatprep.mubr.f32.mxu0 %v7186
        %7970 = vmatmul.mubr.f32.gmra.mrb[0].mxu0 %v7185
        %v7971 = vpop.f32.mrb[0].mxu0
        %v7972 = vadd.f32 0.0, %v7971
        %v7973 = vpop.f32.mrb[0].mxu0
        %7974 = vmatprep.mubr.f32.mxu0 %v7188
        %7975 = vmatmul.mubr.f32.gmra.mrb[0].mxu0 %v7187
        %v7976 = vpop.f32.mrb[0].mxu0
        %v7977 = vadd.f32 0.0, %v7976
        %v7978 = vpop.f32.mrb[0].mxu0
        %7979 = vmatprep.mubr.f32.mxu0 %v7190
        %7980 = vmatmul.mubr.f32.gmra.mrb[0].mxu0 %v7189
        %v7981 = vpop.f32.mrb[0].mxu0
        %v7982 = vadd.f32 0.0, %v7981
        %v7983 = vpop.f32.mrb[0].mxu0
        %7984 = vmatprep.mubr.f32.mxu0 %v7192
        %7985 = vmatmul.mubr.f32.gmra.mrb[0].mxu0 %v7191
        %v7986 = vpop.f32.mrb[0].mxu0
        %v7987 = vadd.f32 0.0, %v7986
        %v7988 = vpop.f32.mrb[0].mxu0
        %7989 = vmatprep.mubr.f32.mxu0 %v7194
        %7990 = vmatmul.mubr.f32.gmra.mrb[0].mxu0 %v7193
        %v7991 = vpop.f32.mrb[0].mxu0
        %v7992 = vadd.f32 0.0, %v7991
        %v7993 = vpop.f32.mrb[0].mxu0
        %7994 = vmatprep.mubr.f32.mxu0 %v7196
        %7995 = vmatmul.mubr.f32.gmra.mrb[0].mxu0 %v7195
        %v7996 = vpop.f32.mrb[0].mxu0
        %v7997 = vadd.f32 0.0, %v7996
        %v7998 = vpop.f32.mrb[0].mxu0
        %7999 = vmatprep.mubr.f32.mxu0 %v7198
        %8000 = vmatmul.mubr.f32.gmra.mrb[0].mxu0 %v7197
        %v8001 = vpop.f32.mrb[0].mxu0
        %v8002 = vadd.f32 0.0, %v8001
        %v8003 = vpop.f32.mrb[0].mxu0
        %8004 = vmatprep.mubr.f32.mxu0 %v7200
        %8005 = vmatmul.mubr.f32.gmra.mrb[0].mxu0 %v7199
        %v8006 = vpop.f32.mrb[0].mxu0
        %v8007 = vadd.f32 0.0, %v8006
        %v8008 = vpop.f32.mrb[0].mxu0
        %8009 = vmatprep.mubr.f32.mxu0 %v7202
        %8010 = vmatmul.mubr.f32.gmra.mrb[0].mxu0 %v7201
        %v8011 = vpop.f32.mrb[0].mxu0
        %v8012 = vadd.f32 0.0, %v8011
        %v8013 = vpop.f32.mrb[0].mxu0
        %8014 = vmatprep.mubr.f32.mxu0 %v7204
        %8015 = vmatmul.mubr.f32.gmra.mrb[0].mxu0 %v7203
        %v8016 = vpop.f32.mrb[0].mxu0
        %v8017 = vadd.f32 0.0, %v8016
        %v8018 = vpop.f32.mrb[0].mxu0
        %8019 = vmatprep.mubr.f32.mxu0 %v7206
        %8020 = vmatmul.mubr.f32.gmra.mrb[0].mxu0 %v7205
        %v8021 = vpop.f32.mrb[0].mxu0
        %v8022 = vadd.f32 0.0, %v8021
        %v8023 = vpop.f32.mrb[0].mxu0
        %8024 = vmatprep.mubr.f32.mxu0 %v7208
        %8025 = vmatmul.mubr.f32.gmra.mrb[0].mxu0 %v7207
        %v8026 = vpop.f32.mrb[0].mxu0
        %v8027 = vadd.f32 0.0, %v8026
        %v8028 = vpop.f32.mrb[0].mxu0
        %8029 = vdwg.mxu0
        %8030 = vmatprep.subr.mxu0 0.0
        %8031 = vmatpush1.msra.mxu0 %v1952
        %8032 = vmatprep.subr.mxu0 0.0
        %8033 = vmatpush1.msra.mxu0 %v1953
        %8034 = vmatprep.subr.mxu0 0.0
        %8035 = vmatpush1.msra.mxu0 %v1954
        %8036 = vmatprep.subr.mxu0 0.0
        %8037 = vmatpush1.msra.mxu0 %v1955
        %8038 = vmatprep.subr.mxu0 0.0
        %8039 = vmatpush1.msra.mxu0 %v1956
        %8040 = vmatprep.subr.mxu0 0.0
        %8041 = vmatpush1.msra.mxu0 %v1957
        %8042 = vmatprep.subr.mxu0 0.0
        %8043 = vmatpush1.msra.mxu0 %v1958
        %8044 = vmatprep.subr.mxu0 0.0
        %8045 = vmatpush1.msra.mxu0 %v1959
        %8046 = vmatprep.subr.mxu0 0.0
        %8047 = vmatpush1.msra.mxu0 %v1960
        %8048 = vmatprep.subr.mxu0 0.0
        %8049 = vmatpush1.msra.mxu0 %v1961
        %8050 = vmatprep.subr.mxu0 0.0
        %8051 = vmatpush1.msra.mxu0 %v1962
        %8052 = vmatprep.subr.mxu0 0.0
        %8053 = vmatpush1.msra.mxu0 %v1963
        %8054 = vmatprep.subr.mxu0 0.0
        %8055 = vmatpush1.msra.mxu0 %v1964
        %8056 = vmatprep.subr.mxu0 0.0
        %8057 = vmatpush1.msra.mxu0 %v1965
        %8058 = vmatprep.subr.mxu0 0.0
        %8059 = vmatpush1.msra.mxu0 %v1966
        %8060 = vmatprep.subr.mxu0 0.0
        %8061 = vmatpush1.msra.mxu0 %v1967
        %8062 = vmatprep.subr.mxu0 0.0
        %8063 = vmatpush1.msra.mxu0 %v1968
        %8064 = vmatprep.subr.mxu0 0.0
        %8065 = vmatpush1.msra.mxu0 %v1969
        %8066 = vmatprep.subr.mxu0 0.0
        %8067 = vmatpush1.msra.mxu0 %v1970
        %8068 = vmatprep.subr.mxu0 0.0
        %8069 = vmatpush1.msra.mxu0 %v1971
        %8070 = vmatprep.subr.mxu0 0.0
        %8071 = vmatpush1.msra.mxu0 %v1972
        %8072 = vmatprep.subr.mxu0 0.0
        %8073 = vmatpush1.msra.mxu0 %v1973
        %8074 = vmatprep.subr.mxu0 0.0
        %8075 = vmatpush1.msra.mxu0 %v1974
        %8076 = vmatprep.subr.mxu0 0.0
        %8077 = vmatpush1.msra.mxu0 %v1975
        %8078 = vmatprep.subr.mxu0 0.0
        %8079 = vmatpush1.msra.mxu0 %v1976
        %8080 = vmatprep.subr.mxu0 0.0
        %8081 = vmatpush1.msra.mxu0 %v1977
        %8082 = vmatprep.subr.mxu0 0.0
        %8083 = vmatpush1.msra.mxu0 %v1978
        %8084 = vmatprep.subr.mxu0 0.0
        %8085 = vmatpush1.msra.mxu0 %v1979
        %8086 = vmatprep.subr.mxu0 0.0
        %8087 = vmatpush1.msra.mxu0 %v1980
        %8088 = vmatprep.subr.mxu0 0.0
        %8089 = vmatpush1.msra.mxu0 %v1981
        %8090 = vmatprep.subr.mxu0 0.0
        %8091 = vmatpush1.msra.mxu0 %v1982
        %8092 = vmatprep.subr.mxu0 0.0
        %8093 = vmatpush1.msra.mxu0 %v1983
        %8094 = vmatprep.mubr.f32.mxu0 %v7210
        %8095 = vmatmul.mubr.f32.gmra.mrb[0].mxu0 %v7209
        %v8096 = vpop.f32.mrb[0].mxu0
        %v8097 = vadd.f32 0.0, %v8096
        %v8098 = vpop.f32.mrb[0].mxu0
        %8099 = vmatprep.mubr.f32.mxu0 %v7212
        %8100 = vmatmul.mubr.f32.gmra.mrb[0].mxu0 %v7211
        %v8101 = vpop.f32.mrb[0].mxu0
        %v8102 = vadd.f32 0.0, %v8101
        %v8103 = vpop.f32.mrb[0].mxu0
        %8104 = vmatprep.mubr.f32.mxu0 %v7214
        %8105 = vmatmul.mubr.f32.gmra.mrb[0].mxu0 %v7213
        %v8106 = vpop.f32.mrb[0].mxu0
        %v8107 = vadd.f32 0.0, %v8106
        %v8108 = vpop.f32.mrb[0].mxu0
        %8109 = vmatprep.mubr.f32.mxu0 %v7216
        %8110 = vmatmul.mubr.f32.gmra.mrb[0].mxu0 %v7215
        %v8111 = vpop.f32.mrb[0].mxu0
        %v8112 = vadd.f32 0.0, %v8111
        %v8113 = vpop.f32.mrb[0].mxu0
        %8114 = vmatprep.mubr.f32.mxu0 %v7218
        %8115 = vmatmul.mubr.f32.gmra.mrb[0].mxu0 %v7217
        %v8116 = vpop.f32.mrb[0].mxu0
        %v8117 = vadd.f32 0.0, %v8116
        %v8118 = vpop.f32.mrb[0].mxu0
        %8119 = vmatprep.mubr.f32.mxu0 %v7220
        %8120 = vmatmul.mubr.f32.gmra.mrb[0].mxu0 %v7219
        %v8121 = vpop.f32.mrb[0].mxu0
        %v8122 = vadd.f32 0.0, %v8121
        %v8123 = vpop.f32.mrb[0].mxu0
        %8124 = vmatprep.mubr.f32.mxu0 %v7222
        %8125 = vmatmul.mubr.f32.gmra.mrb[0].mxu0 %v7221
        %v8126 = vpop.f32.mrb[0].mxu0
        %v8127 = vadd.f32 0.0, %v8126
        %v8128 = vpop.f32.mrb[0].mxu0
        %8129 = vmatprep.mubr.f32.mxu0 %v7224
        %8130 = vmatmul.mubr.f32.gmra.mrb[0].mxu0 %v7223
        %v8131 = vpop.f32.mrb[0].mxu0
        %v8132 = vadd.f32 0.0, %v8131
        %v8133 = vpop.f32.mrb[0].mxu0
        %8134 = vmatprep.mubr.f32.mxu0 %v7226
        %8135 = vmatmul.mubr.f32.gmra.mrb[0].mxu0 %v7225
        %v8136 = vpop.f32.mrb[0].mxu0
        %v8137 = vadd.f32 0.0, %v8136
        %v8138 = vpop.f32.mrb[0].mxu0
        %8139 = vmatprep.mubr.f32.mxu0 %v7228
        %8140 = vmatmul.mubr.f32.gmra.mrb[0].mxu0 %v7227
        %v8141 = vpop.f32.mrb[0].mxu0
        %v8142 = vadd.f32 0.0, %v8141
        %v8143 = vpop.f32.mrb[0].mxu0
        %8144 = vmatprep.mubr.f32.mxu0 %v7230
        %8145 = vmatmul.mubr.f32.gmra.mrb[0].mxu0 %v7229
        %v8146 = vpop.f32.mrb[0].mxu0
        %v8147 = vadd.f32 0.0, %v8146
        %v8148 = vpop.f32.mrb[0].mxu0
        %8149 = vmatprep.mubr.f32.mxu0 %v7232
        %8150 = vmatmul.mubr.f32.gmra.mrb[0].mxu0 %v7231
        %v8151 = vpop.f32.mrb[0].mxu0
        %v8152 = vadd.f32 0.0, %v8151
        %v8153 = vpop.f32.mrb[0].mxu0
        %8154 = vmatprep.mubr.f32.mxu0 %v7234
        %8155 = vmatmul.mubr.f32.gmra.mrb[0].mxu0 %v7233
        %v8156 = vpop.f32.mrb[0].mxu0
        %v8157 = vadd.f32 0.0, %v8156
        %v8158 = vpop.f32.mrb[0].mxu0
        %8159 = vmatprep.mubr.f32.mxu0 %v7236
        %8160 = vmatmul.mubr.f32.gmra.mrb[0].mxu0 %v7235
        %v8161 = vpop.f32.mrb[0].mxu0
        %v8162 = vadd.f32 0.0, %v8161
        %v8163 = vpop.f32.mrb[0].mxu0
        %8164 = vmatprep.mubr.f32.mxu0 %v7238
        %8165 = vmatmul.mubr.f32.gmra.mrb[0].mxu0 %v7237
        %v8166 = vpop.f32.mrb[0].mxu0
        %v8167 = vadd.f32 0.0, %v8166
        %v8168 = vpop.f32.mrb[0].mxu0
        %8169 = vmatprep.mubr.f32.mxu0 %v7240
        %8170 = vmatmul.mubr.f32.gmra.mrb[0].mxu0 %v7239
        %v8171 = vpop.f32.mrb[0].mxu0
        %v8172 = vadd.f32 0.0, %v8171
        %v8173 = vpop.f32.mrb[0].mxu0
        %8174 = vdwg.mxu0
        %8175 = vmatprep.subr.mxu0 0.0
        %8176 = vmatpush1.msra.mxu0 %v1984
        %8177 = vmatprep.subr.mxu0 0.0
        %8178 = vmatpush1.msra.mxu0 %v1985
        %8179 = vmatprep.subr.mxu0 0.0
        %8180 = vmatpush1.msra.mxu0 %v1986
        %8181 = vmatprep.subr.mxu0 0.0
        %8182 = vmatpush1.msra.mxu0 %v1987
        %8183 = vmatprep.subr.mxu0 0.0
        %8184 = vmatpush1.msra.mxu0 %v1988
        %8185 = vmatprep.subr.mxu0 0.0
        %8186 = vmatpush1.msra.mxu0 %v1989
        %8187 = vmatprep.subr.mxu0 0.0
        %8188 = vmatpush1.msra.mxu0 %v1990
        %8189 = vmatprep.subr.mxu0 0.0
        %8190 = vmatpush1.msra.mxu0 %v1991
        %8191 = vmatprep.subr.mxu0 0.0
        %8192 = vmatpush1.msra.mxu0 %v1992
        %8193 = vmatprep.subr.mxu0 0.0
        %8194 = vmatpush1.msra.mxu0 %v1993
        %8195 = vmatprep.subr.mxu0 0.0
        %8196 = vmatpush1.msra.mxu0 %v1994
        %8197 = vmatprep.subr.mxu0 0.0
        %8198 = vmatpush1.msra.mxu0 %v1995
        %8199 = vmatprep.subr.mxu0 0.0
        %8200 = vmatpush1.msra.mxu0 %v1996
        %8201 = vmatprep.subr.mxu0 0.0
        %8202 = vmatpush1.msra.mxu0 %v1997
        %8203 = vmatprep.subr.mxu0 0.0
        %8204 = vmatpush1.msra.mxu0 %v1998
        %8205 = vmatprep.subr.mxu0 0.0
        %8206 = vmatpush1.msra.mxu0 %v1999
        %8207 = vmatprep.subr.mxu0 0.0
        %8208 = vmatpush1.msra.mxu0 %v2000
        %8209 = vmatprep.subr.mxu0 0.0
        %8210 = vmatpush1.msra.mxu0 %v2001
        %8211 = vmatprep.subr.mxu0 0.0
        %8212 = vmatpush1.msra.mxu0 %v2002
        %8213 = vmatprep.subr.mxu0 0.0
        %8214 = vmatpush1.msra.mxu0 %v2003
        %8215 = vmatprep.subr.mxu0 0.0
        %8216 = vmatpush1.msra.mxu0 %v2004
        %8217 = vmatprep.subr.mxu0 0.0
        %8218 = vmatpush1.msra.mxu0 %v2005
        %8219 = vmatprep.subr.mxu0 0.0
        %8220 = vmatpush1.msra.mxu0 %v2006
        %8221 = vmatprep.subr.mxu0 0.0
        %8222 = vmatpush1.msra.mxu0 %v2007
        %8223 = vmatprep.subr.mxu0 0.0
        %8224 = vmatpush1.msra.mxu0 %v2008
        %8225 = vmatprep.subr.mxu0 0.0
        %8226 = vmatpush1.msra.mxu0 %v2009
        %8227 = vmatprep.subr.mxu0 0.0
        %8228 = vmatpush1.msra.mxu0 %v2010
        %8229 = vmatprep.subr.mxu0 0.0
        %8230 = vmatpush1.msra.mxu0 %v2011
        %8231 = vmatprep.subr.mxu0 0.0
        %8232 = vmatpush1.msra.mxu0 %v2012
        %8233 = vmatprep.subr.mxu0 0.0
        %8234 = vmatpush1.msra.mxu0 %v2013
        %8235 = vmatprep.subr.mxu0 0.0
        %8236 = vmatpush1.msra.mxu0 %v2014
        %8237 = vmatprep.subr.mxu0 0.0
        %8238 = vmatpush1.msra.mxu0 %v2015
        %8239 = vmatprep.mubr.f32.mxu0 %v7242
        %8240 = vmatmul.mubr.f32.gmra.mrb[0].mxu0 %v7241
        %v8241 = vpop.f32.mrb[0].mxu0
        %v8242 = vadd.f32 0.0, %v8241
        %v8243 = vpop.f32.mrb[0].mxu0
        %8244 = vmatprep.mubr.f32.mxu0 %v7244
        %8245 = vmatmul.mubr.f32.gmra.mrb[0].mxu0 %v7243
        %v8246 = vpop.f32.mrb[0].mxu0
        %v8247 = vadd.f32 0.0, %v8246
        %v8248 = vpop.f32.mrb[0].mxu0
        %8249 = vmatprep.mubr.f32.mxu0 %v7246
        %8250 = vmatmul.mubr.f32.gmra.mrb[0].mxu0 %v7245
        %v8251 = vpop.f32.mrb[0].mxu0
        %v8252 = vadd.f32 0.0, %v8251
        %v8253 = vpop.f32.mrb[0].mxu0
        %8254 = vmatprep.mubr.f32.mxu0 %v7248
        %8255 = vmatmul.mubr.f32.gmra.mrb[0].mxu0 %v7247
        %v8256 = vpop.f32.mrb[0].mxu0
        %v8257 = vadd.f32 0.0, %v8256
        %v8258 = vpop.f32.mrb[0].mxu0
        %8259 = vmatprep.mubr.f32.mxu0 %v7250
        %8260 = vmatmul.mubr.f32.gmra.mrb[0].mxu0 %v7249
        %v8261 = vpop.f32.mrb[0].mxu0
        %v8262 = vadd.f32 0.0, %v8261
        %v8263 = vpop.f32.mrb[0].mxu0
        %8264 = vmatprep.mubr.f32.mxu0 %v7252
        %8265 = vmatmul.mubr.f32.gmra.mrb[0].mxu0 %v7251
        %v8266 = vpop.f32.mrb[0].mxu0
        %v8267 = vadd.f32 0.0, %v8266
        %v8268 = vpop.f32.mrb[0].mxu0
        %8269 = vmatprep.mubr.f32.mxu0 %v7254
        %8270 = vmatmul.mubr.f32.gmra.mrb[0].mxu0 %v7253
        %v8271 = vpop.f32.mrb[0].mxu0
        %v8272 = vadd.f32 0.0, %v8271
        %v8273 = vpop.f32.mrb[0].mxu0
        %8274 = vmatprep.mubr.f32.mxu0 %v7256
        %8275 = vmatmul.mubr.f32.gmra.mrb[0].mxu0 %v7255
        %v8276 = vpop.f32.mrb[0].mxu0
        %v8277 = vadd.f32 0.0, %v8276
        %v8278 = vpop.f32.mrb[0].mxu0
        %8279 = vmatprep.mubr.f32.mxu0 %v7258
        %8280 = vmatmul.mubr.f32.gmra.mrb[0].mxu0 %v7257
        %v8281 = vpop.f32.mrb[0].mxu0
        %v8282 = vadd.f32 0.0, %v8281
        %v8283 = vpop.f32.mrb[0].mxu0
        %8284 = vmatprep.mubr.f32.mxu0 %v7260
        %8285 = vmatmul.mubr.f32.gmra.mrb[0].mxu0 %v7259
        %v8286 = vpop.f32.mrb[0].mxu0
        %v8287 = vadd.f32 0.0, %v8286
        %v8288 = vpop.f32.mrb[0].mxu0
        %8289 = vmatprep.mubr.f32.mxu0 %v7262
        %8290 = vmatmul.mubr.f32.gmra.mrb[0].mxu0 %v7261
        %v8291 = vpop.f32.mrb[0].mxu0
        %v8292 = vadd.f32 0.0, %v8291
        %v8293 = vpop.f32.mrb[0].mxu0
        %8294 = vmatprep.mubr.f32.mxu0 %v7264
        %8295 = vmatmul.mubr.f32.gmra.mrb[0].mxu0 %v7263
        %v8296 = vpop.f32.mrb[0].mxu0
        %v8297 = vadd.f32 0.0, %v8296
        %v8298 = vpop.f32.mrb[0].mxu0
        %8299 = vmatprep.mubr.f32.mxu0 %v7266
        %8300 = vmatmul.mubr.f32.gmra.mrb[0].mxu0 %v7265
        %v8301 = vpop.f32.mrb[0].mxu0
        %v8302 = vadd.f32 0.0, %v8301
        %v8303 = vpop.f32.mrb[0].mxu0
        %8304 = vmatprep.mubr.f32.mxu0 %v7268
        %8305 = vmatmul.mubr.f32.gmra.mrb[0].mxu0 %v7267
        %v8306 = vpop.f32.mrb[0].mxu0
        %v8307 = vadd.f32 0.0, %v8306
        %v8308 = vpop.f32.mrb[0].mxu0
        %8309 = vmatprep.mubr.f32.mxu0 %v7270
        %8310 = vmatmul.mubr.f32.gmra.mrb[0].mxu0 %v7269
        %v8311 = vpop.f32.mrb[0].mxu0
        %v8312 = vadd.f32 0.0, %v8311
        %v8313 = vpop.f32.mrb[0].mxu0
        %8314 = vmatprep.mubr.f32.mxu0 %v7272
        %8315 = vmatmul.mubr.f32.gmra.mrb[0].mxu0 %v7271
        %v8316 = vpop.f32.mrb[0].mxu0
        %v8317 = vadd.f32 0.0, %v8316
        %v8318 = vpop.f32.mrb[0].mxu0
        %8319 = vdwg.mxu0
        %8320 = vmatprep.subr.mxu0 0.0
        %8321 = vmatpush1.msra.mxu0 %v2016
        %8322 = vmatprep.subr.mxu0 0.0
        %8323 = vmatpush1.msra.mxu0 %v2017
        %8324 = vmatprep.subr.mxu0 0.0
        %8325 = vmatpush1.msra.mxu0 %v2018
        %8326 = vmatprep.subr.mxu0 0.0
        %8327 = vmatpush1.msra.mxu0 %v2019
        %8328 = vmatprep.subr.mxu0 0.0
        %8329 = vmatpush1.msra.mxu0 %v2020
        %8330 = vmatprep.subr.mxu0 0.0
        %8331 = vmatpush1.msra.mxu0 %v2021
        %8332 = vmatprep.subr.mxu0 0.0
        %8333 = vmatpush1.msra.mxu0 %v2022
        %8334 = vmatprep.subr.mxu0 0.0
        %8335 = vmatpush1.msra.mxu0 %v2023
        %8336 = vmatprep.subr.mxu0 0.0
        %8337 = vmatpush1.msra.mxu0 %v2024
        %8338 = vmatprep.subr.mxu0 0.0
        %8339 = vmatpush1.msra.mxu0 %v2025
        %8340 = vmatprep.subr.mxu0 0.0
        %8341 = vmatpush1.msra.mxu0 %v2026
        %8342 = vmatprep.subr.mxu0 0.0
        %8343 = vmatpush1.msra.mxu0 %v2027
        %8344 = vmatprep.subr.mxu0 0.0
        %8345 = vmatpush1.msra.mxu0 %v2028
        %8346 = vmatprep.subr.mxu0 0.0
        %8347 = vmatpush1.msra.mxu0 %v2029
        %8348 = vmatprep.subr.mxu0 0.0
        %8349 = vmatpush1.msra.mxu0 %v2030
        %8350 = vmatprep.subr.mxu0 0.0
        %8351 = vmatpush1.msra.mxu0 %v2031
        %8352 = vmatprep.subr.mxu0 0.0
        %8353 = vmatpush1.msra.mxu0 %v2032
        %8354 = vmatprep.subr.mxu0 0.0
        %8355 = vmatpush1.msra.mxu0 %v2033
        %8356 = vmatprep.subr.mxu0 0.0
        %8357 = vmatpush1.msra.mxu0 %v2034
        %8358 = vmatprep.subr.mxu0 0.0
        %8359 = vmatpush1.msra.mxu0 %v2035
        %8360 = vmatprep.subr.mxu0 0.0
        %8361 = vmatpush1.msra.mxu0 %v2036
        %8362 = vmatprep.subr.mxu0 0.0
        %8363 = vmatpush1.msra.mxu0 %v2037
        %8364 = vmatprep.subr.mxu0 0.0
        %8365 = vmatpush1.msra.mxu0 %v2038
        %8366 = vmatprep.subr.mxu0 0.0
        %8367 = vmatpush1.msra.mxu0 %v2039
        %8368 = vmatprep.subr.mxu0 0.0
        %8369 = vmatpush1.msra.mxu0 %v2040
        %8370 = vmatprep.subr.mxu0 0.0
        %8371 = vmatpush1.msra.mxu0 %v2041
        %8372 = vmatprep.subr.mxu0 0.0
        %8373 = vmatpush1.msra.mxu0 %v2042
        %8374 = vmatprep.subr.mxu0 0.0
        %8375 = vmatpush1.msra.mxu0 %v2043
        %8376 = vmatprep.subr.mxu0 0.0
        %8377 = vmatpush1.msra.mxu0 %v2044
        %8378 = vmatprep.subr.mxu0 0.0
        %8379 = vmatpush1.msra.mxu0 %v2045
        %8380 = vmatprep.subr.mxu0 0.0
        %8381 = vmatpush1.msra.mxu0 %v2046
        %8382 = vmatprep.subr.mxu0 0.0
        %8383 = vmatpush1.msra.mxu0 %v2047
        %8384 = vmatprep.mubr.f32.mxu0 %v7274
        %8385 = vmatmul.mubr.f32.gmra.mrb[0].mxu0 %v7273
        %v8386 = vpop.f32.mrb[0].mxu0
        %v8387 = vadd.f32 0.0, %v8386
        %v8388 = vpop.f32.mrb[0].mxu0
        %8389 = vmatprep.mubr.f32.mxu0 %v7276
        %8390 = vmatmul.mubr.f32.gmra.mrb[0].mxu0 %v7275
        %v8391 = vpop.f32.mrb[0].mxu0
        %v8392 = vadd.f32 0.0, %v8391
        %v8393 = vpop.f32.mrb[0].mxu0
        %8394 = vmatprep.mubr.f32.mxu0 %v7278
        %8395 = vmatmul.mubr.f32.gmra.mrb[0].mxu0 %v7277
        %v8396 = vpop.f32.mrb[0].mxu0
        %v8397 = vadd.f32 0.0, %v8396
        %v8398 = vpop.f32.mrb[0].mxu0
        %8399 = vmatprep.mubr.f32.mxu0 %v7280
        %8400 = vmatmul.mubr.f32.gmra.mrb[0].mxu0 %v7279
        %v8401 = vpop.f32.mrb[0].mxu0
        %v8402 = vadd.f32 0.0, %v8401
        %v8403 = vpop.f32.mrb[0].mxu0
        %8404 = vmatprep.mubr.f32.mxu0 %v7282
        %8405 = vmatmul.mubr.f32.gmra.mrb[0].mxu0 %v7281
        %v8406 = vpop.f32.mrb[0].mxu0
        %v8407 = vadd.f32 0.0, %v8406
        %v8408 = vpop.f32.mrb[0].mxu0
        %8409 = vmatprep.mubr.f32.mxu0 %v7284
        %8410 = vmatmul.mubr.f32.gmra.mrb[0].mxu0 %v7283
        %v8411 = vpop.f32.mrb[0].mxu0
        %v8412 = vadd.f32 0.0, %v8411
        %v8413 = vpop.f32.mrb[0].mxu0
        %8414 = vmatprep.mubr.f32.mxu0 %v7286
        %8415 = vmatmul.mubr.f32.gmra.mrb[0].mxu0 %v7285
        %v8416 = vpop.f32.mrb[0].mxu0
        %v8417 = vadd.f32 0.0, %v8416
        %v8418 = vpop.f32.mrb[0].mxu0
        %8419 = vmatprep.mubr.f32.mxu0 %v7288
        %8420 = vmatmul.mubr.f32.gmra.mrb[0].mxu0 %v7287
        %v8421 = vpop.f32.mrb[0].mxu0
        %v8422 = vadd.f32 0.0, %v8421
        %v8423 = vpop.f32.mrb[0].mxu0
        %8424 = vmatprep.mubr.f32.mxu0 %v7290
        %8425 = vmatmul.mubr.f32.gmra.mrb[0].mxu0 %v7289
        %v8426 = vpop.f32.mrb[0].mxu0
        %v8427 = vadd.f32 0.0, %v8426
        %v8428 = vpop.f32.mrb[0].mxu0
        %8429 = vmatprep.mubr.f32.mxu0 %v7292
        %8430 = vmatmul.mubr.f32.gmra.mrb[0].mxu0 %v7291
        %v8431 = vpop.f32.mrb[0].mxu0
        %v8432 = vadd.f32 0.0, %v8431
        %v8433 = vpop.f32.mrb[0].mxu0
        %8434 = vmatprep.mubr.f32.mxu0 %v7294
        %8435 = vmatmul.mubr.f32.gmra.mrb[0].mxu0 %v7293
        %v8436 = vpop.f32.mrb[0].mxu0
        %v8437 = vadd.f32 0.0, %v8436
        %v8438 = vpop.f32.mrb[0].mxu0
        %8439 = vmatprep.mubr.f32.mxu0 %v7296
        %8440 = vmatmul.mubr.f32.gmra.mrb[0].mxu0 %v7295
        %v8441 = vpop.f32.mrb[0].mxu0
        %v8442 = vadd.f32 0.0, %v8441
        %v8443 = vpop.f32.mrb[0].mxu0
        %8444 = vmatprep.mubr.f32.mxu0 %v7298
        %8445 = vmatmul.mubr.f32.gmra.mrb[0].mxu0 %v7297
        %v8446 = vpop.f32.mrb[0].mxu0
        %v8447 = vadd.f32 0.0, %v8446
        %v8448 = vpop.f32.mrb[0].mxu0
        %8449 = vmatprep.mubr.f32.mxu0 %v7300
        %8450 = vmatmul.mubr.f32.gmra.mrb[0].mxu0 %v7299
        %v8451 = vpop.f32.mrb[0].mxu0
        %v8452 = vadd.f32 0.0, %v8451
        %v8453 = vpop.f32.mrb[0].mxu0
        %8454 = vmatprep.mubr.f32.mxu0 %v7302
        %8455 = vmatmul.mubr.f32.gmra.mrb[0].mxu0 %v7301
        %v8456 = vpop.f32.mrb[0].mxu0
        %v8457 = vadd.f32 0.0, %v8456
        %v8458 = vpop.f32.mrb[0].mxu0
        %8459 = vmatprep.mubr.f32.mxu0 %v7304
        %8460 = vmatmul.mubr.f32.gmra.mrb[0].mxu0 %v7303
        %v8461 = vpop.f32.mrb[0].mxu0
        %v8462 = vadd.f32 0.0, %v8461
        %v8463 = vpop.f32.mrb[0].mxu0
        %8464 = vdwg.mxu0
        %8465 = vst [vmem:[%s1385] sm:$0xff] %v7049
        %8466 = vst [vmem:[%s1385 + $0x8] sm:$0xff] %v7050
        %8467 = vst [vmem:[%s1385 + $0x10] sm:$0xff] %v7051
        %8468 = vst [vmem:[%s1385 + $0x18] sm:$0xff] %v7052
        %8469 = vst [vmem:[%s1385 + $0x20] sm:$0xff] %v7053
        %8470 = vst [vmem:[%s1385 + $0x28] sm:$0xff] %v7054
        %8471 = vst [vmem:[%s1385 + $0x30] sm:$0xff] %v7055
        %8472 = vst [vmem:[%s1385 + $0x38] sm:$0xff] %v7056
        %8473 = vst [vmem:[%s1385 + $0x40] sm:$0xff] %v7057
        %8474 = vst [vmem:[%s1385 + $0x48] sm:$0xff] %v7058
        %8475 = vst [vmem:[%s1385 + $0x50] sm:$0xff] %v7059
        %8476 = vst [vmem:[%s1385 + $0x58] sm:$0xff] %v7060
        %8477 = vst [vmem:[%s1385 + $0x60] sm:$0xff] %v7061
        %8478 = vst [vmem:[%s1385 + $0x68] sm:$0xff] %v7062
        %8479 = vst [vmem:[%s1385 + $0x70] sm:$0xff] %v7063
        %8480 = vst [vmem:[%s1385 + $0x78] sm:$0xff] %v7064
        %8481 = vst [vmem:[%s1385 + $0x80] sm:$0xff] %v7065
        %8482 = vst [vmem:[%s1385 + $0x88] sm:$0xff] %v7066
        %8483 = vst [vmem:[%s1385 + $0x90] sm:$0xff] %v7067
        %8484 = vst [vmem:[%s1385 + $0x98] sm:$0xff] %v7068
        %8485 = vst [vmem:[%s1385 + $0xa0] sm:$0xff] %v7069
        %8486 = vst [vmem:[%s1385 + $0xa8] sm:$0xff] %v7070
        %8487 = vst [vmem:[%s1385 + $0xb0] sm:$0xff] %v7071
        %8488 = vst [vmem:[%s1385 + $0xb8] sm:$0xff] %v7072
        %8489 = vst [vmem:[%s1385 + $0xc0] sm:$0xff] %v7073
        %8490 = vst [vmem:[%s1385 + $0xc8] sm:$0xff] %v7074
        %8491 = vst [vmem:[%s1385 + $0xd0] sm:$0xff] %v7075
        %8492 = vst [vmem:[%s1385 + $0xd8] sm:$0xff] %v7076
        %8493 = vst [vmem:[%s1385 + $0xe0] sm:$0xff] %v7077
        %8494 = vst [vmem:[%s1385 + $0xe8] sm:$0xff] %v7078
        %8495 = vst [vmem:[%s1385 + $0xf0] sm:$0xff] %v7079
        %8496 = vst [vmem:[%s1385 + $0xf8] sm:$0xff] %v7080
        %8497 = vst [vmem:[%s1385 + $0x100] sm:$0xff] %v7081
        %8498 = vst [vmem:[%s1385 + $0x108] sm:$0xff] %v7082
        %8499 = vst [vmem:[%s1385 + $0x110] sm:$0xff] %v7083
        %8500 = vst [vmem:[%s1385 + $0x118] sm:$0xff] %v7084
        %8501 = vst [vmem:[%s1385 + $0x120] sm:$0xff] %v7085
        %8502 = vst [vmem:[%s1385 + $0x128] sm:$0xff] %v7086
        %8503 = vst [vmem:[%s1385 + $0x130] sm:$0xff] %v7087
        %8504 = vst [vmem:[%s1385 + $0x138] sm:$0xff] %v7088
        %8505 = vst [vmem:[%s1385 + $0x140] sm:$0xff] %v7089
        %8506 = vst [vmem:[%s1385 + $0x148] sm:$0xff] %v7090
        %8507 = vst [vmem:[%s1385 + $0x150] sm:$0xff] %v7091
        %8508 = vst [vmem:[%s1385 + $0x158] sm:$0xff] %v7092
        %8509 = vst [vmem:[%s1385 + $0x160] sm:$0xff] %v7093
        %8510 = vst [vmem:[%s1385 + $0x168] sm:$0xff] %v7094
        %8511 = vst [vmem:[%s1385 + $0x170] sm:$0xff] %v7095
        %8512 = vst [vmem:[%s1385 + $0x178] sm:$0xff] %v7096
        %8513 = vst [vmem:[%s1385 + $0x180] sm:$0xff] %v7097
        %8514 = vst [vmem:[%s1385 + $0x188] sm:$0xff] %v7098
        %8515 = vst [vmem:[%s1385 + $0x190] sm:$0xff] %v7099
        %8516 = vst [vmem:[%s1385 + $0x198] sm:$0xff] %v7100
        %8517 = vst [vmem:[%s1385 + $0x1a0] sm:$0xff] %v7101
        %8518 = vst [vmem:[%s1385 + $0x1a8] sm:$0xff] %v7102
        %8519 = vst [vmem:[%s1385 + $0x1b0] sm:$0xff] %v7103
        %8520 = vst [vmem:[%s1385 + $0x1b8] sm:$0xff] %v7104
        %8521 = vst [vmem:[%s1385 + $0x1c0] sm:$0xff] %v7105
        %8522 = vst [vmem:[%s1385 + $0x1c8] sm:$0xff] %v7106
        %8523 = vst [vmem:[%s1385 + $0x1d0] sm:$0xff] %v7107
        %8524 = vst [vmem:[%s1385 + $0x1d8] sm:$0xff] %v7108
        %8525 = vst [vmem:[%s1385 + $0x1e0] sm:$0xff] %v7109
        %8526 = vst [vmem:[%s1385 + $0x1e8] sm:$0xff] %v7110
        %8527 = vst [vmem:[%s1385 + $0x1f0] sm:$0xff] %v7111
        %8528 = vst [vmem:[%s1385 + $0x1f8] sm:$0xff] %v7112
        %8529 = vst [vmem:[%s1385 + $0x200] sm:$0xff] %v7113
        %8530 = vst [vmem:[%s1385 + $0x208] sm:$0xff] %v7114
        %8531 = vst [vmem:[%s1385 + $0x210] sm:$0xff] %v7115
        %8532 = vst [vmem:[%s1385 + $0x218] sm:$0xff] %v7116
        %8533 = vst [vmem:[%s1385 + $0x220] sm:$0xff] %v7117
        %8534 = vst [vmem:[%s1385 + $0x228] sm:$0xff] %v7118
        %8535 = vst [vmem:[%s1385 + $0x230] sm:$0xff] %v7119
        %8536 = vst [vmem:[%s1385 + $0x238] sm:$0xff] %v7120
        %8537 = vst [vmem:[%s1385 + $0x240] sm:$0xff] %v7121
        %8538 = vst [vmem:[%s1385 + $0x248] sm:$0xff] %v7122
        %8539 = vst [vmem:[%s1385 + $0x250] sm:$0xff] %v7123
        %8540 = vst [vmem:[%s1385 + $0x258] sm:$0xff] %v7124
        %8541 = vst [vmem:[%s1385 + $0x260] sm:$0xff] %v7125
        %8542 = vst [vmem:[%s1385 + $0x268] sm:$0xff] %v7126
        %8543 = vst [vmem:[%s1385 + $0x270] sm:$0xff] %v7127
        %8544 = vst [vmem:[%s1385 + $0x278] sm:$0xff] %v7128
        %8545 = vst [vmem:[%s1385 + $0x280] sm:$0xff] %v7129
        %8546 = vst [vmem:[%s1385 + $0x288] sm:$0xff] %v7130
        %8547 = vst [vmem:[%s1385 + $0x290] sm:$0xff] %v7131
        %8548 = vst [vmem:[%s1385 + $0x298] sm:$0xff] %v7132
        %8549 = vst [vmem:[%s1385 + $0x2a0] sm:$0xff] %v7133
        %8550 = vst [vmem:[%s1385 + $0x2a8] sm:$0xff] %v7134
        %8551 = vst [vmem:[%s1385 + $0x2b0] sm:$0xff] %v7135
        %8552 = vst [vmem:[%s1385 + $0x2b8] sm:$0xff] %v7136
        %8553 = vst [vmem:[%s1385 + $0x2c0] sm:$0xff] %v7137
        %8554 = vst [vmem:[%s1385 + $0x2c8] sm:$0xff] %v7138
        %8555 = vst [vmem:[%s1385 + $0x2d0] sm:$0xff] %v7139
        %8556 = vst [vmem:[%s1385 + $0x2d8] sm:$0xff] %v7140
        %8557 = vst [vmem:[%s1385 + $0x2e0] sm:$0xff] %v7141
        %8558 = vst [vmem:[%s1385 + $0x2e8] sm:$0xff] %v7142
        %8559 = vst [vmem:[%s1385 + $0x2f0] sm:$0xff] %v7143
        %8560 = vst [vmem:[%s1385 + $0x2f8] sm:$0xff] %v7144
        %8561 = vst [vmem:[%s1385 + $0x300] sm:$0xff] %v7145
        %8562 = vst [vmem:[%s1385 + $0x308] sm:$0xff] %v7146
        %8563 = vst [vmem:[%s1385 + $0x310] sm:$0xff] %v7147
        %8564 = vst [vmem:[%s1385 + $0x318] sm:$0xff] %v7148
        %8565 = vst [vmem:[%s1385 + $0x320] sm:$0xff] %v7149
        %8566 = vst [vmem:[%s1385 + $0x328] sm:$0xff] %v7150
        %8567 = vst [vmem:[%s1385 + $0x330] sm:$0xff] %v7151
        %8568 = vst [vmem:[%s1385 + $0x338] sm:$0xff] %v7152
        %8569 = vst [vmem:[%s1385 + $0x340] sm:$0xff] %v7153
        %8570 = vst [vmem:[%s1385 + $0x348] sm:$0xff] %v7154
        %8571 = vst [vmem:[%s1385 + $0x350] sm:$0xff] %v7155
        %8572 = vst [vmem:[%s1385 + $0x358] sm:$0xff] %v7156
        %8573 = vst [vmem:[%s1385 + $0x360] sm:$0xff] %v7157
        %8574 = vst [vmem:[%s1385 + $0x368] sm:$0xff] %v7158
        %8575 = vst [vmem:[%s1385 + $0x370] sm:$0xff] %v7159
        %8576 = vst [vmem:[%s1385 + $0x378] sm:$0xff] %v7160
        %8577 = vst [vmem:[%s1385 + $0x380] sm:$0xff] %v7161
        %8578 = vst [vmem:[%s1385 + $0x388] sm:$0xff] %v7162
        %8579 = vst [vmem:[%s1385 + $0x390] sm:$0xff] %v7163
        %8580 = vst [vmem:[%s1385 + $0x398] sm:$0xff] %v7164
        %8581 = vst [vmem:[%s1385 + $0x3a0] sm:$0xff] %v7165
        %8582 = vst [vmem:[%s1385 + $0x3a8] sm:$0xff] %v7166
        %8583 = vst [vmem:[%s1385 + $0x3b0] sm:$0xff] %v7167
        %8584 = vst [vmem:[%s1385 + $0x3b8] sm:$0xff] %v7168
        %8585 = vst [vmem:[%s1385 + $0x3c0] sm:$0xff] %v7169
        %8586 = vst [vmem:[%s1385 + $0x3c8] sm:$0xff] %v7170
        %8587 = vst [vmem:[%s1385 + $0x3d0] sm:$0xff] %v7171
        %8588 = vst [vmem:[%s1385 + $0x3d8] sm:$0xff] %v7172
        %8589 = vst [vmem:[%s1385 + $0x3e0] sm:$0xff] %v7173
        %8590 = vst [vmem:[%s1385 + $0x3e8] sm:$0xff] %v7174
        %8591 = vst [vmem:[%s1385 + $0x3f0] sm:$0xff] %v7175
        %8592 = vst [vmem:[%s1385 + $0x3f8] sm:$0xff] %v7176
        %8593 = vst [vmem:[%s1385 + $0x400] sm:$0xff] %v7177
        %8594 = vst [vmem:[%s1385 + $0x408] sm:$0xff] %v7178
        %8595 = vst [vmem:[%s1385 + $0x410] sm:$0xff] %v7179
        %8596 = vst [vmem:[%s1385 + $0x418] sm:$0xff] %v7180
        %8597 = vst [vmem:[%s1385 + $0x420] sm:$0xff] %v7181
        %8598 = vst [vmem:[%s1385 + $0x428] sm:$0xff] %v7182
        %8599 = vst [vmem:[%s1385 + $0x430] sm:$0xff] %v7183
        %8600 = vst [vmem:[%s1385 + $0x438] sm:$0xff] %v7184
        %8601 = vst [vmem:[%s1385 + $0x440] sm:$0xff] %v7185
        %8602 = vst [vmem:[%s1385 + $0x448] sm:$0xff] %v7186
        %8603 = vst [vmem:[%s1385 + $0x450] sm:$0xff] %v7187
        %8604 = vst [vmem:[%s1385 + $0x458] sm:$0xff] %v7188
        %8605 = vst [vmem:[%s1385 + $0x460] sm:$0xff] %v7189
        %8606 = vst [vmem:[%s1385 + $0x468] sm:$0xff] %v7190
        %8607 = vst [vmem:[%s1385 + $0x470] sm:$0xff] %v7191
        %8608 = vst [vmem:[%s1385 + $0x478] sm:$0xff] %v7192
        %8609 = vst [vmem:[%s1385 + $0x480] sm:$0xff] %v7193
        %8610 = vst [vmem:[%s1385 + $0x488] sm:$0xff] %v7194
        %8611 = vst [vmem:[%s1385 + $0x490] sm:$0xff] %v7195
        %8612 = vst [vmem:[%s1385 + $0x498] sm:$0xff] %v7196
        %8613 = vst [vmem:[%s1385 + $0x4a0] sm:$0xff] %v7197
        %8614 = vst [vmem:[%s1385 + $0x4a8] sm:$0xff] %v7198
        %8615 = vst [vmem:[%s1385 + $0x4b0] sm:$0xff] %v7199
        %8616 = vst [vmem:[%s1385 + $0x4b8] sm:$0xff] %v7200
        %8617 = vst [vmem:[%s1385 + $0x4c0] sm:$0xff] %v7201
        %8618 = vst [vmem:[%s1385 + $0x4c8] sm:$0xff] %v7202
        %8619 = vst [vmem:[%s1385 + $0x4d0] sm:$0xff] %v7203
        %8620 = vst [vmem:[%s1385 + $0x4d8] sm:$0xff] %v7204
        %8621 = vst [vmem:[%s1385 + $0x4e0] sm:$0xff] %v7205
        %8622 = vst [vmem:[%s1385 + $0x4e8] sm:$0xff] %v7206
        %8623 = vst [vmem:[%s1385 + $0x4f0] sm:$0xff] %v7207
        %8624 = vst [vmem:[%s1385 + $0x4f8] sm:$0xff] %v7208
        %8625 = vst [vmem:[%s1385 + $0x500] sm:$0xff] %v7209
        %8626 = vst [vmem:[%s1385 + $0x508] sm:$0xff] %v7210
        %8627 = vst [vmem:[%s1385 + $0x510] sm:$0xff] %v7211
        %8628 = vst [vmem:[%s1385 + $0x518] sm:$0xff] %v7212
        %8629 = vst [vmem:[%s1385 + $0x520] sm:$0xff] %v7213
        %8630 = vst [vmem:[%s1385 + $0x528] sm:$0xff] %v7214
        %8631 = vst [vmem:[%s1385 + $0x530] sm:$0xff] %v7215
        %8632 = vst [vmem:[%s1385 + $0x538] sm:$0xff] %v7216
        %8633 = vst [vmem:[%s1385 + $0x540] sm:$0xff] %v7217
        %8634 = vst [vmem:[%s1385 + $0x548] sm:$0xff] %v7218
        %8635 = vst [vmem:[%s1385 + $0x550] sm:$0xff] %v7219
        %8636 = vst [vmem:[%s1385 + $0x558] sm:$0xff] %v7220
        %8637 = vst [vmem:[%s1385 + $0x560] sm:$0xff] %v7221
        %8638 = vst [vmem:[%s1385 + $0x568] sm:$0xff] %v7222
        %8639 = vst [vmem:[%s1385 + $0x570] sm:$0xff] %v7223
        %8640 = vst [vmem:[%s1385 + $0x578] sm:$0xff] %v7224
        %8641 = vst [vmem:[%s1385 + $0x580] sm:$0xff] %v7225
        %8642 = vst [vmem:[%s1385 + $0x588] sm:$0xff] %v7226
        %8643 = vst [vmem:[%s1385 + $0x590] sm:$0xff] %v7227
        %8644 = vst [vmem:[%s1385 + $0x598] sm:$0xff] %v7228
        %8645 = vst [vmem:[%s1385 + $0x5a0] sm:$0xff] %v7229
        %8646 = vst [vmem:[%s1385 + $0x5a8] sm:$0xff] %v7230
        %8647 = vst [vmem:[%s1385 + $0x5b0] sm:$0xff] %v7231
        %8648 = vst [vmem:[%s1385 + $0x5b8] sm:$0xff] %v7232
        %8649 = vst [vmem:[%s1385 + $0x5c0] sm:$0xff] %v7233
        %8650 = vst [vmem:[%s1385 + $0x5c8] sm:$0xff] %v7234
        %8651 = vst [vmem:[%s1385 + $0x5d0] sm:$0xff] %v7235
        %8652 = vst [vmem:[%s1385 + $0x5d8] sm:$0xff] %v7236
        %8653 = vst [vmem:[%s1385 + $0x5e0] sm:$0xff] %v7237
        %8654 = vst [vmem:[%s1385 + $0x5e8] sm:$0xff] %v7238
        %8655 = vst [vmem:[%s1385 + $0x5f0] sm:$0xff] %v7239
        %8656 = vst [vmem:[%s1385 + $0x5f8] sm:$0xff] %v7240
        %8657 = vst [vmem:[%s1385 + $0x600] sm:$0xff] %v7241
        %8658 = vst [vmem:[%s1385 + $0x608] sm:$0xff] %v7242
        %8659 = vst [vmem:[%s1385 + $0x610] sm:$0xff] %v7243
        %8660 = vst [vmem:[%s1385 + $0x618] sm:$0xff] %v7244
        %8661 = vst [vmem:[%s1385 + $0x620] sm:$0xff] %v7245
        %8662 = vst [vmem:[%s1385 + $0x628] sm:$0xff] %v7246
        %8663 = vst [vmem:[%s1385 + $0x630] sm:$0xff] %v7247
        %8664 = vst [vmem:[%s1385 + $0x638] sm:$0xff] %v7248
        %8665 = vst [vmem:[%s1385 + $0x640] sm:$0xff] %v7249
        %8666 = vst [vmem:[%s1385 + $0x648] sm:$0xff] %v7250
        %8667 = vst [vmem:[%s1385 + $0x650] sm:$0xff] %v7251
        %8668 = vst [vmem:[%s1385 + $0x658] sm:$0xff] %v7252
        %8669 = vst [vmem:[%s1385 + $0x660] sm:$0xff] %v7253
        %8670 = vst [vmem:[%s1385 + $0x668] sm:$0xff] %v7254
        %8671 = vst [vmem:[%s1385 + $0x670] sm:$0xff] %v7255
        %8672 = vst [vmem:[%s1385 + $0x678] sm:$0xff] %v7256
        %8673 = vst [vmem:[%s1385 + $0x680] sm:$0xff] %v7257
        %8674 = vst [vmem:[%s1385 + $0x688] sm:$0xff] %v7258
        %8675 = vst [vmem:[%s1385 + $0x690] sm:$0xff] %v7259
        %8676 = vst [vmem:[%s1385 + $0x698] sm:$0xff] %v7260
        %8677 = vst [vmem:[%s1385 + $0x6a0] sm:$0xff] %v7261
        %8678 = vst [vmem:[%s1385 + $0x6a8] sm:$0xff] %v7262
        %8679 = vst [vmem:[%s1385 + $0x6b0] sm:$0xff] %v7263
        %8680 = vst [vmem:[%s1385 + $0x6b8] sm:$0xff] %v7264
        %8681 = vst [vmem:[%s1385 + $0x6c0] sm:$0xff] %v7265
        %8682 = vst [vmem:[%s1385 + $0x6c8] sm:$0xff] %v7266
        %8683 = vst [vmem:[%s1385 + $0x6d0] sm:$0xff] %v7267
        %8684 = vst [vmem:[%s1385 + $0x6d8] sm:$0xff] %v7268
        %8685 = vst [vmem:[%s1385 + $0x6e0] sm:$0xff] %v7269
        %8686 = vst [vmem:[%s1385 + $0x6e8] sm:$0xff] %v7270
        %8687 = vst [vmem:[%s1385 + $0x6f0] sm:$0xff] %v7271
        %8688 = vst [vmem:[%s1385 + $0x6f8] sm:$0xff] %v7272
        %8689 = vst [vmem:[%s1385 + $0x700] sm:$0xff] %v7273
        %8690 = vst [vmem:[%s1385 + $0x708] sm:$0xff] %v7274
        %8691 = vst [vmem:[%s1385 + $0x710] sm:$0xff] %v7275
        %8692 = vst [vmem:[%s1385 + $0x718] sm:$0xff] %v7276
        %8693 = vst [vmem:[%s1385 + $0x720] sm:$0xff] %v7277
        %8694 = vst [vmem:[%s1385 + $0x728] sm:$0xff] %v7278
        %8695 = vst [vmem:[%s1385 + $0x730] sm:$0xff] %v7279
        %8696 = vst [vmem:[%s1385 + $0x738] sm:$0xff] %v7280
        %8697 = vst [vmem:[%s1385 + $0x740] sm:$0xff] %v7281
        %8698 = vst [vmem:[%s1385 + $0x748] sm:$0xff] %v7282
        %8699 = vst [vmem:[%s1385 + $0x750] sm:$0xff] %v7283
        %8700 = vst [vmem:[%s1385 + $0x758] sm:$0xff] %v7284
        %8701 = vst [vmem:[%s1385 + $0x760] sm:$0xff] %v7285
        %8702 = vst [vmem:[%s1385 + $0x768] sm:$0xff] %v7286
        %8703 = vst [vmem:[%s1385 + $0x770] sm:$0xff] %v7287
        %8704 = vst [vmem:[%s1385 + $0x778] sm:$0xff] %v7288
        %8705 = vst [vmem:[%s1385 + $0x780] sm:$0xff] %v7289
        %8706 = vst [vmem:[%s1385 + $0x788] sm:$0xff] %v7290
        %8707 = vst [vmem:[%s1385 + $0x790] sm:$0xff] %v7291
        %8708 = vst [vmem:[%s1385 + $0x798] sm:$0xff] %v7292
        %8709 = vst [vmem:[%s1385 + $0x7a0] sm:$0xff] %v7293
        %8710 = vst [vmem:[%s1385 + $0x7a8] sm:$0xff] %v7294
        %8711 = vst [vmem:[%s1385 + $0x7b0] sm:$0xff] %v7295
        %8712 = vst [vmem:[%s1385 + $0x7b8] sm:$0xff] %v7296
        %8713 = vst [vmem:[%s1385 + $0x7c0] sm:$0xff] %v7297
        %8714 = vst [vmem:[%s1385 + $0x7c8] sm:$0xff] %v7298
        %8715 = vst [vmem:[%s1385 + $0x7d0] sm:$0xff] %v7299
        %8716 = vst [vmem:[%s1385 + $0x7d8] sm:$0xff] %v7300
        %8717 = vst [vmem:[%s1385 + $0x7e0] sm:$0xff] %v7301
        %8718 = vst [vmem:[%s1385 + $0x7e8] sm:$0xff] %v7302
        %8719 = vst [vmem:[%s1385 + $0x7f0] sm:$0xff] %v7303
        %8720 = vst [vmem:[%s1385 + $0x7f8] sm:$0xff] %v7304
        %8721 = vst.msk [vmem:[%s1378] sm:$0xff] %vm2688, %v7372
        %8722 = vst.msk [vmem:[%s1378 + $0x8] sm:$0xff] %vm2688, %v7377
        %8723 = vst.msk [vmem:[%s1378 + $0x10] sm:$0xff] %vm2688, %v7382
        %8724 = vst.msk [vmem:[%s1378 + $0x18] sm:$0xff] %vm2688, %v7387
        %8725 = vst.msk [vmem:[%s1378 + $0x20] sm:$0xff] %vm2688, %v7392
        %8726 = vst.msk [vmem:[%s1378 + $0x28] sm:$0xff] %vm2688, %v7397
        %8727 = vst.msk [vmem:[%s1378 + $0x30] sm:$0xff] %vm2688, %v7402
        %8728 = vst.msk [vmem:[%s1378 + $0x38] sm:$0xff] %vm2688, %v7407
        %8729 = vst.msk [vmem:[%s1378 + $0x40] sm:$0xff] %vm2688, %v7412
        %8730 = vst.msk [vmem:[%s1378 + $0x48] sm:$0xff] %vm2688, %v7417
        %8731 = vst.msk [vmem:[%s1378 + $0x50] sm:$0xff] %vm2688, %v7422
        %8732 = vst.msk [vmem:[%s1378 + $0x58] sm:$0xff] %vm2688, %v7427
        %8733 = vst.msk [vmem:[%s1378 + $0x60] sm:$0xff] %vm2688, %v7432
        %8734 = vst.msk [vmem:[%s1378 + $0x68] sm:$0xff] %vm2688, %v7437
        %8735 = vst.msk [vmem:[%s1378 + $0x70] sm:$0xff] %vm2688, %v7442
        %8736 = vst.msk [vmem:[%s1378 + $0x78] sm:$0xff] %vm2688, %v7447
        %8737 = vst.msk [vmem:[%s1378 + $0x80] sm:$0xff] %vm2688, %v7517
        %8738 = vst.msk [vmem:[%s1378 + $0x88] sm:$0xff] %vm2688, %v7522
        %8739 = vst.msk [vmem:[%s1378 + $0x90] sm:$0xff] %vm2688, %v7527
        %8740 = vst.msk [vmem:[%s1378 + $0x98] sm:$0xff] %vm2688, %v7532
        %8741 = vst.msk [vmem:[%s1378 + $0xa0] sm:$0xff] %vm2688, %v7537
        %8742 = vst.msk [vmem:[%s1378 + $0xa8] sm:$0xff] %vm2688, %v7542
        %8743 = vst.msk [vmem:[%s1378 + $0xb0] sm:$0xff] %vm2688, %v7547
        %8744 = vst.msk [vmem:[%s1378 + $0xb8] sm:$0xff] %vm2688, %v7552
        %8745 = vst.msk [vmem:[%s1378 + $0xc0] sm:$0xff] %vm2688, %v7557
        %8746 = vst.msk [vmem:[%s1378 + $0xc8] sm:$0xff] %vm2688, %v7562
        %8747 = vst.msk [vmem:[%s1378 + $0xd0] sm:$0xff] %vm2688, %v7567
        %8748 = vst.msk [vmem:[%s1378 + $0xd8] sm:$0xff] %vm2688, %v7572
        %8749 = vst.msk [vmem:[%s1378 + $0xe0] sm:$0xff] %vm2688, %v7577
        %8750 = vst.msk [vmem:[%s1378 + $0xe8] sm:$0xff] %vm2688, %v7582
        %8751 = vst.msk [vmem:[%s1378 + $0xf0] sm:$0xff] %vm2688, %v7587
        %8752 = vst.msk [vmem:[%s1378 + $0xf8] sm:$0xff] %vm2688, %v7592
        %8753 = vst.msk [vmem:[%s1378 + $0x100] sm:$0xff] %vm2688, %v7662
        %8754 = vst.msk [vmem:[%s1378 + $0x108] sm:$0xff] %vm2688, %v7667
        %8755 = vst.msk [vmem:[%s1378 + $0x110] sm:$0xff] %vm2688, %v7672
        %8756 = vst.msk [vmem:[%s1378 + $0x118] sm:$0xff] %vm2688, %v7677
        %8757 = vst.msk [vmem:[%s1378 + $0x120] sm:$0xff] %vm2688, %v7682
        %8758 = vst.msk [vmem:[%s1378 + $0x128] sm:$0xff] %vm2688, %v7687
        %8759 = vst.msk [vmem:[%s1378 + $0x130] sm:$0xff] %vm2688, %v7692
        %8760 = vst.msk [vmem:[%s1378 + $0x138] sm:$0xff] %vm2688, %v7697
        %8761 = vst.msk [vmem:[%s1378 + $0x140] sm:$0xff] %vm2688, %v7702
        %8762 = vst.msk [vmem:[%s1378 + $0x148] sm:$0xff] %vm2688, %v7707
        %8763 = vst.msk [vmem:[%s1378 + $0x150] sm:$0xff] %vm2688, %v7712
        %8764 = vst.msk [vmem:[%s1378 + $0x158] sm:$0xff] %vm2688, %v7717
        %8765 = vst.msk [vmem:[%s1378 + $0x160] sm:$0xff] %vm2688, %v7722
        %8766 = vst.msk [vmem:[%s1378 + $0x168] sm:$0xff] %vm2688, %v7727
        %8767 = vst.msk [vmem:[%s1378 + $0x170] sm:$0xff] %vm2688, %v7732
        %8768 = vst.msk [vmem:[%s1378 + $0x178] sm:$0xff] %vm2688, %v7737
        %8769 = vst.msk [vmem:[%s1378 + $0x180] sm:$0xff] %vm2688, %v7807
        %8770 = vst.msk [vmem:[%s1378 + $0x188] sm:$0xff] %vm2688, %v7812
        %8771 = vst.msk [vmem:[%s1378 + $0x190] sm:$0xff] %vm2688, %v7817
        %8772 = vst.msk [vmem:[%s1378 + $0x198] sm:$0xff] %vm2688, %v7822
        %8773 = vst.msk [vmem:[%s1378 + $0x1a0] sm:$0xff] %vm2688, %v7827
        %8774 = vst.msk [vmem:[%s1378 + $0x1a8] sm:$0xff] %vm2688, %v7832
        %8775 = vst.msk [vmem:[%s1378 + $0x1b0] sm:$0xff] %vm2688, %v7837
        %8776 = vst.msk [vmem:[%s1378 + $0x1b8] sm:$0xff] %vm2688, %v7842
        %8777 = vst.msk [vmem:[%s1378 + $0x1c0] sm:$0xff] %vm2688, %v7847
        %8778 = vst.msk [vmem:[%s1378 + $0x1c8] sm:$0xff] %vm2688, %v7852
        %8779 = vst.msk [vmem:[%s1378 + $0x1d0] sm:$0xff] %vm2688, %v7857
        %8780 = vst.msk [vmem:[%s1378 + $0x1d8] sm:$0xff] %vm2688, %v7862
        %8781 = vst.msk [vmem:[%s1378 + $0x1e0] sm:$0xff] %vm2688, %v7867
        %8782 = vst.msk [vmem:[%s1378 + $0x1e8] sm:$0xff] %vm2688, %v7872
        %8783 = vst.msk [vmem:[%s1378 + $0x1f0] sm:$0xff] %vm2688, %v7877
        %8784 = vst.msk [vmem:[%s1378 + $0x1f8] sm:$0xff] %vm2688, %v7882
        %8785 = vst.msk [vmem:[%s1378 + $0x200] sm:$0xff] %vm2688, %v7952
        %8786 = vst.msk [vmem:[%s1378 + $0x208] sm:$0xff] %vm2688, %v7957
        %8787 = vst.msk [vmem:[%s1378 + $0x210] sm:$0xff] %vm2688, %v7962
        %8788 = vst.msk [vmem:[%s1378 + $0x218] sm:$0xff] %vm2688, %v7967
        %8789 = vst.msk [vmem:[%s1378 + $0x220] sm:$0xff] %vm2688, %v7972
        %8790 = vst.msk [vmem:[%s1378 + $0x228] sm:$0xff] %vm2688, %v7977
        %8791 = vst.msk [vmem:[%s1378 + $0x230] sm:$0xff] %vm2688, %v7982
        %8792 = vst.msk [vmem:[%s1378 + $0x238] sm:$0xff] %vm2688, %v7987
        %8793 = vst.msk [vmem:[%s1378 + $0x240] sm:$0xff] %vm2688, %v7992
        %8794 = vst.msk [vmem:[%s1378 + $0x248] sm:$0xff] %vm2688, %v7997
        %8795 = vst.msk [vmem:[%s1378 + $0x250] sm:$0xff] %vm2688, %v8002
        %8796 = vst.msk [vmem:[%s1378 + $0x258] sm:$0xff] %vm2688, %v8007
        %8797 = vst.msk [vmem:[%s1378 + $0x260] sm:$0xff] %vm2688, %v8012
        %8798 = vst.msk [vmem:[%s1378 + $0x268] sm:$0xff] %vm2688, %v8017
        %8799 = vst.msk [vmem:[%s1378 + $0x270] sm:$0xff] %vm2688, %v8022
        %8800 = vst.msk [vmem:[%s1378 + $0x278] sm:$0xff] %vm2688, %v8027
        %8801 = vst.msk [vmem:[%s1378 + $0x280] sm:$0xff] %vm2688, %v8097
        %8802 = vst.msk [vmem:[%s1378 + $0x288] sm:$0xff] %vm2688, %v8102
        %8803 = vst.msk [vmem:[%s1378 + $0x290] sm:$0xff] %vm2688, %v8107
        %8804 = vst.msk [vmem:[%s1378 + $0x298] sm:$0xff] %vm2688, %v8112
        %8805 = vst.msk [vmem:[%s1378 + $0x2a0] sm:$0xff] %vm2688, %v8117
        %8806 = vst.msk [vmem:[%s1378 + $0x2a8] sm:$0xff] %vm2688, %v8122
        %8807 = vst.msk [vmem:[%s1378 + $0x2b0] sm:$0xff] %vm2688, %v8127
        %8808 = vst.msk [vmem:[%s1378 + $0x2b8] sm:$0xff] %vm2688, %v8132
        %8809 = vst.msk [vmem:[%s1378 + $0x2c0] sm:$0xff] %vm2688, %v8137
        %8810 = vst.msk [vmem:[%s1378 + $0x2c8] sm:$0xff] %vm2688, %v8142
        %8811 = vst.msk [vmem:[%s1378 + $0x2d0] sm:$0xff] %vm2688, %v8147
        %8812 = vst.msk [vmem:[%s1378 + $0x2d8] sm:$0xff] %vm2688, %v8152
        %8813 = vst.msk [vmem:[%s1378 + $0x2e0] sm:$0xff] %vm2688, %v8157
        %8814 = vst.msk [vmem:[%s1378 + $0x2e8] sm:$0xff] %vm2688, %v8162
        %8815 = vst.msk [vmem:[%s1378 + $0x2f0] sm:$0xff] %vm2688, %v8167
        %8816 = vst.msk [vmem:[%s1378 + $0x2f8] sm:$0xff] %vm2688, %v8172
        %8817 = vst.msk [vmem:[%s1378 + $0x300] sm:$0xff] %vm2688, %v8242
        %8818 = vst.msk [vmem:[%s1378 + $0x308] sm:$0xff] %vm2688, %v8247
        %8819 = vst.msk [vmem:[%s1378 + $0x310] sm:$0xff] %vm2688, %v8252
        %8820 = vst.msk [vmem:[%s1378 + $0x318] sm:$0xff] %vm2688, %v8257
        %8821 = vst.msk [vmem:[%s1378 + $0x320] sm:$0xff] %vm2688, %v8262
        %8822 = vst.msk [vmem:[%s1378 + $0x328] sm:$0xff] %vm2688, %v8267
        %8823 = vst.msk [vmem:[%s1378 + $0x330] sm:$0xff] %vm2688, %v8272
        %8824 = vst.msk [vmem:[%s1378 + $0x338] sm:$0xff] %vm2688, %v8277
        %8825 = vst.msk [vmem:[%s1378 + $0x340] sm:$0xff] %vm2688, %v8282
        %8826 = vst.msk [vmem:[%s1378 + $0x348] sm:$0xff] %vm2688, %v8287
        %8827 = vst.msk [vmem:[%s1378 + $0x350] sm:$0xff] %vm2688, %v8292
        %8828 = vst.msk [vmem:[%s1378 + $0x358] sm:$0xff] %vm2688, %v8297
        %8829 = vst.msk [vmem:[%s1378 + $0x360] sm:$0xff] %vm2688, %v8302
        %8830 = vst.msk [vmem:[%s1378 + $0x368] sm:$0xff] %vm2688, %v8307
        %8831 = vst.msk [vmem:[%s1378 + $0x370] sm:$0xff] %vm2688, %v8312
        %8832 = vst.msk [vmem:[%s1378 + $0x378] sm:$0xff] %vm2688, %v8317
        %8833 = vst.msk [vmem:[%s1378 + $0x380] sm:$0xff] %vm2688, %v8387
        %8834 = vst.msk [vmem:[%s1378 + $0x388] sm:$0xff] %vm2688, %v8392
        %8835 = vst.msk [vmem:[%s1378 + $0x390] sm:$0xff] %vm2688, %v8397
        %8836 = vst.msk [vmem:[%s1378 + $0x398] sm:$0xff] %vm2688, %v8402
        %8837 = vst.msk [vmem:[%s1378 + $0x3a0] sm:$0xff] %vm2688, %v8407
        %8838 = vst.msk [vmem:[%s1378 + $0x3a8] sm:$0xff] %vm2688, %v8412
        %8839 = vst.msk [vmem:[%s1378 + $0x3b0] sm:$0xff] %vm2688, %v8417
        %8840 = vst.msk [vmem:[%s1378 + $0x3b8] sm:$0xff] %vm2688, %v8422
        %8841 = vst.msk [vmem:[%s1378 + $0x3c0] sm:$0xff] %vm2688, %v8427
        %8842 = vst.msk [vmem:[%s1378 + $0x3c8] sm:$0xff] %vm2688, %v8432
        %8843 = vst.msk [vmem:[%s1378 + $0x3d0] sm:$0xff] %vm2688, %v8437
        %8844 = vst.msk [vmem:[%s1378 + $0x3d8] sm:$0xff] %vm2688, %v8442
        %8845 = vst.msk [vmem:[%s1378 + $0x3e0] sm:$0xff] %vm2688, %v8447
        %8846 = vst.msk [vmem:[%s1378 + $0x3e8] sm:$0xff] %vm2688, %v8452
        %8847 = vst.msk [vmem:[%s1378 + $0x3f0] sm:$0xff] %vm2688, %v8457
        %8848 = vst.msk [vmem:[%s1378 + $0x3f8] sm:$0xff] %vm2688, %v8462
        %s8849 = sand.u32 %s150, 1
        %s8850 = sand.u32 %s150, 1
        %s8851 = smul.addr %s8850, 1024
        %s8852 = scalar_lea.vmem [#allocation4], %s8851
        %s8853 = sand.u32 %s178, 1
        %s8854 = scalar_lea.sflag [#allocation6], %s8853
        %s8855 = sand.u32 %s178, 1
        %s8856 = smul.addr %s8855, 2048
        %s8857 = scalar_lea.vmem [#allocation5], %s8856
        // Predicated region
        $region98: #{tpu_custom_call.1} parent=88 // pred_check
          %p8858 = pneg %p160
        $region99: #{tpu_custom_call.1} parent=88 // pred_check_branch
          %8860 = sbr.rel (%p8858) target = $region101
        $region100: #{tpu_custom_call.1} parent=88 // pred_region
          %s8861 = smul.u32 8, %s24
          %s8862 = smul.u32 16, %s25
          %s8863 = smul.addr %s8861, 32
          %s8864 = sadd.s32 %s8862, %s8863
          %s8865 = smul.addr %s8864, 8
          %s8866 = scalar_lea.vmem %s4, %s8865
          // Predicated region
          $region102: #{tpu_custom_call.1} parent=100 // pred_check
            _
          $region103: #{tpu_custom_call.1} parent=100 // pred_check_branch
            %8868 = sbr.rel (0) target = $region105
          $region104: #{tpu_custom_call.1} parent=100 // pred_region
            // Predicated region
            $region106: #{tpu_custom_call.1} parent=104 // pred_check
              _
            $region107: #{tpu_custom_call.1} parent=104 // pred_check_branch
              %8870 = sbr.rel (0) target = $region109
            $region108: #{tpu_custom_call.1} parent=104 // pred_region
              // Predicated region
              $region121: #{tpu_custom_call.1} parent=108 // pred_check
                _
              $region122: #{tpu_custom_call.1} parent=108 // pred_check_branch
                %9139 = sbr.rel (0) target = $region124
              $region123: #{tpu_custom_call.1} parent=108 // pred_region
                loop: start=0, step=1, limit=1
                $region125: #{tpu_custom_call.1} parent=123 // loop_pre_header
                  _
                $region126: #{tpu_custom_call.1} parent=123 // loop_header
                  %s9141 = sphi 0, %s9145
                  %p9142 = scmp.ge.s32.totalorder %s9141, 1
                  %s9146 = sphi %s8852, %s8852
                  %s9147 = sphi %s8866, %s8866
                $region127: #{tpu_custom_call.1} parent=123 // loop_header_branch
                  %9144 = sbr.rel (%p9142) target = $region131
                $region128: #{tpu_custom_call.1} parent=123 // loop_body
                  %v9148 = vld [vmem:[%s9146] sm:$0xff]
                  %9149 = vst [vmem:[%s9147] sm:$0xff] %v9148
                  %v9150 = vld [vmem:[%s9146 + $0x8] sm:$0xff]
                  %9151 = vst [vmem:[%s9147 + $0x8] sm:$0xff] %v9150
                  %v9152 = vld [vmem:[%s9146 + $0x10] sm:$0xff]
                  %9153 = vst [vmem:[%s9147 + $0x10] sm:$0xff] %v9152
                  %v9154 = vld [vmem:[%s9146 + $0x18] sm:$0xff]
                  %9155 = vst [vmem:[%s9147 + $0x18] sm:$0xff] %v9154
                  %v9156 = vld [vmem:[%s9146 + $0x20] sm:$0xff]
                  %9157 = vst [vmem:[%s9147 + $0x20] sm:$0xff] %v9156
                  %v9158 = vld [vmem:[%s9146 + $0x28] sm:$0xff]
                  %9159 = vst [vmem:[%s9147 + $0x28] sm:$0xff] %v9158
                  %v9160 = vld [vmem:[%s9146 + $0x30] sm:$0xff]
                  %9161 = vst [vmem:[%s9147 + $0x30] sm:$0xff] %v9160
                  %v9162 = vld [vmem:[%s9146 + $0x38] sm:$0xff]
                  %9163 = vst [vmem:[%s9147 + $0x38] sm:$0xff] %v9162
                  %v9164 = vld [vmem:[%s9146 + $0x40] sm:$0xff]
                  %9165 = vst [vmem:[%s9147 + $0x40] sm:$0xff] %v9164
                  %v9166 = vld [vmem:[%s9146 + $0x48] sm:$0xff]
                  %9167 = vst [vmem:[%s9147 + $0x48] sm:$0xff] %v9166
                  %v9168 = vld [vmem:[%s9146 + $0x50] sm:$0xff]
                  %9169 = vst [vmem:[%s9147 + $0x50] sm:$0xff] %v9168
                  %v9170 = vld [vmem:[%s9146 + $0x58] sm:$0xff]
                  %9171 = vst [vmem:[%s9147 + $0x58] sm:$0xff] %v9170
                  %v9172 = vld [vmem:[%s9146 + $0x60] sm:$0xff]
                  %9173 = vst [vmem:[%s9147 + $0x60] sm:$0xff] %v9172
                  %v9174 = vld [vmem:[%s9146 + $0x68] sm:$0xff]
                  %9175 = vst [vmem:[%s9147 + $0x68] sm:$0xff] %v9174
                  %v9176 = vld [vmem:[%s9146 + $0x70] sm:$0xff]
                  %9177 = vst [vmem:[%s9147 + $0x70] sm:$0xff] %v9176
                  %v9178 = vld [vmem:[%s9146 + $0x78] sm:$0xff]
                  %9179 = vst [vmem:[%s9147 + $0x78] sm:$0xff] %v9178
                  %v9180 = vld [vmem:[%s9146 + $0x80] sm:$0xff]
                  %9181 = vst [vmem:[%s9147 + $0x100] sm:$0xff] %v9180
                  %v9182 = vld [vmem:[%s9146 + $0x88] sm:$0xff]
                  %9183 = vst [vmem:[%s9147 + $0x108] sm:$0xff] %v9182
                  %v9184 = vld [vmem:[%s9146 + $0x90] sm:$0xff]
                  %9185 = vst [vmem:[%s9147 + $0x110] sm:$0xff] %v9184
                  %v9186 = vld [vmem:[%s9146 + $0x98] sm:$0xff]
                  %9187 = vst [vmem:[%s9147 + $0x118] sm:$0xff] %v9186
                  %v9188 = vld [vmem:[%s9146 + $0xa0] sm:$0xff]
                  %9189 = vst [vmem:[%s9147 + $0x120] sm:$0xff] %v9188
                  %v9190 = vld [vmem:[%s9146 + $0xa8] sm:$0xff]
                  %9191 = vst [vmem:[%s9147 + $0x128] sm:$0xff] %v9190
                  %v9192 = vld [vmem:[%s9146 + $0xb0] sm:$0xff]
                  %9193 = vst [vmem:[%s9147 + $0x130] sm:$0xff] %v9192
                  %v9194 = vld [vmem:[%s9146 + $0xb8] sm:$0xff]
                  %9195 = vst [vmem:[%s9147 + $0x138] sm:$0xff] %v9194
                  %v9196 = vld [vmem:[%s9146 + $0xc0] sm:$0xff]
                  %9197 = vst [vmem:[%s9147 + $0x140] sm:$0xff] %v9196
                  %v9198 = vld [vmem:[%s9146 + $0xc8] sm:$0xff]
                  %9199 = vst [vmem:[%s9147 + $0x148] sm:$0xff] %v9198
                  %v9200 = vld [vmem:[%s9146 + $0xd0] sm:$0xff]
                  %9201 = vst [vmem:[%s9147 + $0x150] sm:$0xff] %v9200
                  %v9202 = vld [vmem:[%s9146 + $0xd8] sm:$0xff]
                  %9203 = vst [vmem:[%s9147 + $0x158] sm:$0xff] %v9202
                  %v9204 = vld [vmem:[%s9146 + $0xe0] sm:$0xff]
                  %9205 = vst [vmem:[%s9147 + $0x160] sm:$0xff] %v9204
                  %v9206 = vld [vmem:[%s9146 + $0xe8] sm:$0xff]
                  %9207 = vst [vmem:[%s9147 + $0x168] sm:$0xff] %v9206
                  %v9208 = vld [vmem:[%s9146 + $0xf0] sm:$0xff]
                  %9209 = vst [vmem:[%s9147 + $0x170] sm:$0xff] %v9208
                  %v9210 = vld [vmem:[%s9146 + $0xf8] sm:$0xff]
                  %9211 = vst [vmem:[%s9147 + $0x178] sm:$0xff] %v9210
                  %v9212 = vld [vmem:[%s9146 + $0x100] sm:$0xff]
                  %9213 = vst [vmem:[%s9147 + $0x200] sm:$0xff] %v9212
                  %v9214 = vld [vmem:[%s9146 + $0x108] sm:$0xff]
                  %9215 = vst [vmem:[%s9147 + $0x208] sm:$0xff] %v9214
                  %v9216 = vld [vmem:[%s9146 + $0x110] sm:$0xff]
                  %9217 = vst [vmem:[%s9147 + $0x210] sm:$0xff] %v9216
                  %v9218 = vld [vmem:[%s9146 + $0x118] sm:$0xff]
                  %9219 = vst [vmem:[%s9147 + $0x218] sm:$0xff] %v9218
                  %v9220 = vld [vmem:[%s9146 + $0x120] sm:$0xff]
                  %9221 = vst [vmem:[%s9147 + $0x220] sm:$0xff] %v9220
                  %v9222 = vld [vmem:[%s9146 + $0x128] sm:$0xff]
                  %9223 = vst [vmem:[%s9147 + $0x228] sm:$0xff] %v9222
                  %v9224 = vld [vmem:[%s9146 + $0x130] sm:$0xff]
                  %9225 = vst [vmem:[%s9147 + $0x230] sm:$0xff] %v9224
                  %v9226 = vld [vmem:[%s9146 + $0x138] sm:$0xff]
                  %9227 = vst [vmem:[%s9147 + $0x238] sm:$0xff] %v9226
                  %v9228 = vld [vmem:[%s9146 + $0x140] sm:$0xff]
                  %9229 = vst [vmem:[%s9147 + $0x240] sm:$0xff] %v9228
                  %v9230 = vld [vmem:[%s9146 + $0x148] sm:$0xff]
                  %9231 = vst [vmem:[%s9147 + $0x248] sm:$0xff] %v9230
                  %v9232 = vld [vmem:[%s9146 + $0x150] sm:$0xff]
                  %9233 = vst [vmem:[%s9147 + $0x250] sm:$0xff] %v9232
                  %v9234 = vld [vmem:[%s9146 + $0x158] sm:$0xff]
                  %9235 = vst [vmem:[%s9147 + $0x258] sm:$0xff] %v9234
                  %v9236 = vld [vmem:[%s9146 + $0x160] sm:$0xff]
                  %9237 = vst [vmem:[%s9147 + $0x260] sm:$0xff] %v9236
                  %v9238 = vld [vmem:[%s9146 + $0x168] sm:$0xff]
                  %9239 = vst [vmem:[%s9147 + $0x268] sm:$0xff] %v9238
                  %v9240 = vld [vmem:[%s9146 + $0x170] sm:$0xff]
                  %9241 = vst [vmem:[%s9147 + $0x270] sm:$0xff] %v9240
                  %v9242 = vld [vmem:[%s9146 + $0x178] sm:$0xff]
                  %9243 = vst [vmem:[%s9147 + $0x278] sm:$0xff] %v9242
                  %v9244 = vld [vmem:[%s9146 + $0x180] sm:$0xff]
                  %9245 = vst [vmem:[%s9147 + $0x300] sm:$0xff] %v9244
                  %v9246 = vld [vmem:[%s9146 + $0x188] sm:$0xff]
                  %9247 = vst [vmem:[%s9147 + $0x308] sm:$0xff] %v9246
                  %v9248 = vld [vmem:[%s9146 + $0x190] sm:$0xff]
                  %9249 = vst [vmem:[%s9147 + $0x310] sm:$0xff] %v9248
                  %v9250 = vld [vmem:[%s9146 + $0x198] sm:$0xff]
                  %9251 = vst [vmem:[%s9147 + $0x318] sm:$0xff] %v9250
                  %v9252 = vld [vmem:[%s9146 + $0x1a0] sm:$0xff]
                  %9253 = vst [vmem:[%s9147 + $0x320] sm:$0xff] %v9252
                  %v9254 = vld [vmem:[%s9146 + $0x1a8] sm:$0xff]
                  %9255 = vst [vmem:[%s9147 + $0x328] sm:$0xff] %v9254
                  %v9256 = vld [vmem:[%s9146 + $0x1b0] sm:$0xff]
                  %9257 = vst [vmem:[%s9147 + $0x330] sm:$0xff] %v9256
                  %v9258 = vld [vmem:[%s9146 + $0x1b8] sm:$0xff]
                  %9259 = vst [vmem:[%s9147 + $0x338] sm:$0xff] %v9258
                  %v9260 = vld [vmem:[%s9146 + $0x1c0] sm:$0xff]
                  %9261 = vst [vmem:[%s9147 + $0x340] sm:$0xff] %v9260
                  %v9262 = vld [vmem:[%s9146 + $0x1c8] sm:$0xff]
                  %9263 = vst [vmem:[%s9147 + $0x348] sm:$0xff] %v9262
                  %v9264 = vld [vmem:[%s9146 + $0x1d0] sm:$0xff]
                  %9265 = vst [vmem:[%s9147 + $0x350] sm:$0xff] %v9264
                  %v9266 = vld [vmem:[%s9146 + $0x1d8] sm:$0xff]
                  %9267 = vst [vmem:[%s9147 + $0x358] sm:$0xff] %v9266
                  %v9268 = vld [vmem:[%s9146 + $0x1e0] sm:$0xff]
                  %9269 = vst [vmem:[%s9147 + $0x360] sm:$0xff] %v9268
                  %v9270 = vld [vmem:[%s9146 + $0x1e8] sm:$0xff]
                  %9271 = vst [vmem:[%s9147 + $0x368] sm:$0xff] %v9270
                  %v9272 = vld [vmem:[%s9146 + $0x1f0] sm:$0xff]
                  %9273 = vst [vmem:[%s9147 + $0x370] sm:$0xff] %v9272
                  %v9274 = vld [vmem:[%s9146 + $0x1f8] sm:$0xff]
                  %9275 = vst [vmem:[%s9147 + $0x378] sm:$0xff] %v9274
                  %v9276 = vld [vmem:[%s9146 + $0x200] sm:$0xff]
                  %9277 = vst [vmem:[%s9147 + $0x400] sm:$0xff] %v9276
                  %v9278 = vld [vmem:[%s9146 + $0x208] sm:$0xff]
                  %9279 = vst [vmem:[%s9147 + $0x408] sm:$0xff] %v9278
                  %v9280 = vld [vmem:[%s9146 + $0x210] sm:$0xff]
                  %9281 = vst [vmem:[%s9147 + $0x410] sm:$0xff] %v9280
                  %v9282 = vld [vmem:[%s9146 + $0x218] sm:$0xff]
                  %9283 = vst [vmem:[%s9147 + $0x418] sm:$0xff] %v9282
                  %v9284 = vld [vmem:[%s9146 + $0x220] sm:$0xff]
                  %9285 = vst [vmem:[%s9147 + $0x420] sm:$0xff] %v9284
                  %v9286 = vld [vmem:[%s9146 + $0x228] sm:$0xff]
                  %9287 = vst [vmem:[%s9147 + $0x428] sm:$0xff] %v9286
                  %v9288 = vld [vmem:[%s9146 + $0x230] sm:$0xff]
                  %9289 = vst [vmem:[%s9147 + $0x430] sm:$0xff] %v9288
                  %v9290 = vld [vmem:[%s9146 + $0x238] sm:$0xff]
                  %9291 = vst [vmem:[%s9147 + $0x438] sm:$0xff] %v9290
                  %v9292 = vld [vmem:[%s9146 + $0x240] sm:$0xff]
                  %9293 = vst [vmem:[%s9147 + $0x440] sm:$0xff] %v9292
                  %v9294 = vld [vmem:[%s9146 + $0x248] sm:$0xff]
                  %9295 = vst [vmem:[%s9147 + $0x448] sm:$0xff] %v9294
                  %v9296 = vld [vmem:[%s9146 + $0x250] sm:$0xff]
                  %9297 = vst [vmem:[%s9147 + $0x450] sm:$0xff] %v9296
                  %v9298 = vld [vmem:[%s9146 + $0x258] sm:$0xff]
                  %9299 = vst [vmem:[%s9147 + $0x458] sm:$0xff] %v9298
                  %v9300 = vld [vmem:[%s9146 + $0x260] sm:$0xff]
                  %9301 = vst [vmem:[%s9147 + $0x460] sm:$0xff] %v9300
                  %v9302 = vld [vmem:[%s9146 + $0x268] sm:$0xff]
                  %9303 = vst [vmem:[%s9147 + $0x468] sm:$0xff] %v9302
                  %v9304 = vld [vmem:[%s9146 + $0x270] sm:$0xff]
                  %9305 = vst [vmem:[%s9147 + $0x470] sm:$0xff] %v9304
                  %v9306 = vld [vmem:[%s9146 + $0x278] sm:$0xff]
                  %9307 = vst [vmem:[%s9147 + $0x478] sm:$0xff] %v9306
                  %v9308 = vld [vmem:[%s9146 + $0x280] sm:$0xff]
                  %9309 = vst [vmem:[%s9147 + $0x500] sm:$0xff] %v9308
                  %v9310 = vld [vmem:[%s9146 + $0x288] sm:$0xff]
                  %9311 = vst [vmem:[%s9147 + $0x508] sm:$0xff] %v9310
                  %v9312 = vld [vmem:[%s9146 + $0x290] sm:$0xff]
                  %9313 = vst [vmem:[%s9147 + $0x510] sm:$0xff] %v9312
                  %v9314 = vld [vmem:[%s9146 + $0x298] sm:$0xff]
                  %9315 = vst [vmem:[%s9147 + $0x518] sm:$0xff] %v9314
                  %v9316 = vld [vmem:[%s9146 + $0x2a0] sm:$0xff]
                  %9317 = vst [vmem:[%s9147 + $0x520] sm:$0xff] %v9316
                  %v9318 = vld [vmem:[%s9146 + $0x2a8] sm:$0xff]
                  %9319 = vst [vmem:[%s9147 + $0x528] sm:$0xff] %v9318
                  %v9320 = vld [vmem:[%s9146 + $0x2b0] sm:$0xff]
                  %9321 = vst [vmem:[%s9147 + $0x530] sm:$0xff] %v9320
                  %v9322 = vld [vmem:[%s9146 + $0x2b8] sm:$0xff]
                  %9323 = vst [vmem:[%s9147 + $0x538] sm:$0xff] %v9322
                  %v9324 = vld [vmem:[%s9146 + $0x2c0] sm:$0xff]
                  %9325 = vst [vmem:[%s9147 + $0x540] sm:$0xff] %v9324
                  %v9326 = vld [vmem:[%s9146 + $0x2c8] sm:$0xff]
                  %9327 = vst [vmem:[%s9147 + $0x548] sm:$0xff] %v9326
                  %v9328 = vld [vmem:[%s9146 + $0x2d0] sm:$0xff]
                  %9329 = vst [vmem:[%s9147 + $0x550] sm:$0xff] %v9328
                  %v9330 = vld [vmem:[%s9146 + $0x2d8] sm:$0xff]
                  %9331 = vst [vmem:[%s9147 + $0x558] sm:$0xff] %v9330
                  %v9332 = vld [vmem:[%s9146 + $0x2e0] sm:$0xff]
                  %9333 = vst [vmem:[%s9147 + $0x560] sm:$0xff] %v9332
                  %v9334 = vld [vmem:[%s9146 + $0x2e8] sm:$0xff]
                  %9335 = vst [vmem:[%s9147 + $0x568] sm:$0xff] %v9334
                  %v9336 = vld [vmem:[%s9146 + $0x2f0] sm:$0xff]
                  %9337 = vst [vmem:[%s9147 + $0x570] sm:$0xff] %v9336
                  %v9338 = vld [vmem:[%s9146 + $0x2f8] sm:$0xff]
                  %9339 = vst [vmem:[%s9147 + $0x578] sm:$0xff] %v9338
                  %v9340 = vld [vmem:[%s9146 + $0x300] sm:$0xff]
                  %9341 = vst [vmem:[%s9147 + $0x600] sm:$0xff] %v9340
                  %v9342 = vld [vmem:[%s9146 + $0x308] sm:$0xff]
                  %9343 = vst [vmem:[%s9147 + $0x608] sm:$0xff] %v9342
                  %v9344 = vld [vmem:[%s9146 + $0x310] sm:$0xff]
                  %9345 = vst [vmem:[%s9147 + $0x610] sm:$0xff] %v9344
                  %v9346 = vld [vmem:[%s9146 + $0x318] sm:$0xff]
                  %9347 = vst [vmem:[%s9147 + $0x618] sm:$0xff] %v9346
                  %v9348 = vld [vmem:[%s9146 + $0x320] sm:$0xff]
                  %9349 = vst [vmem:[%s9147 + $0x620] sm:$0xff] %v9348
                  %v9350 = vld [vmem:[%s9146 + $0x328] sm:$0xff]
                  %9351 = vst [vmem:[%s9147 + $0x628] sm:$0xff] %v9350
                  %v9352 = vld [vmem:[%s9146 + $0x330] sm:$0xff]
                  %9353 = vst [vmem:[%s9147 + $0x630] sm:$0xff] %v9352
                  %v9354 = vld [vmem:[%s9146 + $0x338] sm:$0xff]
                  %9355 = vst [vmem:[%s9147 + $0x638] sm:$0xff] %v9354
                  %v9356 = vld [vmem:[%s9146 + $0x340] sm:$0xff]
                  %9357 = vst [vmem:[%s9147 + $0x640] sm:$0xff] %v9356
                  %v9358 = vld [vmem:[%s9146 + $0x348] sm:$0xff]
                  %9359 = vst [vmem:[%s9147 + $0x648] sm:$0xff] %v9358
                  %v9360 = vld [vmem:[%s9146 + $0x350] sm:$0xff]
                  %9361 = vst [vmem:[%s9147 + $0x650] sm:$0xff] %v9360
                  %v9362 = vld [vmem:[%s9146 + $0x358] sm:$0xff]
                  %9363 = vst [vmem:[%s9147 + $0x658] sm:$0xff] %v9362
                  %v9364 = vld [vmem:[%s9146 + $0x360] sm:$0xff]
                  %9365 = vst [vmem:[%s9147 + $0x660] sm:$0xff] %v9364
                  %v9366 = vld [vmem:[%s9146 + $0x368] sm:$0xff]
                  %9367 = vst [vmem:[%s9147 + $0x668] sm:$0xff] %v9366
                  %v9368 = vld [vmem:[%s9146 + $0x370] sm:$0xff]
                  %9369 = vst [vmem:[%s9147 + $0x670] sm:$0xff] %v9368
                  %v9370 = vld [vmem:[%s9146 + $0x378] sm:$0xff]
                  %9371 = vst [vmem:[%s9147 + $0x678] sm:$0xff] %v9370
                  %v9372 = vld [vmem:[%s9146 + $0x380] sm:$0xff]
                  %9373 = vst [vmem:[%s9147 + $0x700] sm:$0xff] %v9372
                  %v9374 = vld [vmem:[%s9146 + $0x388] sm:$0xff]
                  %9375 = vst [vmem:[%s9147 + $0x708] sm:$0xff] %v9374
                  %v9376 = vld [vmem:[%s9146 + $0x390] sm:$0xff]
                  %9377 = vst [vmem:[%s9147 + $0x710] sm:$0xff] %v9376
                  %v9378 = vld [vmem:[%s9146 + $0x398] sm:$0xff]
                  %9379 = vst [vmem:[%s9147 + $0x718] sm:$0xff] %v9378
                  %v9380 = vld [vmem:[%s9146 + $0x3a0] sm:$0xff]
                  %9381 = vst [vmem:[%s9147 + $0x720] sm:$0xff] %v9380
                  %v9382 = vld [vmem:[%s9146 + $0x3a8] sm:$0xff]
                  %9383 = vst [vmem:[%s9147 + $0x728] sm:$0xff] %v9382
                  %v9384 = vld [vmem:[%s9146 + $0x3b0] sm:$0xff]
                  %9385 = vst [vmem:[%s9147 + $0x730] sm:$0xff] %v9384
                  %v9386 = vld [vmem:[%s9146 + $0x3b8] sm:$0xff]
                  %9387 = vst [vmem:[%s9147 + $0x738] sm:$0xff] %v9386
                  %v9388 = vld [vmem:[%s9146 + $0x3c0] sm:$0xff]
                  %9389 = vst [vmem:[%s9147 + $0x740] sm:$0xff] %v9388
                  %v9390 = vld [vmem:[%s9146 + $0x3c8] sm:$0xff]
                  %9391 = vst [vmem:[%s9147 + $0x748] sm:$0xff] %v9390
                  %v9392 = vld [vmem:[%s9146 + $0x3d0] sm:$0xff]
                  %9393 = vst [vmem:[%s9147 + $0x750] sm:$0xff] %v9392
                  %v9394 = vld [vmem:[%s9146 + $0x3d8] sm:$0xff]
                  %9395 = vst [vmem:[%s9147 + $0x758] sm:$0xff] %v9394
                  %v9396 = vld [vmem:[%s9146 + $0x3e0] sm:$0xff]
                  %9397 = vst [vmem:[%s9147 + $0x760] sm:$0xff] %v9396
                  %v9398 = vld [vmem:[%s9146 + $0x3e8] sm:$0xff]
                  %9399 = vst [vmem:[%s9147 + $0x768] sm:$0xff] %v9398
                  %v9400 = vld [vmem:[%s9146 + $0x3f0] sm:$0xff]
                  %9401 = vst [vmem:[%s9147 + $0x770] sm:$0xff] %v9400
                  %v9402 = vld [vmem:[%s9146 + $0x3f8] sm:$0xff]
                  %9403 = vst [vmem:[%s9147 + $0x778] sm:$0xff] %v9402
                $region129: #{tpu_custom_call.1} parent=123 // loop_footer
                  %s9145 = sadd.s32 1, %s9141
                $region130: #{tpu_custom_call.1} parent=123 // loop_footer_branch
                  %9140 = sbr.rel target = $region126
                $region131: #{tpu_custom_call.1} parent=123 // loop_exit
                  _
              $region124: #{tpu_custom_call.1} parent=108 // pred_fallthru
                _
              // Predicated region
              $region132: #{tpu_custom_call.1} parent=108 // pred_check
                _
              $region133: #{tpu_custom_call.1} parent=108 // pred_check_branch
                %9405 = sbr.rel target = $region135
              $region134: #{tpu_custom_call.1} parent=108 // pred_region
                _
              $region135: #{tpu_custom_call.1} parent=108 // pred_fallthru
                _
            $region109: #{tpu_custom_call.1} parent=104 // pred_fallthru
              _
            // Predicated region
            $region110: #{tpu_custom_call.1} parent=104 // pred_check
              _
            $region111: #{tpu_custom_call.1} parent=104 // pred_check_branch
              %8872 = sbr.rel target = $region113
            $region112: #{tpu_custom_call.1} parent=104 // pred_region
              loop: start=0, step=1, limit=1
              $region114: #{tpu_custom_call.1} parent=112 // loop_pre_header
                _
              $region115: #{tpu_custom_call.1} parent=112 // loop_header
                %s8875 = sphi 0, %s8879
                %p8876 = scmp.ge.s32.totalorder %s8875, 1
                %s8880 = sphi %s8852, %s8852
                %s8881 = sphi %s8866, %s8866
              $region116: #{tpu_custom_call.1} parent=112 // loop_header_branch
                %8878 = sbr.rel (%p8876) target = $region120
              $region117: #{tpu_custom_call.1} parent=112 // loop_body
                %v8882 = vld [vmem:[%s8880] sm:$0xff]
                %8883 = vst [vmem:[%s8881] sm:$0xff] %v8882
                %v8884 = vld [vmem:[%s8880 + $0x8] sm:$0xff]
                %8885 = vst [vmem:[%s8881 + $0x8] sm:$0xff] %v8884
                %v8886 = vld [vmem:[%s8880 + $0x10] sm:$0xff]
                %8887 = vst [vmem:[%s8881 + $0x10] sm:$0xff] %v8886
                %v8888 = vld [vmem:[%s8880 + $0x18] sm:$0xff]
                %8889 = vst [vmem:[%s8881 + $0x18] sm:$0xff] %v8888
                %v8890 = vld [vmem:[%s8880 + $0x20] sm:$0xff]
                %8891 = vst [vmem:[%s8881 + $0x20] sm:$0xff] %v8890
                %v8892 = vld [vmem:[%s8880 + $0x28] sm:$0xff]
                %8893 = vst [vmem:[%s8881 + $0x28] sm:$0xff] %v8892
                %v8894 = vld [vmem:[%s8880 + $0x30] sm:$0xff]
                %8895 = vst [vmem:[%s8881 + $0x30] sm:$0xff] %v8894
                %v8896 = vld [vmem:[%s8880 + $0x38] sm:$0xff]
                %8897 = vst [vmem:[%s8881 + $0x38] sm:$0xff] %v8896
                %v8898 = vld [vmem:[%s8880 + $0x40] sm:$0xff]
                %8899 = vst [vmem:[%s8881 + $0x40] sm:$0xff] %v8898
                %v8900 = vld [vmem:[%s8880 + $0x48] sm:$0xff]
                %8901 = vst [vmem:[%s8881 + $0x48] sm:$0xff] %v8900
                %v8902 = vld [vmem:[%s8880 + $0x50] sm:$0xff]
                %8903 = vst [vmem:[%s8881 + $0x50] sm:$0xff] %v8902
                %v8904 = vld [vmem:[%s8880 + $0x58] sm:$0xff]
                %8905 = vst [vmem:[%s8881 + $0x58] sm:$0xff] %v8904
                %v8906 = vld [vmem:[%s8880 + $0x60] sm:$0xff]
                %8907 = vst [vmem:[%s8881 + $0x60] sm:$0xff] %v8906
                %v8908 = vld [vmem:[%s8880 + $0x68] sm:$0xff]
                %8909 = vst [vmem:[%s8881 + $0x68] sm:$0xff] %v8908
                %v8910 = vld [vmem:[%s8880 + $0x70] sm:$0xff]
                %8911 = vst [vmem:[%s8881 + $0x70] sm:$0xff] %v8910
                %v8912 = vld [vmem:[%s8880 + $0x78] sm:$0xff]
                %8913 = vst [vmem:[%s8881 + $0x78] sm:$0xff] %v8912
                %v8914 = vld [vmem:[%s8880 + $0x80] sm:$0xff]
                %8915 = vst [vmem:[%s8881 + $0x100] sm:$0xff] %v8914
                %v8916 = vld [vmem:[%s8880 + $0x88] sm:$0xff]
                %8917 = vst [vmem:[%s8881 + $0x108] sm:$0xff] %v8916
                %v8918 = vld [vmem:[%s8880 + $0x90] sm:$0xff]
                %8919 = vst [vmem:[%s8881 + $0x110] sm:$0xff] %v8918
                %v8920 = vld [vmem:[%s8880 + $0x98] sm:$0xff]
                %8921 = vst [vmem:[%s8881 + $0x118] sm:$0xff] %v8920
                %v8922 = vld [vmem:[%s8880 + $0xa0] sm:$0xff]
                %8923 = vst [vmem:[%s8881 + $0x120] sm:$0xff] %v8922
                %v8924 = vld [vmem:[%s8880 + $0xa8] sm:$0xff]
                %8925 = vst [vmem:[%s8881 + $0x128] sm:$0xff] %v8924
                %v8926 = vld [vmem:[%s8880 + $0xb0] sm:$0xff]
                %8927 = vst [vmem:[%s8881 + $0x130] sm:$0xff] %v8926
                %v8928 = vld [vmem:[%s8880 + $0xb8] sm:$0xff]
                %8929 = vst [vmem:[%s8881 + $0x138] sm:$0xff] %v8928
                %v8930 = vld [vmem:[%s8880 + $0xc0] sm:$0xff]
                %8931 = vst [vmem:[%s8881 + $0x140] sm:$0xff] %v8930
                %v8932 = vld [vmem:[%s8880 + $0xc8] sm:$0xff]
                %8933 = vst [vmem:[%s8881 + $0x148] sm:$0xff] %v8932
                %v8934 = vld [vmem:[%s8880 + $0xd0] sm:$0xff]
                %8935 = vst [vmem:[%s8881 + $0x150] sm:$0xff] %v8934
                %v8936 = vld [vmem:[%s8880 + $0xd8] sm:$0xff]
                %8937 = vst [vmem:[%s8881 + $0x158] sm:$0xff] %v8936
                %v8938 = vld [vmem:[%s8880 + $0xe0] sm:$0xff]
                %8939 = vst [vmem:[%s8881 + $0x160] sm:$0xff] %v8938
                %v8940 = vld [vmem:[%s8880 + $0xe8] sm:$0xff]
                %8941 = vst [vmem:[%s8881 + $0x168] sm:$0xff] %v8940
                %v8942 = vld [vmem:[%s8880 + $0xf0] sm:$0xff]
                %8943 = vst [vmem:[%s8881 + $0x170] sm:$0xff] %v8942
                %v8944 = vld [vmem:[%s8880 + $0xf8] sm:$0xff]
                %8945 = vst [vmem:[%s8881 + $0x178] sm:$0xff] %v8944
                %v8946 = vld [vmem:[%s8880 + $0x100] sm:$0xff]
                %8947 = vst [vmem:[%s8881 + $0x200] sm:$0xff] %v8946
                %v8948 = vld [vmem:[%s8880 + $0x108] sm:$0xff]
                %8949 = vst [vmem:[%s8881 + $0x208] sm:$0xff] %v8948
                %v8950 = vld [vmem:[%s8880 + $0x110] sm:$0xff]
                %8951 = vst [vmem:[%s8881 + $0x210] sm:$0xff] %v8950
                %v8952 = vld [vmem:[%s8880 + $0x118] sm:$0xff]
                %8953 = vst [vmem:[%s8881 + $0x218] sm:$0xff] %v8952
                %v8954 = vld [vmem:[%s8880 + $0x120] sm:$0xff]
                %8955 = vst [vmem:[%s8881 + $0x220] sm:$0xff] %v8954
                %v8956 = vld [vmem:[%s8880 + $0x128] sm:$0xff]
                %8957 = vst [vmem:[%s8881 + $0x228] sm:$0xff] %v8956
                %v8958 = vld [vmem:[%s8880 + $0x130] sm:$0xff]
                %8959 = vst [vmem:[%s8881 + $0x230] sm:$0xff] %v8958
                %v8960 = vld [vmem:[%s8880 + $0x138] sm:$0xff]
                %8961 = vst [vmem:[%s8881 + $0x238] sm:$0xff] %v8960
                %v8962 = vld [vmem:[%s8880 + $0x140] sm:$0xff]
                %8963 = vst [vmem:[%s8881 + $0x240] sm:$0xff] %v8962
                %v8964 = vld [vmem:[%s8880 + $0x148] sm:$0xff]
                %8965 = vst [vmem:[%s8881 + $0x248] sm:$0xff] %v8964
                %v8966 = vld [vmem:[%s8880 + $0x150] sm:$0xff]
                %8967 = vst [vmem:[%s8881 + $0x250] sm:$0xff] %v8966
                %v8968 = vld [vmem:[%s8880 + $0x158] sm:$0xff]
                %8969 = vst [vmem:[%s8881 + $0x258] sm:$0xff] %v8968
                %v8970 = vld [vmem:[%s8880 + $0x160] sm:$0xff]
                %8971 = vst [vmem:[%s8881 + $0x260] sm:$0xff] %v8970
                %v8972 = vld [vmem:[%s8880 + $0x168] sm:$0xff]
                %8973 = vst [vmem:[%s8881 + $0x268] sm:$0xff] %v8972
                %v8974 = vld [vmem:[%s8880 + $0x170] sm:$0xff]
                %8975 = vst [vmem:[%s8881 + $0x270] sm:$0xff] %v8974
                %v8976 = vld [vmem:[%s8880 + $0x178] sm:$0xff]
                %8977 = vst [vmem:[%s8881 + $0x278] sm:$0xff] %v8976
                %v8978 = vld [vmem:[%s8880 + $0x180] sm:$0xff]
                %8979 = vst [vmem:[%s8881 + $0x300] sm:$0xff] %v8978
                %v8980 = vld [vmem:[%s8880 + $0x188] sm:$0xff]
                %8981 = vst [vmem:[%s8881 + $0x308] sm:$0xff] %v8980
                %v8982 = vld [vmem:[%s8880 + $0x190] sm:$0xff]
                %8983 = vst [vmem:[%s8881 + $0x310] sm:$0xff] %v8982
                %v8984 = vld [vmem:[%s8880 + $0x198] sm:$0xff]
                %8985 = vst [vmem:[%s8881 + $0x318] sm:$0xff] %v8984
                %v8986 = vld [vmem:[%s8880 + $0x1a0] sm:$0xff]
                %8987 = vst [vmem:[%s8881 + $0x320] sm:$0xff] %v8986
                %v8988 = vld [vmem:[%s8880 + $0x1a8] sm:$0xff]
                %8989 = vst [vmem:[%s8881 + $0x328] sm:$0xff] %v8988
                %v8990 = vld [vmem:[%s8880 + $0x1b0] sm:$0xff]
                %8991 = vst [vmem:[%s8881 + $0x330] sm:$0xff] %v8990
                %v8992 = vld [vmem:[%s8880 + $0x1b8] sm:$0xff]
                %8993 = vst [vmem:[%s8881 + $0x338] sm:$0xff] %v8992
                %v8994 = vld [vmem:[%s8880 + $0x1c0] sm:$0xff]
                %8995 = vst [vmem:[%s8881 + $0x340] sm:$0xff] %v8994
                %v8996 = vld [vmem:[%s8880 + $0x1c8] sm:$0xff]
                %8997 = vst [vmem:[%s8881 + $0x348] sm:$0xff] %v8996
                %v8998 = vld [vmem:[%s8880 + $0x1d0] sm:$0xff]
                %8999 = vst [vmem:[%s8881 + $0x350] sm:$0xff] %v8998
                %v9000 = vld [vmem:[%s8880 + $0x1d8] sm:$0xff]
                %9001 = vst [vmem:[%s8881 + $0x358] sm:$0xff] %v9000
                %v9002 = vld [vmem:[%s8880 + $0x1e0] sm:$0xff]
                %9003 = vst [vmem:[%s8881 + $0x360] sm:$0xff] %v9002
                %v9004 = vld [vmem:[%s8880 + $0x1e8] sm:$0xff]
                %9005 = vst [vmem:[%s8881 + $0x368] sm:$0xff] %v9004
                %v9006 = vld [vmem:[%s8880 + $0x1f0] sm:$0xff]
                %9007 = vst [vmem:[%s8881 + $0x370] sm:$0xff] %v9006
                %v9008 = vld [vmem:[%s8880 + $0x1f8] sm:$0xff]
                %9009 = vst [vmem:[%s8881 + $0x378] sm:$0xff] %v9008
                %v9010 = vld [vmem:[%s8880 + $0x200] sm:$0xff]
                %9011 = vst [vmem:[%s8881 + $0x400] sm:$0xff] %v9010
                %v9012 = vld [vmem:[%s8880 + $0x208] sm:$0xff]
                %9013 = vst [vmem:[%s8881 + $0x408] sm:$0xff] %v9012
                %v9014 = vld [vmem:[%s8880 + $0x210] sm:$0xff]
                %9015 = vst [vmem:[%s8881 + $0x410] sm:$0xff] %v9014
                %v9016 = vld [vmem:[%s8880 + $0x218] sm:$0xff]
                %9017 = vst [vmem:[%s8881 + $0x418] sm:$0xff] %v9016
                %v9018 = vld [vmem:[%s8880 + $0x220] sm:$0xff]
                %9019 = vst [vmem:[%s8881 + $0x420] sm:$0xff] %v9018
                %v9020 = vld [vmem:[%s8880 + $0x228] sm:$0xff]
                %9021 = vst [vmem:[%s8881 + $0x428] sm:$0xff] %v9020
                %v9022 = vld [vmem:[%s8880 + $0x230] sm:$0xff]
                %9023 = vst [vmem:[%s8881 + $0x430] sm:$0xff] %v9022
                %v9024 = vld [vmem:[%s8880 + $0x238] sm:$0xff]
                %9025 = vst [vmem:[%s8881 + $0x438] sm:$0xff] %v9024
                %v9026 = vld [vmem:[%s8880 + $0x240] sm:$0xff]
                %9027 = vst [vmem:[%s8881 + $0x440] sm:$0xff] %v9026
                %v9028 = vld [vmem:[%s8880 + $0x248] sm:$0xff]
                %9029 = vst [vmem:[%s8881 + $0x448] sm:$0xff] %v9028
                %v9030 = vld [vmem:[%s8880 + $0x250] sm:$0xff]
                %9031 = vst [vmem:[%s8881 + $0x450] sm:$0xff] %v9030
                %v9032 = vld [vmem:[%s8880 + $0x258] sm:$0xff]
                %9033 = vst [vmem:[%s8881 + $0x458] sm:$0xff] %v9032
                %v9034 = vld [vmem:[%s8880 + $0x260] sm:$0xff]
                %9035 = vst [vmem:[%s8881 + $0x460] sm:$0xff] %v9034
                %v9036 = vld [vmem:[%s8880 + $0x268] sm:$0xff]
                %9037 = vst [vmem:[%s8881 + $0x468] sm:$0xff] %v9036
                %v9038 = vld [vmem:[%s8880 + $0x270] sm:$0xff]
                %9039 = vst [vmem:[%s8881 + $0x470] sm:$0xff] %v9038
                %v9040 = vld [vmem:[%s8880 + $0x278] sm:$0xff]
                %9041 = vst [vmem:[%s8881 + $0x478] sm:$0xff] %v9040
                %v9042 = vld [vmem:[%s8880 + $0x280] sm:$0xff]
                %9043 = vst [vmem:[%s8881 + $0x500] sm:$0xff] %v9042
                %v9044 = vld [vmem:[%s8880 + $0x288] sm:$0xff]
                %9045 = vst [vmem:[%s8881 + $0x508] sm:$0xff] %v9044
                %v9046 = vld [vmem:[%s8880 + $0x290] sm:$0xff]
                %9047 = vst [vmem:[%s8881 + $0x510] sm:$0xff] %v9046
                %v9048 = vld [vmem:[%s8880 + $0x298] sm:$0xff]
                %9049 = vst [vmem:[%s8881 + $0x518] sm:$0xff] %v9048
                %v9050 = vld [vmem:[%s8880 + $0x2a0] sm:$0xff]
                %9051 = vst [vmem:[%s8881 + $0x520] sm:$0xff] %v9050
                %v9052 = vld [vmem:[%s8880 + $0x2a8] sm:$0xff]
                %9053 = vst [vmem:[%s8881 + $0x528] sm:$0xff] %v9052
                %v9054 = vld [vmem:[%s8880 + $0x2b0] sm:$0xff]
                %9055 = vst [vmem:[%s8881 + $0x530] sm:$0xff] %v9054
                %v9056 = vld [vmem:[%s8880 + $0x2b8] sm:$0xff]
                %9057 = vst [vmem:[%s8881 + $0x538] sm:$0xff] %v9056
                %v9058 = vld [vmem:[%s8880 + $0x2c0] sm:$0xff]
                %9059 = vst [vmem:[%s8881 + $0x540] sm:$0xff] %v9058
                %v9060 = vld [vmem:[%s8880 + $0x2c8] sm:$0xff]
                %9061 = vst [vmem:[%s8881 + $0x548] sm:$0xff] %v9060
                %v9062 = vld [vmem:[%s8880 + $0x2d0] sm:$0xff]
                %9063 = vst [vmem:[%s8881 + $0x550] sm:$0xff] %v9062
                %v9064 = vld [vmem:[%s8880 + $0x2d8] sm:$0xff]
                %9065 = vst [vmem:[%s8881 + $0x558] sm:$0xff] %v9064
                %v9066 = vld [vmem:[%s8880 + $0x2e0] sm:$0xff]
                %9067 = vst [vmem:[%s8881 + $0x560] sm:$0xff] %v9066
                %v9068 = vld [vmem:[%s8880 + $0x2e8] sm:$0xff]
                %9069 = vst [vmem:[%s8881 + $0x568] sm:$0xff] %v9068
                %v9070 = vld [vmem:[%s8880 + $0x2f0] sm:$0xff]
                %9071 = vst [vmem:[%s8881 + $0x570] sm:$0xff] %v9070
                %v9072 = vld [vmem:[%s8880 + $0x2f8] sm:$0xff]
                %9073 = vst [vmem:[%s8881 + $0x578] sm:$0xff] %v9072
                %v9074 = vld [vmem:[%s8880 + $0x300] sm:$0xff]
                %9075 = vst [vmem:[%s8881 + $0x600] sm:$0xff] %v9074
                %v9076 = vld [vmem:[%s8880 + $0x308] sm:$0xff]
                %9077 = vst [vmem:[%s8881 + $0x608] sm:$0xff] %v9076
                %v9078 = vld [vmem:[%s8880 + $0x310] sm:$0xff]
                %9079 = vst [vmem:[%s8881 + $0x610] sm:$0xff] %v9078
                %v9080 = vld [vmem:[%s8880 + $0x318] sm:$0xff]
                %9081 = vst [vmem:[%s8881 + $0x618] sm:$0xff] %v9080
                %v9082 = vld [vmem:[%s8880 + $0x320] sm:$0xff]
                %9083 = vst [vmem:[%s8881 + $0x620] sm:$0xff] %v9082
                %v9084 = vld [vmem:[%s8880 + $0x328] sm:$0xff]
                %9085 = vst [vmem:[%s8881 + $0x628] sm:$0xff] %v9084
                %v9086 = vld [vmem:[%s8880 + $0x330] sm:$0xff]
                %9087 = vst [vmem:[%s8881 + $0x630] sm:$0xff] %v9086
                %v9088 = vld [vmem:[%s8880 + $0x338] sm:$0xff]
                %9089 = vst [vmem:[%s8881 + $0x638] sm:$0xff] %v9088
                %v9090 = vld [vmem:[%s8880 + $0x340] sm:$0xff]
                %9091 = vst [vmem:[%s8881 + $0x640] sm:$0xff] %v9090
                %v9092 = vld [vmem:[%s8880 + $0x348] sm:$0xff]
                %9093 = vst [vmem:[%s8881 + $0x648] sm:$0xff] %v9092
                %v9094 = vld [vmem:[%s8880 + $0x350] sm:$0xff]
                %9095 = vst [vmem:[%s8881 + $0x650] sm:$0xff] %v9094
                %v9096 = vld [vmem:[%s8880 + $0x358] sm:$0xff]
                %9097 = vst [vmem:[%s8881 + $0x658] sm:$0xff] %v9096
                %v9098 = vld [vmem:[%s8880 + $0x360] sm:$0xff]
                %9099 = vst [vmem:[%s8881 + $0x660] sm:$0xff] %v9098
                %v9100 = vld [vmem:[%s8880 + $0x368] sm:$0xff]
                %9101 = vst [vmem:[%s8881 + $0x668] sm:$0xff] %v9100
                %v9102 = vld [vmem:[%s8880 + $0x370] sm:$0xff]
                %9103 = vst [vmem:[%s8881 + $0x670] sm:$0xff] %v9102
                %v9104 = vld [vmem:[%s8880 + $0x378] sm:$0xff]
                %9105 = vst [vmem:[%s8881 + $0x678] sm:$0xff] %v9104
                %v9106 = vld [vmem:[%s8880 + $0x380] sm:$0xff]
                %9107 = vst [vmem:[%s8881 + $0x700] sm:$0xff] %v9106
                %v9108 = vld [vmem:[%s8880 + $0x388] sm:$0xff]
                %9109 = vst [vmem:[%s8881 + $0x708] sm:$0xff] %v9108
                %v9110 = vld [vmem:[%s8880 + $0x390] sm:$0xff]
                %9111 = vst [vmem:[%s8881 + $0x710] sm:$0xff] %v9110
                %v9112 = vld [vmem:[%s8880 + $0x398] sm:$0xff]
                %9113 = vst [vmem:[%s8881 + $0x718] sm:$0xff] %v9112
                %v9114 = vld [vmem:[%s8880 + $0x3a0] sm:$0xff]
                %9115 = vst [vmem:[%s8881 + $0x720] sm:$0xff] %v9114
                %v9116 = vld [vmem:[%s8880 + $0x3a8] sm:$0xff]
                %9117 = vst [vmem:[%s8881 + $0x728] sm:$0xff] %v9116
                %v9118 = vld [vmem:[%s8880 + $0x3b0] sm:$0xff]
                %9119 = vst [vmem:[%s8881 + $0x730] sm:$0xff] %v9118
                %v9120 = vld [vmem:[%s8880 + $0x3b8] sm:$0xff]
                %9121 = vst [vmem:[%s8881 + $0x738] sm:$0xff] %v9120
                %v9122 = vld [vmem:[%s8880 + $0x3c0] sm:$0xff]
                %9123 = vst [vmem:[%s8881 + $0x740] sm:$0xff] %v9122
                %v9124 = vld [vmem:[%s8880 + $0x3c8] sm:$0xff]
                %9125 = vst [vmem:[%s8881 + $0x748] sm:$0xff] %v9124
                %v9126 = vld [vmem:[%s8880 + $0x3d0] sm:$0xff]
                %9127 = vst [vmem:[%s8881 + $0x750] sm:$0xff] %v9126
                %v9128 = vld [vmem:[%s8880 + $0x3d8] sm:$0xff]
                %9129 = vst [vmem:[%s8881 + $0x758] sm:$0xff] %v9128
                %v9130 = vld [vmem:[%s8880 + $0x3e0] sm:$0xff]
                %9131 = vst [vmem:[%s8881 + $0x760] sm:$0xff] %v9130
                %v9132 = vld [vmem:[%s8880 + $0x3e8] sm:$0xff]
                %9133 = vst [vmem:[%s8881 + $0x768] sm:$0xff] %v9132
                %v9134 = vld [vmem:[%s8880 + $0x3f0] sm:$0xff]
                %9135 = vst [vmem:[%s8881 + $0x770] sm:$0xff] %v9134
                %v9136 = vld [vmem:[%s8880 + $0x3f8] sm:$0xff]
                %9137 = vst [vmem:[%s8881 + $0x778] sm:$0xff] %v9136
              $region118: #{tpu_custom_call.1} parent=112 // loop_footer
                %s8879 = sadd.s32 1, %s8875
              $region119: #{tpu_custom_call.1} parent=112 // loop_footer_branch
                %8874 = sbr.rel target = $region115
              $region120: #{tpu_custom_call.1} parent=112 // loop_exit
                _
            $region113: #{tpu_custom_call.1} parent=104 // pred_fallthru
              _
          $region105: #{tpu_custom_call.1} parent=100 // pred_fallthru
            _
          %9406 = vnop
        $region101: #{tpu_custom_call.1} parent=88 // pred_fallthru
          _
        // Predicated region
        $region136: #{tpu_custom_call.1} parent=88 // pred_check
          %p9407 = pneg %p188
        $region137: #{tpu_custom_call.1} parent=88 // pred_check_branch
          %9409 = sbr.rel (%p9407) target = $region139
        $region138: #{tpu_custom_call.1} parent=88 // pred_region
          #allocation8 [shape = 'u32[6]{0}', space=smem, size = 0x18, scoped, tag = 'DMA stride descriptor']
          %s9410 = smul.u32 8, %s24
          %s9411 = smul.u32 16, %s25
          %s9413 = ssub.s32 32768, 32768
          %9414 = vsyncadd %s8854, %s9413
          %s9415 = smul.addr %s9411, 2
          %s9416 = smul.addr %s9410, 64
          %s9417 = sadd.s32 %s9415, %s9416
          %s9418 = smul.addr %s9417, 128
          %s9419 = scalar_lea.hbm %s5, %s9418
          %s9421 = sshll.u32 1, 14
          %s9422 = sxor.u32 4294967295, %s9421
          %s9425 = sshll.u32 7, 18
          %s9426 = sxor.u32 4294967295, %s9425
          %s9427 = sand.u32 0, %s9426
          %s9429 = sor.u32 %s9427, 0
          %s9431 = sshll.u32 3, 24
          %s9432 = sxor.u32 4294967295, %s9431
          %s9433 = sand.u32 %s9429, %s9432
          %s9435 = sor.u32 %s9433, 0
          %s9436 = sshll.u32 %s8857, 4
          %s9437 = int_to_ptr.vmem [resolvable:$true] %s9436
          %9443 = sst [smem:[#allocation8]] 4096
          %s9444 = scalar_lea.smem [#allocation8], 1
          %9445 = sst [smem:[%s9444]] 8192
          %s9446 = scalar_lea.smem [#allocation8], 2
          %9447 = sst [smem:[%s9446]] 16
          %s9448 = scalar_lea.smem [#allocation8], 3
          %9449 = sst [smem:[%s9448]] 256
          %s9450 = scalar_lea.smem [#allocation8], 4
          %9451 = sst [smem:[%s9450]] 256
          %s9452 = scalar_lea.smem [#allocation8], 5
          %9453 = sst [smem:[%s9452]] 16
          %9455 = dma.general %s9437, 32768, %s9419, %s8854, [#allocation7], [#allocation8], %s9435, 0
        $region139: #{tpu_custom_call.1} parent=88 // pred_fallthru
          _
      $region89: #{tpu_custom_call.1} parent=5 // pred_fallthru
        _
      %p9456 = scmp.le.s32.totalorder 2, %s15
      // Predicated region
      $region140: #{tpu_custom_call.1} parent=5 // pred_check
        %p9457 = pneg %p9456
      $region141: #{tpu_custom_call.1} parent=5 // pred_check_branch
        %9459 = sbr.rel (%p9457) target = $region143
      $region142: #{tpu_custom_call.1} parent=5 // pred_region
        %s9460 = ssub.s32 %s15, 2
        // Predicated region
        $region144: #{tpu_custom_call.1} parent=142 // pred_check
          %p9461 = pneg %p166
        $region145: #{tpu_custom_call.1} parent=142 // pred_check_branch
          %9463 = sbr.rel (%p9461) target = $region147
        $region146: #{tpu_custom_call.1} parent=142 // pred_region
          %s9464 = sand.u32 %s151, 1
          %s9465 = sand.u32 %s151, 1
          %s9466 = smul.addr %s9465, 1024
          %s9467 = scalar_lea.vmem [#allocation4], %s9466
        $region147: #{tpu_custom_call.1} parent=142 // pred_fallthru
          _
        // Predicated region
        $region148: #{tpu_custom_call.1} parent=142 // pred_check
          %p9468 = pneg %p194
        $region149: #{tpu_custom_call.1} parent=142 // pred_check_branch
          %9470 = sbr.rel (%p9468) target = $region151
        $region150: #{tpu_custom_call.1} parent=142 // pred_region
          %s9471 = sand.u32 %s179, 1
          %s9472 = scalar_lea.sflag [#allocation6], %s9471
          %s9473 = sand.u32 %s179, 1
          %s9474 = smul.addr %s9473, 2048
          %s9475 = scalar_lea.vmem [#allocation5], %s9474
          %9476 = dma.done %s9472, 32768
        $region151: #{tpu_custom_call.1} parent=142 // pred_fallthru
          _
      $region143: #{tpu_custom_call.1} parent=5 // pred_fallthru
        _
    $region6: #{tpu_custom_call.1} parent=1 // loop_footer
      %s19 = sadd.s32 1, %s15
    $region7: #{tpu_custom_call.1} parent=1 // loop_footer_branch
      %14 = sbr.rel target = $region3
    $region8: #{tpu_custom_call.1} parent=1 // loop_exit
      _
    %9477 = vsyncpa [#allocation6], 1
    %s9478 = scalar_lea.sflag [#allocation6], 1
    %9479 = vsyncpa %s9478, 1

</llo_original>
